<compile_context>
chip_gen: v6e
topology: v6e:2x2x1
jax: 0.10.0
libtpu: 0.0.40
codegen_flags: <defaults>
</compile_context>

<pallas_src>
import functools

import jax
import jax.numpy as jnp
import numpy as np
from jax.experimental import pallas as pl
from jax.experimental.pallas import tpu as pltpu


def _lstm_aim_kernel(x_ref, wih_e_ref, b_e_ref, whh_e_ref, b_d_ref, bout_ref,
                     wdec_hbm_ref, whead_hbm_ref,
                     out_ref,
                     xproj_ref, dh_all_ref, wdec_vmem_ref, whead_vmem_ref,
                     dma_sem,
                     *, hid_dim, t_enc, t_dec, batch):
    """Encoder LSTM -> decoder LSTM -> fused per-step Linear(H, 1) heads."""
    H = hid_dim
    B = batch

    # ---- hide decoder / head weight DMA behind the encoder recurrence ----
    wdec_cp = pltpu.make_async_copy(wdec_hbm_ref, wdec_vmem_ref, dma_sem.at[0])
    whead_cp = pltpu.make_async_copy(whead_hbm_ref, whead_vmem_ref,
                                     dma_sem.at[1])
    wdec_cp.start()
    whead_cp.start()

    # ---- one-shot encoder input projection (off the recurrent chain) ----
    # [t_enc*B, D_pad] @ [D_pad, 4H] -> f32, bias folded in, stored bf16.
    xproj_ref[...] = (
        jnp.dot(x_ref[...], wih_e_ref[...], preferred_element_type=jnp.float32)
        + b_e_ref[...]).astype(jnp.bfloat16)

    # Gate order (i, f, o, g): one sigmoid over the first 3H columns, one tanh
    # over the last H -> 2 EUP pushes per recurrent step instead of 4.
    def gate_math(gates, c):
        sig = jax.nn.sigmoid(gates[:, 0:3 * H])
        g = jnp.tanh(gates[:, 3 * H:4 * H])
        i = sig[:, 0:H]
        f = sig[:, H:2 * H]
        o = sig[:, 2 * H:3 * H]
        c_new = f * c + i * g
        h_new = o * jnp.tanh(c_new)
        return h_new, c_new

    # ---- encoder recurrence: one h @ Whh matmul per step on the serial path ----
    h = jnp.zeros((B, H), jnp.float32)
    c = jnp.zeros((B, H), jnp.float32)
    for t in range(t_enc):
        gates = (xproj_ref[t * B:(t + 1) * B, :]
                 + jnp.dot(h.astype(jnp.bfloat16), whh_e_ref[...],
                           preferred_element_type=jnp.float32))
        h, c = gate_math(gates, c)

    # decoder weights must have landed before the first decoder matmul
    wdec_cp.wait()

    # ---- decoder: dec_in == dh every step, so Wih_d and Whh_d are pre-fused ----
    # (decoder_input is encoder h at step 0 and the previous decoder output
    #  afterwards; for a 1-layer LSTM both equal the decoder hidden state.)
    b_d = jnp.broadcast_to(b_d_ref[...], (B, 4 * H))   # hoisted out of the loop
    dh, dc = h, c
    for t in range(t_dec):
        gates = (jnp.dot(dh.astype(jnp.bfloat16), wdec_vmem_ref[...],
                         preferred_element_type=jnp.float32) + b_d)
        dh, dc = gate_math(gates, dc)
        dh_all_ref[:, t * H:(t + 1) * H] = dh.astype(jnp.bfloat16)

    whead_cp.wait()

    # ---- all per-step Linear(H, 1) heads as one block-diagonal matmul into a
    #      lane-dense (128-wide padded) output ----
    out_ref[...] = (
        jnp.dot(dh_all_ref[...], whead_vmem_ref[...],
                preferred_element_type=jnp.float32)
        + bout_ref[...])


def _prepare_input(x, *, num_prior_ticks, per_tick, d_pad=128):
    """Glue: cts.transform (identity), temporal reshape + non-temporal
    broadcast, concat, pad, and flatten to a time-major 2-D bf16 layout."""
    B = x.shape[0]
    num_temporal = num_prior_ticks * per_tick
    # TODO(synk): IOColumnTransformers.transform_columns is a dataset-specific
    # column scaling; treated as identity here (no cts available in-script).
    x_transformed = x
    x_temporal = x_transformed[:, :num_temporal].reshape(
        B, num_prior_ticks, per_tick)
    x_non_temporal = x_transformed[:, num_temporal:]
    x_non_temporal_dup = jnp.broadcast_to(
        x_non_temporal[:, None, :],
        (B, num_prior_ticks, x_non_temporal.shape[-1]))
    x_all = jnp.concatenate([x_temporal, x_non_temporal_dup], axis=2)

    d_in = x_all.shape[-1]
    # pad batch to a multiple of 16 so bf16 operands fill whole [16,128] vregs
    b_pad = max(16, ((B + 15) // 16) * 16)
    x_p = jnp.zeros((b_pad, num_prior_ticks, d_pad), jnp.float32)
    x_p = x_p.at[:B, :, :d_in].set(x_all)
    # time-major so each step's batch rows are contiguous sublanes
    x2d = jnp.transpose(x_p, (1, 0, 2)).reshape(num_prior_ticks * b_pad, d_pad)
    return x2d.astype(jnp.bfloat16), b_pad


def lstm_aim_forward(x, params, *, num_prior_ticks, per_tick, t_dec, hid_dim,
                     n_out_pad=128):
    B = x.shape[0]
    n_out = t_dec * per_tick
    x2d, b_pad = _prepare_input(
        x, num_prior_ticks=num_prior_ticks, per_tick=per_tick)
    wih_e, b_e, whh_e, w_dec, b_d, w_head, b_head = params
    assert w_head.shape[1] == n_out_pad and b_head.shape[1] == n_out_pad

    kernel = functools.partial(
        _lstm_aim_kernel, hid_dim=hid_dim, t_enc=num_prior_ticks,
        t_dec=t_dec, batch=b_pad)

    out_padded = pl.pallas_call(
        kernel,
        out_shape=jax.ShapeDtypeStruct((b_pad, n_out_pad), jnp.float32),
        grid=(1,),
        in_specs=[
            pl.BlockSpec(x2d.shape, lambda i: (0, 0)),
            pl.BlockSpec(wih_e.shape, lambda i: (0, 0)),
            pl.BlockSpec(b_e.shape, lambda i: (0, 0)),
            pl.BlockSpec(whh_e.shape, lambda i: (0, 0)),
            pl.BlockSpec(b_d.shape, lambda i: (0, 0)),
            pl.BlockSpec(b_head.shape, lambda i: (0, 0)),
            pl.BlockSpec(memory_space=pl.ANY),   # w_dec  (manual DMA)
            pl.BlockSpec(memory_space=pl.ANY),   # w_head (manual DMA)
        ],
        out_specs=pl.BlockSpec((b_pad, n_out_pad), lambda i: (0, 0)),
        scratch_shapes=[
            pltpu.VMEM((num_prior_ticks * b_pad, 4 * hid_dim), jnp.bfloat16),
            pltpu.VMEM((b_pad, t_dec * hid_dim), jnp.bfloat16),
            pltpu.VMEM(w_dec.shape, w_dec.dtype),
            pltpu.VMEM(w_head.shape, w_head.dtype),
            pltpu.SemaphoreType.DMA((2,)),
        ],
        compiler_params=pltpu.CompilerParams(
            dimension_semantics=("arbitrary",),
            vmem_limit_bytes=32 << 20),
    )(x2d, wih_e, b_e, whh_e, b_d, b_head, w_dec, w_head)

    out_transformed = out_padded[:B, :n_out]
    # TODO(synk): cts.untransform_columns is identity here (no cts available).
    out_untransformed = out_transformed
    # torch.stack([out_transformed, out_untransformed], dim=1) -> [B, 2, n_out]
    return jnp.stack([out_transformed, out_untransformed], axis=1)


# ----------------------------- references -----------------------------------

def _reference_bf16(x2d, params, *, hid_dim, t_enc, t_dec, b_pad):
    """Pure-JAX reference using the same fused algebra / bf16 rounding."""
    wih_e, b_e, whh_e, w_dec, b_d, w_head, b_head = params
    H = hid_dim

    xproj = (jnp.dot(x2d, wih_e, preferred_element_type=jnp.float32)
             + b_e).astype(jnp.bfloat16)

    def gate_math(gates, c):
        sig = jax.nn.sigmoid(gates[:, :3 * H])
        g = jnp.tanh(gates[:, 3 * H:])
        i, f, o = sig[:, :H], sig[:, H:2 * H], sig[:, 2 * H:3 * H]
        c = f * c + i * g
        h = o * jnp.tanh(c)
        return h, c

    h = jnp.zeros((b_pad, H), jnp.float32)
    c = jnp.zeros((b_pad, H), jnp.float32)
    for t in range(t_enc):
        gates = (xproj[t * b_pad:(t + 1) * b_pad].astype(jnp.float32)
                 + jnp.dot(h.astype(jnp.bfloat16), whh_e,
                           preferred_element_type=jnp.float32))
        h, c = gate_math(gates, c)
    dh, dc = h, c
    dhs = []
    for _ in range(t_dec):
        gates = (jnp.dot(dh.astype(jnp.bfloat16), w_dec,
                         preferred_element_type=jnp.float32) + b_d)
        dh, dc = gate_math(gates, dc)
        dhs.append(dh.astype(jnp.bfloat16))
    dh_all = jnp.concatenate(dhs, axis=1)
    return jnp.dot(dh_all, w_head, preferred_element_type=jnp.float32) + b_head


def _reference_f32(x, raw_params, *, num_prior_ticks, per_tick, t_dec, hid_dim):
    """Full-precision reference with the original (unfused) torch algebra."""
    (wih_e_raw, whh_e_raw, b_ih_e, b_hh_e,
     wih_d_raw, whh_d_raw, b_ih_d, b_hh_d, wout_raw, bout_raw) = raw_params
    H = hid_dim
    B = x.shape[0]
    num_temporal = num_prior_ticks * per_tick
    x_temporal = x[:, :num_temporal].reshape(B, num_prior_ticks, per_tick)
    x_non_temporal = x[:, num_temporal:]
    x_nt_dup = jnp.broadcast_to(
        x_non_temporal[:, None, :],
        (B, num_prior_ticks, x_non_temporal.shape[-1]))
    x_all = jnp.concatenate([x_temporal, x_nt_dup], axis=2)

    def step(x_t, h, c, wih, whh, b_ih, b_hh):
        gates = x_t @ wih.T + h @ whh.T + b_ih + b_hh
        i = jax.nn.sigmoid(gates[:, :H])
        f = jax.nn.sigmoid(gates[:, H:2 * H])
        g = jnp.tanh(gates[:, 2 * H:3 * H])
        o = jax.nn.sigmoid(gates[:, 3 * H:])
        c = f * c + i * g
        h = o * jnp.tanh(c)
        return h, c

    h = jnp.zeros((B, H), jnp.float32)
    c = jnp.zeros((B, H), jnp.float32)
    for t in range(num_prior_ticks):
        h, c = step(x_all[:, t, :], h, c, wih_e_raw, whh_e_raw, b_ih_e, b_hh_e)
    dec_in, dh, dc = h, h, c
    outs = []
    for t in range(t_dec):
        dh, dc = step(dec_in, dh, dc, wih_d_raw, whh_d_raw, b_ih_d, b_hh_d)
        for ci in range(per_tick):
            k = t * per_tick + ci
            outs.append(dh @ wout_raw[k][:, None] + bout_raw[k])
        dec_in = dh
    return jnp.concatenate(outs, axis=1)


if __name__ == "__main__":
    # Small shapes consistent with LSTMAimModel.__init__ / forward.
    B = 2
    HID = 256                     # internal_width
    NUM_PRIOR_TICKS = 8           # -PRIOR_TICKS
    PER_TICK = 4                  # input_temporal_data_per_tick
    NUM_CAT = 2                   # num_categorical_transformed_features
    NUM_NON_TEMP = 2              # num_input_non_temporal_floats
    CUR_TICK, FUTURE_TICKS = 1, 2
    T_DEC = CUR_TICK + FUTURE_TICKS
    NUM_TEMPORAL = NUM_PRIOR_TICKS * PER_TICK          # num_input_temporal_features
    F = NUM_TEMPORAL + NUM_CAT + NUM_NON_TEMP          # total input features
    D_IN = PER_TICK + NUM_CAT + NUM_NON_TEMP           # encoder per-tick input dim
    N_OUT = T_DEC * PER_TICK                           # number of Linear(256,1) heads
    N_OUT_PAD = 128                                    # lane-dense head output
    D_PAD = 128

    key = jax.random.PRNGKey(0)
    keys = jax.random.split(key, 12)
    bound = float(1.0 / np.sqrt(HID))

    def u(k, shape):
        return jax.random.uniform(k, shape, jnp.float32, -bound, bound)

    # Deterministic synthetic parameters (torch.nn.LSTM / Linear shapes).
    wih_e_raw = u(keys[0], (4 * HID, D_IN))
    whh_e_raw = u(keys[1], (4 * HID, HID))
    b_ih_e = u(keys[2], (4 * HID,))
    b_hh_e = u(keys[3], (4 * HID,))
    wih_d_raw = u(keys[4], (4 * HID, HID))
    whh_d_raw = u(keys[5], (4 * HID, HID))
    b_ih_d = u(keys[6], (4 * HID,))
    b_hh_d = u(keys[7], (4 * HID,))
    wout_raw = u(keys[8], (N_OUT, HID))   # N_OUT stacked Linear(256, 1) weights
    bout_raw = u(keys[9], (N_OUT,))
    raw_params = (wih_e_raw, whh_e_raw, b_ih_e, b_hh_e,
                  wih_d_raw, whh_d_raw, b_ih_d, b_hh_d, wout_raw, bout_raw)

    # Kernel parameters: pre-transposed [in, 4H], gate columns permuted from
    # torch's (i, f, g, o) to the kernel's (i, f, o, g), fused, bf16 operands.
    def reorder_ifog(w):
        return jnp.concatenate(
            [w[..., 0:HID], w[..., HID:2 * HID],
             w[..., 3 * HID:4 * HID], w[..., 2 * HID:3 * HID]], axis=-1)

    wih_e = reorder_ifog(
        jnp.zeros((D_PAD, 4 * HID), jnp.float32).at[:D_IN, :].set(wih_e_raw.T)
    ).astype(jnp.bfloat16)
    b_e = reorder_ifog((b_ih_e + b_hh_e)[None, :])                  # f32
    whh_e = reorder_ifog(whh_e_raw.T).astype(jnp.bfloat16)
    w_dec = reorder_ifog((wih_d_raw + whh_d_raw).T).astype(jnp.bfloat16)
    b_d = reorder_ifog((b_ih_d + b_hh_d)[None, :])                  # f32
    # Block-diagonal fused head weights, padded to 128 output lanes:
    # out[:, k] only sees decoder step k // PER_TICK.
    w_head = jnp.zeros((T_DEC * HID, N_OUT_PAD), jnp.float32)
    for t in range(T_DEC):
        lo, hi = t * PER_TICK, (t + 1) * PER_TICK
        w_head = w_head.at[t * HID:(t + 1) * HID, lo:hi].set(wout_raw[lo:hi, :].T)
    w_head = w_head.astype(jnp.bfloat16)
    b_head = jnp.zeros((1, N_OUT_PAD), jnp.float32).at[0, :N_OUT].set(bout_raw)
    params = (wih_e, b_e, whh_e, w_dec, b_d, w_head, b_head)

    x = jax.random.normal(keys[10], (B, F), jnp.float32)

    out = lstm_aim_forward(
        x, params, num_prior_ticks=NUM_PRIOR_TICKS, per_tick=PER_TICK,
        t_dec=T_DEC, hid_dim=HID)
    out = jax.block_until_ready(out)
    assert out.shape == (B, 2, N_OUT), out.shape

    # Check 1: against a pure-JAX reference with identical (bf16-fused) math.
    x2d, b_pad = _prepare_input(
        x, num_prior_ticks=NUM_PRIOR_TICKS, per_tick=PER_TICK)
    ref_bf16 = _reference_bf16(
        x2d, params, hid_dim=HID, t_enc=NUM_PRIOR_TICKS, t_dec=T_DEC,
        b_pad=b_pad)[:B, :N_OUT]
    np.testing.assert_allclose(np.asarray(out[:, 0, :]), np.asarray(ref_bf16),
                               rtol=2e-3, atol=2e-3)
    np.testing.assert_allclose(np.asarray(out[:, 1, :]), np.asarray(ref_bf16),
                               rtol=2e-3, atol=2e-3)

    # Check 2: against the full-precision unfused reference (original algebra);
    # looser tolerance accounts for bf16 matmul operands through the recurrence.
    ref_f32 = _reference_f32(
        x, raw_params, num_prior_ticks=NUM_PRIOR_TICKS, per_tick=PER_TICK,
        t_dec=T_DEC, hid_dim=HID)
    np.testing.assert_allclose(np.asarray(out[:, 0, :]), np.asarray(ref_f32),
                               rtol=3e-2, atol=3e-2)

    print("KERNEL_OK")
</pallas_src>

<mosaic_0001>
module attributes {stable_mosaic.version = 11 : i64} {
  func.func @_lstm_aim_kernel(%arg0: i32, %arg1: memref<128x128xbf16, #tpu.memory_space<vmem>>, %arg2: memref<128x1024xbf16, #tpu.memory_space<vmem>>, %arg3: memref<1x1024xf32, #tpu.memory_space<vmem>>, %arg4: memref<256x1024xbf16, #tpu.memory_space<vmem>>, %arg5: memref<1x1024xf32, #tpu.memory_space<vmem>>, %arg6: memref<1x128xf32, #tpu.memory_space<vmem>>, %arg7: memref<256x1024xbf16, #tpu.memory_space<any>>, %arg8: memref<768x128xbf16, #tpu.memory_space<any>>, %arg9: memref<16x128xf32, #tpu.memory_space<vmem>>, %arg10: memref<128x1024xbf16, #tpu.memory_space<vmem>>, %arg11: memref<16x768xbf16, #tpu.memory_space<vmem>>, %arg12: memref<256x1024xbf16, #tpu.memory_space<vmem>>, %arg13: memref<768x128xbf16, #tpu.memory_space<vmem>>, %arg14: memref<2x!tpu.dma_semaphore, #tpu.memory_space<semaphore_mem>>) attributes {dimension_semantics = [#tpu.dimension_semantics<arbitrary>], iteration_bounds = array<i64: 1>, scalar_prefetch = 0 : i64, scratch_operands = 5 : i64, tpu.core_type = #tpu.core_type<tc>, window_params = [{pipeline_mode = #tpu.pipeline_mode<synchronous>, transform_indices = @transform_0, window_bounds = array<i64: 128, 128>}, {pipeline_mode = #tpu.pipeline_mode<synchronous>, transform_indices = @transform_1, window_bounds = array<i64: 128, 1024>}, {pipeline_mode = #tpu.pipeline_mode<synchronous>, transform_indices = @transform_2, window_bounds = array<i64: 1, 1024>}, {pipeline_mode = #tpu.pipeline_mode<synchronous>, transform_indices = @transform_3, window_bounds = array<i64: 256, 1024>}, {pipeline_mode = #tpu.pipeline_mode<synchronous>, transform_indices = @transform_4, window_bounds = array<i64: 1, 1024>}, {pipeline_mode = #tpu.pipeline_mode<synchronous>, transform_indices = @transform_5, window_bounds = array<i64: 1, 128>}, {}, {}, {pipeline_mode = #tpu.pipeline_mode<synchronous>, transform_indices = @transform_8, window_bounds = array<i64: 16, 128>}]} {
    %c0_i32 = arith.constant 0 : i32
    %0 = tpu.memref_slice %arg14[%c0_i32] : memref<2x!tpu.dma_semaphore, #tpu.memory_space<semaphore_mem>> -> memref<1x!tpu.dma_semaphore, #tpu.memory_space<semaphore_mem>>
    %1 = tpu.memref_squeeze %0 : memref<1x!tpu.dma_semaphore, #tpu.memory_space<semaphore_mem>> -> memref<!tpu.dma_semaphore, #tpu.memory_space<semaphore_mem>>
    tpu.enqueue_dma source(%arg7 : memref<256x1024xbf16, #tpu.memory_space<any>>) target(%arg12 : memref<256x1024xbf16, #tpu.memory_space<vmem>>) target_semaphore(%1 : memref<!tpu.dma_semaphore, #tpu.memory_space<semaphore_mem>>)
    %c1_i32 = arith.constant 1 : i32
    %2 = tpu.memref_slice %arg14[%c1_i32] : memref<2x!tpu.dma_semaphore, #tpu.memory_space<semaphore_mem>> -> memref<1x!tpu.dma_semaphore, #tpu.memory_space<semaphore_mem>>
    %3 = tpu.memref_squeeze %2 : memref<1x!tpu.dma_semaphore, #tpu.memory_space<semaphore_mem>> -> memref<!tpu.dma_semaphore, #tpu.memory_space<semaphore_mem>>
    tpu.enqueue_dma source(%arg8 : memref<768x128xbf16, #tpu.memory_space<any>>) target(%arg13 : memref<768x128xbf16, #tpu.memory_space<vmem>>) target_semaphore(%3 : memref<!tpu.dma_semaphore, #tpu.memory_space<semaphore_mem>>)
    %c0 = arith.constant 0 : index
    %c0_0 = arith.constant 0 : index
    %4 = vector.load %arg1[%c0, %c0_0] : memref<128x128xbf16, #tpu.memory_space<vmem>>, vector<128x128xbf16>
    %c0_1 = arith.constant 0 : index
    %c0_2 = arith.constant 0 : index
    %5 = vector.load %arg2[%c0_1, %c0_2] : memref<128x1024xbf16, #tpu.memory_space<vmem>>, vector<128x1024xbf16>
    %cst = arith.constant dense<0.000000e+00> : vector<128x1024xf32>
    %6 = tpu.matmul %4, %5, %cst {dimension_numbers = #tpu.dot_dimension_numbers<[1], [0], [0], [1], [0, 0, 1, 1], [], []>} : vector<128x128xbf16>, vector<128x1024xbf16>, vector<128x1024xf32> -> vector<128x1024xf32>
    %c0_3 = arith.constant 0 : index
    %c0_4 = arith.constant 0 : index
    %7 = vector.load %arg3[%c0_3, %c0_4] : memref<1x1024xf32, #tpu.memory_space<vmem>>, vector<1x1024xf32>
    %8 = vector.broadcast %7 : vector<1x1024xf32> to vector<128x1024xf32>
    %9 = arith.addf %6, %8 : vector<128x1024xf32>
    %10 = arith.truncf %9 : vector<128x1024xf32> to vector<128x1024xbf16>
    %c0_5 = arith.constant 0 : index
    %c0_6 = arith.constant 0 : index
    %11 = vector.load %arg10[%c0_5, %c0_6] : memref<128x1024xbf16, #tpu.memory_space<vmem>>, vector<128x1024xbf16>
    tpu.vector_store %arg10[%c0_5, %c0_6], %10 {strides = array<i32>} : memref<128x1024xbf16, #tpu.memory_space<vmem>>, vector<128x1024xbf16>,
    %cst_7 = arith.constant 0.000000e+00 : f32
    %12 = vector.broadcast %cst_7 : f32 to vector<16x256xf32>
    %cst_8 = arith.constant 0.000000e+00 : f32
    %13 = vector.broadcast %cst_8 : f32 to vector<16x256xf32>
    %c0_9 = arith.constant 0 : index
    %c0_10 = arith.constant 0 : index
    %14 = vector.load %arg10[%c0_9, %c0_10] : memref<128x1024xbf16, #tpu.memory_space<vmem>>, vector<16x1024xbf16>
    %15 = arith.truncf %12 : vector<16x256xf32> to vector<16x256xbf16>
    %c0_11 = arith.constant 0 : index
    %c0_12 = arith.constant 0 : index
    %16 = vector.load %arg4[%c0_11, %c0_12] : memref<256x1024xbf16, #tpu.memory_space<vmem>>, vector<256x1024xbf16>
    %cst_13 = arith.constant dense<0.000000e+00> : vector<16x1024xf32>
    %17 = tpu.matmul %15, %16, %cst_13 {dimension_numbers = #tpu.dot_dimension_numbers<[1], [0], [0], [1], [0, 0, 1, 1], [], []>} : vector<16x256xbf16>, vector<256x1024xbf16>, vector<16x1024xf32> -> vector<16x1024xf32>
    %18 = arith.extf %14 : vector<16x1024xbf16> to vector<16x1024xf32>
    %19 = arith.addf %18, %17 : vector<16x1024xf32>
    %20 = vector.extract_strided_slice %19 {offsets = [0, 0], sizes = [16, 768], strides = [1, 1]} : vector<16x1024xf32> to vector<16x768xf32>
    %21 = arith.negf %20 : vector<16x768xf32>
    %22 = math.exp %21 : vector<16x768xf32>
    %cst_14 = arith.constant 1.000000e+00 : f32
    %23 = vector.broadcast %cst_14 : f32 to vector<16x768xf32>
    %24 = arith.addf %23, %22 : vector<16x768xf32>
    %25 = arith.divf %23, %24 : vector<16x768xf32>
    %26 = vector.extract_strided_slice %19 {offsets = [0, 768], sizes = [16, 256], strides = [1, 1]} : vector<16x1024xf32> to vector<16x256xf32>
    %27 = math.tanh %26 : vector<16x256xf32>
    %28 = vector.extract_strided_slice %25 {offsets = [0, 0], sizes = [16, 256], strides = [1, 1]} : vector<16x768xf32> to vector<16x256xf32>
    %29 = vector.extract_strided_slice %25 {offsets = [0, 256], sizes = [16, 256], strides = [1, 1]} : vector<16x768xf32> to vector<16x256xf32>
    %30 = vector.extract_strided_slice %25 {offsets = [0, 512], sizes = [16, 256], strides = [1, 1]} : vector<16x768xf32> to vector<16x256xf32>
    %31 = arith.mulf %29, %13 : vector<16x256xf32>
    %32 = arith.mulf %28, %27 : vector<16x256xf32>
    %33 = arith.addf %31, %32 : vector<16x256xf32>
    %34 = math.tanh %33 : vector<16x256xf32>
    %35 = arith.mulf %30, %34 : vector<16x256xf32>
    %c16 = arith.constant 16 : index
    %c0_15 = arith.constant 0 : index
    %36 = vector.load %arg10[%c16, %c0_15] : memref<128x1024xbf16, #tpu.memory_space<vmem>>, vector<16x1024xbf16>
    %37 = arith.truncf %35 : vector<16x256xf32> to vector<16x256xbf16>
    %c0_16 = arith.constant 0 : index
    %c0_17 = arith.constant 0 : index
    %38 = vector.load %arg4[%c0_16, %c0_17] : memref<256x1024xbf16, #tpu.memory_space<vmem>>, vector<256x1024xbf16>
    %cst_18 = arith.constant dense<0.000000e+00> : vector<16x1024xf32>
    %39 = tpu.matmul %37, %38, %cst_18 {dimension_numbers = #tpu.dot_dimension_numbers<[1], [0], [0], [1], [0, 0, 1, 1], [], []>} : vector<16x256xbf16>, vector<256x1024xbf16>, vector<16x1024xf32> -> vector<16x1024xf32>
    %40 = arith.extf %36 : vector<16x1024xbf16> to vector<16x1024xf32>
    %41 = arith.addf %40, %39 : vector<16x1024xf32>
    %42 = vector.extract_strided_slice %41 {offsets = [0, 0], sizes = [16, 768], strides = [1, 1]} : vector<16x1024xf32> to vector<16x768xf32>
    %43 = arith.negf %42 : vector<16x768xf32>
    %44 = math.exp %43 : vector<16x768xf32>
    %cst_19 = arith.constant 1.000000e+00 : f32
    %45 = vector.broadcast %cst_19 : f32 to vector<16x768xf32>
    %46 = arith.addf %45, %44 : vector<16x768xf32>
    %47 = arith.divf %45, %46 : vector<16x768xf32>
    %48 = vector.extract_strided_slice %41 {offsets = [0, 768], sizes = [16, 256], strides = [1, 1]} : vector<16x1024xf32> to vector<16x256xf32>
    %49 = math.tanh %48 : vector<16x256xf32>
    %50 = vector.extract_strided_slice %47 {offsets = [0, 0], sizes = [16, 256], strides = [1, 1]} : vector<16x768xf32> to vector<16x256xf32>
    %51 = vector.extract_strided_slice %47 {offsets = [0, 256], sizes = [16, 256], strides = [1, 1]} : vector<16x768xf32> to vector<16x256xf32>
    %52 = vector.extract_strided_slice %47 {offsets = [0, 512], sizes = [16, 256], strides = [1, 1]} : vector<16x768xf32> to vector<16x256xf32>
    %53 = arith.mulf %51, %33 : vector<16x256xf32>
    %54 = arith.mulf %50, %49 : vector<16x256xf32>
    %55 = arith.addf %53, %54 : vector<16x256xf32>
    %56 = math.tanh %55 : vector<16x256xf32>
    %57 = arith.mulf %52, %56 : vector<16x256xf32>
    %c32 = arith.constant 32 : index
    %c0_20 = arith.constant 0 : index
    %58 = vector.load %arg10[%c32, %c0_20] : memref<128x1024xbf16, #tpu.memory_space<vmem>>, vector<16x1024xbf16>
    %59 = arith.truncf %57 : vector<16x256xf32> to vector<16x256xbf16>
    %c0_21 = arith.constant 0 : index
    %c0_22 = arith.constant 0 : index
    %60 = vector.load %arg4[%c0_21, %c0_22] : memref<256x1024xbf16, #tpu.memory_space<vmem>>, vector<256x1024xbf16>
    %cst_23 = arith.constant dense<0.000000e+00> : vector<16x1024xf32>
    %61 = tpu.matmul %59, %60, %cst_23 {dimension_numbers = #tpu.dot_dimension_numbers<[1], [0], [0], [1], [0, 0, 1, 1], [], []>} : vector<16x256xbf16>, vector<256x1024xbf16>, vector<16x1024xf32> -> vector<16x1024xf32>
    %62 = arith.extf %58 : vector<16x1024xbf16> to vector<16x1024xf32>
    %63 = arith.addf %62, %61 : vector<16x1024xf32>
    %64 = vector.extract_strided_slice %63 {offsets = [0, 0], sizes = [16, 768], strides = [1, 1]} : vector<16x1024xf32> to vector<16x768xf32>
    %65 = arith.negf %64 : vector<16x768xf32>
    %66 = math.exp %65 : vector<16x768xf32>
    %cst_24 = arith.constant 1.000000e+00 : f32
    %67 = vector.broadcast %cst_24 : f32 to vector<16x768xf32>
    %68 = arith.addf %67, %66 : vector<16x768xf32>
    %69 = arith.divf %67, %68 : vector<16x768xf32>
    %70 = vector.extract_strided_slice %63 {offsets = [0, 768], sizes = [16, 256], strides = [1, 1]} : vector<16x1024xf32> to vector<16x256xf32>
    %71 = math.tanh %70 : vector<16x256xf32>
    %72 = vector.extract_strided_slice %69 {offsets = [0, 0], sizes = [16, 256], strides = [1, 1]} : vector<16x768xf32> to vector<16x256xf32>
    %73 = vector.extract_strided_slice %69 {offsets = [0, 256], sizes = [16, 256], strides = [1, 1]} : vector<16x768xf32> to vector<16x256xf32>
    %74 = vector.extract_strided_slice %69 {offsets = [0, 512], sizes = [16, 256], strides = [1, 1]} : vector<16x768xf32> to vector<16x256xf32>
    %75 = arith.mulf %73, %55 : vector<16x256xf32>
    %76 = arith.mulf %72, %71 : vector<16x256xf32>
    %77 = arith.addf %75, %76 : vector<16x256xf32>
    %78 = math.tanh %77 : vector<16x256xf32>
    %79 = arith.mulf %74, %78 : vector<16x256xf32>
    %c48 = arith.constant 48 : index
    %c0_25 = arith.constant 0 : index
    %80 = vector.load %arg10[%c48, %c0_25] : memref<128x1024xbf16, #tpu.memory_space<vmem>>, vector<16x1024xbf16>
    %81 = arith.truncf %79 : vector<16x256xf32> to vector<16x256xbf16>
    %c0_26 = arith.constant 0 : index
    %c0_27 = arith.constant 0 : index
    %82 = vector.load %arg4[%c0_26, %c0_27] : memref<256x1024xbf16, #tpu.memory_space<vmem>>, vector<256x1024xbf16>
    %cst_28 = arith.constant dense<0.000000e+00> : vector<16x1024xf32>
    %83 = tpu.matmul %81, %82, %cst_28 {dimension_numbers = #tpu.dot_dimension_numbers<[1], [0], [0], [1], [0, 0, 1, 1], [], []>} : vector<16x256xbf16>, vector<256x1024xbf16>, vector<16x1024xf32> -> vector<16x1024xf32>
    %84 = arith.extf %80 : vector<16x1024xbf16> to vector<16x1024xf32>
    %85 = arith.addf %84, %83 : vector<16x1024xf32>
    %86 = vector.extract_strided_slice %85 {offsets = [0, 0], sizes = [16, 768], strides = [1, 1]} : vector<16x1024xf32> to vector<16x768xf32>
    %87 = arith.negf %86 : vector<16x768xf32>
    %88 = math.exp %87 : vector<16x768xf32>
    %cst_29 = arith.constant 1.000000e+00 : f32
    %89 = vector.broadcast %cst_29 : f32 to vector<16x768xf32>
    %90 = arith.addf %89, %88 : vector<16x768xf32>
    %91 = arith.divf %89, %90 : vector<16x768xf32>
    %92 = vector.extract_strided_slice %85 {offsets = [0, 768], sizes = [16, 256], strides = [1, 1]} : vector<16x1024xf32> to vector<16x256xf32>
    %93 = math.tanh %92 : vector<16x256xf32>
    %94 = vector.extract_strided_slice %91 {offsets = [0, 0], sizes = [16, 256], strides = [1, 1]} : vector<16x768xf32> to vector<16x256xf32>
    %95 = vector.extract_strided_slice %91 {offsets = [0, 256], sizes = [16, 256], strides = [1, 1]} : vector<16x768xf32> to vector<16x256xf32>
    %96 = vector.extract_strided_slice %91 {offsets = [0, 512], sizes = [16, 256], strides = [1, 1]} : vector<16x768xf32> to vector<16x256xf32>
    %97 = arith.mulf %95, %77 : vector<16x256xf32>
    %98 = arith.mulf %94, %93 : vector<16x256xf32>
    %99 = arith.addf %97, %98 : vector<16x256xf32>
    %100 = math.tanh %99 : vector<16x256xf32>
    %101 = arith.mulf %96, %100 : vector<16x256xf32>
    %c64 = arith.constant 64 : index
    %c0_30 = arith.constant 0 : index
    %102 = vector.load %arg10[%c64, %c0_30] : memref<128x1024xbf16, #tpu.memory_space<vmem>>, vector<16x1024xbf16>
    %103 = arith.truncf %101 : vector<16x256xf32> to vector<16x256xbf16>
    %c0_31 = arith.constant 0 : index
    %c0_32 = arith.constant 0 : index
    %104 = vector.load %arg4[%c0_31, %c0_32] : memref<256x1024xbf16, #tpu.memory_space<vmem>>, vector<256x1024xbf16>
    %cst_33 = arith.constant dense<0.000000e+00> : vector<16x1024xf32>
    %105 = tpu.matmul %103, %104, %cst_33 {dimension_numbers = #tpu.dot_dimension_numbers<[1], [0], [0], [1], [0, 0, 1, 1], [], []>} : vector<16x256xbf16>, vector<256x1024xbf16>, vector<16x1024xf32> -> vector<16x1024xf32>
    %106 = arith.extf %102 : vector<16x1024xbf16> to vector<16x1024xf32>
    %107 = arith.addf %106, %105 : vector<16x1024xf32>
    %108 = vector.extract_strided_slice %107 {offsets = [0, 0], sizes = [16, 768], strides = [1, 1]} : vector<16x1024xf32> to vector<16x768xf32>
    %109 = arith.negf %108 : vector<16x768xf32>
    %110 = math.exp %109 : vector<16x768xf32>
    %cst_34 = arith.constant 1.000000e+00 : f32
    %111 = vector.broadcast %cst_34 : f32 to vector<16x768xf32>
    %112 = arith.addf %111, %110 : vector<16x768xf32>
    %113 = arith.divf %111, %112 : vector<16x768xf32>
    %114 = vector.extract_strided_slice %107 {offsets = [0, 768], sizes = [16, 256], strides = [1, 1]} : vector<16x1024xf32> to vector<16x256xf32>
    %115 = math.tanh %114 : vector<16x256xf32>
    %116 = vector.extract_strided_slice %113 {offsets = [0, 0], sizes = [16, 256], strides = [1, 1]} : vector<16x768xf32> to vector<16x256xf32>
    %117 = vector.extract_strided_slice %113 {offsets = [0, 256], sizes = [16, 256], strides = [1, 1]} : vector<16x768xf32> to vector<16x256xf32>
    %118 = vector.extract_strided_slice %113 {offsets = [0, 512], sizes = [16, 256], strides = [1, 1]} : vector<16x768xf32> to vector<16x256xf32>
    %119 = arith.mulf %117, %99 : vector<16x256xf32>
    %120 = arith.mulf %116, %115 : vector<16x256xf32>
    %121 = arith.addf %119, %120 : vector<16x256xf32>
    %122 = math.tanh %121 : vector<16x256xf32>
    %123 = arith.mulf %118, %122 : vector<16x256xf32>
    %c80 = arith.constant 80 : index
    %c0_35 = arith.constant 0 : index
    %124 = vector.load %arg10[%c80, %c0_35] : memref<128x1024xbf16, #tpu.memory_space<vmem>>, vector<16x1024xbf16>
    %125 = arith.truncf %123 : vector<16x256xf32> to vector<16x256xbf16>
    %c0_36 = arith.constant 0 : index
    %c0_37 = arith.constant 0 : index
    %126 = vector.load %arg4[%c0_36, %c0_37] : memref<256x1024xbf16, #tpu.memory_space<vmem>>, vector<256x1024xbf16>
    %cst_38 = arith.constant dense<0.000000e+00> : vector<16x1024xf32>
    %127 = tpu.matmul %125, %126, %cst_38 {dimension_numbers = #tpu.dot_dimension_numbers<[1], [0], [0], [1], [0, 0, 1, 1], [], []>} : vector<16x256xbf16>, vector<256x1024xbf16>, vector<16x1024xf32> -> vector<16x1024xf32>
    %128 = arith.extf %124 : vector<16x1024xbf16> to vector<16x1024xf32>
    %129 = arith.addf %128, %127 : vector<16x1024xf32>
    %130 = vector.extract_strided_slice %129 {offsets = [0, 0], sizes = [16, 768], strides = [1, 1]} : vector<16x1024xf32> to vector<16x768xf32>
    %131 = arith.negf %130 : vector<16x768xf32>
    %132 = math.exp %131 : vector<16x768xf32>
    %cst_39 = arith.constant 1.000000e+00 : f32
    %133 = vector.broadcast %cst_39 : f32 to vector<16x768xf32>
    %134 = arith.addf %133, %132 : vector<16x768xf32>
    %135 = arith.divf %133, %134 : vector<16x768xf32>
    %136 = vector.extract_strided_slice %129 {offsets = [0, 768], sizes = [16, 256], strides = [1, 1]} : vector<16x1024xf32> to vector<16x256xf32>
    %137 = math.tanh %136 : vector<16x256xf32>
    %138 = vector.extract_strided_slice %135 {offsets = [0, 0], sizes = [16, 256], strides = [1, 1]} : vector<16x768xf32> to vector<16x256xf32>
    %139 = vector.extract_strided_slice %135 {offsets = [0, 256], sizes = [16, 256], strides = [1, 1]} : vector<16x768xf32> to vector<16x256xf32>
    %140 = vector.extract_strided_slice %135 {offsets = [0, 512], sizes = [16, 256], strides = [1, 1]} : vector<16x768xf32> to vector<16x256xf32>
    %141 = arith.mulf %139, %121 : vector<16x256xf32>
    %142 = arith.mulf %138, %137 : vector<16x256xf32>
    %143 = arith.addf %141, %142 : vector<16x256xf32>
    %144 = math.tanh %143 : vector<16x256xf32>
    %145 = arith.mulf %140, %144 : vector<16x256xf32>
    %c96 = arith.constant 96 : index
    %c0_40 = arith.constant 0 : index
    %146 = vector.load %arg10[%c96, %c0_40] : memref<128x1024xbf16, #tpu.memory_space<vmem>>, vector<16x1024xbf16>
    %147 = arith.truncf %145 : vector<16x256xf32> to vector<16x256xbf16>
    %c0_41 = arith.constant 0 : index
    %c0_42 = arith.constant 0 : index
    %148 = vector.load %arg4[%c0_41, %c0_42] : memref<256x1024xbf16, #tpu.memory_space<vmem>>, vector<256x1024xbf16>
    %cst_43 = arith.constant dense<0.000000e+00> : vector<16x1024xf32>
    %149 = tpu.matmul %147, %148, %cst_43 {dimension_numbers = #tpu.dot_dimension_numbers<[1], [0], [0], [1], [0, 0, 1, 1], [], []>} : vector<16x256xbf16>, vector<256x1024xbf16>, vector<16x1024xf32> -> vector<16x1024xf32>
    %150 = arith.extf %146 : vector<16x1024xbf16> to vector<16x1024xf32>
    %151 = arith.addf %150, %149 : vector<16x1024xf32>
    %152 = vector.extract_strided_slice %151 {offsets = [0, 0], sizes = [16, 768], strides = [1, 1]} : vector<16x1024xf32> to vector<16x768xf32>
    %153 = arith.negf %152 : vector<16x768xf32>
    %154 = math.exp %153 : vector<16x768xf32>
    %cst_44 = arith.constant 1.000000e+00 : f32
    %155 = vector.broadcast %cst_44 : f32 to vector<16x768xf32>
    %156 = arith.addf %155, %154 : vector<16x768xf32>
    %157 = arith.divf %155, %156 : vector<16x768xf32>
    %158 = vector.extract_strided_slice %151 {offsets = [0, 768], sizes = [16, 256], strides = [1, 1]} : vector<16x1024xf32> to vector<16x256xf32>
    %159 = math.tanh %158 : vector<16x256xf32>
    %160 = vector.extract_strided_slice %157 {offsets = [0, 0], sizes = [16, 256], strides = [1, 1]} : vector<16x768xf32> to vector<16x256xf32>
    %161 = vector.extract_strided_slice %157 {offsets = [0, 256], sizes = [16, 256], strides = [1, 1]} : vector<16x768xf32> to vector<16x256xf32>
    %162 = vector.extract_strided_slice %157 {offsets = [0, 512], sizes = [16, 256], strides = [1, 1]} : vector<16x768xf32> to vector<16x256xf32>
    %163 = arith.mulf %161, %143 : vector<16x256xf32>
    %164 = arith.mulf %160, %159 : vector<16x256xf32>
    %165 = arith.addf %163, %164 : vector<16x256xf32>
    %166 = math.tanh %165 : vector<16x256xf32>
    %167 = arith.mulf %162, %166 : vector<16x256xf32>
    %c112 = arith.constant 112 : index
    %c0_45 = arith.constant 0 : index
    %168 = vector.load %arg10[%c112, %c0_45] : memref<128x1024xbf16, #tpu.memory_space<vmem>>, vector<16x1024xbf16>
    %169 = arith.truncf %167 : vector<16x256xf32> to vector<16x256xbf16>
    %c0_46 = arith.constant 0 : index
    %c0_47 = arith.constant 0 : index
    %170 = vector.load %arg4[%c0_46, %c0_47] : memref<256x1024xbf16, #tpu.memory_space<vmem>>, vector<256x1024xbf16>
    %cst_48 = arith.constant dense<0.000000e+00> : vector<16x1024xf32>
    %171 = tpu.matmul %169, %170, %cst_48 {dimension_numbers = #tpu.dot_dimension_numbers<[1], [0], [0], [1], [0, 0, 1, 1], [], []>} : vector<16x256xbf16>, vector<256x1024xbf16>, vector<16x1024xf32> -> vector<16x1024xf32>
    %172 = arith.extf %168 : vector<16x1024xbf16> to vector<16x1024xf32>
    %173 = arith.addf %172, %171 : vector<16x1024xf32>
    %174 = vector.extract_strided_slice %173 {offsets = [0, 0], sizes = [16, 768], strides = [1, 1]} : vector<16x1024xf32> to vector<16x768xf32>
    %175 = arith.negf %174 : vector<16x768xf32>
    %176 = math.exp %175 : vector<16x768xf32>
    %cst_49 = arith.constant 1.000000e+00 : f32
    %177 = vector.broadcast %cst_49 : f32 to vector<16x768xf32>
    %178 = arith.addf %177, %176 : vector<16x768xf32>
    %179 = arith.divf %177, %178 : vector<16x768xf32>
    %180 = vector.extract_strided_slice %173 {offsets = [0, 768], sizes = [16, 256], strides = [1, 1]} : vector<16x1024xf32> to vector<16x256xf32>
    %181 = math.tanh %180 : vector<16x256xf32>
    %182 = vector.extract_strided_slice %179 {offsets = [0, 0], sizes = [16, 256], strides = [1, 1]} : vector<16x768xf32> to vector<16x256xf32>
    %183 = vector.extract_strided_slice %179 {offsets = [0, 256], sizes = [16, 256], strides = [1, 1]} : vector<16x768xf32> to vector<16x256xf32>
    %184 = vector.extract_strided_slice %179 {offsets = [0, 512], sizes = [16, 256], strides = [1, 1]} : vector<16x768xf32> to vector<16x256xf32>
    %185 = arith.mulf %183, %165 : vector<16x256xf32>
    %186 = arith.mulf %182, %181 : vector<16x256xf32>
    %187 = arith.addf %185, %186 : vector<16x256xf32>
    %188 = math.tanh %187 : vector<16x256xf32>
    %189 = arith.mulf %184, %188 : vector<16x256xf32>
    %c0_i32_50 = arith.constant 0 : i32
    %190 = tpu.memref_slice %arg14[%c0_i32_50] : memref<2x!tpu.dma_semaphore, #tpu.memory_space<semaphore_mem>> -> memref<1x!tpu.dma_semaphore, #tpu.memory_space<semaphore_mem>>
    %191 = tpu.memref_squeeze %190 : memref<1x!tpu.dma_semaphore, #tpu.memory_space<semaphore_mem>> -> memref<!tpu.dma_semaphore, #tpu.memory_space<semaphore_mem>>
    tpu.wait_dma2 semaphore(%191 : memref<!tpu.dma_semaphore, #tpu.memory_space<semaphore_mem>>) src(%arg7 : memref<256x1024xbf16, #tpu.memory_space<any>>) dst(%arg12 : memref<256x1024xbf16, #tpu.memory_space<vmem>>)
    %c0_51 = arith.constant 0 : index
    %c0_52 = arith.constant 0 : index
    %192 = vector.load %arg5[%c0_51, %c0_52] : memref<1x1024xf32, #tpu.memory_space<vmem>>, vector<1x1024xf32>
    %193 = vector.shape_cast %192 : vector<1x1024xf32> to vector<1x1024xf32>
    %194 = vector.broadcast %193 : vector<1x1024xf32> to vector<16x1024xf32>
    %195 = arith.truncf %189 : vector<16x256xf32> to vector<16x256xbf16>
    %c0_53 = arith.constant 0 : index
    %c0_54 = arith.constant 0 : index
    %196 = vector.load %arg12[%c0_53, %c0_54] : memref<256x1024xbf16, #tpu.memory_space<vmem>>, vector<256x1024xbf16>
    %cst_55 = arith.constant dense<0.000000e+00> : vector<16x1024xf32>
    %197 = tpu.matmul %195, %196, %cst_55 {dimension_numbers = #tpu.dot_dimension_numbers<[1], [0], [0], [1], [0, 0, 1, 1], [], []>} : vector<16x256xbf16>, vector<256x1024xbf16>, vector<16x1024xf32> -> vector<16x1024xf32>
    %198 = arith.addf %197, %194 : vector<16x1024xf32>
    %199 = vector.extract_strided_slice %198 {offsets = [0, 0], sizes = [16, 768], strides = [1, 1]} : vector<16x1024xf32> to vector<16x768xf32>
    %200 = arith.negf %199 : vector<16x768xf32>
    %201 = math.exp %200 : vector<16x768xf32>
    %cst_56 = arith.constant 1.000000e+00 : f32
    %202 = vector.broadcast %cst_56 : f32 to vector<16x768xf32>
    %203 = arith.addf %202, %201 : vector<16x768xf32>
    %204 = arith.divf %202, %203 : vector<16x768xf32>
    %205 = vector.extract_strided_slice %198 {offsets = [0, 768], sizes = [16, 256], strides = [1, 1]} : vector<16x1024xf32> to vector<16x256xf32>
    %206 = math.tanh %205 : vector<16x256xf32>
    %207 = vector.extract_strided_slice %204 {offsets = [0, 0], sizes = [16, 256], strides = [1, 1]} : vector<16x768xf32> to vector<16x256xf32>
    %208 = vector.extract_strided_slice %204 {offsets = [0, 256], sizes = [16, 256], strides = [1, 1]} : vector<16x768xf32> to vector<16x256xf32>
    %209 = vector.extract_strided_slice %204 {offsets = [0, 512], sizes = [16, 256], strides = [1, 1]} : vector<16x768xf32> to vector<16x256xf32>
    %210 = arith.mulf %208, %187 : vector<16x256xf32>
    %211 = arith.mulf %207, %206 : vector<16x256xf32>
    %212 = arith.addf %210, %211 : vector<16x256xf32>
    %213 = math.tanh %212 : vector<16x256xf32>
    %214 = arith.mulf %209, %213 : vector<16x256xf32>
    %215 = arith.truncf %214 : vector<16x256xf32> to vector<16x256xbf16>
    %c0_57 = arith.constant 0 : index
    %c0_58 = arith.constant 0 : index
    %216 = vector.load %arg11[%c0_57, %c0_58] : memref<16x768xbf16, #tpu.memory_space<vmem>>, vector<16x256xbf16>
    tpu.vector_store %arg11[%c0_57, %c0_58], %215 {strides = array<i32>} : memref<16x768xbf16, #tpu.memory_space<vmem>>, vector<16x256xbf16>,
    %217 = arith.truncf %214 : vector<16x256xf32> to vector<16x256xbf16>
    %c0_59 = arith.constant 0 : index
    %c0_60 = arith.constant 0 : index
    %218 = vector.load %arg12[%c0_59, %c0_60] : memref<256x1024xbf16, #tpu.memory_space<vmem>>, vector<256x1024xbf16>
    %cst_61 = arith.constant dense<0.000000e+00> : vector<16x1024xf32>
    %219 = tpu.matmul %217, %218, %cst_61 {dimension_numbers = #tpu.dot_dimension_numbers<[1], [0], [0], [1], [0, 0, 1, 1], [], []>} : vector<16x256xbf16>, vector<256x1024xbf16>, vector<16x1024xf32> -> vector<16x1024xf32>
    %220 = arith.addf %219, %194 : vector<16x1024xf32>
    %221 = vector.extract_strided_slice %220 {offsets = [0, 0], sizes = [16, 768], strides = [1, 1]} : vector<16x1024xf32> to vector<16x768xf32>
    %222 = arith.negf %221 : vector<16x768xf32>
    %223 = math.exp %222 : vector<16x768xf32>
    %cst_62 = arith.constant 1.000000e+00 : f32
    %224 = vector.broadcast %cst_62 : f32 to vector<16x768xf32>
    %225 = arith.addf %224, %223 : vector<16x768xf32>
    %226 = arith.divf %224, %225 : vector<16x768xf32>
    %227 = vector.extract_strided_slice %220 {offsets = [0, 768], sizes = [16, 256], strides = [1, 1]} : vector<16x1024xf32> to vector<16x256xf32>
    %228 = math.tanh %227 : vector<16x256xf32>
    %229 = vector.extract_strided_slice %226 {offsets = [0, 0], sizes = [16, 256], strides = [1, 1]} : vector<16x768xf32> to vector<16x256xf32>
    %230 = vector.extract_strided_slice %226 {offsets = [0, 256], sizes = [16, 256], strides = [1, 1]} : vector<16x768xf32> to vector<16x256xf32>
    %231 = vector.extract_strided_slice %226 {offsets = [0, 512], sizes = [16, 256], strides = [1, 1]} : vector<16x768xf32> to vector<16x256xf32>
    %232 = arith.mulf %230, %212 : vector<16x256xf32>
    %233 = arith.mulf %229, %228 : vector<16x256xf32>
    %234 = arith.addf %232, %233 : vector<16x256xf32>
    %235 = math.tanh %234 : vector<16x256xf32>
    %236 = arith.mulf %231, %235 : vector<16x256xf32>
    %237 = arith.truncf %236 : vector<16x256xf32> to vector<16x256xbf16>
    %c0_63 = arith.constant 0 : index
    %c256 = arith.constant 256 : index
    %238 = vector.load %arg11[%c0_63, %c256] : memref<16x768xbf16, #tpu.memory_space<vmem>>, vector<16x256xbf16>
    tpu.vector_store %arg11[%c0_63, %c256], %237 {strides = array<i32>} : memref<16x768xbf16, #tpu.memory_space<vmem>>, vector<16x256xbf16>,
    %239 = arith.truncf %236 : vector<16x256xf32> to vector<16x256xbf16>
    %c0_64 = arith.constant 0 : index
    %c0_65 = arith.constant 0 : index
    %240 = vector.load %arg12[%c0_64, %c0_65] : memref<256x1024xbf16, #tpu.memory_space<vmem>>, vector<256x1024xbf16>
    %cst_66 = arith.constant dense<0.000000e+00> : vector<16x1024xf32>
    %241 = tpu.matmul %239, %240, %cst_66 {dimension_numbers = #tpu.dot_dimension_numbers<[1], [0], [0], [1], [0, 0, 1, 1], [], []>} : vector<16x256xbf16>, vector<256x1024xbf16>, vector<16x1024xf32> -> vector<16x1024xf32>
    %242 = arith.addf %241, %194 : vector<16x1024xf32>
    %243 = vector.extract_strided_slice %242 {offsets = [0, 0], sizes = [16, 768], strides = [1, 1]} : vector<16x1024xf32> to vector<16x768xf32>
    %244 = arith.negf %243 : vector<16x768xf32>
    %245 = math.exp %244 : vector<16x768xf32>
    %cst_67 = arith.constant 1.000000e+00 : f32
    %246 = vector.broadcast %cst_67 : f32 to vector<16x768xf32>
    %247 = arith.addf %246, %245 : vector<16x768xf32>
    %248 = arith.divf %246, %247 : vector<16x768xf32>
    %249 = vector.extract_strided_slice %242 {offsets = [0, 768], sizes = [16, 256], strides = [1, 1]} : vector<16x1024xf32> to vector<16x256xf32>
    %250 = math.tanh %249 : vector<16x256xf32>
    %251 = vector.extract_strided_slice %248 {offsets = [0, 0], sizes = [16, 256], strides = [1, 1]} : vector<16x768xf32> to vector<16x256xf32>
    %252 = vector.extract_strided_slice %248 {offsets = [0, 256], sizes = [16, 256], strides = [1, 1]} : vector<16x768xf32> to vector<16x256xf32>
    %253 = vector.extract_strided_slice %248 {offsets = [0, 512], sizes = [16, 256], strides = [1, 1]} : vector<16x768xf32> to vector<16x256xf32>
    %254 = arith.mulf %252, %234 : vector<16x256xf32>
    %255 = arith.mulf %251, %250 : vector<16x256xf32>
    %256 = arith.addf %254, %255 : vector<16x256xf32>
    %257 = math.tanh %256 : vector<16x256xf32>
    %258 = arith.mulf %253, %257 : vector<16x256xf32>
    %259 = arith.truncf %258 : vector<16x256xf32> to vector<16x256xbf16>
    %c0_68 = arith.constant 0 : index
    %c512 = arith.constant 512 : index
    %260 = vector.load %arg11[%c0_68, %c512] : memref<16x768xbf16, #tpu.memory_space<vmem>>, vector<16x256xbf16>
    tpu.vector_store %arg11[%c0_68, %c512], %259 {strides = array<i32>} : memref<16x768xbf16, #tpu.memory_space<vmem>>, vector<16x256xbf16>,
    %c1_i32_69 = arith.constant 1 : i32
    %261 = tpu.memref_slice %arg14[%c1_i32_69] : memref<2x!tpu.dma_semaphore, #tpu.memory_space<semaphore_mem>> -> memref<1x!tpu.dma_semaphore, #tpu.memory_space<semaphore_mem>>
    %262 = tpu.memref_squeeze %261 : memref<1x!tpu.dma_semaphore, #tpu.memory_space<semaphore_mem>> -> memref<!tpu.dma_semaphore, #tpu.memory_space<semaphore_mem>>
    tpu.wait_dma2 semaphore(%262 : memref<!tpu.dma_semaphore, #tpu.memory_space<semaphore_mem>>) src(%arg8 : memref<768x128xbf16, #tpu.memory_space<any>>) dst(%arg13 : memref<768x128xbf16, #tpu.memory_space<vmem>>)
    %c0_70 = arith.constant 0 : index
    %c0_71 = arith.constant 0 : index
    %263 = vector.load %arg11[%c0_70, %c0_71] : memref<16x768xbf16, #tpu.memory_space<vmem>>, vector<16x768xbf16>
    %c0_72 = arith.constant 0 : index
    %c0_73 = arith.constant 0 : index
    %264 = vector.load %arg13[%c0_72, %c0_73] : memref<768x128xbf16, #tpu.memory_space<vmem>>, vector<768x128xbf16>
    %cst_74 = arith.constant dense<0.000000e+00> : vector<16x128xf32>
    %265 = tpu.matmul %263, %264, %cst_74 {dimension_numbers = #tpu.dot_dimension_numbers<[1], [0], [0], [1], [0, 0, 1, 1], [], []>} : vector<16x768xbf16>, vector<768x128xbf16>, vector<16x128xf32> -> vector<16x128xf32>
    %c0_75 = arith.constant 0 : index
    %c0_76 = arith.constant 0 : index
    %266 = vector.load %arg6[%c0_75, %c0_76] : memref<1x128xf32, #tpu.memory_space<vmem>>, vector<1x128xf32>
    %267 = vector.broadcast %266 : vector<1x128xf32> to vector<16x128xf32>
    %268 = arith.addf %265, %267 : vector<16x128xf32>
    %c0_77 = arith.constant 0 : index
    %c0_78 = arith.constant 0 : index
    %269 = vector.load %arg9[%c0_77, %c0_78] : memref<16x128xf32, #tpu.memory_space<vmem>>, vector<16x128xf32>
    tpu.vector_store %arg9[%c0_77, %c0_78], %268 {strides = array<i32>} : memref<16x128xf32, #tpu.memory_space<vmem>>, vector<16x128xf32>,
    return
  }
  func.func @transform_0(%arg0: i32) -> (i32, i32) {
    %c0_i32 = arith.constant 0 : i32
    %c0_i32_0 = arith.constant 0 : i32
    %c0_i32_1 = arith.constant 0 : i32
    return %c0_i32, %c0_i32_0 : i32, i32
  }
  func.func @transform_1(%arg0: i32) -> (i32, i32) {
    %c0_i32 = arith.constant 0 : i32
    %c0_i32_0 = arith.constant 0 : i32
    %c0_i32_1 = arith.constant 0 : i32
    return %c0_i32, %c0_i32_0 : i32, i32
  }
  func.func @transform_2(%arg0: i32) -> (i32, i32) {
    %c0_i32 = arith.constant 0 : i32
    %c0_i32_0 = arith.constant 0 : i32
    %c0_i32_1 = arith.constant 0 : i32
    return %c0_i32, %c0_i32_0 : i32, i32
  }
  func.func @transform_3(%arg0: i32) -> (i32, i32) {
    %c0_i32 = arith.constant 0 : i32
    %c0_i32_0 = arith.constant 0 : i32
    %c0_i32_1 = arith.constant 0 : i32
    return %c0_i32, %c0_i32_0 : i32, i32
  }
  func.func @transform_4(%arg0: i32) -> (i32, i32) {
    %c0_i32 = arith.constant 0 : i32
    %c0_i32_0 = arith.constant 0 : i32
    %c0_i32_1 = arith.constant 0 : i32
    return %c0_i32, %c0_i32_0 : i32, i32
  }
  func.func @transform_5(%arg0: i32) -> (i32, i32) {
    %c0_i32 = arith.constant 0 : i32
    %c0_i32_0 = arith.constant 0 : i32
    %c0_i32_1 = arith.constant 0 : i32
    return %c0_i32, %c0_i32_0 : i32, i32
  }
  func.func @transform_8(%arg0: i32) -> (i32, i32) {
    %c0_i32 = arith.constant 0 : i32
    %c0_i32_0 = arith.constant 0 : i32
    %c0_i32_1 = arith.constant 0 : i32
    return %c0_i32, %c0_i32_0 : i32, i32
  }
}

</mosaic_0001>

<llo_original>
// kernel: tpu_custom_call.1
$region0: #{tpu_custom_call.1}
  #allocation0 [shape = 'u32[]', space=smem, size = 0x4, offset = 0x4, fixed_abs, tag = 'smem constant byte address 0x4 - core index']
  #allocation1 [shape = 'u32[144,128]{1,0:T(1,128)}', space=vmem, size = 0x12000, scoped, tag = 'internal scratch']
  #allocation2 [shape = 'bf16[128,1024]{1,0:T(8,128)(2,1)}', space=vmem, size = 0x40000, scoped, tag = 'scratch operand']
  #allocation3 [shape = 'bf16[16,768]{1,0:T(8,128)(2,1)}', space=vmem, size = 0x6000, scoped, tag = 'scratch operand']
  #allocation4 [shape = 'bf16[256,1024]{1,0:T(8,128)(2,1)}', space=vmem, size = 0x80000, scoped, tag = 'scratch operand']
  #allocation5 [shape = 'bf16[768,128]{1,0:T(8,128)(2,1)}', space=vmem, size = 0x30000, scoped, tag = 'scratch operand']
  #allocation6 [shape = 's32[2]{0}', space=sflag, size = 0x8, scoped, tag = 'scratch operand']
  #allocation17 [shape = 's32[]', space=sflag, size = 0x4, offset = 0, fixed_abs, tag = 'sflag constant byte address 0x0 - dummy sync flag']
  #allocation18 [shape = 's32[]', space=sflag, size = 0x4, offset = 0, fixed_abs, tag = 'sflag constant byte address 0x0 - dummy sync flag']
  #allocation19 [shape = 'u32[]', space=smem, size = 0x4, offset = 0x44, fixed_abs, tag = 'smem constant byte address 0x44 - assertion arg 0']
  #allocation20 [shape = 'u32[]', space=smem, size = 0x4, offset = 0x48, fixed_abs, tag = 'smem constant byte address 0x48 - assertion arg 1']
  #allocation21 [shape = 's32[]', space=sflag, size = 0x4, offset = 0, fixed_abs, tag = 'sflag constant byte address 0x0 - dummy sync flag']
  #allocation22 [shape = 's32[]', space=sflag, size = 0x4, offset = 0, fixed_abs, tag = 'sflag constant byte address 0x0 - dummy sync flag']
  %s0 = inlined_call_operand.hbm [shape: bf16[128,128], index: 0, kind: input, shape index: {}]
  %s1 = inlined_call_operand.hbm [shape: bf16[128,1024], index: 1, kind: input, shape index: {}]
  %s2 = inlined_call_operand.hbm [shape: f32[1,1024], index: 2, kind: input, shape index: {}]
  %s3 = inlined_call_operand.hbm [shape: bf16[256,1024], index: 3, kind: input, shape index: {}]
  %s4 = inlined_call_operand.hbm [shape: f32[1,1024], index: 4, kind: input, shape index: {}]
  %s5 = inlined_call_operand.vmem [shape: f32[1,128], index: 5, kind: input, shape index: {}]
  %s6 = inlined_call_operand.hbm [shape: bf16[256,1024], index: 6, kind: input, shape index: {}]
  %s7 = inlined_call_operand.hbm [shape: bf16[768,128], index: 7, kind: input, shape index: {}]
  %s8 = inlined_call_operand.hbm [shape: f32[16,128], index: 8, kind: output, shape index: {}]
  %s9 = sld [smem:[#allocation0]]
  $region62: #{tpu_custom_call.1} parent=0
    _
  %s11 = ssub.s32 1, %s9
  %s12 = scalar_select 0, %s11, %s9
  $region1: #{tpu_custom_call.1} parent=0
    #allocation7 [shape = 'u8[32768]{0}', space=vmem, size = 0x8000, scoped, tag = 'input window, operand 0, single buffered']
    #allocation8 [shape = 's32[1]{0}', space=sflag, size = 0x4, scoped, tag = 'scoped memory for tpu_custom_call.1']
    #allocation9 [shape = 's32[1]{0}', space=sflag, size = 0x4, scoped, tag = 'scoped memory for tpu_custom_call.1']
    #allocation10 [shape = 'u8[262144]{0}', space=vmem, size = 0x40000, scoped, tag = 'input window, operand 1, single buffered']
    #allocation11 [shape = 's32[1]{0}', space=sflag, size = 0x4, scoped, tag = 'scoped memory for tpu_custom_call.1']
    #allocation12 [shape = 'u8[4096]{0}', space=vmem, size = 0x1000, scoped, tag = 'input window, operand 2, single buffered']
    #allocation13 [shape = 'u8[524288]{0}', space=vmem, size = 0x80000, scoped, tag = 'input window, operand 3, single buffered']
    #allocation14 [shape = 's32[1]{0}', space=sflag, size = 0x4, scoped, tag = 'scoped memory for tpu_custom_call.1']
    #allocation15 [shape = 'u8[4096]{0}', space=vmem, size = 0x1000, scoped, tag = 'input window, operand 4, single buffered']
    #allocation16 [shape = 'u8[8192]{0}', space=vmem, size = 0x2000, scoped, tag = 'output window, operand 0, single buffered']
    %13 = vsyncpa [#allocation8], 0
    %14 = vsyncpa [#allocation11], 0
    %15 = vsyncpa [#allocation14], 0
    %16 = vsyncpa [#allocation9], 0
    // Predicated region
    $region2: #{tpu_custom_call.1} parent=1 // pred_check
      _
    $region3: #{tpu_custom_call.1} parent=1 // pred_check_branch
      %18 = sbr.rel (0) target = $region5
    $region4: #{tpu_custom_call.1} parent=1 // pred_region
      %s20 = ssub.s32 1024, 1024
      %21 = vsyncadd [#allocation8], %s20
      %s22 = sshll.u32 [#allocation7], 4
      %s23 = int_to_ptr.vmem [resolvable:$true] %s22
      %28 = dma.hbm_to_vmem [thread:$0]  %s0, 1024, %s23, [#allocation8], 64, 64, 4
    $region5: #{tpu_custom_call.1} parent=1 // pred_fallthru
      _
    // Predicated region
    $region6: #{tpu_custom_call.1} parent=1 // pred_check
      _
    $region7: #{tpu_custom_call.1} parent=1 // pred_check_branch
      %30 = sbr.rel (0) target = $region9
    $region8: #{tpu_custom_call.1} parent=1 // pred_region
      %s32 = ssub.s32 8192, 8192
      %33 = vsyncadd [#allocation11], %s32
      %s34 = sshll.u32 [#allocation10], 4
      %s35 = int_to_ptr.vmem [resolvable:$true] %s34
      %40 = dma.hbm_to_vmem [thread:$0]  %s1, 8192, %s35, [#allocation11], 512, 512, 32
    $region9: #{tpu_custom_call.1} parent=1 // pred_fallthru
      _
    // Predicated region
    $region10: #{tpu_custom_call.1} parent=1 // pred_check
      _
    $region11: #{tpu_custom_call.1} parent=1 // pred_check_branch
      %42 = sbr.rel (0) target = $region13
    $region12: #{tpu_custom_call.1} parent=1 // pred_region
      %s44 = ssub.s32 128, 128
      %45 = vsyncadd [#allocation11], %s44
      %s47 = sshll.u32 [#allocation12], 4
      %s48 = int_to_ptr.vmem [resolvable:$true] %s47
      %50 = dma.hbm_to_vmem [thread:$0]  %s2, 128, %s48, [#allocation11]
    $region13: #{tpu_custom_call.1} parent=1 // pred_fallthru
      _
    // Predicated region
    $region14: #{tpu_custom_call.1} parent=1 // pred_check
      _
    $region15: #{tpu_custom_call.1} parent=1 // pred_check_branch
      %52 = sbr.rel (0) target = $region17
    $region16: #{tpu_custom_call.1} parent=1 // pred_region
      %s54 = ssub.s32 16384, 16384
      %55 = vsyncadd [#allocation14], %s54
      %s56 = sshll.u32 [#allocation13], 4
      %s57 = int_to_ptr.vmem [resolvable:$true] %s56
      %62 = dma.hbm_to_vmem [thread:$0]  %s3, 16384, %s57, [#allocation14], 512, 512, 32
    $region17: #{tpu_custom_call.1} parent=1 // pred_fallthru
      _
    // Predicated region
    $region18: #{tpu_custom_call.1} parent=1 // pred_check
      _
    $region19: #{tpu_custom_call.1} parent=1 // pred_check_branch
      %64 = sbr.rel (0) target = $region21
    $region20: #{tpu_custom_call.1} parent=1 // pred_region
      %s66 = ssub.s32 128, 128
      %67 = vsyncadd [#allocation14], %s66
      %s69 = sshll.u32 [#allocation15], 4
      %s70 = int_to_ptr.vmem [resolvable:$true] %s69
      %72 = dma.hbm_to_vmem [thread:$0]  %s4, 128, %s70, [#allocation14]
    $region21: #{tpu_custom_call.1} parent=1 // pred_fallthru
      _
    // Predicated region
    $region22: #{tpu_custom_call.1} parent=1 // pred_check
      _
    $region23: #{tpu_custom_call.1} parent=1 // pred_check_branch
      %74 = sbr.rel (0) target = $region25
    $region24: #{tpu_custom_call.1} parent=1 // pred_region
      _
    $region25: #{tpu_custom_call.1} parent=1 // pred_fallthru
      _
    // Predicated region
    $region26: #{tpu_custom_call.1} parent=1 // pred_check
      _
    $region27: #{tpu_custom_call.1} parent=1 // pred_check_branch
      %76 = sbr.rel (0) target = $region29
    $region28: #{tpu_custom_call.1} parent=1 // pred_region
      %77 = dma.done [#allocation8], 1024
    $region29: #{tpu_custom_call.1} parent=1 // pred_fallthru
      _
    // Predicated region
    $region30: #{tpu_custom_call.1} parent=1 // pred_check
      _
    $region31: #{tpu_custom_call.1} parent=1 // pred_check_branch
      %79 = sbr.rel (0) target = $region33
    $region32: #{tpu_custom_call.1} parent=1 // pred_region
      %80 = dma.done [#allocation11], 8192
    $region33: #{tpu_custom_call.1} parent=1 // pred_fallthru
      _
    // Predicated region
    $region34: #{tpu_custom_call.1} parent=1 // pred_check
      _
    $region35: #{tpu_custom_call.1} parent=1 // pred_check_branch
      %82 = sbr.rel (0) target = $region37
    $region36: #{tpu_custom_call.1} parent=1 // pred_region
      %83 = dma.done [#allocation11], 128
    $region37: #{tpu_custom_call.1} parent=1 // pred_fallthru
      _
    // Predicated region
    $region38: #{tpu_custom_call.1} parent=1 // pred_check
      _
    $region39: #{tpu_custom_call.1} parent=1 // pred_check_branch
      %85 = sbr.rel (0) target = $region41
    $region40: #{tpu_custom_call.1} parent=1 // pred_region
      %86 = dma.done [#allocation14], 16384
    $region41: #{tpu_custom_call.1} parent=1 // pred_fallthru
      _
    // Predicated region
    $region42: #{tpu_custom_call.1} parent=1 // pred_check
      _
    $region43: #{tpu_custom_call.1} parent=1 // pred_check_branch
      %88 = sbr.rel (0) target = $region45
    $region44: #{tpu_custom_call.1} parent=1 // pred_region
      %89 = dma.done [#allocation14], 128
    $region45: #{tpu_custom_call.1} parent=1 // pred_fallthru
      _
    // Predicated region
    $region46: #{tpu_custom_call.1} parent=1 // pred_check
      _
    $region47: #{tpu_custom_call.1} parent=1 // pred_check_branch
      %92 = sbr.rel target = $region49
    $region48: #{tpu_custom_call.1} parent=1 // pred_region
      %93 = sst [smem:[#allocation19]] [#allocation18]
      %94 = sst [smem:[#allocation20]] [#allocation17]
    $region49: #{tpu_custom_call.1} parent=1 // pred_fallthru
      _
    %96 = shalt.err (0)
    %s98 = sshll.u32 [#allocation4], 4
    %s99 = int_to_ptr.vmem [resolvable:$true] %s98
    %101 = dma.hbm_to_vmem [thread:$0]  %s6, 16384, %s99, [#allocation6]
    %s102 = scalar_lea.sflag [#allocation6], 1
    // Predicated region
    $region50: #{tpu_custom_call.1} parent=1 // pred_check
      _
    $region51: #{tpu_custom_call.1} parent=1 // pred_check_branch
      %104 = sbr.rel target = $region53
    $region52: #{tpu_custom_call.1} parent=1 // pred_region
      %105 = sst [smem:[#allocation19]] [#allocation22]
      %106 = sst [smem:[#allocation20]] [#allocation21]
    $region53: #{tpu_custom_call.1} parent=1 // pred_fallthru
      _
    %108 = shalt.err (0)
    %s110 = sshll.u32 [#allocation5], 4
    %s111 = int_to_ptr.vmem [resolvable:$true] %s110
    %113 = dma.hbm_to_vmem [thread:$0]  %s7, 6144, %s111, %s102
    %v114 = vld [vmem:[#allocation7] sm:$0xf]
    %v115 = vld [vmem:[#allocation7 + $0x4] sm:$0xf]
    %v116 = vld [vmem:[#allocation7 + $0x8] sm:$0xf]
    %v117 = vld [vmem:[#allocation7 + $0xc] sm:$0xf]
    %v118 = vld [vmem:[#allocation7 + $0x10] sm:$0xf]
    %v119 = vld [vmem:[#allocation7 + $0x14] sm:$0xf]
    %v120 = vld [vmem:[#allocation7 + $0x18] sm:$0xf]
    %v121 = vld [vmem:[#allocation7 + $0x1c] sm:$0xf]
    %v122 = vld [vmem:[#allocation7 + $0x20] sm:$0xf]
    %v123 = vld [vmem:[#allocation7 + $0x24] sm:$0xf]
    %v124 = vld [vmem:[#allocation7 + $0x28] sm:$0xf]
    %v125 = vld [vmem:[#allocation7 + $0x2c] sm:$0xf]
    %v126 = vld [vmem:[#allocation7 + $0x30] sm:$0xf]
    %v127 = vld [vmem:[#allocation7 + $0x34] sm:$0xf]
    %v128 = vld [vmem:[#allocation7 + $0x38] sm:$0xf]
    %v129 = vld [vmem:[#allocation7 + $0x3c] sm:$0xf]
    %v130 = vld [vmem:[#allocation10] sm:$0xff]
    %v131 = vld [vmem:[#allocation10 + $0x8] sm:$0xff]
    %v132 = vld [vmem:[#allocation10 + $0x10] sm:$0xff]
    %v133 = vld [vmem:[#allocation10 + $0x18] sm:$0xff]
    %v134 = vld [vmem:[#allocation10 + $0x20] sm:$0xff]
    %v135 = vld [vmem:[#allocation10 + $0x28] sm:$0xff]
    %v136 = vld [vmem:[#allocation10 + $0x30] sm:$0xff]
    %v137 = vld [vmem:[#allocation10 + $0x38] sm:$0xff]
    %v138 = vld [vmem:[#allocation10 + $0x40] sm:$0xff]
    %v139 = vld [vmem:[#allocation10 + $0x48] sm:$0xff]
    %v140 = vld [vmem:[#allocation10 + $0x50] sm:$0xff]
    %v141 = vld [vmem:[#allocation10 + $0x58] sm:$0xff]
    %v142 = vld [vmem:[#allocation10 + $0x60] sm:$0xff]
    %v143 = vld [vmem:[#allocation10 + $0x68] sm:$0xff]
    %v144 = vld [vmem:[#allocation10 + $0x70] sm:$0xff]
    %v145 = vld [vmem:[#allocation10 + $0x78] sm:$0xff]
    %v146 = vld [vmem:[#allocation10 + $0x80] sm:$0xff]
    %v147 = vld [vmem:[#allocation10 + $0x88] sm:$0xff]
    %v148 = vld [vmem:[#allocation10 + $0x90] sm:$0xff]
    %v149 = vld [vmem:[#allocation10 + $0x98] sm:$0xff]
    %v150 = vld [vmem:[#allocation10 + $0xa0] sm:$0xff]
    %v151 = vld [vmem:[#allocation10 + $0xa8] sm:$0xff]
    %v152 = vld [vmem:[#allocation10 + $0xb0] sm:$0xff]
    %v153 = vld [vmem:[#allocation10 + $0xb8] sm:$0xff]
    %v154 = vld [vmem:[#allocation10 + $0xc0] sm:$0xff]
    %v155 = vld [vmem:[#allocation10 + $0xc8] sm:$0xff]
    %v156 = vld [vmem:[#allocation10 + $0xd0] sm:$0xff]
    %v157 = vld [vmem:[#allocation10 + $0xd8] sm:$0xff]
    %v158 = vld [vmem:[#allocation10 + $0xe0] sm:$0xff]
    %v159 = vld [vmem:[#allocation10 + $0xe8] sm:$0xff]
    %v160 = vld [vmem:[#allocation10 + $0xf0] sm:$0xff]
    %v161 = vld [vmem:[#allocation10 + $0xf8] sm:$0xff]
    %v162 = vld [vmem:[#allocation10 + $0x100] sm:$0xff]
    %v163 = vld [vmem:[#allocation10 + $0x108] sm:$0xff]
    %v164 = vld [vmem:[#allocation10 + $0x110] sm:$0xff]
    %v165 = vld [vmem:[#allocation10 + $0x118] sm:$0xff]
    %v166 = vld [vmem:[#allocation10 + $0x120] sm:$0xff]
    %v167 = vld [vmem:[#allocation10 + $0x128] sm:$0xff]
    %v168 = vld [vmem:[#allocation10 + $0x130] sm:$0xff]
    %v169 = vld [vmem:[#allocation10 + $0x138] sm:$0xff]
    %v170 = vld [vmem:[#allocation10 + $0x140] sm:$0xff]
    %v171 = vld [vmem:[#allocation10 + $0x148] sm:$0xff]
    %v172 = vld [vmem:[#allocation10 + $0x150] sm:$0xff]
    %v173 = vld [vmem:[#allocation10 + $0x158] sm:$0xff]
    %v174 = vld [vmem:[#allocation10 + $0x160] sm:$0xff]
    %v175 = vld [vmem:[#allocation10 + $0x168] sm:$0xff]
    %v176 = vld [vmem:[#allocation10 + $0x170] sm:$0xff]
    %v177 = vld [vmem:[#allocation10 + $0x178] sm:$0xff]
    %v178 = vld [vmem:[#allocation10 + $0x180] sm:$0xff]
    %v179 = vld [vmem:[#allocation10 + $0x188] sm:$0xff]
    %v180 = vld [vmem:[#allocation10 + $0x190] sm:$0xff]
    %v181 = vld [vmem:[#allocation10 + $0x198] sm:$0xff]
    %v182 = vld [vmem:[#allocation10 + $0x1a0] sm:$0xff]
    %v183 = vld [vmem:[#allocation10 + $0x1a8] sm:$0xff]
    %v184 = vld [vmem:[#allocation10 + $0x1b0] sm:$0xff]
    %v185 = vld [vmem:[#allocation10 + $0x1b8] sm:$0xff]
    %v186 = vld [vmem:[#allocation10 + $0x1c0] sm:$0xff]
    %v187 = vld [vmem:[#allocation10 + $0x1c8] sm:$0xff]
    %v188 = vld [vmem:[#allocation10 + $0x1d0] sm:$0xff]
    %v189 = vld [vmem:[#allocation10 + $0x1d8] sm:$0xff]
    %v190 = vld [vmem:[#allocation10 + $0x1e0] sm:$0xff]
    %v191 = vld [vmem:[#allocation10 + $0x1e8] sm:$0xff]
    %v192 = vld [vmem:[#allocation10 + $0x1f0] sm:$0xff]
    %v193 = vld [vmem:[#allocation10 + $0x1f8] sm:$0xff]
    %v194 = vld [vmem:[#allocation12] sm:$0xff]
    %v196 = vlaneseq
    %v197 = vshrl.u32 %v196, 7
    %v198 = vsub.s32 0, %v197
    %v199 = vrot.slane %v194, %v198
    %v200 = vlaneseq
    %v201 = vshrl.u32 %v200, 7
    %v202 = vsub.s32 1, %v201
    %v203 = vrot.slane %v194, %v202
    %v204 = vlaneseq
    %v205 = vshrl.u32 %v204, 7
    %v206 = vsub.s32 2, %v205
    %v207 = vrot.slane %v194, %v206
    %v208 = vlaneseq
    %v209 = vshrl.u32 %v208, 7
    %v210 = vsub.s32 3, %v209
    %v211 = vrot.slane %v194, %v210
    %v212 = vlaneseq
    %v213 = vshrl.u32 %v212, 7
    %v214 = vsub.s32 4, %v213
    %v215 = vrot.slane %v194, %v214
    %v216 = vlaneseq
    %v217 = vshrl.u32 %v216, 7
    %v218 = vsub.s32 5, %v217
    %v219 = vrot.slane %v194, %v218
    %v220 = vlaneseq
    %v221 = vshrl.u32 %v220, 7
    %v222 = vsub.s32 6, %v221
    %v223 = vrot.slane %v194, %v222
    %v224 = vlaneseq
    %v225 = vshrl.u32 %v224, 7
    %v226 = vsub.s32 7, %v225
    %v227 = vrot.slane %v194, %v226
    %v252 = vunpack.c.l.b16 %v114
    %v253 = vunpack.c.l.b16 %v115
    %v254 = vunpack.c.l.b16 %v116
    %v255 = vunpack.c.l.b16 %v117
    %v256 = vunpack.c.l.b16 %v118
    %v257 = vunpack.c.l.b16 %v119
    %v258 = vunpack.c.l.b16 %v120
    %v259 = vunpack.c.l.b16 %v121
    %v260 = vunpack.c.l.b16 %v122
    %v261 = vunpack.c.l.b16 %v123
    %v262 = vunpack.c.l.b16 %v124
    %v263 = vunpack.c.l.b16 %v125
    %v264 = vunpack.c.l.b16 %v126
    %v265 = vunpack.c.l.b16 %v127
    %v266 = vunpack.c.l.b16 %v128
    %v267 = vunpack.c.l.b16 %v129
    %v268 = vpack.c.b16 %v253, %v252
    %v269 = vpack.c.b16 %v255, %v254
    %v270 = vpack.c.b16 %v257, %v256
    %v271 = vpack.c.b16 %v259, %v258
    %v272 = vpack.c.b16 %v261, %v260
    %v273 = vpack.c.b16 %v263, %v262
    %v274 = vpack.c.b16 %v265, %v264
    %v275 = vpack.c.b16 %v267, %v266
    %v348 = vunpack.c.l.b16 %v130
    %v349 = vunpack.c.h.b16 %v130
    %v350 = vunpack.c.l.b16 %v131
    %v351 = vunpack.c.h.b16 %v131
    %v352 = vunpack.c.l.b16 %v132
    %v353 = vunpack.c.h.b16 %v132
    %v354 = vunpack.c.l.b16 %v133
    %v355 = vunpack.c.h.b16 %v133
    %v356 = vunpack.c.l.b16 %v134
    %v357 = vunpack.c.h.b16 %v134
    %v358 = vunpack.c.l.b16 %v135
    %v359 = vunpack.c.h.b16 %v135
    %v360 = vunpack.c.l.b16 %v136
    %v361 = vunpack.c.h.b16 %v136
    %v362 = vunpack.c.l.b16 %v137
    %v363 = vunpack.c.h.b16 %v137
    %v364 = vunpack.c.l.b16 %v138
    %v365 = vunpack.c.h.b16 %v138
    %v366 = vunpack.c.l.b16 %v139
    %v367 = vunpack.c.h.b16 %v139
    %v368 = vunpack.c.l.b16 %v140
    %v369 = vunpack.c.h.b16 %v140
    %v370 = vunpack.c.l.b16 %v141
    %v371 = vunpack.c.h.b16 %v141
    %v372 = vunpack.c.l.b16 %v142
    %v373 = vunpack.c.h.b16 %v142
    %v374 = vunpack.c.l.b16 %v143
    %v375 = vunpack.c.h.b16 %v143
    %v376 = vunpack.c.l.b16 %v144
    %v377 = vunpack.c.h.b16 %v144
    %v378 = vunpack.c.l.b16 %v145
    %v379 = vunpack.c.h.b16 %v145
    %v380 = vunpack.c.l.b16 %v146
    %v381 = vunpack.c.h.b16 %v146
    %v382 = vunpack.c.l.b16 %v147
    %v383 = vunpack.c.h.b16 %v147
    %v384 = vunpack.c.l.b16 %v148
    %v385 = vunpack.c.h.b16 %v148
    %v386 = vunpack.c.l.b16 %v149
    %v387 = vunpack.c.h.b16 %v149
    %v388 = vunpack.c.l.b16 %v150
    %v389 = vunpack.c.h.b16 %v150
    %v390 = vunpack.c.l.b16 %v151
    %v391 = vunpack.c.h.b16 %v151
    %v392 = vunpack.c.l.b16 %v152
    %v393 = vunpack.c.h.b16 %v152
    %v394 = vunpack.c.l.b16 %v153
    %v395 = vunpack.c.h.b16 %v153
    %v396 = vunpack.c.l.b16 %v154
    %v397 = vunpack.c.h.b16 %v154
    %v398 = vunpack.c.l.b16 %v155
    %v399 = vunpack.c.h.b16 %v155
    %v400 = vunpack.c.l.b16 %v156
    %v401 = vunpack.c.h.b16 %v156
    %v402 = vunpack.c.l.b16 %v157
    %v403 = vunpack.c.h.b16 %v157
    %v404 = vunpack.c.l.b16 %v158
    %v405 = vunpack.c.h.b16 %v158
    %v406 = vunpack.c.l.b16 %v159
    %v407 = vunpack.c.h.b16 %v159
    %v408 = vunpack.c.l.b16 %v160
    %v409 = vunpack.c.h.b16 %v160
    %v410 = vunpack.c.l.b16 %v161
    %v411 = vunpack.c.h.b16 %v161
    %v412 = vunpack.c.l.b16 %v162
    %v413 = vunpack.c.h.b16 %v162
    %v414 = vunpack.c.l.b16 %v163
    %v415 = vunpack.c.h.b16 %v163
    %v416 = vunpack.c.l.b16 %v164
    %v417 = vunpack.c.h.b16 %v164
    %v418 = vunpack.c.l.b16 %v165
    %v419 = vunpack.c.h.b16 %v165
    %v420 = vunpack.c.l.b16 %v166
    %v421 = vunpack.c.h.b16 %v166
    %v422 = vunpack.c.l.b16 %v167
    %v423 = vunpack.c.h.b16 %v167
    %v424 = vunpack.c.l.b16 %v168
    %v425 = vunpack.c.h.b16 %v168
    %v426 = vunpack.c.l.b16 %v169
    %v427 = vunpack.c.h.b16 %v169
    %v428 = vunpack.c.l.b16 %v170
    %v429 = vunpack.c.h.b16 %v170
    %v430 = vunpack.c.l.b16 %v171
    %v431 = vunpack.c.h.b16 %v171
    %v432 = vunpack.c.l.b16 %v172
    %v433 = vunpack.c.h.b16 %v172
    %v434 = vunpack.c.l.b16 %v173
    %v435 = vunpack.c.h.b16 %v173
    %v436 = vunpack.c.l.b16 %v174
    %v437 = vunpack.c.h.b16 %v174
    %v438 = vunpack.c.l.b16 %v175
    %v439 = vunpack.c.h.b16 %v175
    %v440 = vunpack.c.l.b16 %v176
    %v441 = vunpack.c.h.b16 %v176
    %v442 = vunpack.c.l.b16 %v177
    %v443 = vunpack.c.h.b16 %v177
    %v444 = vunpack.c.l.b16 %v178
    %v445 = vunpack.c.h.b16 %v178
    %v446 = vunpack.c.l.b16 %v179
    %v447 = vunpack.c.h.b16 %v179
    %v448 = vunpack.c.l.b16 %v180
    %v449 = vunpack.c.h.b16 %v180
    %v450 = vunpack.c.l.b16 %v181
    %v451 = vunpack.c.h.b16 %v181
    %v452 = vunpack.c.l.b16 %v182
    %v453 = vunpack.c.h.b16 %v182
    %v454 = vunpack.c.l.b16 %v183
    %v455 = vunpack.c.h.b16 %v183
    %v456 = vunpack.c.l.b16 %v184
    %v457 = vunpack.c.h.b16 %v184
    %v458 = vunpack.c.l.b16 %v185
    %v459 = vunpack.c.h.b16 %v185
    %v460 = vunpack.c.l.b16 %v186
    %v461 = vunpack.c.h.b16 %v186
    %v462 = vunpack.c.l.b16 %v187
    %v463 = vunpack.c.h.b16 %v187
    %v464 = vunpack.c.l.b16 %v188
    %v465 = vunpack.c.h.b16 %v188
    %v466 = vunpack.c.l.b16 %v189
    %v467 = vunpack.c.h.b16 %v189
    %v468 = vunpack.c.l.b16 %v190
    %v469 = vunpack.c.h.b16 %v190
    %v470 = vunpack.c.l.b16 %v191
    %v471 = vunpack.c.h.b16 %v191
    %v472 = vunpack.c.l.b16 %v192
    %v473 = vunpack.c.h.b16 %v192
    %v474 = vunpack.c.l.b16 %v193
    %v475 = vunpack.c.h.b16 %v193
    %v476 = vpack.c.b16 %v356, %v348
    %v477 = vpack.c.b16 %v357, %v349
    %v478 = vpack.c.b16 %v358, %v350
    %v479 = vpack.c.b16 %v359, %v351
    %v480 = vpack.c.b16 %v360, %v352
    %v481 = vpack.c.b16 %v361, %v353
    %v482 = vpack.c.b16 %v362, %v354
    %v483 = vpack.c.b16 %v363, %v355
    %v484 = vpack.c.b16 %v372, %v364
    %v485 = vpack.c.b16 %v373, %v365
    %v486 = vpack.c.b16 %v374, %v366
    %v487 = vpack.c.b16 %v375, %v367
    %v488 = vpack.c.b16 %v376, %v368
    %v489 = vpack.c.b16 %v377, %v369
    %v490 = vpack.c.b16 %v378, %v370
    %v491 = vpack.c.b16 %v379, %v371
    %v492 = vpack.c.b16 %v388, %v380
    %v493 = vpack.c.b16 %v389, %v381
    %v494 = vpack.c.b16 %v390, %v382
    %v495 = vpack.c.b16 %v391, %v383
    %v496 = vpack.c.b16 %v392, %v384
    %v497 = vpack.c.b16 %v393, %v385
    %v498 = vpack.c.b16 %v394, %v386
    %v499 = vpack.c.b16 %v395, %v387
    %v500 = vpack.c.b16 %v404, %v396
    %v501 = vpack.c.b16 %v405, %v397
    %v502 = vpack.c.b16 %v406, %v398
    %v503 = vpack.c.b16 %v407, %v399
    %v504 = vpack.c.b16 %v408, %v400
    %v505 = vpack.c.b16 %v409, %v401
    %v506 = vpack.c.b16 %v410, %v402
    %v507 = vpack.c.b16 %v411, %v403
    %v508 = vpack.c.b16 %v420, %v412
    %v509 = vpack.c.b16 %v421, %v413
    %v510 = vpack.c.b16 %v422, %v414
    %v511 = vpack.c.b16 %v423, %v415
    %v512 = vpack.c.b16 %v424, %v416
    %v513 = vpack.c.b16 %v425, %v417
    %v514 = vpack.c.b16 %v426, %v418
    %v515 = vpack.c.b16 %v427, %v419
    %v516 = vpack.c.b16 %v436, %v428
    %v517 = vpack.c.b16 %v437, %v429
    %v518 = vpack.c.b16 %v438, %v430
    %v519 = vpack.c.b16 %v439, %v431
    %v520 = vpack.c.b16 %v440, %v432
    %v521 = vpack.c.b16 %v441, %v433
    %v522 = vpack.c.b16 %v442, %v434
    %v523 = vpack.c.b16 %v443, %v435
    %v524 = vpack.c.b16 %v452, %v444
    %v525 = vpack.c.b16 %v453, %v445
    %v526 = vpack.c.b16 %v454, %v446
    %v527 = vpack.c.b16 %v455, %v447
    %v528 = vpack.c.b16 %v456, %v448
    %v529 = vpack.c.b16 %v457, %v449
    %v530 = vpack.c.b16 %v458, %v450
    %v531 = vpack.c.b16 %v459, %v451
    %v532 = vpack.c.b16 %v468, %v460
    %v533 = vpack.c.b16 %v469, %v461
    %v534 = vpack.c.b16 %v470, %v462
    %v535 = vpack.c.b16 %v471, %v463
    %v536 = vpack.c.b16 %v472, %v464
    %v537 = vpack.c.b16 %v473, %v465
    %v538 = vpack.c.b16 %v474, %v466
    %v539 = vpack.c.b16 %v475, %v467
    %604 = vmatprep.subr.bf16.mxu0 %v533
    %605 = vmatpush1.bf16.msra.mxu0 %v532
    %606 = vmatprep.subr.bf16.mxu0 %v525
    %607 = vmatpush1.bf16.msra.mxu0 %v524
    %608 = vmatprep.subr.bf16.mxu0 %v517
    %609 = vmatpush1.bf16.msra.mxu0 %v516
    %610 = vmatprep.subr.bf16.mxu0 %v509
    %611 = vmatpush1.bf16.msra.mxu0 %v508
    %612 = vmatprep.subr.bf16.mxu0 %v501
    %613 = vmatpush1.bf16.msra.mxu0 %v500
    %614 = vmatprep.subr.bf16.mxu0 %v493
    %615 = vmatpush1.bf16.msra.mxu0 %v492
    %616 = vmatprep.subr.bf16.mxu0 %v485
    %617 = vmatpush1.bf16.msra.mxu0 %v484
    %618 = vmatprep.subr.bf16.mxu0 %v477
    %619 = vmatpush1.bf16.msra.mxu0 %v476
    %620 = vmatprep.subr.bf16.mxu0 0
    %621 = vmatpush2.bf16.msra.mxu0 0
    %622 = vmatprep.subr.bf16.mxu0 0
    %623 = vmatpush2.bf16.msra.mxu0 0
    %624 = vmatprep.subr.bf16.mxu0 0
    %625 = vmatpush2.bf16.msra.mxu0 0
    %626 = vmatprep.subr.bf16.mxu0 0
    %627 = vmatpush2.bf16.msra.mxu0 0
    %628 = vmatprep.subr.bf16.mxu0 0
    %629 = vmatpush2.bf16.msra.mxu0 0
    %630 = vmatprep.subr.bf16.mxu0 0
    %631 = vmatpush2.bf16.msra.mxu0 0
    %632 = vmatprep.subr.bf16.mxu0 0
    %633 = vmatpush2.bf16.msra.mxu0 0
    %634 = vmatprep.subr.bf16.mxu0 0
    %635 = vmatpush2.bf16.msra.mxu0 0
    %636 = vmatprep.mubr.bf16.mxu0 0
    %637 = vmatmul.mubr.bf16.gmra.mxu0 %v268
    %v638 = vpop.f32.mrf.mxu0
    %v639 = vadd.f32 %v199, %v638
    %v640 = vpop.f32.mrf.mxu0
    %v641 = vadd.f32 %v203, %v640
    %v642 = vpop.f32.mrf.mxu0
    %v643 = vadd.f32 %v199, %v642
    %v644 = vpop.f32.mrf.mxu0
    %v645 = vadd.f32 %v203, %v644
    %646 = vmatprep.mubr.bf16.mxu0 0
    %647 = vmatmul.mubr.bf16.gmra.mxu0 %v269
    %v648 = vpop.f32.mrf.mxu0
    %v649 = vadd.f32 %v199, %v648
    %v650 = vpop.f32.mrf.mxu0
    %v651 = vadd.f32 %v203, %v650
    %v652 = vpop.f32.mrf.mxu0
    %v653 = vadd.f32 %v199, %v652
    %v654 = vpop.f32.mrf.mxu0
    %v655 = vadd.f32 %v203, %v654
    %656 = vmatprep.mubr.bf16.mxu0 0
    %657 = vmatmul.mubr.bf16.gmra.mxu0 %v270
    %v658 = vpop.f32.mrf.mxu0
    %v659 = vadd.f32 %v199, %v658
    %v660 = vpop.f32.mrf.mxu0
    %v661 = vadd.f32 %v203, %v660
    %v662 = vpop.f32.mrf.mxu0
    %v663 = vadd.f32 %v199, %v662
    %v664 = vpop.f32.mrf.mxu0
    %v665 = vadd.f32 %v203, %v664
    %666 = vmatprep.mubr.bf16.mxu0 0
    %667 = vmatmul.mubr.bf16.gmra.mxu0 %v271
    %v668 = vpop.f32.mrf.mxu0
    %v669 = vadd.f32 %v199, %v668
    %v670 = vpop.f32.mrf.mxu0
    %v671 = vadd.f32 %v203, %v670
    %v672 = vpop.f32.mrf.mxu0
    %v673 = vadd.f32 %v199, %v672
    %v674 = vpop.f32.mrf.mxu0
    %v675 = vadd.f32 %v203, %v674
    %676 = vmatprep.mubr.bf16.mxu0 0
    %677 = vmatmul.mubr.bf16.gmra.mxu0 %v272
    %v678 = vpop.f32.mrf.mxu0
    %v679 = vadd.f32 %v199, %v678
    %v680 = vpop.f32.mrf.mxu0
    %v681 = vadd.f32 %v203, %v680
    %v682 = vpop.f32.mrf.mxu0
    %v683 = vadd.f32 %v199, %v682
    %v684 = vpop.f32.mrf.mxu0
    %v685 = vadd.f32 %v203, %v684
    %686 = vmatprep.mubr.bf16.mxu0 0
    %687 = vmatmul.mubr.bf16.gmra.mxu0 %v273
    %v688 = vpop.f32.mrf.mxu0
    %v689 = vadd.f32 %v199, %v688
    %v690 = vpop.f32.mrf.mxu0
    %v691 = vadd.f32 %v203, %v690
    %v692 = vpop.f32.mrf.mxu0
    %v693 = vadd.f32 %v199, %v692
    %v694 = vpop.f32.mrf.mxu0
    %v695 = vadd.f32 %v203, %v694
    %696 = vmatprep.mubr.bf16.mxu0 0
    %697 = vmatmul.mubr.bf16.gmra.mxu0 %v274
    %v698 = vpop.f32.mrf.mxu0
    %v699 = vadd.f32 %v199, %v698
    %v700 = vpop.f32.mrf.mxu0
    %v701 = vadd.f32 %v203, %v700
    %v702 = vpop.f32.mrf.mxu0
    %v703 = vadd.f32 %v199, %v702
    %v704 = vpop.f32.mrf.mxu0
    %v705 = vadd.f32 %v203, %v704
    %706 = vmatprep.mubr.bf16.mxu0 0
    %707 = vmatmul.mubr.bf16.gmra.mxu0 %v275
    %v708 = vpop.f32.mrf.mxu0
    %v709 = vadd.f32 %v199, %v708
    %v710 = vpop.f32.mrf.mxu0
    %v711 = vadd.f32 %v203, %v710
    %v712 = vpop.f32.mrf.mxu0
    %v713 = vadd.f32 %v199, %v712
    %v714 = vpop.f32.mrf.mxu0
    %v715 = vadd.f32 %v203, %v714
    %716 = vdwg.mxu0
    %717 = vmatprep.subr.bf16.mxu0 %v535
    %718 = vmatpush1.bf16.msra.mxu0 %v534
    %719 = vmatprep.subr.bf16.mxu0 %v527
    %720 = vmatpush1.bf16.msra.mxu0 %v526
    %721 = vmatprep.subr.bf16.mxu0 %v519
    %722 = vmatpush1.bf16.msra.mxu0 %v518
    %723 = vmatprep.subr.bf16.mxu0 %v511
    %724 = vmatpush1.bf16.msra.mxu0 %v510
    %725 = vmatprep.subr.bf16.mxu0 %v503
    %726 = vmatpush1.bf16.msra.mxu0 %v502
    %727 = vmatprep.subr.bf16.mxu0 %v495
    %728 = vmatpush1.bf16.msra.mxu0 %v494
    %729 = vmatprep.subr.bf16.mxu0 %v487
    %730 = vmatpush1.bf16.msra.mxu0 %v486
    %731 = vmatprep.subr.bf16.mxu0 %v479
    %732 = vmatpush1.bf16.msra.mxu0 %v478
    %733 = vmatprep.subr.bf16.mxu0 0
    %734 = vmatpush2.bf16.msra.mxu0 0
    %735 = vmatprep.subr.bf16.mxu0 0
    %736 = vmatpush2.bf16.msra.mxu0 0
    %737 = vmatprep.subr.bf16.mxu0 0
    %738 = vmatpush2.bf16.msra.mxu0 0
    %739 = vmatprep.subr.bf16.mxu0 0
    %740 = vmatpush2.bf16.msra.mxu0 0
    %741 = vmatprep.subr.bf16.mxu0 0
    %742 = vmatpush2.bf16.msra.mxu0 0
    %743 = vmatprep.subr.bf16.mxu0 0
    %744 = vmatpush2.bf16.msra.mxu0 0
    %745 = vmatprep.subr.bf16.mxu0 0
    %746 = vmatpush2.bf16.msra.mxu0 0
    %747 = vmatprep.subr.bf16.mxu0 0
    %748 = vmatpush2.bf16.msra.mxu0 0
    %749 = vmatprep.mubr.bf16.mxu0 0
    %750 = vmatmul.mubr.bf16.gmra.mxu0 %v268
    %v751 = vpop.f32.mrf.mxu0
    %v752 = vadd.f32 %v207, %v751
    %v753 = vpop.f32.mrf.mxu0
    %v754 = vadd.f32 %v211, %v753
    %v755 = vpop.f32.mrf.mxu0
    %v756 = vadd.f32 %v207, %v755
    %v757 = vpop.f32.mrf.mxu0
    %v758 = vadd.f32 %v211, %v757
    %759 = vmatprep.mubr.bf16.mxu0 0
    %760 = vmatmul.mubr.bf16.gmra.mxu0 %v269
    %v761 = vpop.f32.mrf.mxu0
    %v762 = vadd.f32 %v207, %v761
    %v763 = vpop.f32.mrf.mxu0
    %v764 = vadd.f32 %v211, %v763
    %v765 = vpop.f32.mrf.mxu0
    %v766 = vadd.f32 %v207, %v765
    %v767 = vpop.f32.mrf.mxu0
    %v768 = vadd.f32 %v211, %v767
    %769 = vmatprep.mubr.bf16.mxu0 0
    %770 = vmatmul.mubr.bf16.gmra.mxu0 %v270
    %v771 = vpop.f32.mrf.mxu0
    %v772 = vadd.f32 %v207, %v771
    %v773 = vpop.f32.mrf.mxu0
    %v774 = vadd.f32 %v211, %v773
    %v775 = vpop.f32.mrf.mxu0
    %v776 = vadd.f32 %v207, %v775
    %v777 = vpop.f32.mrf.mxu0
    %v778 = vadd.f32 %v211, %v777
    %779 = vmatprep.mubr.bf16.mxu0 0
    %780 = vmatmul.mubr.bf16.gmra.mxu0 %v271
    %v781 = vpop.f32.mrf.mxu0
    %v782 = vadd.f32 %v207, %v781
    %v783 = vpop.f32.mrf.mxu0
    %v784 = vadd.f32 %v211, %v783
    %v785 = vpop.f32.mrf.mxu0
    %v786 = vadd.f32 %v207, %v785
    %v787 = vpop.f32.mrf.mxu0
    %v788 = vadd.f32 %v211, %v787
    %789 = vmatprep.mubr.bf16.mxu0 0
    %790 = vmatmul.mubr.bf16.gmra.mxu0 %v272
    %v791 = vpop.f32.mrf.mxu0
    %v792 = vadd.f32 %v207, %v791
    %v793 = vpop.f32.mrf.mxu0
    %v794 = vadd.f32 %v211, %v793
    %v795 = vpop.f32.mrf.mxu0
    %v796 = vadd.f32 %v207, %v795
    %v797 = vpop.f32.mrf.mxu0
    %v798 = vadd.f32 %v211, %v797
    %799 = vmatprep.mubr.bf16.mxu0 0
    %800 = vmatmul.mubr.bf16.gmra.mxu0 %v273
    %v801 = vpop.f32.mrf.mxu0
    %v802 = vadd.f32 %v207, %v801
    %v803 = vpop.f32.mrf.mxu0
    %v804 = vadd.f32 %v211, %v803
    %v805 = vpop.f32.mrf.mxu0
    %v806 = vadd.f32 %v207, %v805
    %v807 = vpop.f32.mrf.mxu0
    %v808 = vadd.f32 %v211, %v807
    %809 = vmatprep.mubr.bf16.mxu0 0
    %810 = vmatmul.mubr.bf16.gmra.mxu0 %v274
    %v811 = vpop.f32.mrf.mxu0
    %v812 = vadd.f32 %v207, %v811
    %v813 = vpop.f32.mrf.mxu0
    %v814 = vadd.f32 %v211, %v813
    %v815 = vpop.f32.mrf.mxu0
    %v816 = vadd.f32 %v207, %v815
    %v817 = vpop.f32.mrf.mxu0
    %v818 = vadd.f32 %v211, %v817
    %819 = vmatprep.mubr.bf16.mxu0 0
    %820 = vmatmul.mubr.bf16.gmra.mxu0 %v275
    %v821 = vpop.f32.mrf.mxu0
    %v822 = vadd.f32 %v207, %v821
    %v823 = vpop.f32.mrf.mxu0
    %v824 = vadd.f32 %v211, %v823
    %v825 = vpop.f32.mrf.mxu0
    %v826 = vadd.f32 %v207, %v825
    %v827 = vpop.f32.mrf.mxu0
    %v828 = vadd.f32 %v211, %v827
    %829 = vdwg.mxu0
    %830 = vmatprep.subr.bf16.mxu0 %v537
    %831 = vmatpush1.bf16.msra.mxu0 %v536
    %832 = vmatprep.subr.bf16.mxu0 %v529
    %833 = vmatpush1.bf16.msra.mxu0 %v528
    %834 = vmatprep.subr.bf16.mxu0 %v521
    %835 = vmatpush1.bf16.msra.mxu0 %v520
    %836 = vmatprep.subr.bf16.mxu0 %v513
    %837 = vmatpush1.bf16.msra.mxu0 %v512
    %838 = vmatprep.subr.bf16.mxu0 %v505
    %839 = vmatpush1.bf16.msra.mxu0 %v504
    %840 = vmatprep.subr.bf16.mxu0 %v497
    %841 = vmatpush1.bf16.msra.mxu0 %v496
    %842 = vmatprep.subr.bf16.mxu0 %v489
    %843 = vmatpush1.bf16.msra.mxu0 %v488
    %844 = vmatprep.subr.bf16.mxu0 %v481
    %845 = vmatpush1.bf16.msra.mxu0 %v480
    %846 = vmatprep.subr.bf16.mxu0 0
    %847 = vmatpush2.bf16.msra.mxu0 0
    %848 = vmatprep.subr.bf16.mxu0 0
    %849 = vmatpush2.bf16.msra.mxu0 0
    %850 = vmatprep.subr.bf16.mxu0 0
    %851 = vmatpush2.bf16.msra.mxu0 0
    %852 = vmatprep.subr.bf16.mxu0 0
    %853 = vmatpush2.bf16.msra.mxu0 0
    %854 = vmatprep.subr.bf16.mxu0 0
    %855 = vmatpush2.bf16.msra.mxu0 0
    %856 = vmatprep.subr.bf16.mxu0 0
    %857 = vmatpush2.bf16.msra.mxu0 0
    %858 = vmatprep.subr.bf16.mxu0 0
    %859 = vmatpush2.bf16.msra.mxu0 0
    %860 = vmatprep.subr.bf16.mxu0 0
    %861 = vmatpush2.bf16.msra.mxu0 0
    %862 = vmatprep.mubr.bf16.mxu0 0
    %863 = vmatmul.mubr.bf16.gmra.mxu0 %v268
    %v864 = vpop.f32.mrf.mxu0
    %v865 = vadd.f32 %v215, %v864
    %v866 = vpop.f32.mrf.mxu0
    %v867 = vadd.f32 %v219, %v866
    %v868 = vpop.f32.mrf.mxu0
    %v869 = vadd.f32 %v215, %v868
    %v870 = vpop.f32.mrf.mxu0
    %v871 = vadd.f32 %v219, %v870
    %872 = vmatprep.mubr.bf16.mxu0 0
    %873 = vmatmul.mubr.bf16.gmra.mxu0 %v269
    %v874 = vpop.f32.mrf.mxu0
    %v875 = vadd.f32 %v215, %v874
    %v876 = vpop.f32.mrf.mxu0
    %v877 = vadd.f32 %v219, %v876
    %v878 = vpop.f32.mrf.mxu0
    %v879 = vadd.f32 %v215, %v878
    %v880 = vpop.f32.mrf.mxu0
    %v881 = vadd.f32 %v219, %v880
    %882 = vmatprep.mubr.bf16.mxu0 0
    %883 = vmatmul.mubr.bf16.gmra.mxu0 %v270
    %v884 = vpop.f32.mrf.mxu0
    %v885 = vadd.f32 %v215, %v884
    %v886 = vpop.f32.mrf.mxu0
    %v887 = vadd.f32 %v219, %v886
    %v888 = vpop.f32.mrf.mxu0
    %v889 = vadd.f32 %v215, %v888
    %v890 = vpop.f32.mrf.mxu0
    %v891 = vadd.f32 %v219, %v890
    %892 = vmatprep.mubr.bf16.mxu0 0
    %893 = vmatmul.mubr.bf16.gmra.mxu0 %v271
    %v894 = vpop.f32.mrf.mxu0
    %v895 = vadd.f32 %v215, %v894
    %v896 = vpop.f32.mrf.mxu0
    %v897 = vadd.f32 %v219, %v896
    %v898 = vpop.f32.mrf.mxu0
    %v899 = vadd.f32 %v215, %v898
    %v900 = vpop.f32.mrf.mxu0
    %v901 = vadd.f32 %v219, %v900
    %902 = vmatprep.mubr.bf16.mxu0 0
    %903 = vmatmul.mubr.bf16.gmra.mxu0 %v272
    %v904 = vpop.f32.mrf.mxu0
    %v905 = vadd.f32 %v215, %v904
    %v906 = vpop.f32.mrf.mxu0
    %v907 = vadd.f32 %v219, %v906
    %v908 = vpop.f32.mrf.mxu0
    %v909 = vadd.f32 %v215, %v908
    %v910 = vpop.f32.mrf.mxu0
    %v911 = vadd.f32 %v219, %v910
    %912 = vmatprep.mubr.bf16.mxu0 0
    %913 = vmatmul.mubr.bf16.gmra.mxu0 %v273
    %v914 = vpop.f32.mrf.mxu0
    %v915 = vadd.f32 %v215, %v914
    %v916 = vpop.f32.mrf.mxu0
    %v917 = vadd.f32 %v219, %v916
    %v918 = vpop.f32.mrf.mxu0
    %v919 = vadd.f32 %v215, %v918
    %v920 = vpop.f32.mrf.mxu0
    %v921 = vadd.f32 %v219, %v920
    %922 = vmatprep.mubr.bf16.mxu0 0
    %923 = vmatmul.mubr.bf16.gmra.mxu0 %v274
    %v924 = vpop.f32.mrf.mxu0
    %v925 = vadd.f32 %v215, %v924
    %v926 = vpop.f32.mrf.mxu0
    %v927 = vadd.f32 %v219, %v926
    %v928 = vpop.f32.mrf.mxu0
    %v929 = vadd.f32 %v215, %v928
    %v930 = vpop.f32.mrf.mxu0
    %v931 = vadd.f32 %v219, %v930
    %932 = vmatprep.mubr.bf16.mxu0 0
    %933 = vmatmul.mubr.bf16.gmra.mxu0 %v275
    %v934 = vpop.f32.mrf.mxu0
    %v935 = vadd.f32 %v215, %v934
    %v936 = vpop.f32.mrf.mxu0
    %v937 = vadd.f32 %v219, %v936
    %v938 = vpop.f32.mrf.mxu0
    %v939 = vadd.f32 %v215, %v938
    %v940 = vpop.f32.mrf.mxu0
    %v941 = vadd.f32 %v219, %v940
    %942 = vdwg.mxu0
    %943 = vmatprep.subr.bf16.mxu0 %v539
    %944 = vmatpush1.bf16.msra.mxu0 %v538
    %945 = vmatprep.subr.bf16.mxu0 %v531
    %946 = vmatpush1.bf16.msra.mxu0 %v530
    %947 = vmatprep.subr.bf16.mxu0 %v523
    %948 = vmatpush1.bf16.msra.mxu0 %v522
    %949 = vmatprep.subr.bf16.mxu0 %v515
    %950 = vmatpush1.bf16.msra.mxu0 %v514
    %951 = vmatprep.subr.bf16.mxu0 %v507
    %952 = vmatpush1.bf16.msra.mxu0 %v506
    %953 = vmatprep.subr.bf16.mxu0 %v499
    %954 = vmatpush1.bf16.msra.mxu0 %v498
    %955 = vmatprep.subr.bf16.mxu0 %v491
    %956 = vmatpush1.bf16.msra.mxu0 %v490
    %957 = vmatprep.subr.bf16.mxu0 %v483
    %958 = vmatpush1.bf16.msra.mxu0 %v482
    %959 = vmatprep.subr.bf16.mxu0 0
    %960 = vmatpush2.bf16.msra.mxu0 0
    %961 = vmatprep.subr.bf16.mxu0 0
    %962 = vmatpush2.bf16.msra.mxu0 0
    %963 = vmatprep.subr.bf16.mxu0 0
    %964 = vmatpush2.bf16.msra.mxu0 0
    %965 = vmatprep.subr.bf16.mxu0 0
    %966 = vmatpush2.bf16.msra.mxu0 0
    %967 = vmatprep.subr.bf16.mxu0 0
    %968 = vmatpush2.bf16.msra.mxu0 0
    %969 = vmatprep.subr.bf16.mxu0 0
    %970 = vmatpush2.bf16.msra.mxu0 0
    %971 = vmatprep.subr.bf16.mxu0 0
    %972 = vmatpush2.bf16.msra.mxu0 0
    %973 = vmatprep.subr.bf16.mxu0 0
    %974 = vmatpush2.bf16.msra.mxu0 0
    %975 = vmatprep.mubr.bf16.mxu0 0
    %976 = vmatmul.mubr.bf16.gmra.mxu0 %v268
    %v977 = vpop.f32.mrf.mxu0
    %v978 = vadd.f32 %v223, %v977
    %v979 = vpop.f32.mrf.mxu0
    %v980 = vadd.f32 %v227, %v979
    %v981 = vpop.f32.mrf.mxu0
    %v982 = vadd.f32 %v223, %v981
    %v983 = vpop.f32.mrf.mxu0
    %v984 = vadd.f32 %v227, %v983
    %985 = vmatprep.mubr.bf16.mxu0 0
    %986 = vmatmul.mubr.bf16.gmra.mxu0 %v269
    %v987 = vpop.f32.mrf.mxu0
    %v988 = vadd.f32 %v223, %v987
    %v989 = vpop.f32.mrf.mxu0
    %v990 = vadd.f32 %v227, %v989
    %v991 = vpop.f32.mrf.mxu0
    %v992 = vadd.f32 %v223, %v991
    %v993 = vpop.f32.mrf.mxu0
    %v994 = vadd.f32 %v227, %v993
    %995 = vmatprep.mubr.bf16.mxu0 0
    %996 = vmatmul.mubr.bf16.gmra.mxu0 %v270
    %v997 = vpop.f32.mrf.mxu0
    %v998 = vadd.f32 %v223, %v997
    %v999 = vpop.f32.mrf.mxu0
    %v1000 = vadd.f32 %v227, %v999
    %v1001 = vpop.f32.mrf.mxu0
    %v1002 = vadd.f32 %v223, %v1001
    %v1003 = vpop.f32.mrf.mxu0
    %v1004 = vadd.f32 %v227, %v1003
    %1005 = vmatprep.mubr.bf16.mxu0 0
    %1006 = vmatmul.mubr.bf16.gmra.mxu0 %v271
    %v1007 = vpop.f32.mrf.mxu0
    %v1008 = vadd.f32 %v223, %v1007
    %v1009 = vpop.f32.mrf.mxu0
    %v1010 = vadd.f32 %v227, %v1009
    %v1011 = vpop.f32.mrf.mxu0
    %v1012 = vadd.f32 %v223, %v1011
    %v1013 = vpop.f32.mrf.mxu0
    %v1014 = vadd.f32 %v227, %v1013
    %1015 = vmatprep.mubr.bf16.mxu0 0
    %1016 = vmatmul.mubr.bf16.gmra.mxu0 %v272
    %v1017 = vpop.f32.mrf.mxu0
    %v1018 = vadd.f32 %v223, %v1017
    %v1019 = vpop.f32.mrf.mxu0
    %v1020 = vadd.f32 %v227, %v1019
    %v1021 = vpop.f32.mrf.mxu0
    %v1022 = vadd.f32 %v223, %v1021
    %v1023 = vpop.f32.mrf.mxu0
    %v1024 = vadd.f32 %v227, %v1023
    %1025 = vmatprep.mubr.bf16.mxu0 0
    %1026 = vmatmul.mubr.bf16.gmra.mxu0 %v273
    %v1027 = vpop.f32.mrf.mxu0
    %v1028 = vadd.f32 %v223, %v1027
    %v1029 = vpop.f32.mrf.mxu0
    %v1030 = vadd.f32 %v227, %v1029
    %v1031 = vpop.f32.mrf.mxu0
    %v1032 = vadd.f32 %v223, %v1031
    %v1033 = vpop.f32.mrf.mxu0
    %v1034 = vadd.f32 %v227, %v1033
    %1035 = vmatprep.mubr.bf16.mxu0 0
    %1036 = vmatmul.mubr.bf16.gmra.mxu0 %v274
    %v1037 = vpop.f32.mrf.mxu0
    %v1038 = vadd.f32 %v223, %v1037
    %v1039 = vpop.f32.mrf.mxu0
    %v1040 = vadd.f32 %v227, %v1039
    %v1041 = vpop.f32.mrf.mxu0
    %v1042 = vadd.f32 %v223, %v1041
    %v1043 = vpop.f32.mrf.mxu0
    %v1044 = vadd.f32 %v227, %v1043
    %1045 = vmatprep.mubr.bf16.mxu0 0
    %1046 = vmatmul.mubr.bf16.gmra.mxu0 %v275
    %v1047 = vpop.f32.mrf.mxu0
    %v1048 = vadd.f32 %v223, %v1047
    %v1049 = vpop.f32.mrf.mxu0
    %v1050 = vadd.f32 %v227, %v1049
    %v1051 = vpop.f32.mrf.mxu0
    %v1052 = vadd.f32 %v223, %v1051
    %v1053 = vpop.f32.mrf.mxu0
    %v1054 = vadd.f32 %v227, %v1053
    %1055 = vdwg.mxu0
    %v1056 = vpack.c.bf16 %v643, %v639
    %v1057 = vpack.c.bf16 %v645, %v641
    %v1058 = vpack.c.bf16 %v756, %v752
    %v1059 = vpack.c.bf16 %v758, %v754
    %v1060 = vpack.c.bf16 %v869, %v865
    %v1061 = vpack.c.bf16 %v871, %v867
    %v1062 = vpack.c.bf16 %v982, %v978
    %v1063 = vpack.c.bf16 %v984, %v980
    %v1064 = vpack.c.bf16 %v653, %v649
    %v1065 = vpack.c.bf16 %v655, %v651
    %v1066 = vpack.c.bf16 %v766, %v762
    %v1067 = vpack.c.bf16 %v768, %v764
    %v1068 = vpack.c.bf16 %v879, %v875
    %v1069 = vpack.c.bf16 %v881, %v877
    %v1070 = vpack.c.bf16 %v992, %v988
    %v1071 = vpack.c.bf16 %v994, %v990
    %v1072 = vpack.c.bf16 %v663, %v659
    %v1073 = vpack.c.bf16 %v665, %v661
    %v1074 = vpack.c.bf16 %v776, %v772
    %v1075 = vpack.c.bf16 %v778, %v774
    %v1076 = vpack.c.bf16 %v889, %v885
    %v1077 = vpack.c.bf16 %v891, %v887
    %v1078 = vpack.c.bf16 %v1002, %v998
    %v1079 = vpack.c.bf16 %v1004, %v1000
    %v1080 = vpack.c.bf16 %v673, %v669
    %v1081 = vpack.c.bf16 %v675, %v671
    %v1082 = vpack.c.bf16 %v786, %v782
    %v1083 = vpack.c.bf16 %v788, %v784
    %v1084 = vpack.c.bf16 %v899, %v895
    %v1085 = vpack.c.bf16 %v901, %v897
    %v1086 = vpack.c.bf16 %v1012, %v1008
    %v1087 = vpack.c.bf16 %v1014, %v1010
    %v1088 = vpack.c.bf16 %v683, %v679
    %v1089 = vpack.c.bf16 %v685, %v681
    %v1090 = vpack.c.bf16 %v796, %v792
    %v1091 = vpack.c.bf16 %v798, %v794
    %v1092 = vpack.c.bf16 %v909, %v905
    %v1093 = vpack.c.bf16 %v911, %v907
    %v1094 = vpack.c.bf16 %v1022, %v1018
    %v1095 = vpack.c.bf16 %v1024, %v1020
    %v1096 = vpack.c.bf16 %v693, %v689
    %v1097 = vpack.c.bf16 %v695, %v691
    %v1098 = vpack.c.bf16 %v806, %v802
    %v1099 = vpack.c.bf16 %v808, %v804
    %v1100 = vpack.c.bf16 %v919, %v915
    %v1101 = vpack.c.bf16 %v921, %v917
    %v1102 = vpack.c.bf16 %v1032, %v1028
    %v1103 = vpack.c.bf16 %v1034, %v1030
    %v1104 = vpack.c.bf16 %v703, %v699
    %v1105 = vpack.c.bf16 %v705, %v701
    %v1106 = vpack.c.bf16 %v816, %v812
    %v1107 = vpack.c.bf16 %v818, %v814
    %v1108 = vpack.c.bf16 %v929, %v925
    %v1109 = vpack.c.bf16 %v931, %v927
    %v1110 = vpack.c.bf16 %v1042, %v1038
    %v1111 = vpack.c.bf16 %v1044, %v1040
    %v1112 = vpack.c.bf16 %v713, %v709
    %v1113 = vpack.c.bf16 %v715, %v711
    %v1114 = vpack.c.bf16 %v826, %v822
    %v1115 = vpack.c.bf16 %v828, %v824
    %v1116 = vpack.c.bf16 %v939, %v935
    %v1117 = vpack.c.bf16 %v941, %v937
    %v1118 = vpack.c.bf16 %v1052, %v1048
    %v1119 = vpack.c.bf16 %v1054, %v1050
    %v1184 = vunpack.c.l.b16 %v1056
    %v1185 = vunpack.c.l.b16 %v1057
    %v1186 = vunpack.c.l.b16 %v1058
    %v1187 = vunpack.c.l.b16 %v1059
    %v1188 = vunpack.c.l.b16 %v1060
    %v1189 = vunpack.c.l.b16 %v1061
    %v1190 = vunpack.c.l.b16 %v1062
    %v1191 = vunpack.c.l.b16 %v1063
    %v1192 = vunpack.c.h.b16 %v1056
    %v1193 = vunpack.c.h.b16 %v1057
    %v1194 = vunpack.c.h.b16 %v1058
    %v1195 = vunpack.c.h.b16 %v1059
    %v1196 = vunpack.c.h.b16 %v1060
    %v1197 = vunpack.c.h.b16 %v1061
    %v1198 = vunpack.c.h.b16 %v1062
    %v1199 = vunpack.c.h.b16 %v1063
    %v1200 = vunpack.c.l.b16 %v1064
    %v1201 = vunpack.c.l.b16 %v1065
    %v1202 = vunpack.c.l.b16 %v1066
    %v1203 = vunpack.c.l.b16 %v1067
    %v1204 = vunpack.c.l.b16 %v1068
    %v1205 = vunpack.c.l.b16 %v1069
    %v1206 = vunpack.c.l.b16 %v1070
    %v1207 = vunpack.c.l.b16 %v1071
    %v1208 = vunpack.c.h.b16 %v1064
    %v1209 = vunpack.c.h.b16 %v1065
    %v1210 = vunpack.c.h.b16 %v1066
    %v1211 = vunpack.c.h.b16 %v1067
    %v1212 = vunpack.c.h.b16 %v1068
    %v1213 = vunpack.c.h.b16 %v1069
    %v1214 = vunpack.c.h.b16 %v1070
    %v1215 = vunpack.c.h.b16 %v1071
    %v1216 = vunpack.c.l.b16 %v1072
    %v1217 = vunpack.c.l.b16 %v1073
    %v1218 = vunpack.c.l.b16 %v1074
    %v1219 = vunpack.c.l.b16 %v1075
    %v1220 = vunpack.c.l.b16 %v1076
    %v1221 = vunpack.c.l.b16 %v1077
    %v1222 = vunpack.c.l.b16 %v1078
    %v1223 = vunpack.c.l.b16 %v1079
    %v1224 = vunpack.c.h.b16 %v1072
    %v1225 = vunpack.c.h.b16 %v1073
    %v1226 = vunpack.c.h.b16 %v1074
    %v1227 = vunpack.c.h.b16 %v1075
    %v1228 = vunpack.c.h.b16 %v1076
    %v1229 = vunpack.c.h.b16 %v1077
    %v1230 = vunpack.c.h.b16 %v1078
    %v1231 = vunpack.c.h.b16 %v1079
    %v1232 = vunpack.c.l.b16 %v1080
    %v1233 = vunpack.c.l.b16 %v1081
    %v1234 = vunpack.c.l.b16 %v1082
    %v1235 = vunpack.c.l.b16 %v1083
    %v1236 = vunpack.c.l.b16 %v1084
    %v1237 = vunpack.c.l.b16 %v1085
    %v1238 = vunpack.c.l.b16 %v1086
    %v1239 = vunpack.c.l.b16 %v1087
    %v1240 = vunpack.c.h.b16 %v1080
    %v1241 = vunpack.c.h.b16 %v1081
    %v1242 = vunpack.c.h.b16 %v1082
    %v1243 = vunpack.c.h.b16 %v1083
    %v1244 = vunpack.c.h.b16 %v1084
    %v1245 = vunpack.c.h.b16 %v1085
    %v1246 = vunpack.c.h.b16 %v1086
    %v1247 = vunpack.c.h.b16 %v1087
    %v1248 = vunpack.c.l.b16 %v1088
    %v1249 = vunpack.c.l.b16 %v1089
    %v1250 = vunpack.c.l.b16 %v1090
    %v1251 = vunpack.c.l.b16 %v1091
    %v1252 = vunpack.c.l.b16 %v1092
    %v1253 = vunpack.c.l.b16 %v1093
    %v1254 = vunpack.c.l.b16 %v1094
    %v1255 = vunpack.c.l.b16 %v1095
    %v1256 = vunpack.c.h.b16 %v1088
    %v1257 = vunpack.c.h.b16 %v1089
    %v1258 = vunpack.c.h.b16 %v1090
    %v1259 = vunpack.c.h.b16 %v1091
    %v1260 = vunpack.c.h.b16 %v1092
    %v1261 = vunpack.c.h.b16 %v1093
    %v1262 = vunpack.c.h.b16 %v1094
    %v1263 = vunpack.c.h.b16 %v1095
    %v1264 = vunpack.c.l.b16 %v1096
    %v1265 = vunpack.c.l.b16 %v1097
    %v1266 = vunpack.c.l.b16 %v1098
    %v1267 = vunpack.c.l.b16 %v1099
    %v1268 = vunpack.c.l.b16 %v1100
    %v1269 = vunpack.c.l.b16 %v1101
    %v1270 = vunpack.c.l.b16 %v1102
    %v1271 = vunpack.c.l.b16 %v1103
    %v1272 = vunpack.c.h.b16 %v1096
    %v1273 = vunpack.c.h.b16 %v1097
    %v1274 = vunpack.c.h.b16 %v1098
    %v1275 = vunpack.c.h.b16 %v1099
    %v1276 = vunpack.c.h.b16 %v1100
    %v1277 = vunpack.c.h.b16 %v1101
    %v1278 = vunpack.c.h.b16 %v1102
    %v1279 = vunpack.c.h.b16 %v1103
    %v1280 = vunpack.c.l.b16 %v1104
    %v1281 = vunpack.c.l.b16 %v1105
    %v1282 = vunpack.c.l.b16 %v1106
    %v1283 = vunpack.c.l.b16 %v1107
    %v1284 = vunpack.c.l.b16 %v1108
    %v1285 = vunpack.c.l.b16 %v1109
    %v1286 = vunpack.c.l.b16 %v1110
    %v1287 = vunpack.c.l.b16 %v1111
    %v1288 = vunpack.c.h.b16 %v1104
    %v1289 = vunpack.c.h.b16 %v1105
    %v1290 = vunpack.c.h.b16 %v1106
    %v1291 = vunpack.c.h.b16 %v1107
    %v1292 = vunpack.c.h.b16 %v1108
    %v1293 = vunpack.c.h.b16 %v1109
    %v1294 = vunpack.c.h.b16 %v1110
    %v1295 = vunpack.c.h.b16 %v1111
    %v1296 = vunpack.c.l.b16 %v1112
    %v1297 = vunpack.c.l.b16 %v1113
    %v1298 = vunpack.c.l.b16 %v1114
    %v1299 = vunpack.c.l.b16 %v1115
    %v1300 = vunpack.c.l.b16 %v1116
    %v1301 = vunpack.c.l.b16 %v1117
    %v1302 = vunpack.c.l.b16 %v1118
    %v1303 = vunpack.c.l.b16 %v1119
    %v1304 = vunpack.c.h.b16 %v1112
    %v1305 = vunpack.c.h.b16 %v1113
    %v1306 = vunpack.c.h.b16 %v1114
    %v1307 = vunpack.c.h.b16 %v1115
    %v1308 = vunpack.c.h.b16 %v1116
    %v1309 = vunpack.c.h.b16 %v1117
    %v1310 = vunpack.c.h.b16 %v1118
    %v1311 = vunpack.c.h.b16 %v1119
    %v1312 = vpack.c.b16 %v1185, %v1184
    %v1313 = vpack.c.b16 %v1187, %v1186
    %v1314 = vpack.c.b16 %v1189, %v1188
    %v1315 = vpack.c.b16 %v1191, %v1190
    %v1316 = vpack.c.b16 %v1193, %v1192
    %v1317 = vpack.c.b16 %v1195, %v1194
    %v1318 = vpack.c.b16 %v1197, %v1196
    %v1319 = vpack.c.b16 %v1199, %v1198
    %v1320 = vpack.c.b16 %v1201, %v1200
    %v1321 = vpack.c.b16 %v1203, %v1202
    %v1322 = vpack.c.b16 %v1205, %v1204
    %v1323 = vpack.c.b16 %v1207, %v1206
    %v1324 = vpack.c.b16 %v1209, %v1208
    %v1325 = vpack.c.b16 %v1211, %v1210
    %v1326 = vpack.c.b16 %v1213, %v1212
    %v1327 = vpack.c.b16 %v1215, %v1214
    %v1328 = vpack.c.b16 %v1217, %v1216
    %v1329 = vpack.c.b16 %v1219, %v1218
    %v1330 = vpack.c.b16 %v1221, %v1220
    %v1331 = vpack.c.b16 %v1223, %v1222
    %v1332 = vpack.c.b16 %v1225, %v1224
    %v1333 = vpack.c.b16 %v1227, %v1226
    %v1334 = vpack.c.b16 %v1229, %v1228
    %v1335 = vpack.c.b16 %v1231, %v1230
    %v1336 = vpack.c.b16 %v1233, %v1232
    %v1337 = vpack.c.b16 %v1235, %v1234
    %v1338 = vpack.c.b16 %v1237, %v1236
    %v1339 = vpack.c.b16 %v1239, %v1238
    %v1340 = vpack.c.b16 %v1241, %v1240
    %v1341 = vpack.c.b16 %v1243, %v1242
    %v1342 = vpack.c.b16 %v1245, %v1244
    %v1343 = vpack.c.b16 %v1247, %v1246
    %v1344 = vpack.c.b16 %v1249, %v1248
    %v1345 = vpack.c.b16 %v1251, %v1250
    %v1346 = vpack.c.b16 %v1253, %v1252
    %v1347 = vpack.c.b16 %v1255, %v1254
    %v1348 = vpack.c.b16 %v1257, %v1256
    %v1349 = vpack.c.b16 %v1259, %v1258
    %v1350 = vpack.c.b16 %v1261, %v1260
    %v1351 = vpack.c.b16 %v1263, %v1262
    %v1352 = vpack.c.b16 %v1265, %v1264
    %v1353 = vpack.c.b16 %v1267, %v1266
    %v1354 = vpack.c.b16 %v1269, %v1268
    %v1355 = vpack.c.b16 %v1271, %v1270
    %v1356 = vpack.c.b16 %v1273, %v1272
    %v1357 = vpack.c.b16 %v1275, %v1274
    %v1358 = vpack.c.b16 %v1277, %v1276
    %v1359 = vpack.c.b16 %v1279, %v1278
    %v1360 = vpack.c.b16 %v1281, %v1280
    %v1361 = vpack.c.b16 %v1283, %v1282
    %v1362 = vpack.c.b16 %v1285, %v1284
    %v1363 = vpack.c.b16 %v1287, %v1286
    %v1364 = vpack.c.b16 %v1289, %v1288
    %v1365 = vpack.c.b16 %v1291, %v1290
    %v1366 = vpack.c.b16 %v1293, %v1292
    %v1367 = vpack.c.b16 %v1295, %v1294
    %v1368 = vpack.c.b16 %v1297, %v1296
    %v1369 = vpack.c.b16 %v1299, %v1298
    %v1370 = vpack.c.b16 %v1301, %v1300
    %v1371 = vpack.c.b16 %v1303, %v1302
    %v1372 = vpack.c.b16 %v1305, %v1304
    %v1373 = vpack.c.b16 %v1307, %v1306
    %v1374 = vpack.c.b16 %v1309, %v1308
    %v1375 = vpack.c.b16 %v1311, %v1310
    %1440 = vst [vmem:[#allocation2] sm:$0xff] %v1312
    %1441 = vst [vmem:[#allocation2 + $0x8] sm:$0xff] %v1313
    %1442 = vst [vmem:[#allocation2 + $0x10] sm:$0xff] %v1314
    %1443 = vst [vmem:[#allocation2 + $0x18] sm:$0xff] %v1315
    %1444 = vst [vmem:[#allocation2 + $0x20] sm:$0xff] %v1316
    %1445 = vst [vmem:[#allocation2 + $0x28] sm:$0xff] %v1317
    %1446 = vst [vmem:[#allocation2 + $0x30] sm:$0xff] %v1318
    %1447 = vst [vmem:[#allocation2 + $0x38] sm:$0xff] %v1319
    %1448 = vst [vmem:[#allocation2 + $0x40] sm:$0xff] %v1320
    %1449 = vst [vmem:[#allocation2 + $0x48] sm:$0xff] %v1321
    %1450 = vst [vmem:[#allocation2 + $0x50] sm:$0xff] %v1322
    %1451 = vst [vmem:[#allocation2 + $0x58] sm:$0xff] %v1323
    %1452 = vst [vmem:[#allocation2 + $0x60] sm:$0xff] %v1324
    %1453 = vst [vmem:[#allocation2 + $0x68] sm:$0xff] %v1325
    %1454 = vst [vmem:[#allocation2 + $0x70] sm:$0xff] %v1326
    %1455 = vst [vmem:[#allocation2 + $0x78] sm:$0xff] %v1327
    %1456 = vst [vmem:[#allocation2 + $0x80] sm:$0xff] %v1328
    %1457 = vst [vmem:[#allocation2 + $0x88] sm:$0xff] %v1329
    %1458 = vst [vmem:[#allocation2 + $0x90] sm:$0xff] %v1330
    %1459 = vst [vmem:[#allocation2 + $0x98] sm:$0xff] %v1331
    %1460 = vst [vmem:[#allocation2 + $0xa0] sm:$0xff] %v1332
    %1461 = vst [vmem:[#allocation2 + $0xa8] sm:$0xff] %v1333
    %1462 = vst [vmem:[#allocation2 + $0xb0] sm:$0xff] %v1334
    %1463 = vst [vmem:[#allocation2 + $0xb8] sm:$0xff] %v1335
    %1464 = vst [vmem:[#allocation2 + $0xc0] sm:$0xff] %v1336
    %1465 = vst [vmem:[#allocation2 + $0xc8] sm:$0xff] %v1337
    %1466 = vst [vmem:[#allocation2 + $0xd0] sm:$0xff] %v1338
    %1467 = vst [vmem:[#allocation2 + $0xd8] sm:$0xff] %v1339
    %1468 = vst [vmem:[#allocation2 + $0xe0] sm:$0xff] %v1340
    %1469 = vst [vmem:[#allocation2 + $0xe8] sm:$0xff] %v1341
    %1470 = vst [vmem:[#allocation2 + $0xf0] sm:$0xff] %v1342
    %1471 = vst [vmem:[#allocation2 + $0xf8] sm:$0xff] %v1343
    %1472 = vst [vmem:[#allocation2 + $0x100] sm:$0xff] %v1344
    %1473 = vst [vmem:[#allocation2 + $0x108] sm:$0xff] %v1345
    %1474 = vst [vmem:[#allocation2 + $0x110] sm:$0xff] %v1346
    %1475 = vst [vmem:[#allocation2 + $0x118] sm:$0xff] %v1347
    %1476 = vst [vmem:[#allocation2 + $0x120] sm:$0xff] %v1348
    %1477 = vst [vmem:[#allocation2 + $0x128] sm:$0xff] %v1349
    %1478 = vst [vmem:[#allocation2 + $0x130] sm:$0xff] %v1350
    %1479 = vst [vmem:[#allocation2 + $0x138] sm:$0xff] %v1351
    %1480 = vst [vmem:[#allocation2 + $0x140] sm:$0xff] %v1352
    %1481 = vst [vmem:[#allocation2 + $0x148] sm:$0xff] %v1353
    %1482 = vst [vmem:[#allocation2 + $0x150] sm:$0xff] %v1354
    %1483 = vst [vmem:[#allocation2 + $0x158] sm:$0xff] %v1355
    %1484 = vst [vmem:[#allocation2 + $0x160] sm:$0xff] %v1356
    %1485 = vst [vmem:[#allocation2 + $0x168] sm:$0xff] %v1357
    %1486 = vst [vmem:[#allocation2 + $0x170] sm:$0xff] %v1358
    %1487 = vst [vmem:[#allocation2 + $0x178] sm:$0xff] %v1359
    %1488 = vst [vmem:[#allocation2 + $0x180] sm:$0xff] %v1360
    %1489 = vst [vmem:[#allocation2 + $0x188] sm:$0xff] %v1361
    %1490 = vst [vmem:[#allocation2 + $0x190] sm:$0xff] %v1362
    %1491 = vst [vmem:[#allocation2 + $0x198] sm:$0xff] %v1363
    %1492 = vst [vmem:[#allocation2 + $0x1a0] sm:$0xff] %v1364
    %1493 = vst [vmem:[#allocation2 + $0x1a8] sm:$0xff] %v1365
    %1494 = vst [vmem:[#allocation2 + $0x1b0] sm:$0xff] %v1366
    %1495 = vst [vmem:[#allocation2 + $0x1b8] sm:$0xff] %v1367
    %1496 = vst [vmem:[#allocation2 + $0x1c0] sm:$0xff] %v1368
    %1497 = vst [vmem:[#allocation2 + $0x1c8] sm:$0xff] %v1369
    %1498 = vst [vmem:[#allocation2 + $0x1d0] sm:$0xff] %v1370
    %1499 = vst [vmem:[#allocation2 + $0x1d8] sm:$0xff] %v1371
    %1500 = vst [vmem:[#allocation2 + $0x1e0] sm:$0xff] %v1372
    %1501 = vst [vmem:[#allocation2 + $0x1e8] sm:$0xff] %v1373
    %1502 = vst [vmem:[#allocation2 + $0x1f0] sm:$0xff] %v1374
    %1503 = vst [vmem:[#allocation2 + $0x1f8] sm:$0xff] %v1375
    %v1504 = vld [vmem:[#allocation2] sm:$0xff]
    %v1505 = vld [vmem:[#allocation2 + $0x8] sm:$0xff]
    %v1506 = vld [vmem:[#allocation2 + $0x10] sm:$0xff]
    %v1507 = vld [vmem:[#allocation2 + $0x18] sm:$0xff]
    %v1508 = vld [vmem:[#allocation2 + $0x20] sm:$0xff]
    %v1509 = vld [vmem:[#allocation2 + $0x28] sm:$0xff]
    %v1510 = vld [vmem:[#allocation2 + $0x30] sm:$0xff]
    %v1511 = vld [vmem:[#allocation2 + $0x38] sm:$0xff]
    %v1512 = vld [vmem:[#allocation13] sm:$0xff]
    %v1513 = vld [vmem:[#allocation13 + $0x8] sm:$0xff]
    %v1514 = vld [vmem:[#allocation13 + $0x10] sm:$0xff]
    %v1515 = vld [vmem:[#allocation13 + $0x18] sm:$0xff]
    %v1516 = vld [vmem:[#allocation13 + $0x20] sm:$0xff]
    %v1517 = vld [vmem:[#allocation13 + $0x28] sm:$0xff]
    %v1518 = vld [vmem:[#allocation13 + $0x30] sm:$0xff]
    %v1519 = vld [vmem:[#allocation13 + $0x38] sm:$0xff]
    %v1520 = vld [vmem:[#allocation13 + $0x40] sm:$0xff]
    %v1521 = vld [vmem:[#allocation13 + $0x48] sm:$0xff]
    %v1522 = vld [vmem:[#allocation13 + $0x50] sm:$0xff]
    %v1523 = vld [vmem:[#allocation13 + $0x58] sm:$0xff]
    %v1524 = vld [vmem:[#allocation13 + $0x60] sm:$0xff]
    %v1525 = vld [vmem:[#allocation13 + $0x68] sm:$0xff]
    %v1526 = vld [vmem:[#allocation13 + $0x70] sm:$0xff]
    %v1527 = vld [vmem:[#allocation13 + $0x78] sm:$0xff]
    %v1528 = vld [vmem:[#allocation13 + $0x80] sm:$0xff]
    %v1529 = vld [vmem:[#allocation13 + $0x88] sm:$0xff]
    %v1530 = vld [vmem:[#allocation13 + $0x90] sm:$0xff]
    %v1531 = vld [vmem:[#allocation13 + $0x98] sm:$0xff]
    %v1532 = vld [vmem:[#allocation13 + $0xa0] sm:$0xff]
    %v1533 = vld [vmem:[#allocation13 + $0xa8] sm:$0xff]
    %v1534 = vld [vmem:[#allocation13 + $0xb0] sm:$0xff]
    %v1535 = vld [vmem:[#allocation13 + $0xb8] sm:$0xff]
    %v1536 = vld [vmem:[#allocation13 + $0xc0] sm:$0xff]
    %v1537 = vld [vmem:[#allocation13 + $0xc8] sm:$0xff]
    %v1538 = vld [vmem:[#allocation13 + $0xd0] sm:$0xff]
    %v1539 = vld [vmem:[#allocation13 + $0xd8] sm:$0xff]
    %v1540 = vld [vmem:[#allocation13 + $0xe0] sm:$0xff]
    %v1541 = vld [vmem:[#allocation13 + $0xe8] sm:$0xff]
    %v1542 = vld [vmem:[#allocation13 + $0xf0] sm:$0xff]
    %v1543 = vld [vmem:[#allocation13 + $0xf8] sm:$0xff]
    %v1544 = vld [vmem:[#allocation13 + $0x100] sm:$0xff]
    %v1545 = vld [vmem:[#allocation13 + $0x108] sm:$0xff]
    %v1546 = vld [vmem:[#allocation13 + $0x110] sm:$0xff]
    %v1547 = vld [vmem:[#allocation13 + $0x118] sm:$0xff]
    %v1548 = vld [vmem:[#allocation13 + $0x120] sm:$0xff]
    %v1549 = vld [vmem:[#allocation13 + $0x128] sm:$0xff]
    %v1550 = vld [vmem:[#allocation13 + $0x130] sm:$0xff]
    %v1551 = vld [vmem:[#allocation13 + $0x138] sm:$0xff]
    %v1552 = vld [vmem:[#allocation13 + $0x140] sm:$0xff]
    %v1553 = vld [vmem:[#allocation13 + $0x148] sm:$0xff]
    %v1554 = vld [vmem:[#allocation13 + $0x150] sm:$0xff]
    %v1555 = vld [vmem:[#allocation13 + $0x158] sm:$0xff]
    %v1556 = vld [vmem:[#allocation13 + $0x160] sm:$0xff]
    %v1557 = vld [vmem:[#allocation13 + $0x168] sm:$0xff]
    %v1558 = vld [vmem:[#allocation13 + $0x170] sm:$0xff]
    %v1559 = vld [vmem:[#allocation13 + $0x178] sm:$0xff]
    %v1560 = vld [vmem:[#allocation13 + $0x180] sm:$0xff]
    %v1561 = vld [vmem:[#allocation13 + $0x188] sm:$0xff]
    %v1562 = vld [vmem:[#allocation13 + $0x190] sm:$0xff]
    %v1563 = vld [vmem:[#allocation13 + $0x198] sm:$0xff]
    %v1564 = vld [vmem:[#allocation13 + $0x1a0] sm:$0xff]
    %v1565 = vld [vmem:[#allocation13 + $0x1a8] sm:$0xff]
    %v1566 = vld [vmem:[#allocation13 + $0x1b0] sm:$0xff]
    %v1567 = vld [vmem:[#allocation13 + $0x1b8] sm:$0xff]
    %v1568 = vld [vmem:[#allocation13 + $0x1c0] sm:$0xff]
    %v1569 = vld [vmem:[#allocation13 + $0x1c8] sm:$0xff]
    %v1570 = vld [vmem:[#allocation13 + $0x1d0] sm:$0xff]
    %v1571 = vld [vmem:[#allocation13 + $0x1d8] sm:$0xff]
    %v1572 = vld [vmem:[#allocation13 + $0x1e0] sm:$0xff]
    %v1573 = vld [vmem:[#allocation13 + $0x1e8] sm:$0xff]
    %v1574 = vld [vmem:[#allocation13 + $0x1f0] sm:$0xff]
    %v1575 = vld [vmem:[#allocation13 + $0x1f8] sm:$0xff]
    %v1576 = vld [vmem:[#allocation13 + $0x200] sm:$0xff]
    %v1577 = vld [vmem:[#allocation13 + $0x208] sm:$0xff]
    %v1578 = vld [vmem:[#allocation13 + $0x210] sm:$0xff]
    %v1579 = vld [vmem:[#allocation13 + $0x218] sm:$0xff]
    %v1580 = vld [vmem:[#allocation13 + $0x220] sm:$0xff]
    %v1581 = vld [vmem:[#allocation13 + $0x228] sm:$0xff]
    %v1582 = vld [vmem:[#allocation13 + $0x230] sm:$0xff]
    %v1583 = vld [vmem:[#allocation13 + $0x238] sm:$0xff]
    %v1584 = vld [vmem:[#allocation13 + $0x240] sm:$0xff]
    %v1585 = vld [vmem:[#allocation13 + $0x248] sm:$0xff]
    %v1586 = vld [vmem:[#allocation13 + $0x250] sm:$0xff]
    %v1587 = vld [vmem:[#allocation13 + $0x258] sm:$0xff]
    %v1588 = vld [vmem:[#allocation13 + $0x260] sm:$0xff]
    %v1589 = vld [vmem:[#allocation13 + $0x268] sm:$0xff]
    %v1590 = vld [vmem:[#allocation13 + $0x270] sm:$0xff]
    %v1591 = vld [vmem:[#allocation13 + $0x278] sm:$0xff]
    %v1592 = vld [vmem:[#allocation13 + $0x280] sm:$0xff]
    %v1593 = vld [vmem:[#allocation13 + $0x288] sm:$0xff]
    %v1594 = vld [vmem:[#allocation13 + $0x290] sm:$0xff]
    %v1595 = vld [vmem:[#allocation13 + $0x298] sm:$0xff]
    %v1596 = vld [vmem:[#allocation13 + $0x2a0] sm:$0xff]
    %v1597 = vld [vmem:[#allocation13 + $0x2a8] sm:$0xff]
    %v1598 = vld [vmem:[#allocation13 + $0x2b0] sm:$0xff]
    %v1599 = vld [vmem:[#allocation13 + $0x2b8] sm:$0xff]
    %v1600 = vld [vmem:[#allocation13 + $0x2c0] sm:$0xff]
    %v1601 = vld [vmem:[#allocation13 + $0x2c8] sm:$0xff]
    %v1602 = vld [vmem:[#allocation13 + $0x2d0] sm:$0xff]
    %v1603 = vld [vmem:[#allocation13 + $0x2d8] sm:$0xff]
    %v1604 = vld [vmem:[#allocation13 + $0x2e0] sm:$0xff]
    %v1605 = vld [vmem:[#allocation13 + $0x2e8] sm:$0xff]
    %v1606 = vld [vmem:[#allocation13 + $0x2f0] sm:$0xff]
    %v1607 = vld [vmem:[#allocation13 + $0x2f8] sm:$0xff]
    %v1608 = vld [vmem:[#allocation13 + $0x300] sm:$0xff]
    %v1609 = vld [vmem:[#allocation13 + $0x308] sm:$0xff]
    %v1610 = vld [vmem:[#allocation13 + $0x310] sm:$0xff]
    %v1611 = vld [vmem:[#allocation13 + $0x318] sm:$0xff]
    %v1612 = vld [vmem:[#allocation13 + $0x320] sm:$0xff]
    %v1613 = vld [vmem:[#allocation13 + $0x328] sm:$0xff]
    %v1614 = vld [vmem:[#allocation13 + $0x330] sm:$0xff]
    %v1615 = vld [vmem:[#allocation13 + $0x338] sm:$0xff]
    %v1616 = vld [vmem:[#allocation13 + $0x340] sm:$0xff]
    %v1617 = vld [vmem:[#allocation13 + $0x348] sm:$0xff]
    %v1618 = vld [vmem:[#allocation13 + $0x350] sm:$0xff]
    %v1619 = vld [vmem:[#allocation13 + $0x358] sm:$0xff]
    %v1620 = vld [vmem:[#allocation13 + $0x360] sm:$0xff]
    %v1621 = vld [vmem:[#allocation13 + $0x368] sm:$0xff]
    %v1622 = vld [vmem:[#allocation13 + $0x370] sm:$0xff]
    %v1623 = vld [vmem:[#allocation13 + $0x378] sm:$0xff]
    %v1624 = vld [vmem:[#allocation13 + $0x380] sm:$0xff]
    %v1625 = vld [vmem:[#allocation13 + $0x388] sm:$0xff]
    %v1626 = vld [vmem:[#allocation13 + $0x390] sm:$0xff]
    %v1627 = vld [vmem:[#allocation13 + $0x398] sm:$0xff]
    %v1628 = vld [vmem:[#allocation13 + $0x3a0] sm:$0xff]
    %v1629 = vld [vmem:[#allocation13 + $0x3a8] sm:$0xff]
    %v1630 = vld [vmem:[#allocation13 + $0x3b0] sm:$0xff]
    %v1631 = vld [vmem:[#allocation13 + $0x3b8] sm:$0xff]
    %v1632 = vld [vmem:[#allocation13 + $0x3c0] sm:$0xff]
    %v1633 = vld [vmem:[#allocation13 + $0x3c8] sm:$0xff]
    %v1634 = vld [vmem:[#allocation13 + $0x3d0] sm:$0xff]
    %v1635 = vld [vmem:[#allocation13 + $0x3d8] sm:$0xff]
    %v1636 = vld [vmem:[#allocation13 + $0x3e0] sm:$0xff]
    %v1637 = vld [vmem:[#allocation13 + $0x3e8] sm:$0xff]
    %v1638 = vld [vmem:[#allocation13 + $0x3f0] sm:$0xff]
    %v1639 = vld [vmem:[#allocation13 + $0x3f8] sm:$0xff]
    %v1768 = vunpack.c.l.b16 %v1512
    %v1769 = vunpack.c.h.b16 %v1512
    %v1770 = vunpack.c.l.b16 %v1513
    %v1771 = vunpack.c.h.b16 %v1513
    %v1772 = vunpack.c.l.b16 %v1514
    %v1773 = vunpack.c.h.b16 %v1514
    %v1774 = vunpack.c.l.b16 %v1515
    %v1775 = vunpack.c.h.b16 %v1515
    %v1776 = vunpack.c.l.b16 %v1516
    %v1777 = vunpack.c.h.b16 %v1516
    %v1778 = vunpack.c.l.b16 %v1517
    %v1779 = vunpack.c.h.b16 %v1517
    %v1780 = vunpack.c.l.b16 %v1518
    %v1781 = vunpack.c.h.b16 %v1518
    %v1782 = vunpack.c.l.b16 %v1519
    %v1783 = vunpack.c.h.b16 %v1519
    %v1784 = vunpack.c.l.b16 %v1520
    %v1785 = vunpack.c.h.b16 %v1520
    %v1786 = vunpack.c.l.b16 %v1521
    %v1787 = vunpack.c.h.b16 %v1521
    %v1788 = vunpack.c.l.b16 %v1522
    %v1789 = vunpack.c.h.b16 %v1522
    %v1790 = vunpack.c.l.b16 %v1523
    %v1791 = vunpack.c.h.b16 %v1523
    %v1792 = vunpack.c.l.b16 %v1524
    %v1793 = vunpack.c.h.b16 %v1524
    %v1794 = vunpack.c.l.b16 %v1525
    %v1795 = vunpack.c.h.b16 %v1525
    %v1796 = vunpack.c.l.b16 %v1526
    %v1797 = vunpack.c.h.b16 %v1526
    %v1798 = vunpack.c.l.b16 %v1527
    %v1799 = vunpack.c.h.b16 %v1527
    %v1800 = vunpack.c.l.b16 %v1528
    %v1801 = vunpack.c.h.b16 %v1528
    %v1802 = vunpack.c.l.b16 %v1529
    %v1803 = vunpack.c.h.b16 %v1529
    %v1804 = vunpack.c.l.b16 %v1530
    %v1805 = vunpack.c.h.b16 %v1530
    %v1806 = vunpack.c.l.b16 %v1531
    %v1807 = vunpack.c.h.b16 %v1531
    %v1808 = vunpack.c.l.b16 %v1532
    %v1809 = vunpack.c.h.b16 %v1532
    %v1810 = vunpack.c.l.b16 %v1533
    %v1811 = vunpack.c.h.b16 %v1533
    %v1812 = vunpack.c.l.b16 %v1534
    %v1813 = vunpack.c.h.b16 %v1534
    %v1814 = vunpack.c.l.b16 %v1535
    %v1815 = vunpack.c.h.b16 %v1535
    %v1816 = vunpack.c.l.b16 %v1536
    %v1817 = vunpack.c.h.b16 %v1536
    %v1818 = vunpack.c.l.b16 %v1537
    %v1819 = vunpack.c.h.b16 %v1537
    %v1820 = vunpack.c.l.b16 %v1538
    %v1821 = vunpack.c.h.b16 %v1538
    %v1822 = vunpack.c.l.b16 %v1539
    %v1823 = vunpack.c.h.b16 %v1539
    %v1824 = vunpack.c.l.b16 %v1540
    %v1825 = vunpack.c.h.b16 %v1540
    %v1826 = vunpack.c.l.b16 %v1541
    %v1827 = vunpack.c.h.b16 %v1541
    %v1828 = vunpack.c.l.b16 %v1542
    %v1829 = vunpack.c.h.b16 %v1542
    %v1830 = vunpack.c.l.b16 %v1543
    %v1831 = vunpack.c.h.b16 %v1543
    %v1832 = vunpack.c.l.b16 %v1544
    %v1833 = vunpack.c.h.b16 %v1544
    %v1834 = vunpack.c.l.b16 %v1545
    %v1835 = vunpack.c.h.b16 %v1545
    %v1836 = vunpack.c.l.b16 %v1546
    %v1837 = vunpack.c.h.b16 %v1546
    %v1838 = vunpack.c.l.b16 %v1547
    %v1839 = vunpack.c.h.b16 %v1547
    %v1840 = vunpack.c.l.b16 %v1548
    %v1841 = vunpack.c.h.b16 %v1548
    %v1842 = vunpack.c.l.b16 %v1549
    %v1843 = vunpack.c.h.b16 %v1549
    %v1844 = vunpack.c.l.b16 %v1550
    %v1845 = vunpack.c.h.b16 %v1550
    %v1846 = vunpack.c.l.b16 %v1551
    %v1847 = vunpack.c.h.b16 %v1551
    %v1848 = vunpack.c.l.b16 %v1552
    %v1849 = vunpack.c.h.b16 %v1552
    %v1850 = vunpack.c.l.b16 %v1553
    %v1851 = vunpack.c.h.b16 %v1553
    %v1852 = vunpack.c.l.b16 %v1554
    %v1853 = vunpack.c.h.b16 %v1554
    %v1854 = vunpack.c.l.b16 %v1555
    %v1855 = vunpack.c.h.b16 %v1555
    %v1856 = vunpack.c.l.b16 %v1556
    %v1857 = vunpack.c.h.b16 %v1556
    %v1858 = vunpack.c.l.b16 %v1557
    %v1859 = vunpack.c.h.b16 %v1557
    %v1860 = vunpack.c.l.b16 %v1558
    %v1861 = vunpack.c.h.b16 %v1558
    %v1862 = vunpack.c.l.b16 %v1559
    %v1863 = vunpack.c.h.b16 %v1559
    %v1864 = vunpack.c.l.b16 %v1560
    %v1865 = vunpack.c.h.b16 %v1560
    %v1866 = vunpack.c.l.b16 %v1561
    %v1867 = vunpack.c.h.b16 %v1561
    %v1868 = vunpack.c.l.b16 %v1562
    %v1869 = vunpack.c.h.b16 %v1562
    %v1870 = vunpack.c.l.b16 %v1563
    %v1871 = vunpack.c.h.b16 %v1563
    %v1872 = vunpack.c.l.b16 %v1564
    %v1873 = vunpack.c.h.b16 %v1564
    %v1874 = vunpack.c.l.b16 %v1565
    %v1875 = vunpack.c.h.b16 %v1565
    %v1876 = vunpack.c.l.b16 %v1566
    %v1877 = vunpack.c.h.b16 %v1566
    %v1878 = vunpack.c.l.b16 %v1567
    %v1879 = vunpack.c.h.b16 %v1567
    %v1880 = vunpack.c.l.b16 %v1568
    %v1881 = vunpack.c.h.b16 %v1568
    %v1882 = vunpack.c.l.b16 %v1569
    %v1883 = vunpack.c.h.b16 %v1569
    %v1884 = vunpack.c.l.b16 %v1570
    %v1885 = vunpack.c.h.b16 %v1570
    %v1886 = vunpack.c.l.b16 %v1571
    %v1887 = vunpack.c.h.b16 %v1571
    %v1888 = vunpack.c.l.b16 %v1572
    %v1889 = vunpack.c.h.b16 %v1572
    %v1890 = vunpack.c.l.b16 %v1573
    %v1891 = vunpack.c.h.b16 %v1573
    %v1892 = vunpack.c.l.b16 %v1574
    %v1893 = vunpack.c.h.b16 %v1574
    %v1894 = vunpack.c.l.b16 %v1575
    %v1895 = vunpack.c.h.b16 %v1575
    %v1896 = vunpack.c.l.b16 %v1576
    %v1897 = vunpack.c.h.b16 %v1576
    %v1898 = vunpack.c.l.b16 %v1577
    %v1899 = vunpack.c.h.b16 %v1577
    %v1900 = vunpack.c.l.b16 %v1578
    %v1901 = vunpack.c.h.b16 %v1578
    %v1902 = vunpack.c.l.b16 %v1579
    %v1903 = vunpack.c.h.b16 %v1579
    %v1904 = vunpack.c.l.b16 %v1580
    %v1905 = vunpack.c.h.b16 %v1580
    %v1906 = vunpack.c.l.b16 %v1581
    %v1907 = vunpack.c.h.b16 %v1581
    %v1908 = vunpack.c.l.b16 %v1582
    %v1909 = vunpack.c.h.b16 %v1582
    %v1910 = vunpack.c.l.b16 %v1583
    %v1911 = vunpack.c.h.b16 %v1583
    %v1912 = vunpack.c.l.b16 %v1584
    %v1913 = vunpack.c.h.b16 %v1584
    %v1914 = vunpack.c.l.b16 %v1585
    %v1915 = vunpack.c.h.b16 %v1585
    %v1916 = vunpack.c.l.b16 %v1586
    %v1917 = vunpack.c.h.b16 %v1586
    %v1918 = vunpack.c.l.b16 %v1587
    %v1919 = vunpack.c.h.b16 %v1587
    %v1920 = vunpack.c.l.b16 %v1588
    %v1921 = vunpack.c.h.b16 %v1588
    %v1922 = vunpack.c.l.b16 %v1589
    %v1923 = vunpack.c.h.b16 %v1589
    %v1924 = vunpack.c.l.b16 %v1590
    %v1925 = vunpack.c.h.b16 %v1590
    %v1926 = vunpack.c.l.b16 %v1591
    %v1927 = vunpack.c.h.b16 %v1591
    %v1928 = vunpack.c.l.b16 %v1592
    %v1929 = vunpack.c.h.b16 %v1592
    %v1930 = vunpack.c.l.b16 %v1593
    %v1931 = vunpack.c.h.b16 %v1593
    %v1932 = vunpack.c.l.b16 %v1594
    %v1933 = vunpack.c.h.b16 %v1594
    %v1934 = vunpack.c.l.b16 %v1595
    %v1935 = vunpack.c.h.b16 %v1595
    %v1936 = vunpack.c.l.b16 %v1596
    %v1937 = vunpack.c.h.b16 %v1596
    %v1938 = vunpack.c.l.b16 %v1597
    %v1939 = vunpack.c.h.b16 %v1597
    %v1940 = vunpack.c.l.b16 %v1598
    %v1941 = vunpack.c.h.b16 %v1598
    %v1942 = vunpack.c.l.b16 %v1599
    %v1943 = vunpack.c.h.b16 %v1599
    %v1944 = vunpack.c.l.b16 %v1600
    %v1945 = vunpack.c.h.b16 %v1600
    %v1946 = vunpack.c.l.b16 %v1601
    %v1947 = vunpack.c.h.b16 %v1601
    %v1948 = vunpack.c.l.b16 %v1602
    %v1949 = vunpack.c.h.b16 %v1602
    %v1950 = vunpack.c.l.b16 %v1603
    %v1951 = vunpack.c.h.b16 %v1603
    %v1952 = vunpack.c.l.b16 %v1604
    %v1953 = vunpack.c.h.b16 %v1604
    %v1954 = vunpack.c.l.b16 %v1605
    %v1955 = vunpack.c.h.b16 %v1605
    %v1956 = vunpack.c.l.b16 %v1606
    %v1957 = vunpack.c.h.b16 %v1606
    %v1958 = vunpack.c.l.b16 %v1607
    %v1959 = vunpack.c.h.b16 %v1607
    %v1960 = vunpack.c.l.b16 %v1608
    %v1961 = vunpack.c.h.b16 %v1608
    %v1962 = vunpack.c.l.b16 %v1609
    %v1963 = vunpack.c.h.b16 %v1609
    %v1964 = vunpack.c.l.b16 %v1610
    %v1965 = vunpack.c.h.b16 %v1610
    %v1966 = vunpack.c.l.b16 %v1611
    %v1967 = vunpack.c.h.b16 %v1611
    %v1968 = vunpack.c.l.b16 %v1612
    %v1969 = vunpack.c.h.b16 %v1612
    %v1970 = vunpack.c.l.b16 %v1613
    %v1971 = vunpack.c.h.b16 %v1613
    %v1972 = vunpack.c.l.b16 %v1614
    %v1973 = vunpack.c.h.b16 %v1614
    %v1974 = vunpack.c.l.b16 %v1615
    %v1975 = vunpack.c.h.b16 %v1615
    %v1976 = vunpack.c.l.b16 %v1616
    %v1977 = vunpack.c.h.b16 %v1616
    %v1978 = vunpack.c.l.b16 %v1617
    %v1979 = vunpack.c.h.b16 %v1617
    %v1980 = vunpack.c.l.b16 %v1618
    %v1981 = vunpack.c.h.b16 %v1618
    %v1982 = vunpack.c.l.b16 %v1619
    %v1983 = vunpack.c.h.b16 %v1619
    %v1984 = vunpack.c.l.b16 %v1620
    %v1985 = vunpack.c.h.b16 %v1620
    %v1986 = vunpack.c.l.b16 %v1621
    %v1987 = vunpack.c.h.b16 %v1621
    %v1988 = vunpack.c.l.b16 %v1622
    %v1989 = vunpack.c.h.b16 %v1622
    %v1990 = vunpack.c.l.b16 %v1623
    %v1991 = vunpack.c.h.b16 %v1623
    %v1992 = vunpack.c.l.b16 %v1624
    %v1993 = vunpack.c.h.b16 %v1624
    %v1994 = vunpack.c.l.b16 %v1625
    %v1995 = vunpack.c.h.b16 %v1625
    %v1996 = vunpack.c.l.b16 %v1626
    %v1997 = vunpack.c.h.b16 %v1626
    %v1998 = vunpack.c.l.b16 %v1627
    %v1999 = vunpack.c.h.b16 %v1627
    %v2000 = vunpack.c.l.b16 %v1628
    %v2001 = vunpack.c.h.b16 %v1628
    %v2002 = vunpack.c.l.b16 %v1629
    %v2003 = vunpack.c.h.b16 %v1629
    %v2004 = vunpack.c.l.b16 %v1630
    %v2005 = vunpack.c.h.b16 %v1630
    %v2006 = vunpack.c.l.b16 %v1631
    %v2007 = vunpack.c.h.b16 %v1631
    %v2008 = vunpack.c.l.b16 %v1632
    %v2009 = vunpack.c.h.b16 %v1632
    %v2010 = vunpack.c.l.b16 %v1633
    %v2011 = vunpack.c.h.b16 %v1633
    %v2012 = vunpack.c.l.b16 %v1634
    %v2013 = vunpack.c.h.b16 %v1634
    %v2014 = vunpack.c.l.b16 %v1635
    %v2015 = vunpack.c.h.b16 %v1635
    %v2016 = vunpack.c.l.b16 %v1636
    %v2017 = vunpack.c.h.b16 %v1636
    %v2018 = vunpack.c.l.b16 %v1637
    %v2019 = vunpack.c.h.b16 %v1637
    %v2020 = vunpack.c.l.b16 %v1638
    %v2021 = vunpack.c.h.b16 %v1638
    %v2022 = vunpack.c.l.b16 %v1639
    %v2023 = vunpack.c.h.b16 %v1639
    %v2024 = vpack.c.b16 %v1776, %v1768
    %v2025 = vpack.c.b16 %v1777, %v1769
    %v2026 = vpack.c.b16 %v1778, %v1770
    %v2027 = vpack.c.b16 %v1779, %v1771
    %v2028 = vpack.c.b16 %v1780, %v1772
    %v2029 = vpack.c.b16 %v1781, %v1773
    %v2030 = vpack.c.b16 %v1782, %v1774
    %v2031 = vpack.c.b16 %v1783, %v1775
    %v2032 = vpack.c.b16 %v1792, %v1784
    %v2033 = vpack.c.b16 %v1793, %v1785
    %v2034 = vpack.c.b16 %v1794, %v1786
    %v2035 = vpack.c.b16 %v1795, %v1787
    %v2036 = vpack.c.b16 %v1796, %v1788
    %v2037 = vpack.c.b16 %v1797, %v1789
    %v2038 = vpack.c.b16 %v1798, %v1790
    %v2039 = vpack.c.b16 %v1799, %v1791
    %v2040 = vpack.c.b16 %v1808, %v1800
    %v2041 = vpack.c.b16 %v1809, %v1801
    %v2042 = vpack.c.b16 %v1810, %v1802
    %v2043 = vpack.c.b16 %v1811, %v1803
    %v2044 = vpack.c.b16 %v1812, %v1804
    %v2045 = vpack.c.b16 %v1813, %v1805
    %v2046 = vpack.c.b16 %v1814, %v1806
    %v2047 = vpack.c.b16 %v1815, %v1807
    %v2048 = vpack.c.b16 %v1824, %v1816
    %v2049 = vpack.c.b16 %v1825, %v1817
    %v2050 = vpack.c.b16 %v1826, %v1818
    %v2051 = vpack.c.b16 %v1827, %v1819
    %v2052 = vpack.c.b16 %v1828, %v1820
    %v2053 = vpack.c.b16 %v1829, %v1821
    %v2054 = vpack.c.b16 %v1830, %v1822
    %v2055 = vpack.c.b16 %v1831, %v1823
    %v2056 = vpack.c.b16 %v1840, %v1832
    %v2057 = vpack.c.b16 %v1841, %v1833
    %v2058 = vpack.c.b16 %v1842, %v1834
    %v2059 = vpack.c.b16 %v1843, %v1835
    %v2060 = vpack.c.b16 %v1844, %v1836
    %v2061 = vpack.c.b16 %v1845, %v1837
    %v2062 = vpack.c.b16 %v1846, %v1838
    %v2063 = vpack.c.b16 %v1847, %v1839
    %v2064 = vpack.c.b16 %v1856, %v1848
    %v2065 = vpack.c.b16 %v1857, %v1849
    %v2066 = vpack.c.b16 %v1858, %v1850
    %v2067 = vpack.c.b16 %v1859, %v1851
    %v2068 = vpack.c.b16 %v1860, %v1852
    %v2069 = vpack.c.b16 %v1861, %v1853
    %v2070 = vpack.c.b16 %v1862, %v1854
    %v2071 = vpack.c.b16 %v1863, %v1855
    %v2072 = vpack.c.b16 %v1872, %v1864
    %v2073 = vpack.c.b16 %v1873, %v1865
    %v2074 = vpack.c.b16 %v1874, %v1866
    %v2075 = vpack.c.b16 %v1875, %v1867
    %v2076 = vpack.c.b16 %v1876, %v1868
    %v2077 = vpack.c.b16 %v1877, %v1869
    %v2078 = vpack.c.b16 %v1878, %v1870
    %v2079 = vpack.c.b16 %v1879, %v1871
    %v2080 = vpack.c.b16 %v1888, %v1880
    %v2081 = vpack.c.b16 %v1889, %v1881
    %v2082 = vpack.c.b16 %v1890, %v1882
    %v2083 = vpack.c.b16 %v1891, %v1883
    %v2084 = vpack.c.b16 %v1892, %v1884
    %v2085 = vpack.c.b16 %v1893, %v1885
    %v2086 = vpack.c.b16 %v1894, %v1886
    %v2087 = vpack.c.b16 %v1895, %v1887
    %v2088 = vpack.c.b16 %v1904, %v1896
    %v2089 = vpack.c.b16 %v1905, %v1897
    %v2090 = vpack.c.b16 %v1906, %v1898
    %v2091 = vpack.c.b16 %v1907, %v1899
    %v2092 = vpack.c.b16 %v1908, %v1900
    %v2093 = vpack.c.b16 %v1909, %v1901
    %v2094 = vpack.c.b16 %v1910, %v1902
    %v2095 = vpack.c.b16 %v1911, %v1903
    %v2096 = vpack.c.b16 %v1920, %v1912
    %v2097 = vpack.c.b16 %v1921, %v1913
    %v2098 = vpack.c.b16 %v1922, %v1914
    %v2099 = vpack.c.b16 %v1923, %v1915
    %v2100 = vpack.c.b16 %v1924, %v1916
    %v2101 = vpack.c.b16 %v1925, %v1917
    %v2102 = vpack.c.b16 %v1926, %v1918
    %v2103 = vpack.c.b16 %v1927, %v1919
    %v2104 = vpack.c.b16 %v1936, %v1928
    %v2105 = vpack.c.b16 %v1937, %v1929
    %v2106 = vpack.c.b16 %v1938, %v1930
    %v2107 = vpack.c.b16 %v1939, %v1931
    %v2108 = vpack.c.b16 %v1940, %v1932
    %v2109 = vpack.c.b16 %v1941, %v1933
    %v2110 = vpack.c.b16 %v1942, %v1934
    %v2111 = vpack.c.b16 %v1943, %v1935
    %v2112 = vpack.c.b16 %v1952, %v1944
    %v2113 = vpack.c.b16 %v1953, %v1945
    %v2114 = vpack.c.b16 %v1954, %v1946
    %v2115 = vpack.c.b16 %v1955, %v1947
    %v2116 = vpack.c.b16 %v1956, %v1948
    %v2117 = vpack.c.b16 %v1957, %v1949
    %v2118 = vpack.c.b16 %v1958, %v1950
    %v2119 = vpack.c.b16 %v1959, %v1951
    %v2120 = vpack.c.b16 %v1968, %v1960
    %v2121 = vpack.c.b16 %v1969, %v1961
    %v2122 = vpack.c.b16 %v1970, %v1962
    %v2123 = vpack.c.b16 %v1971, %v1963
    %v2124 = vpack.c.b16 %v1972, %v1964
    %v2125 = vpack.c.b16 %v1973, %v1965
    %v2126 = vpack.c.b16 %v1974, %v1966
    %v2127 = vpack.c.b16 %v1975, %v1967
    %v2128 = vpack.c.b16 %v1984, %v1976
    %v2129 = vpack.c.b16 %v1985, %v1977
    %v2130 = vpack.c.b16 %v1986, %v1978
    %v2131 = vpack.c.b16 %v1987, %v1979
    %v2132 = vpack.c.b16 %v1988, %v1980
    %v2133 = vpack.c.b16 %v1989, %v1981
    %v2134 = vpack.c.b16 %v1990, %v1982
    %v2135 = vpack.c.b16 %v1991, %v1983
    %v2136 = vpack.c.b16 %v2000, %v1992
    %v2137 = vpack.c.b16 %v2001, %v1993
    %v2138 = vpack.c.b16 %v2002, %v1994
    %v2139 = vpack.c.b16 %v2003, %v1995
    %v2140 = vpack.c.b16 %v2004, %v1996
    %v2141 = vpack.c.b16 %v2005, %v1997
    %v2142 = vpack.c.b16 %v2006, %v1998
    %v2143 = vpack.c.b16 %v2007, %v1999
    %v2144 = vpack.c.b16 %v2016, %v2008
    %v2145 = vpack.c.b16 %v2017, %v2009
    %v2146 = vpack.c.b16 %v2018, %v2010
    %v2147 = vpack.c.b16 %v2019, %v2011
    %v2148 = vpack.c.b16 %v2020, %v2012
    %v2149 = vpack.c.b16 %v2021, %v2013
    %v2150 = vpack.c.b16 %v2022, %v2014
    %v2151 = vpack.c.b16 %v2023, %v2015
    %2280 = vmatprep.subr.bf16.mxu0 %v2081
    %2281 = vmatpush1.bf16.msra.mxu0 %v2080
    %2282 = vmatprep.subr.bf16.mxu0 %v2073
    %2283 = vmatpush1.bf16.msra.mxu0 %v2072
    %2284 = vmatprep.subr.bf16.mxu0 %v2065
    %2285 = vmatpush1.bf16.msra.mxu0 %v2064
    %2286 = vmatprep.subr.bf16.mxu0 %v2057
    %2287 = vmatpush1.bf16.msra.mxu0 %v2056
    %2288 = vmatprep.subr.bf16.mxu0 %v2049
    %2289 = vmatpush1.bf16.msra.mxu0 %v2048
    %2290 = vmatprep.subr.bf16.mxu0 %v2041
    %2291 = vmatpush1.bf16.msra.mxu0 %v2040
    %2292 = vmatprep.subr.bf16.mxu0 %v2033
    %2293 = vmatpush1.bf16.msra.mxu0 %v2032
    %2294 = vmatprep.subr.bf16.mxu0 %v2025
    %2295 = vmatpush1.bf16.msra.mxu0 %v2024
    %2296 = vmatprep.subr.bf16.mxu0 %v2145
    %2297 = vmatpush2.bf16.msra.mxu0 %v2144
    %2298 = vmatprep.subr.bf16.mxu0 %v2137
    %2299 = vmatpush2.bf16.msra.mxu0 %v2136
    %2300 = vmatprep.subr.bf16.mxu0 %v2129
    %2301 = vmatpush2.bf16.msra.mxu0 %v2128
    %2302 = vmatprep.subr.bf16.mxu0 %v2121
    %2303 = vmatpush2.bf16.msra.mxu0 %v2120
    %2304 = vmatprep.subr.bf16.mxu0 %v2113
    %2305 = vmatpush2.bf16.msra.mxu0 %v2112
    %2306 = vmatprep.subr.bf16.mxu0 %v2105
    %2307 = vmatpush2.bf16.msra.mxu0 %v2104
    %2308 = vmatprep.subr.bf16.mxu0 %v2097
    %2309 = vmatpush2.bf16.msra.mxu0 %v2096
    %2310 = vmatprep.subr.bf16.mxu0 %v2089
    %2311 = vmatpush2.bf16.msra.mxu0 %v2088
    %2312 = vmatprep.mubr.bf16.mxu0 0
    %2313 = vmatmul.mubr.bf16.gmra.mxu0 0
    %v2314 = vpop.f32.mrf.mxu0
    %v2315 = vadd.f32 0.0, %v2314
    %v2316 = vpop.f32.mrf.mxu0
    %v2317 = vadd.f32 0.0, %v2316
    %v2318 = vpop.f32.mrf.mxu0
    %v2319 = vadd.f32 0.0, %v2318
    %v2320 = vpop.f32.mrf.mxu0
    %v2321 = vadd.f32 0.0, %v2320
    %2322 = vdwg.mxu0
    %2323 = vmatprep.subr.bf16.mxu0 %v2083
    %2324 = vmatpush1.bf16.msra.mxu0 %v2082
    %2325 = vmatprep.subr.bf16.mxu0 %v2075
    %2326 = vmatpush1.bf16.msra.mxu0 %v2074
    %2327 = vmatprep.subr.bf16.mxu0 %v2067
    %2328 = vmatpush1.bf16.msra.mxu0 %v2066
    %2329 = vmatprep.subr.bf16.mxu0 %v2059
    %2330 = vmatpush1.bf16.msra.mxu0 %v2058
    %2331 = vmatprep.subr.bf16.mxu0 %v2051
    %2332 = vmatpush1.bf16.msra.mxu0 %v2050
    %2333 = vmatprep.subr.bf16.mxu0 %v2043
    %2334 = vmatpush1.bf16.msra.mxu0 %v2042
    %2335 = vmatprep.subr.bf16.mxu0 %v2035
    %2336 = vmatpush1.bf16.msra.mxu0 %v2034
    %2337 = vmatprep.subr.bf16.mxu0 %v2027
    %2338 = vmatpush1.bf16.msra.mxu0 %v2026
    %2339 = vmatprep.subr.bf16.mxu0 %v2147
    %2340 = vmatpush2.bf16.msra.mxu0 %v2146
    %2341 = vmatprep.subr.bf16.mxu0 %v2139
    %2342 = vmatpush2.bf16.msra.mxu0 %v2138
    %2343 = vmatprep.subr.bf16.mxu0 %v2131
    %2344 = vmatpush2.bf16.msra.mxu0 %v2130
    %2345 = vmatprep.subr.bf16.mxu0 %v2123
    %2346 = vmatpush2.bf16.msra.mxu0 %v2122
    %2347 = vmatprep.subr.bf16.mxu0 %v2115
    %2348 = vmatpush2.bf16.msra.mxu0 %v2114
    %2349 = vmatprep.subr.bf16.mxu0 %v2107
    %2350 = vmatpush2.bf16.msra.mxu0 %v2106
    %2351 = vmatprep.subr.bf16.mxu0 %v2099
    %2352 = vmatpush2.bf16.msra.mxu0 %v2098
    %2353 = vmatprep.subr.bf16.mxu0 %v2091
    %2354 = vmatpush2.bf16.msra.mxu0 %v2090
    %2355 = vmatprep.mubr.bf16.mxu0 0
    %2356 = vmatmul.mubr.bf16.gmra.mxu0 0
    %v2357 = vpop.f32.mrf.mxu0
    %v2358 = vadd.f32 0.0, %v2357
    %v2359 = vpop.f32.mrf.mxu0
    %v2360 = vadd.f32 0.0, %v2359
    %v2361 = vpop.f32.mrf.mxu0
    %v2362 = vadd.f32 0.0, %v2361
    %v2363 = vpop.f32.mrf.mxu0
    %v2364 = vadd.f32 0.0, %v2363
    %2365 = vdwg.mxu0
    %2366 = vmatprep.subr.bf16.mxu0 %v2085
    %2367 = vmatpush1.bf16.msra.mxu0 %v2084
    %2368 = vmatprep.subr.bf16.mxu0 %v2077
    %2369 = vmatpush1.bf16.msra.mxu0 %v2076
    %2370 = vmatprep.subr.bf16.mxu0 %v2069
    %2371 = vmatpush1.bf16.msra.mxu0 %v2068
    %2372 = vmatprep.subr.bf16.mxu0 %v2061
    %2373 = vmatpush1.bf16.msra.mxu0 %v2060
    %2374 = vmatprep.subr.bf16.mxu0 %v2053
    %2375 = vmatpush1.bf16.msra.mxu0 %v2052
    %2376 = vmatprep.subr.bf16.mxu0 %v2045
    %2377 = vmatpush1.bf16.msra.mxu0 %v2044
    %2378 = vmatprep.subr.bf16.mxu0 %v2037
    %2379 = vmatpush1.bf16.msra.mxu0 %v2036
    %2380 = vmatprep.subr.bf16.mxu0 %v2029
    %2381 = vmatpush1.bf16.msra.mxu0 %v2028
    %2382 = vmatprep.subr.bf16.mxu0 %v2149
    %2383 = vmatpush2.bf16.msra.mxu0 %v2148
    %2384 = vmatprep.subr.bf16.mxu0 %v2141
    %2385 = vmatpush2.bf16.msra.mxu0 %v2140
    %2386 = vmatprep.subr.bf16.mxu0 %v2133
    %2387 = vmatpush2.bf16.msra.mxu0 %v2132
    %2388 = vmatprep.subr.bf16.mxu0 %v2125
    %2389 = vmatpush2.bf16.msra.mxu0 %v2124
    %2390 = vmatprep.subr.bf16.mxu0 %v2117
    %2391 = vmatpush2.bf16.msra.mxu0 %v2116
    %2392 = vmatprep.subr.bf16.mxu0 %v2109
    %2393 = vmatpush2.bf16.msra.mxu0 %v2108
    %2394 = vmatprep.subr.bf16.mxu0 %v2101
    %2395 = vmatpush2.bf16.msra.mxu0 %v2100
    %2396 = vmatprep.subr.bf16.mxu0 %v2093
    %2397 = vmatpush2.bf16.msra.mxu0 %v2092
    %2398 = vmatprep.mubr.bf16.mxu0 0
    %2399 = vmatmul.mubr.bf16.gmra.mxu0 0
    %v2400 = vpop.f32.mrf.mxu0
    %v2401 = vadd.f32 0.0, %v2400
    %v2402 = vpop.f32.mrf.mxu0
    %v2403 = vadd.f32 0.0, %v2402
    %v2404 = vpop.f32.mrf.mxu0
    %v2405 = vadd.f32 0.0, %v2404
    %v2406 = vpop.f32.mrf.mxu0
    %v2407 = vadd.f32 0.0, %v2406
    %2408 = vdwg.mxu0
    %2409 = vmatprep.subr.bf16.mxu0 %v2087
    %2410 = vmatpush1.bf16.msra.mxu0 %v2086
    %2411 = vmatprep.subr.bf16.mxu0 %v2079
    %2412 = vmatpush1.bf16.msra.mxu0 %v2078
    %2413 = vmatprep.subr.bf16.mxu0 %v2071
    %2414 = vmatpush1.bf16.msra.mxu0 %v2070
    %2415 = vmatprep.subr.bf16.mxu0 %v2063
    %2416 = vmatpush1.bf16.msra.mxu0 %v2062
    %2417 = vmatprep.subr.bf16.mxu0 %v2055
    %2418 = vmatpush1.bf16.msra.mxu0 %v2054
    %2419 = vmatprep.subr.bf16.mxu0 %v2047
    %2420 = vmatpush1.bf16.msra.mxu0 %v2046
    %2421 = vmatprep.subr.bf16.mxu0 %v2039
    %2422 = vmatpush1.bf16.msra.mxu0 %v2038
    %2423 = vmatprep.subr.bf16.mxu0 %v2031
    %2424 = vmatpush1.bf16.msra.mxu0 %v2030
    %2425 = vmatprep.subr.bf16.mxu0 %v2151
    %2426 = vmatpush2.bf16.msra.mxu0 %v2150
    %2427 = vmatprep.subr.bf16.mxu0 %v2143
    %2428 = vmatpush2.bf16.msra.mxu0 %v2142
    %2429 = vmatprep.subr.bf16.mxu0 %v2135
    %2430 = vmatpush2.bf16.msra.mxu0 %v2134
    %2431 = vmatprep.subr.bf16.mxu0 %v2127
    %2432 = vmatpush2.bf16.msra.mxu0 %v2126
    %2433 = vmatprep.subr.bf16.mxu0 %v2119
    %2434 = vmatpush2.bf16.msra.mxu0 %v2118
    %2435 = vmatprep.subr.bf16.mxu0 %v2111
    %2436 = vmatpush2.bf16.msra.mxu0 %v2110
    %2437 = vmatprep.subr.bf16.mxu0 %v2103
    %2438 = vmatpush2.bf16.msra.mxu0 %v2102
    %2439 = vmatprep.subr.bf16.mxu0 %v2095
    %2440 = vmatpush2.bf16.msra.mxu0 %v2094
    %2441 = vmatprep.mubr.bf16.mxu0 0
    %2442 = vmatmul.mubr.bf16.gmra.mxu0 0
    %v2443 = vpop.f32.mrf.mxu0
    %v2444 = vadd.f32 0.0, %v2443
    %v2445 = vpop.f32.mrf.mxu0
    %v2446 = vadd.f32 0.0, %v2445
    %v2447 = vpop.f32.mrf.mxu0
    %v2448 = vadd.f32 0.0, %v2447
    %v2449 = vpop.f32.mrf.mxu0
    %v2450 = vadd.f32 0.0, %v2449
    %2451 = vdwg.mxu0
    %v2452 = vunpack.c.l.bf16 %v1504
    %v2453 = vunpack.c.h.bf16 %v1504
    %v2454 = vunpack.c.l.bf16 %v1505
    %v2455 = vunpack.c.h.bf16 %v1505
    %v2456 = vunpack.c.l.bf16 %v1506
    %v2457 = vunpack.c.h.bf16 %v1506
    %v2458 = vunpack.c.l.bf16 %v1507
    %v2459 = vunpack.c.h.bf16 %v1507
    %v2460 = vunpack.c.l.bf16 %v1508
    %v2461 = vunpack.c.h.bf16 %v1508
    %v2462 = vunpack.c.l.bf16 %v1509
    %v2463 = vunpack.c.h.bf16 %v1509
    %v2464 = vunpack.c.l.bf16 %v1510
    %v2465 = vunpack.c.h.bf16 %v1510
    %v2466 = vunpack.c.l.bf16 %v1511
    %v2467 = vunpack.c.h.bf16 %v1511
    %v2468 = vadd.f32 %v2452, %v2315
    %v2469 = vadd.f32 %v2453, %v2317
    %v2470 = vadd.f32 %v2454, %v2358
    %v2471 = vadd.f32 %v2455, %v2360
    %v2472 = vadd.f32 %v2456, %v2401
    %v2473 = vadd.f32 %v2457, %v2403
    %v2474 = vadd.f32 %v2458, %v2444
    %v2475 = vadd.f32 %v2459, %v2446
    %v2476 = vadd.f32 %v2460, %v2319
    %v2477 = vadd.f32 %v2461, %v2321
    %v2478 = vadd.f32 %v2462, %v2362
    %v2479 = vadd.f32 %v2463, %v2364
    %v2480 = vadd.f32 %v2464, %v2405
    %v2481 = vadd.f32 %v2465, %v2407
    %v2482 = vadd.f32 %v2466, %v2448
    %v2483 = vadd.f32 %v2467, %v2450
    %v2484 = vxor.u32 %v2468, 2147483648
    %v2485 = vxor.u32 %v2469, 2147483648
    %v2486 = vxor.u32 %v2470, 2147483648
    %v2487 = vxor.u32 %v2471, 2147483648
    %v2488 = vxor.u32 %v2472, 2147483648
    %v2489 = vxor.u32 %v2473, 2147483648
    %v2490 = vxor.u32 %v2476, 2147483648
    %v2491 = vxor.u32 %v2477, 2147483648
    %v2492 = vxor.u32 %v2478, 2147483648
    %v2493 = vxor.u32 %v2479, 2147483648
    %v2494 = vxor.u32 %v2480, 2147483648
    %v2495 = vxor.u32 %v2481, 2147483648
    %v2496 = vmul.f32 %v2484, 1.442695
    %v2497 = vpow.pop %v2496
    %v2498 = vmul.f32 %v2485, 1.442695
    %v2499 = vpow.pop %v2498
    %v2500 = vmul.f32 %v2486, 1.442695
    %v2501 = vpow.pop %v2500
    %v2502 = vmul.f32 %v2487, 1.442695
    %v2503 = vpow.pop %v2502
    %v2504 = vmul.f32 %v2488, 1.442695
    %v2505 = vpow.pop %v2504
    %v2506 = vmul.f32 %v2489, 1.442695
    %v2507 = vpow.pop %v2506
    %v2508 = vmul.f32 %v2490, 1.442695
    %v2509 = vpow.pop %v2508
    %v2510 = vmul.f32 %v2491, 1.442695
    %v2511 = vpow.pop %v2510
    %v2512 = vmul.f32 %v2492, 1.442695
    %v2513 = vpow.pop %v2512
    %v2514 = vmul.f32 %v2493, 1.442695
    %v2515 = vpow.pop %v2514
    %v2516 = vmul.f32 %v2494, 1.442695
    %v2517 = vpow.pop %v2516
    %v2518 = vmul.f32 %v2495, 1.442695
    %v2519 = vpow.pop %v2518
    %v2520 = vadd.f32 %v2497, 1.0
    %v2521 = vadd.f32 %v2499, 1.0
    %v2522 = vadd.f32 %v2501, 1.0
    %v2523 = vadd.f32 %v2503, 1.0
    %v2524 = vadd.f32 %v2505, 1.0
    %v2525 = vadd.f32 %v2507, 1.0
    %v2526 = vadd.f32 %v2509, 1.0
    %v2527 = vadd.f32 %v2511, 1.0
    %v2528 = vadd.f32 %v2513, 1.0
    %v2529 = vadd.f32 %v2515, 1.0
    %v2530 = vadd.f32 %v2517, 1.0
    %v2531 = vadd.f32 %v2519, 1.0
    %v2532 = vrcp.pop %v2520
    %v2533 = vmul.f32 1.0, %v2532
    %v2534 = vrcp.pop %v2521
    %v2535 = vmul.f32 1.0, %v2534
    %v2536 = vrcp.pop %v2522
    %v2537 = vmul.f32 1.0, %v2536
    %v2538 = vrcp.pop %v2523
    %v2539 = vmul.f32 1.0, %v2538
    %v2540 = vrcp.pop %v2524
    %v2541 = vmul.f32 1.0, %v2540
    %v2542 = vrcp.pop %v2525
    %v2543 = vmul.f32 1.0, %v2542
    %v2544 = vrcp.pop %v2526
    %v2545 = vmul.f32 1.0, %v2544
    %v2546 = vrcp.pop %v2527
    %v2547 = vmul.f32 1.0, %v2546
    %v2548 = vrcp.pop %v2528
    %v2549 = vmul.f32 1.0, %v2548
    %v2550 = vrcp.pop %v2529
    %v2551 = vmul.f32 1.0, %v2550
    %v2552 = vrcp.pop %v2530
    %v2553 = vmul.f32 1.0, %v2552
    %v2554 = vrcp.pop %v2531
    %v2555 = vmul.f32 1.0, %v2554
    %v2556 = vtanh.pop %v2474
    %v2557 = vtanh.pop %v2475
    %v2558 = vtanh.pop %v2482
    %v2559 = vtanh.pop %v2483
    %v2560 = vmul.f32 %v2537, 0.0
    %v2561 = vmul.f32 %v2539, 0.0
    %v2562 = vmul.f32 %v2549, 0.0
    %v2563 = vmul.f32 %v2551, 0.0
    %v2564 = vmul.f32 %v2533, %v2556
    %v2565 = vmul.f32 %v2535, %v2557
    %v2566 = vmul.f32 %v2545, %v2558
    %v2567 = vmul.f32 %v2547, %v2559
    %v2568 = vadd.f32 %v2560, %v2564
    %v2569 = vadd.f32 %v2561, %v2565
    %v2570 = vadd.f32 %v2562, %v2566
    %v2571 = vadd.f32 %v2563, %v2567
    %v2572 = vtanh.pop %v2568
    %v2573 = vtanh.pop %v2569
    %v2574 = vtanh.pop %v2570
    %v2575 = vtanh.pop %v2571
    %v2576 = vmul.f32 %v2541, %v2572
    %v2577 = vmul.f32 %v2543, %v2573
    %v2578 = vmul.f32 %v2553, %v2574
    %v2579 = vmul.f32 %v2555, %v2575
    %v2580 = vld [vmem:[#allocation2 + $0x40] sm:$0xff]
    %v2581 = vld [vmem:[#allocation2 + $0x48] sm:$0xff]
    %v2582 = vld [vmem:[#allocation2 + $0x50] sm:$0xff]
    %v2583 = vld [vmem:[#allocation2 + $0x58] sm:$0xff]
    %v2584 = vld [vmem:[#allocation2 + $0x60] sm:$0xff]
    %v2585 = vld [vmem:[#allocation2 + $0x68] sm:$0xff]
    %v2586 = vld [vmem:[#allocation2 + $0x70] sm:$0xff]
    %v2587 = vld [vmem:[#allocation2 + $0x78] sm:$0xff]
    %v2588 = vpack.c.bf16 %v2578, %v2576
    %v2589 = vpack.c.bf16 %v2579, %v2577
    %2590 = vmatprep.subr.bf16.mxu0 %v2081
    %2591 = vmatpush1.bf16.msra.mxu0 %v2080
    %2592 = vmatprep.subr.bf16.mxu0 %v2073
    %2593 = vmatpush1.bf16.msra.mxu0 %v2072
    %2594 = vmatprep.subr.bf16.mxu0 %v2065
    %2595 = vmatpush1.bf16.msra.mxu0 %v2064
    %2596 = vmatprep.subr.bf16.mxu0 %v2057
    %2597 = vmatpush1.bf16.msra.mxu0 %v2056
    %2598 = vmatprep.subr.bf16.mxu0 %v2049
    %2599 = vmatpush1.bf16.msra.mxu0 %v2048
    %2600 = vmatprep.subr.bf16.mxu0 %v2041
    %2601 = vmatpush1.bf16.msra.mxu0 %v2040
    %2602 = vmatprep.subr.bf16.mxu0 %v2033
    %2603 = vmatpush1.bf16.msra.mxu0 %v2032
    %2604 = vmatprep.subr.bf16.mxu0 %v2025
    %2605 = vmatpush1.bf16.msra.mxu0 %v2024
    %2606 = vmatprep.subr.bf16.mxu0 %v2145
    %2607 = vmatpush2.bf16.msra.mxu0 %v2144
    %2608 = vmatprep.subr.bf16.mxu0 %v2137
    %2609 = vmatpush2.bf16.msra.mxu0 %v2136
    %2610 = vmatprep.subr.bf16.mxu0 %v2129
    %2611 = vmatpush2.bf16.msra.mxu0 %v2128
    %2612 = vmatprep.subr.bf16.mxu0 %v2121
    %2613 = vmatpush2.bf16.msra.mxu0 %v2120
    %2614 = vmatprep.subr.bf16.mxu0 %v2113
    %2615 = vmatpush2.bf16.msra.mxu0 %v2112
    %2616 = vmatprep.subr.bf16.mxu0 %v2105
    %2617 = vmatpush2.bf16.msra.mxu0 %v2104
    %2618 = vmatprep.subr.bf16.mxu0 %v2097
    %2619 = vmatpush2.bf16.msra.mxu0 %v2096
    %2620 = vmatprep.subr.bf16.mxu0 %v2089
    %2621 = vmatpush2.bf16.msra.mxu0 %v2088
    %2622 = vmatprep.mubr.bf16.mxu0 %v2589
    %2623 = vmatmul.mubr.bf16.gmra.mxu0 %v2588
    %v2624 = vpop.f32.mrf.mxu0
    %v2625 = vadd.f32 0.0, %v2624
    %v2626 = vpop.f32.mrf.mxu0
    %v2627 = vadd.f32 0.0, %v2626
    %v2628 = vpop.f32.mrf.mxu0
    %v2629 = vadd.f32 0.0, %v2628
    %v2630 = vpop.f32.mrf.mxu0
    %v2631 = vadd.f32 0.0, %v2630
    %2632 = vdwg.mxu0
    %2633 = vmatprep.subr.bf16.mxu0 %v2083
    %2634 = vmatpush1.bf16.msra.mxu0 %v2082
    %2635 = vmatprep.subr.bf16.mxu0 %v2075
    %2636 = vmatpush1.bf16.msra.mxu0 %v2074
    %2637 = vmatprep.subr.bf16.mxu0 %v2067
    %2638 = vmatpush1.bf16.msra.mxu0 %v2066
    %2639 = vmatprep.subr.bf16.mxu0 %v2059
    %2640 = vmatpush1.bf16.msra.mxu0 %v2058
    %2641 = vmatprep.subr.bf16.mxu0 %v2051
    %2642 = vmatpush1.bf16.msra.mxu0 %v2050
    %2643 = vmatprep.subr.bf16.mxu0 %v2043
    %2644 = vmatpush1.bf16.msra.mxu0 %v2042
    %2645 = vmatprep.subr.bf16.mxu0 %v2035
    %2646 = vmatpush1.bf16.msra.mxu0 %v2034
    %2647 = vmatprep.subr.bf16.mxu0 %v2027
    %2648 = vmatpush1.bf16.msra.mxu0 %v2026
    %2649 = vmatprep.subr.bf16.mxu0 %v2147
    %2650 = vmatpush2.bf16.msra.mxu0 %v2146
    %2651 = vmatprep.subr.bf16.mxu0 %v2139
    %2652 = vmatpush2.bf16.msra.mxu0 %v2138
    %2653 = vmatprep.subr.bf16.mxu0 %v2131
    %2654 = vmatpush2.bf16.msra.mxu0 %v2130
    %2655 = vmatprep.subr.bf16.mxu0 %v2123
    %2656 = vmatpush2.bf16.msra.mxu0 %v2122
    %2657 = vmatprep.subr.bf16.mxu0 %v2115
    %2658 = vmatpush2.bf16.msra.mxu0 %v2114
    %2659 = vmatprep.subr.bf16.mxu0 %v2107
    %2660 = vmatpush2.bf16.msra.mxu0 %v2106
    %2661 = vmatprep.subr.bf16.mxu0 %v2099
    %2662 = vmatpush2.bf16.msra.mxu0 %v2098
    %2663 = vmatprep.subr.bf16.mxu0 %v2091
    %2664 = vmatpush2.bf16.msra.mxu0 %v2090
    %2665 = vmatprep.mubr.bf16.mxu0 %v2589
    %2666 = vmatmul.mubr.bf16.gmra.mxu0 %v2588
    %v2667 = vpop.f32.mrf.mxu0
    %v2668 = vadd.f32 0.0, %v2667
    %v2669 = vpop.f32.mrf.mxu0
    %v2670 = vadd.f32 0.0, %v2669
    %v2671 = vpop.f32.mrf.mxu0
    %v2672 = vadd.f32 0.0, %v2671
    %v2673 = vpop.f32.mrf.mxu0
    %v2674 = vadd.f32 0.0, %v2673
    %2675 = vdwg.mxu0
    %2676 = vmatprep.subr.bf16.mxu0 %v2085
    %2677 = vmatpush1.bf16.msra.mxu0 %v2084
    %2678 = vmatprep.subr.bf16.mxu0 %v2077
    %2679 = vmatpush1.bf16.msra.mxu0 %v2076
    %2680 = vmatprep.subr.bf16.mxu0 %v2069
    %2681 = vmatpush1.bf16.msra.mxu0 %v2068
    %2682 = vmatprep.subr.bf16.mxu0 %v2061
    %2683 = vmatpush1.bf16.msra.mxu0 %v2060
    %2684 = vmatprep.subr.bf16.mxu0 %v2053
    %2685 = vmatpush1.bf16.msra.mxu0 %v2052
    %2686 = vmatprep.subr.bf16.mxu0 %v2045
    %2687 = vmatpush1.bf16.msra.mxu0 %v2044
    %2688 = vmatprep.subr.bf16.mxu0 %v2037
    %2689 = vmatpush1.bf16.msra.mxu0 %v2036
    %2690 = vmatprep.subr.bf16.mxu0 %v2029
    %2691 = vmatpush1.bf16.msra.mxu0 %v2028
    %2692 = vmatprep.subr.bf16.mxu0 %v2149
    %2693 = vmatpush2.bf16.msra.mxu0 %v2148
    %2694 = vmatprep.subr.bf16.mxu0 %v2141
    %2695 = vmatpush2.bf16.msra.mxu0 %v2140
    %2696 = vmatprep.subr.bf16.mxu0 %v2133
    %2697 = vmatpush2.bf16.msra.mxu0 %v2132
    %2698 = vmatprep.subr.bf16.mxu0 %v2125
    %2699 = vmatpush2.bf16.msra.mxu0 %v2124
    %2700 = vmatprep.subr.bf16.mxu0 %v2117
    %2701 = vmatpush2.bf16.msra.mxu0 %v2116
    %2702 = vmatprep.subr.bf16.mxu0 %v2109
    %2703 = vmatpush2.bf16.msra.mxu0 %v2108
    %2704 = vmatprep.subr.bf16.mxu0 %v2101
    %2705 = vmatpush2.bf16.msra.mxu0 %v2100
    %2706 = vmatprep.subr.bf16.mxu0 %v2093
    %2707 = vmatpush2.bf16.msra.mxu0 %v2092
    %2708 = vmatprep.mubr.bf16.mxu0 %v2589
    %2709 = vmatmul.mubr.bf16.gmra.mxu0 %v2588
    %v2710 = vpop.f32.mrf.mxu0
    %v2711 = vadd.f32 0.0, %v2710
    %v2712 = vpop.f32.mrf.mxu0
    %v2713 = vadd.f32 0.0, %v2712
    %v2714 = vpop.f32.mrf.mxu0
    %v2715 = vadd.f32 0.0, %v2714
    %v2716 = vpop.f32.mrf.mxu0
    %v2717 = vadd.f32 0.0, %v2716
    %2718 = vdwg.mxu0
    %2719 = vmatprep.subr.bf16.mxu0 %v2087
    %2720 = vmatpush1.bf16.msra.mxu0 %v2086
    %2721 = vmatprep.subr.bf16.mxu0 %v2079
    %2722 = vmatpush1.bf16.msra.mxu0 %v2078
    %2723 = vmatprep.subr.bf16.mxu0 %v2071
    %2724 = vmatpush1.bf16.msra.mxu0 %v2070
    %2725 = vmatprep.subr.bf16.mxu0 %v2063
    %2726 = vmatpush1.bf16.msra.mxu0 %v2062
    %2727 = vmatprep.subr.bf16.mxu0 %v2055
    %2728 = vmatpush1.bf16.msra.mxu0 %v2054
    %2729 = vmatprep.subr.bf16.mxu0 %v2047
    %2730 = vmatpush1.bf16.msra.mxu0 %v2046
    %2731 = vmatprep.subr.bf16.mxu0 %v2039
    %2732 = vmatpush1.bf16.msra.mxu0 %v2038
    %2733 = vmatprep.subr.bf16.mxu0 %v2031
    %2734 = vmatpush1.bf16.msra.mxu0 %v2030
    %2735 = vmatprep.subr.bf16.mxu0 %v2151
    %2736 = vmatpush2.bf16.msra.mxu0 %v2150
    %2737 = vmatprep.subr.bf16.mxu0 %v2143
    %2738 = vmatpush2.bf16.msra.mxu0 %v2142
    %2739 = vmatprep.subr.bf16.mxu0 %v2135
    %2740 = vmatpush2.bf16.msra.mxu0 %v2134
    %2741 = vmatprep.subr.bf16.mxu0 %v2127
    %2742 = vmatpush2.bf16.msra.mxu0 %v2126
    %2743 = vmatprep.subr.bf16.mxu0 %v2119
    %2744 = vmatpush2.bf16.msra.mxu0 %v2118
    %2745 = vmatprep.subr.bf16.mxu0 %v2111
    %2746 = vmatpush2.bf16.msra.mxu0 %v2110
    %2747 = vmatprep.subr.bf16.mxu0 %v2103
    %2748 = vmatpush2.bf16.msra.mxu0 %v2102
    %2749 = vmatprep.subr.bf16.mxu0 %v2095
    %2750 = vmatpush2.bf16.msra.mxu0 %v2094
    %2751 = vmatprep.mubr.bf16.mxu0 %v2589
    %2752 = vmatmul.mubr.bf16.gmra.mxu0 %v2588
    %v2753 = vpop.f32.mrf.mxu0
    %v2754 = vadd.f32 0.0, %v2753
    %v2755 = vpop.f32.mrf.mxu0
    %v2756 = vadd.f32 0.0, %v2755
    %v2757 = vpop.f32.mrf.mxu0
    %v2758 = vadd.f32 0.0, %v2757
    %v2759 = vpop.f32.mrf.mxu0
    %v2760 = vadd.f32 0.0, %v2759
    %2761 = vdwg.mxu0
    %v2762 = vunpack.c.l.bf16 %v2580
    %v2763 = vunpack.c.h.bf16 %v2580
    %v2764 = vunpack.c.l.bf16 %v2581
    %v2765 = vunpack.c.h.bf16 %v2581
    %v2766 = vunpack.c.l.bf16 %v2582
    %v2767 = vunpack.c.h.bf16 %v2582
    %v2768 = vunpack.c.l.bf16 %v2583
    %v2769 = vunpack.c.h.bf16 %v2583
    %v2770 = vunpack.c.l.bf16 %v2584
    %v2771 = vunpack.c.h.bf16 %v2584
    %v2772 = vunpack.c.l.bf16 %v2585
    %v2773 = vunpack.c.h.bf16 %v2585
    %v2774 = vunpack.c.l.bf16 %v2586
    %v2775 = vunpack.c.h.bf16 %v2586
    %v2776 = vunpack.c.l.bf16 %v2587
    %v2777 = vunpack.c.h.bf16 %v2587
    %v2778 = vadd.f32 %v2762, %v2625
    %v2779 = vadd.f32 %v2763, %v2627
    %v2780 = vadd.f32 %v2764, %v2668
    %v2781 = vadd.f32 %v2765, %v2670
    %v2782 = vadd.f32 %v2766, %v2711
    %v2783 = vadd.f32 %v2767, %v2713
    %v2784 = vadd.f32 %v2768, %v2754
    %v2785 = vadd.f32 %v2769, %v2756
    %v2786 = vadd.f32 %v2770, %v2629
    %v2787 = vadd.f32 %v2771, %v2631
    %v2788 = vadd.f32 %v2772, %v2672
    %v2789 = vadd.f32 %v2773, %v2674
    %v2790 = vadd.f32 %v2774, %v2715
    %v2791 = vadd.f32 %v2775, %v2717
    %v2792 = vadd.f32 %v2776, %v2758
    %v2793 = vadd.f32 %v2777, %v2760
    %v2794 = vxor.u32 %v2778, 2147483648
    %v2795 = vxor.u32 %v2779, 2147483648
    %v2796 = vxor.u32 %v2780, 2147483648
    %v2797 = vxor.u32 %v2781, 2147483648
    %v2798 = vxor.u32 %v2782, 2147483648
    %v2799 = vxor.u32 %v2783, 2147483648
    %v2800 = vxor.u32 %v2786, 2147483648
    %v2801 = vxor.u32 %v2787, 2147483648
    %v2802 = vxor.u32 %v2788, 2147483648
    %v2803 = vxor.u32 %v2789, 2147483648
    %v2804 = vxor.u32 %v2790, 2147483648
    %v2805 = vxor.u32 %v2791, 2147483648
    %v2806 = vmul.f32 %v2794, 1.442695
    %v2807 = vpow.pop %v2806
    %v2808 = vmul.f32 %v2795, 1.442695
    %v2809 = vpow.pop %v2808
    %v2810 = vmul.f32 %v2796, 1.442695
    %v2811 = vpow.pop %v2810
    %v2812 = vmul.f32 %v2797, 1.442695
    %v2813 = vpow.pop %v2812
    %v2814 = vmul.f32 %v2798, 1.442695
    %v2815 = vpow.pop %v2814
    %v2816 = vmul.f32 %v2799, 1.442695
    %v2817 = vpow.pop %v2816
    %v2818 = vmul.f32 %v2800, 1.442695
    %v2819 = vpow.pop %v2818
    %v2820 = vmul.f32 %v2801, 1.442695
    %v2821 = vpow.pop %v2820
    %v2822 = vmul.f32 %v2802, 1.442695
    %v2823 = vpow.pop %v2822
    %v2824 = vmul.f32 %v2803, 1.442695
    %v2825 = vpow.pop %v2824
    %v2826 = vmul.f32 %v2804, 1.442695
    %v2827 = vpow.pop %v2826
    %v2828 = vmul.f32 %v2805, 1.442695
    %v2829 = vpow.pop %v2828
    %v2830 = vadd.f32 %v2807, 1.0
    %v2831 = vadd.f32 %v2809, 1.0
    %v2832 = vadd.f32 %v2811, 1.0
    %v2833 = vadd.f32 %v2813, 1.0
    %v2834 = vadd.f32 %v2815, 1.0
    %v2835 = vadd.f32 %v2817, 1.0
    %v2836 = vadd.f32 %v2819, 1.0
    %v2837 = vadd.f32 %v2821, 1.0
    %v2838 = vadd.f32 %v2823, 1.0
    %v2839 = vadd.f32 %v2825, 1.0
    %v2840 = vadd.f32 %v2827, 1.0
    %v2841 = vadd.f32 %v2829, 1.0
    %v2842 = vrcp.pop %v2830
    %v2843 = vmul.f32 1.0, %v2842
    %v2844 = vrcp.pop %v2831
    %v2845 = vmul.f32 1.0, %v2844
    %v2846 = vrcp.pop %v2832
    %v2847 = vmul.f32 1.0, %v2846
    %v2848 = vrcp.pop %v2833
    %v2849 = vmul.f32 1.0, %v2848
    %v2850 = vrcp.pop %v2834
    %v2851 = vmul.f32 1.0, %v2850
    %v2852 = vrcp.pop %v2835
    %v2853 = vmul.f32 1.0, %v2852
    %v2854 = vrcp.pop %v2836
    %v2855 = vmul.f32 1.0, %v2854
    %v2856 = vrcp.pop %v2837
    %v2857 = vmul.f32 1.0, %v2856
    %v2858 = vrcp.pop %v2838
    %v2859 = vmul.f32 1.0, %v2858
    %v2860 = vrcp.pop %v2839
    %v2861 = vmul.f32 1.0, %v2860
    %v2862 = vrcp.pop %v2840
    %v2863 = vmul.f32 1.0, %v2862
    %v2864 = vrcp.pop %v2841
    %v2865 = vmul.f32 1.0, %v2864
    %v2866 = vtanh.pop %v2784
    %v2867 = vtanh.pop %v2785
    %v2868 = vtanh.pop %v2792
    %v2869 = vtanh.pop %v2793
    %v2870 = vmul.f32 %v2847, %v2568
    %v2871 = vmul.f32 %v2849, %v2569
    %v2872 = vmul.f32 %v2859, %v2570
    %v2873 = vmul.f32 %v2861, %v2571
    %v2874 = vmul.f32 %v2843, %v2866
    %v2875 = vmul.f32 %v2845, %v2867
    %v2876 = vmul.f32 %v2855, %v2868
    %v2877 = vmul.f32 %v2857, %v2869
    %v2878 = vadd.f32 %v2870, %v2874
    %v2879 = vadd.f32 %v2871, %v2875
    %v2880 = vadd.f32 %v2872, %v2876
    %v2881 = vadd.f32 %v2873, %v2877
    %v2882 = vtanh.pop %v2878
    %v2883 = vtanh.pop %v2879
    %v2884 = vtanh.pop %v2880
    %v2885 = vtanh.pop %v2881
    %v2886 = vmul.f32 %v2851, %v2882
    %v2887 = vmul.f32 %v2853, %v2883
    %v2888 = vmul.f32 %v2863, %v2884
    %v2889 = vmul.f32 %v2865, %v2885
    %v2890 = vld [vmem:[#allocation2 + $0x80] sm:$0xff]
    %v2891 = vld [vmem:[#allocation2 + $0x88] sm:$0xff]
    %v2892 = vld [vmem:[#allocation2 + $0x90] sm:$0xff]
    %v2893 = vld [vmem:[#allocation2 + $0x98] sm:$0xff]
    %v2894 = vld [vmem:[#allocation2 + $0xa0] sm:$0xff]
    %v2895 = vld [vmem:[#allocation2 + $0xa8] sm:$0xff]
    %v2896 = vld [vmem:[#allocation2 + $0xb0] sm:$0xff]
    %v2897 = vld [vmem:[#allocation2 + $0xb8] sm:$0xff]
    %v2898 = vpack.c.bf16 %v2888, %v2886
    %v2899 = vpack.c.bf16 %v2889, %v2887
    %2900 = vmatprep.subr.bf16.mxu0 %v2081
    %2901 = vmatpush1.bf16.msra.mxu0 %v2080
    %2902 = vmatprep.subr.bf16.mxu0 %v2073
    %2903 = vmatpush1.bf16.msra.mxu0 %v2072
    %2904 = vmatprep.subr.bf16.mxu0 %v2065
    %2905 = vmatpush1.bf16.msra.mxu0 %v2064
    %2906 = vmatprep.subr.bf16.mxu0 %v2057
    %2907 = vmatpush1.bf16.msra.mxu0 %v2056
    %2908 = vmatprep.subr.bf16.mxu0 %v2049
    %2909 = vmatpush1.bf16.msra.mxu0 %v2048
    %2910 = vmatprep.subr.bf16.mxu0 %v2041
    %2911 = vmatpush1.bf16.msra.mxu0 %v2040
    %2912 = vmatprep.subr.bf16.mxu0 %v2033
    %2913 = vmatpush1.bf16.msra.mxu0 %v2032
    %2914 = vmatprep.subr.bf16.mxu0 %v2025
    %2915 = vmatpush1.bf16.msra.mxu0 %v2024
    %2916 = vmatprep.subr.bf16.mxu0 %v2145
    %2917 = vmatpush2.bf16.msra.mxu0 %v2144
    %2918 = vmatprep.subr.bf16.mxu0 %v2137
    %2919 = vmatpush2.bf16.msra.mxu0 %v2136
    %2920 = vmatprep.subr.bf16.mxu0 %v2129
    %2921 = vmatpush2.bf16.msra.mxu0 %v2128
    %2922 = vmatprep.subr.bf16.mxu0 %v2121
    %2923 = vmatpush2.bf16.msra.mxu0 %v2120
    %2924 = vmatprep.subr.bf16.mxu0 %v2113
    %2925 = vmatpush2.bf16.msra.mxu0 %v2112
    %2926 = vmatprep.subr.bf16.mxu0 %v2105
    %2927 = vmatpush2.bf16.msra.mxu0 %v2104
    %2928 = vmatprep.subr.bf16.mxu0 %v2097
    %2929 = vmatpush2.bf16.msra.mxu0 %v2096
    %2930 = vmatprep.subr.bf16.mxu0 %v2089
    %2931 = vmatpush2.bf16.msra.mxu0 %v2088
    %2932 = vmatprep.mubr.bf16.mxu0 %v2899
    %2933 = vmatmul.mubr.bf16.gmra.mxu0 %v2898
    %v2934 = vpop.f32.mrf.mxu0
    %v2935 = vadd.f32 0.0, %v2934
    %v2936 = vpop.f32.mrf.mxu0
    %v2937 = vadd.f32 0.0, %v2936
    %v2938 = vpop.f32.mrf.mxu0
    %v2939 = vadd.f32 0.0, %v2938
    %v2940 = vpop.f32.mrf.mxu0
    %v2941 = vadd.f32 0.0, %v2940
    %2942 = vdwg.mxu0
    %2943 = vmatprep.subr.bf16.mxu0 %v2083
    %2944 = vmatpush1.bf16.msra.mxu0 %v2082
    %2945 = vmatprep.subr.bf16.mxu0 %v2075
    %2946 = vmatpush1.bf16.msra.mxu0 %v2074
    %2947 = vmatprep.subr.bf16.mxu0 %v2067
    %2948 = vmatpush1.bf16.msra.mxu0 %v2066
    %2949 = vmatprep.subr.bf16.mxu0 %v2059
    %2950 = vmatpush1.bf16.msra.mxu0 %v2058
    %2951 = vmatprep.subr.bf16.mxu0 %v2051
    %2952 = vmatpush1.bf16.msra.mxu0 %v2050
    %2953 = vmatprep.subr.bf16.mxu0 %v2043
    %2954 = vmatpush1.bf16.msra.mxu0 %v2042
    %2955 = vmatprep.subr.bf16.mxu0 %v2035
    %2956 = vmatpush1.bf16.msra.mxu0 %v2034
    %2957 = vmatprep.subr.bf16.mxu0 %v2027
    %2958 = vmatpush1.bf16.msra.mxu0 %v2026
    %2959 = vmatprep.subr.bf16.mxu0 %v2147
    %2960 = vmatpush2.bf16.msra.mxu0 %v2146
    %2961 = vmatprep.subr.bf16.mxu0 %v2139
    %2962 = vmatpush2.bf16.msra.mxu0 %v2138
    %2963 = vmatprep.subr.bf16.mxu0 %v2131
    %2964 = vmatpush2.bf16.msra.mxu0 %v2130
    %2965 = vmatprep.subr.bf16.mxu0 %v2123
    %2966 = vmatpush2.bf16.msra.mxu0 %v2122
    %2967 = vmatprep.subr.bf16.mxu0 %v2115
    %2968 = vmatpush2.bf16.msra.mxu0 %v2114
    %2969 = vmatprep.subr.bf16.mxu0 %v2107
    %2970 = vmatpush2.bf16.msra.mxu0 %v2106
    %2971 = vmatprep.subr.bf16.mxu0 %v2099
    %2972 = vmatpush2.bf16.msra.mxu0 %v2098
    %2973 = vmatprep.subr.bf16.mxu0 %v2091
    %2974 = vmatpush2.bf16.msra.mxu0 %v2090
    %2975 = vmatprep.mubr.bf16.mxu0 %v2899
    %2976 = vmatmul.mubr.bf16.gmra.mxu0 %v2898
    %v2977 = vpop.f32.mrf.mxu0
    %v2978 = vadd.f32 0.0, %v2977
    %v2979 = vpop.f32.mrf.mxu0
    %v2980 = vadd.f32 0.0, %v2979
    %v2981 = vpop.f32.mrf.mxu0
    %v2982 = vadd.f32 0.0, %v2981
    %v2983 = vpop.f32.mrf.mxu0
    %v2984 = vadd.f32 0.0, %v2983
    %2985 = vdwg.mxu0
    %2986 = vmatprep.subr.bf16.mxu0 %v2085
    %2987 = vmatpush1.bf16.msra.mxu0 %v2084
    %2988 = vmatprep.subr.bf16.mxu0 %v2077
    %2989 = vmatpush1.bf16.msra.mxu0 %v2076
    %2990 = vmatprep.subr.bf16.mxu0 %v2069
    %2991 = vmatpush1.bf16.msra.mxu0 %v2068
    %2992 = vmatprep.subr.bf16.mxu0 %v2061
    %2993 = vmatpush1.bf16.msra.mxu0 %v2060
    %2994 = vmatprep.subr.bf16.mxu0 %v2053
    %2995 = vmatpush1.bf16.msra.mxu0 %v2052
    %2996 = vmatprep.subr.bf16.mxu0 %v2045
    %2997 = vmatpush1.bf16.msra.mxu0 %v2044
    %2998 = vmatprep.subr.bf16.mxu0 %v2037
    %2999 = vmatpush1.bf16.msra.mxu0 %v2036
    %3000 = vmatprep.subr.bf16.mxu0 %v2029
    %3001 = vmatpush1.bf16.msra.mxu0 %v2028
    %3002 = vmatprep.subr.bf16.mxu0 %v2149
    %3003 = vmatpush2.bf16.msra.mxu0 %v2148
    %3004 = vmatprep.subr.bf16.mxu0 %v2141
    %3005 = vmatpush2.bf16.msra.mxu0 %v2140
    %3006 = vmatprep.subr.bf16.mxu0 %v2133
    %3007 = vmatpush2.bf16.msra.mxu0 %v2132
    %3008 = vmatprep.subr.bf16.mxu0 %v2125
    %3009 = vmatpush2.bf16.msra.mxu0 %v2124
    %3010 = vmatprep.subr.bf16.mxu0 %v2117
    %3011 = vmatpush2.bf16.msra.mxu0 %v2116
    %3012 = vmatprep.subr.bf16.mxu0 %v2109
    %3013 = vmatpush2.bf16.msra.mxu0 %v2108
    %3014 = vmatprep.subr.bf16.mxu0 %v2101
    %3015 = vmatpush2.bf16.msra.mxu0 %v2100
    %3016 = vmatprep.subr.bf16.mxu0 %v2093
    %3017 = vmatpush2.bf16.msra.mxu0 %v2092
    %3018 = vmatprep.mubr.bf16.mxu0 %v2899
    %3019 = vmatmul.mubr.bf16.gmra.mxu0 %v2898
    %v3020 = vpop.f32.mrf.mxu0
    %v3021 = vadd.f32 0.0, %v3020
    %v3022 = vpop.f32.mrf.mxu0
    %v3023 = vadd.f32 0.0, %v3022
    %v3024 = vpop.f32.mrf.mxu0
    %v3025 = vadd.f32 0.0, %v3024
    %v3026 = vpop.f32.mrf.mxu0
    %v3027 = vadd.f32 0.0, %v3026
    %3028 = vdwg.mxu0
    %3029 = vmatprep.subr.bf16.mxu0 %v2087
    %3030 = vmatpush1.bf16.msra.mxu0 %v2086
    %3031 = vmatprep.subr.bf16.mxu0 %v2079
    %3032 = vmatpush1.bf16.msra.mxu0 %v2078
    %3033 = vmatprep.subr.bf16.mxu0 %v2071
    %3034 = vmatpush1.bf16.msra.mxu0 %v2070
    %3035 = vmatprep.subr.bf16.mxu0 %v2063
    %3036 = vmatpush1.bf16.msra.mxu0 %v2062
    %3037 = vmatprep.subr.bf16.mxu0 %v2055
    %3038 = vmatpush1.bf16.msra.mxu0 %v2054
    %3039 = vmatprep.subr.bf16.mxu0 %v2047
    %3040 = vmatpush1.bf16.msra.mxu0 %v2046
    %3041 = vmatprep.subr.bf16.mxu0 %v2039
    %3042 = vmatpush1.bf16.msra.mxu0 %v2038
    %3043 = vmatprep.subr.bf16.mxu0 %v2031
    %3044 = vmatpush1.bf16.msra.mxu0 %v2030
    %3045 = vmatprep.subr.bf16.mxu0 %v2151
    %3046 = vmatpush2.bf16.msra.mxu0 %v2150
    %3047 = vmatprep.subr.bf16.mxu0 %v2143
    %3048 = vmatpush2.bf16.msra.mxu0 %v2142
    %3049 = vmatprep.subr.bf16.mxu0 %v2135
    %3050 = vmatpush2.bf16.msra.mxu0 %v2134
    %3051 = vmatprep.subr.bf16.mxu0 %v2127
    %3052 = vmatpush2.bf16.msra.mxu0 %v2126
    %3053 = vmatprep.subr.bf16.mxu0 %v2119
    %3054 = vmatpush2.bf16.msra.mxu0 %v2118
    %3055 = vmatprep.subr.bf16.mxu0 %v2111
    %3056 = vmatpush2.bf16.msra.mxu0 %v2110
    %3057 = vmatprep.subr.bf16.mxu0 %v2103
    %3058 = vmatpush2.bf16.msra.mxu0 %v2102
    %3059 = vmatprep.subr.bf16.mxu0 %v2095
    %3060 = vmatpush2.bf16.msra.mxu0 %v2094
    %3061 = vmatprep.mubr.bf16.mxu0 %v2899
    %3062 = vmatmul.mubr.bf16.gmra.mxu0 %v2898
    %v3063 = vpop.f32.mrf.mxu0
    %v3064 = vadd.f32 0.0, %v3063
    %v3065 = vpop.f32.mrf.mxu0
    %v3066 = vadd.f32 0.0, %v3065
    %v3067 = vpop.f32.mrf.mxu0
    %v3068 = vadd.f32 0.0, %v3067
    %v3069 = vpop.f32.mrf.mxu0
    %v3070 = vadd.f32 0.0, %v3069
    %3071 = vdwg.mxu0
    %v3072 = vunpack.c.l.bf16 %v2890
    %v3073 = vunpack.c.h.bf16 %v2890
    %v3074 = vunpack.c.l.bf16 %v2891
    %v3075 = vunpack.c.h.bf16 %v2891
    %v3076 = vunpack.c.l.bf16 %v2892
    %v3077 = vunpack.c.h.bf16 %v2892
    %v3078 = vunpack.c.l.bf16 %v2893
    %v3079 = vunpack.c.h.bf16 %v2893
    %v3080 = vunpack.c.l.bf16 %v2894
    %v3081 = vunpack.c.h.bf16 %v2894
    %v3082 = vunpack.c.l.bf16 %v2895
    %v3083 = vunpack.c.h.bf16 %v2895
    %v3084 = vunpack.c.l.bf16 %v2896
    %v3085 = vunpack.c.h.bf16 %v2896
    %v3086 = vunpack.c.l.bf16 %v2897
    %v3087 = vunpack.c.h.bf16 %v2897
    %v3088 = vadd.f32 %v3072, %v2935
    %v3089 = vadd.f32 %v3073, %v2937
    %v3090 = vadd.f32 %v3074, %v2978
    %v3091 = vadd.f32 %v3075, %v2980
    %v3092 = vadd.f32 %v3076, %v3021
    %v3093 = vadd.f32 %v3077, %v3023
    %v3094 = vadd.f32 %v3078, %v3064
    %v3095 = vadd.f32 %v3079, %v3066
    %v3096 = vadd.f32 %v3080, %v2939
    %v3097 = vadd.f32 %v3081, %v2941
    %v3098 = vadd.f32 %v3082, %v2982
    %v3099 = vadd.f32 %v3083, %v2984
    %v3100 = vadd.f32 %v3084, %v3025
    %v3101 = vadd.f32 %v3085, %v3027
    %v3102 = vadd.f32 %v3086, %v3068
    %v3103 = vadd.f32 %v3087, %v3070
    %v3104 = vxor.u32 %v3088, 2147483648
    %v3105 = vxor.u32 %v3089, 2147483648
    %v3106 = vxor.u32 %v3090, 2147483648
    %v3107 = vxor.u32 %v3091, 2147483648
    %v3108 = vxor.u32 %v3092, 2147483648
    %v3109 = vxor.u32 %v3093, 2147483648
    %v3110 = vxor.u32 %v3096, 2147483648
    %v3111 = vxor.u32 %v3097, 2147483648
    %v3112 = vxor.u32 %v3098, 2147483648
    %v3113 = vxor.u32 %v3099, 2147483648
    %v3114 = vxor.u32 %v3100, 2147483648
    %v3115 = vxor.u32 %v3101, 2147483648
    %v3116 = vmul.f32 %v3104, 1.442695
    %v3117 = vpow.pop %v3116
    %v3118 = vmul.f32 %v3105, 1.442695
    %v3119 = vpow.pop %v3118
    %v3120 = vmul.f32 %v3106, 1.442695
    %v3121 = vpow.pop %v3120
    %v3122 = vmul.f32 %v3107, 1.442695
    %v3123 = vpow.pop %v3122
    %v3124 = vmul.f32 %v3108, 1.442695
    %v3125 = vpow.pop %v3124
    %v3126 = vmul.f32 %v3109, 1.442695
    %v3127 = vpow.pop %v3126
    %v3128 = vmul.f32 %v3110, 1.442695
    %v3129 = vpow.pop %v3128
    %v3130 = vmul.f32 %v3111, 1.442695
    %v3131 = vpow.pop %v3130
    %v3132 = vmul.f32 %v3112, 1.442695
    %v3133 = vpow.pop %v3132
    %v3134 = vmul.f32 %v3113, 1.442695
    %v3135 = vpow.pop %v3134
    %v3136 = vmul.f32 %v3114, 1.442695
    %v3137 = vpow.pop %v3136
    %v3138 = vmul.f32 %v3115, 1.442695
    %v3139 = vpow.pop %v3138
    %v3140 = vadd.f32 %v3117, 1.0
    %v3141 = vadd.f32 %v3119, 1.0
    %v3142 = vadd.f32 %v3121, 1.0
    %v3143 = vadd.f32 %v3123, 1.0
    %v3144 = vadd.f32 %v3125, 1.0
    %v3145 = vadd.f32 %v3127, 1.0
    %v3146 = vadd.f32 %v3129, 1.0
    %v3147 = vadd.f32 %v3131, 1.0
    %v3148 = vadd.f32 %v3133, 1.0
    %v3149 = vadd.f32 %v3135, 1.0
    %v3150 = vadd.f32 %v3137, 1.0
    %v3151 = vadd.f32 %v3139, 1.0
    %v3152 = vrcp.pop %v3140
    %v3153 = vmul.f32 1.0, %v3152
    %v3154 = vrcp.pop %v3141
    %v3155 = vmul.f32 1.0, %v3154
    %v3156 = vrcp.pop %v3142
    %v3157 = vmul.f32 1.0, %v3156
    %v3158 = vrcp.pop %v3143
    %v3159 = vmul.f32 1.0, %v3158
    %v3160 = vrcp.pop %v3144
    %v3161 = vmul.f32 1.0, %v3160
    %v3162 = vrcp.pop %v3145
    %v3163 = vmul.f32 1.0, %v3162
    %v3164 = vrcp.pop %v3146
    %v3165 = vmul.f32 1.0, %v3164
    %v3166 = vrcp.pop %v3147
    %v3167 = vmul.f32 1.0, %v3166
    %v3168 = vrcp.pop %v3148
    %v3169 = vmul.f32 1.0, %v3168
    %v3170 = vrcp.pop %v3149
    %v3171 = vmul.f32 1.0, %v3170
    %v3172 = vrcp.pop %v3150
    %v3173 = vmul.f32 1.0, %v3172
    %v3174 = vrcp.pop %v3151
    %v3175 = vmul.f32 1.0, %v3174
    %v3176 = vtanh.pop %v3094
    %v3177 = vtanh.pop %v3095
    %v3178 = vtanh.pop %v3102
    %v3179 = vtanh.pop %v3103
    %v3180 = vmul.f32 %v3157, %v2878
    %v3181 = vmul.f32 %v3159, %v2879
    %v3182 = vmul.f32 %v3169, %v2880
    %v3183 = vmul.f32 %v3171, %v2881
    %v3184 = vmul.f32 %v3153, %v3176
    %v3185 = vmul.f32 %v3155, %v3177
    %v3186 = vmul.f32 %v3165, %v3178
    %v3187 = vmul.f32 %v3167, %v3179
    %v3188 = vadd.f32 %v3180, %v3184
    %v3189 = vadd.f32 %v3181, %v3185
    %v3190 = vadd.f32 %v3182, %v3186
    %v3191 = vadd.f32 %v3183, %v3187
    %v3192 = vtanh.pop %v3188
    %v3193 = vtanh.pop %v3189
    %v3194 = vtanh.pop %v3190
    %v3195 = vtanh.pop %v3191
    %v3196 = vmul.f32 %v3161, %v3192
    %v3197 = vmul.f32 %v3163, %v3193
    %v3198 = vmul.f32 %v3173, %v3194
    %v3199 = vmul.f32 %v3175, %v3195
    %v3200 = vld [vmem:[#allocation2 + $0xc0] sm:$0xff]
    %v3201 = vld [vmem:[#allocation2 + $0xc8] sm:$0xff]
    %v3202 = vld [vmem:[#allocation2 + $0xd0] sm:$0xff]
    %v3203 = vld [vmem:[#allocation2 + $0xd8] sm:$0xff]
    %v3204 = vld [vmem:[#allocation2 + $0xe0] sm:$0xff]
    %v3205 = vld [vmem:[#allocation2 + $0xe8] sm:$0xff]
    %v3206 = vld [vmem:[#allocation2 + $0xf0] sm:$0xff]
    %v3207 = vld [vmem:[#allocation2 + $0xf8] sm:$0xff]
    %v3208 = vpack.c.bf16 %v3198, %v3196
    %v3209 = vpack.c.bf16 %v3199, %v3197
    %3210 = vmatprep.subr.bf16.mxu0 %v2081
    %3211 = vmatpush1.bf16.msra.mxu0 %v2080
    %3212 = vmatprep.subr.bf16.mxu0 %v2073
    %3213 = vmatpush1.bf16.msra.mxu0 %v2072
    %3214 = vmatprep.subr.bf16.mxu0 %v2065
    %3215 = vmatpush1.bf16.msra.mxu0 %v2064
    %3216 = vmatprep.subr.bf16.mxu0 %v2057
    %3217 = vmatpush1.bf16.msra.mxu0 %v2056
    %3218 = vmatprep.subr.bf16.mxu0 %v2049
    %3219 = vmatpush1.bf16.msra.mxu0 %v2048
    %3220 = vmatprep.subr.bf16.mxu0 %v2041
    %3221 = vmatpush1.bf16.msra.mxu0 %v2040
    %3222 = vmatprep.subr.bf16.mxu0 %v2033
    %3223 = vmatpush1.bf16.msra.mxu0 %v2032
    %3224 = vmatprep.subr.bf16.mxu0 %v2025
    %3225 = vmatpush1.bf16.msra.mxu0 %v2024
    %3226 = vmatprep.subr.bf16.mxu0 %v2145
    %3227 = vmatpush2.bf16.msra.mxu0 %v2144
    %3228 = vmatprep.subr.bf16.mxu0 %v2137
    %3229 = vmatpush2.bf16.msra.mxu0 %v2136
    %3230 = vmatprep.subr.bf16.mxu0 %v2129
    %3231 = vmatpush2.bf16.msra.mxu0 %v2128
    %3232 = vmatprep.subr.bf16.mxu0 %v2121
    %3233 = vmatpush2.bf16.msra.mxu0 %v2120
    %3234 = vmatprep.subr.bf16.mxu0 %v2113
    %3235 = vmatpush2.bf16.msra.mxu0 %v2112
    %3236 = vmatprep.subr.bf16.mxu0 %v2105
    %3237 = vmatpush2.bf16.msra.mxu0 %v2104
    %3238 = vmatprep.subr.bf16.mxu0 %v2097
    %3239 = vmatpush2.bf16.msra.mxu0 %v2096
    %3240 = vmatprep.subr.bf16.mxu0 %v2089
    %3241 = vmatpush2.bf16.msra.mxu0 %v2088
    %3242 = vmatprep.mubr.bf16.mxu0 %v3209
    %3243 = vmatmul.mubr.bf16.gmra.mxu0 %v3208
    %v3244 = vpop.f32.mrf.mxu0
    %v3245 = vadd.f32 0.0, %v3244
    %v3246 = vpop.f32.mrf.mxu0
    %v3247 = vadd.f32 0.0, %v3246
    %v3248 = vpop.f32.mrf.mxu0
    %v3249 = vadd.f32 0.0, %v3248
    %v3250 = vpop.f32.mrf.mxu0
    %v3251 = vadd.f32 0.0, %v3250
    %3252 = vdwg.mxu0
    %3253 = vmatprep.subr.bf16.mxu0 %v2083
    %3254 = vmatpush1.bf16.msra.mxu0 %v2082
    %3255 = vmatprep.subr.bf16.mxu0 %v2075
    %3256 = vmatpush1.bf16.msra.mxu0 %v2074
    %3257 = vmatprep.subr.bf16.mxu0 %v2067
    %3258 = vmatpush1.bf16.msra.mxu0 %v2066
    %3259 = vmatprep.subr.bf16.mxu0 %v2059
    %3260 = vmatpush1.bf16.msra.mxu0 %v2058
    %3261 = vmatprep.subr.bf16.mxu0 %v2051
    %3262 = vmatpush1.bf16.msra.mxu0 %v2050
    %3263 = vmatprep.subr.bf16.mxu0 %v2043
    %3264 = vmatpush1.bf16.msra.mxu0 %v2042
    %3265 = vmatprep.subr.bf16.mxu0 %v2035
    %3266 = vmatpush1.bf16.msra.mxu0 %v2034
    %3267 = vmatprep.subr.bf16.mxu0 %v2027
    %3268 = vmatpush1.bf16.msra.mxu0 %v2026
    %3269 = vmatprep.subr.bf16.mxu0 %v2147
    %3270 = vmatpush2.bf16.msra.mxu0 %v2146
    %3271 = vmatprep.subr.bf16.mxu0 %v2139
    %3272 = vmatpush2.bf16.msra.mxu0 %v2138
    %3273 = vmatprep.subr.bf16.mxu0 %v2131
    %3274 = vmatpush2.bf16.msra.mxu0 %v2130
    %3275 = vmatprep.subr.bf16.mxu0 %v2123
    %3276 = vmatpush2.bf16.msra.mxu0 %v2122
    %3277 = vmatprep.subr.bf16.mxu0 %v2115
    %3278 = vmatpush2.bf16.msra.mxu0 %v2114
    %3279 = vmatprep.subr.bf16.mxu0 %v2107
    %3280 = vmatpush2.bf16.msra.mxu0 %v2106
    %3281 = vmatprep.subr.bf16.mxu0 %v2099
    %3282 = vmatpush2.bf16.msra.mxu0 %v2098
    %3283 = vmatprep.subr.bf16.mxu0 %v2091
    %3284 = vmatpush2.bf16.msra.mxu0 %v2090
    %3285 = vmatprep.mubr.bf16.mxu0 %v3209
    %3286 = vmatmul.mubr.bf16.gmra.mxu0 %v3208
    %v3287 = vpop.f32.mrf.mxu0
    %v3288 = vadd.f32 0.0, %v3287
    %v3289 = vpop.f32.mrf.mxu0
    %v3290 = vadd.f32 0.0, %v3289
    %v3291 = vpop.f32.mrf.mxu0
    %v3292 = vadd.f32 0.0, %v3291
    %v3293 = vpop.f32.mrf.mxu0
    %v3294 = vadd.f32 0.0, %v3293
    %3295 = vdwg.mxu0
    %3296 = vmatprep.subr.bf16.mxu0 %v2085
    %3297 = vmatpush1.bf16.msra.mxu0 %v2084
    %3298 = vmatprep.subr.bf16.mxu0 %v2077
    %3299 = vmatpush1.bf16.msra.mxu0 %v2076
    %3300 = vmatprep.subr.bf16.mxu0 %v2069
    %3301 = vmatpush1.bf16.msra.mxu0 %v2068
    %3302 = vmatprep.subr.bf16.mxu0 %v2061
    %3303 = vmatpush1.bf16.msra.mxu0 %v2060
    %3304 = vmatprep.subr.bf16.mxu0 %v2053
    %3305 = vmatpush1.bf16.msra.mxu0 %v2052
    %3306 = vmatprep.subr.bf16.mxu0 %v2045
    %3307 = vmatpush1.bf16.msra.mxu0 %v2044
    %3308 = vmatprep.subr.bf16.mxu0 %v2037
    %3309 = vmatpush1.bf16.msra.mxu0 %v2036
    %3310 = vmatprep.subr.bf16.mxu0 %v2029
    %3311 = vmatpush1.bf16.msra.mxu0 %v2028
    %3312 = vmatprep.subr.bf16.mxu0 %v2149
    %3313 = vmatpush2.bf16.msra.mxu0 %v2148
    %3314 = vmatprep.subr.bf16.mxu0 %v2141
    %3315 = vmatpush2.bf16.msra.mxu0 %v2140
    %3316 = vmatprep.subr.bf16.mxu0 %v2133
    %3317 = vmatpush2.bf16.msra.mxu0 %v2132
    %3318 = vmatprep.subr.bf16.mxu0 %v2125
    %3319 = vmatpush2.bf16.msra.mxu0 %v2124
    %3320 = vmatprep.subr.bf16.mxu0 %v2117
    %3321 = vmatpush2.bf16.msra.mxu0 %v2116
    %3322 = vmatprep.subr.bf16.mxu0 %v2109
    %3323 = vmatpush2.bf16.msra.mxu0 %v2108
    %3324 = vmatprep.subr.bf16.mxu0 %v2101
    %3325 = vmatpush2.bf16.msra.mxu0 %v2100
    %3326 = vmatprep.subr.bf16.mxu0 %v2093
    %3327 = vmatpush2.bf16.msra.mxu0 %v2092
    %3328 = vmatprep.mubr.bf16.mxu0 %v3209
    %3329 = vmatmul.mubr.bf16.gmra.mxu0 %v3208
    %v3330 = vpop.f32.mrf.mxu0
    %v3331 = vadd.f32 0.0, %v3330
    %v3332 = vpop.f32.mrf.mxu0
    %v3333 = vadd.f32 0.0, %v3332
    %v3334 = vpop.f32.mrf.mxu0
    %v3335 = vadd.f32 0.0, %v3334
    %v3336 = vpop.f32.mrf.mxu0
    %v3337 = vadd.f32 0.0, %v3336
    %3338 = vdwg.mxu0
    %3339 = vmatprep.subr.bf16.mxu0 %v2087
    %3340 = vmatpush1.bf16.msra.mxu0 %v2086
    %3341 = vmatprep.subr.bf16.mxu0 %v2079
    %3342 = vmatpush1.bf16.msra.mxu0 %v2078
    %3343 = vmatprep.subr.bf16.mxu0 %v2071
    %3344 = vmatpush1.bf16.msra.mxu0 %v2070
    %3345 = vmatprep.subr.bf16.mxu0 %v2063
    %3346 = vmatpush1.bf16.msra.mxu0 %v2062
    %3347 = vmatprep.subr.bf16.mxu0 %v2055
    %3348 = vmatpush1.bf16.msra.mxu0 %v2054
    %3349 = vmatprep.subr.bf16.mxu0 %v2047
    %3350 = vmatpush1.bf16.msra.mxu0 %v2046
    %3351 = vmatprep.subr.bf16.mxu0 %v2039
    %3352 = vmatpush1.bf16.msra.mxu0 %v2038
    %3353 = vmatprep.subr.bf16.mxu0 %v2031
    %3354 = vmatpush1.bf16.msra.mxu0 %v2030
    %3355 = vmatprep.subr.bf16.mxu0 %v2151
    %3356 = vmatpush2.bf16.msra.mxu0 %v2150
    %3357 = vmatprep.subr.bf16.mxu0 %v2143
    %3358 = vmatpush2.bf16.msra.mxu0 %v2142
    %3359 = vmatprep.subr.bf16.mxu0 %v2135
    %3360 = vmatpush2.bf16.msra.mxu0 %v2134
    %3361 = vmatprep.subr.bf16.mxu0 %v2127
    %3362 = vmatpush2.bf16.msra.mxu0 %v2126
    %3363 = vmatprep.subr.bf16.mxu0 %v2119
    %3364 = vmatpush2.bf16.msra.mxu0 %v2118
    %3365 = vmatprep.subr.bf16.mxu0 %v2111
    %3366 = vmatpush2.bf16.msra.mxu0 %v2110
    %3367 = vmatprep.subr.bf16.mxu0 %v2103
    %3368 = vmatpush2.bf16.msra.mxu0 %v2102
    %3369 = vmatprep.subr.bf16.mxu0 %v2095
    %3370 = vmatpush2.bf16.msra.mxu0 %v2094
    %3371 = vmatprep.mubr.bf16.mxu0 %v3209
    %3372 = vmatmul.mubr.bf16.gmra.mxu0 %v3208
    %v3373 = vpop.f32.mrf.mxu0
    %v3374 = vadd.f32 0.0, %v3373
    %v3375 = vpop.f32.mrf.mxu0
    %v3376 = vadd.f32 0.0, %v3375
    %v3377 = vpop.f32.mrf.mxu0
    %v3378 = vadd.f32 0.0, %v3377
    %v3379 = vpop.f32.mrf.mxu0
    %v3380 = vadd.f32 0.0, %v3379
    %3381 = vdwg.mxu0
    %v3382 = vunpack.c.l.bf16 %v3200
    %v3383 = vunpack.c.h.bf16 %v3200
    %v3384 = vunpack.c.l.bf16 %v3201
    %v3385 = vunpack.c.h.bf16 %v3201
    %v3386 = vunpack.c.l.bf16 %v3202
    %v3387 = vunpack.c.h.bf16 %v3202
    %v3388 = vunpack.c.l.bf16 %v3203
    %v3389 = vunpack.c.h.bf16 %v3203
    %v3390 = vunpack.c.l.bf16 %v3204
    %v3391 = vunpack.c.h.bf16 %v3204
    %v3392 = vunpack.c.l.bf16 %v3205
    %v3393 = vunpack.c.h.bf16 %v3205
    %v3394 = vunpack.c.l.bf16 %v3206
    %v3395 = vunpack.c.h.bf16 %v3206
    %v3396 = vunpack.c.l.bf16 %v3207
    %v3397 = vunpack.c.h.bf16 %v3207
    %v3398 = vadd.f32 %v3382, %v3245
    %v3399 = vadd.f32 %v3383, %v3247
    %v3400 = vadd.f32 %v3384, %v3288
    %v3401 = vadd.f32 %v3385, %v3290
    %v3402 = vadd.f32 %v3386, %v3331
    %v3403 = vadd.f32 %v3387, %v3333
    %v3404 = vadd.f32 %v3388, %v3374
    %v3405 = vadd.f32 %v3389, %v3376
    %v3406 = vadd.f32 %v3390, %v3249
    %v3407 = vadd.f32 %v3391, %v3251
    %v3408 = vadd.f32 %v3392, %v3292
    %v3409 = vadd.f32 %v3393, %v3294
    %v3410 = vadd.f32 %v3394, %v3335
    %v3411 = vadd.f32 %v3395, %v3337
    %v3412 = vadd.f32 %v3396, %v3378
    %v3413 = vadd.f32 %v3397, %v3380
    %v3414 = vxor.u32 %v3398, 2147483648
    %v3415 = vxor.u32 %v3399, 2147483648
    %v3416 = vxor.u32 %v3400, 2147483648
    %v3417 = vxor.u32 %v3401, 2147483648
    %v3418 = vxor.u32 %v3402, 2147483648
    %v3419 = vxor.u32 %v3403, 2147483648
    %v3420 = vxor.u32 %v3406, 2147483648
    %v3421 = vxor.u32 %v3407, 2147483648
    %v3422 = vxor.u32 %v3408, 2147483648
    %v3423 = vxor.u32 %v3409, 2147483648
    %v3424 = vxor.u32 %v3410, 2147483648
    %v3425 = vxor.u32 %v3411, 2147483648
    %v3426 = vmul.f32 %v3414, 1.442695
    %v3427 = vpow.pop %v3426
    %v3428 = vmul.f32 %v3415, 1.442695
    %v3429 = vpow.pop %v3428
    %v3430 = vmul.f32 %v3416, 1.442695
    %v3431 = vpow.pop %v3430
    %v3432 = vmul.f32 %v3417, 1.442695
    %v3433 = vpow.pop %v3432
    %v3434 = vmul.f32 %v3418, 1.442695
    %v3435 = vpow.pop %v3434
    %v3436 = vmul.f32 %v3419, 1.442695
    %v3437 = vpow.pop %v3436
    %v3438 = vmul.f32 %v3420, 1.442695
    %v3439 = vpow.pop %v3438
    %v3440 = vmul.f32 %v3421, 1.442695
    %v3441 = vpow.pop %v3440
    %v3442 = vmul.f32 %v3422, 1.442695
    %v3443 = vpow.pop %v3442
    %v3444 = vmul.f32 %v3423, 1.442695
    %v3445 = vpow.pop %v3444
    %v3446 = vmul.f32 %v3424, 1.442695
    %v3447 = vpow.pop %v3446
    %v3448 = vmul.f32 %v3425, 1.442695
    %v3449 = vpow.pop %v3448
    %v3450 = vadd.f32 %v3427, 1.0
    %v3451 = vadd.f32 %v3429, 1.0
    %v3452 = vadd.f32 %v3431, 1.0
    %v3453 = vadd.f32 %v3433, 1.0
    %v3454 = vadd.f32 %v3435, 1.0
    %v3455 = vadd.f32 %v3437, 1.0
    %v3456 = vadd.f32 %v3439, 1.0
    %v3457 = vadd.f32 %v3441, 1.0
    %v3458 = vadd.f32 %v3443, 1.0
    %v3459 = vadd.f32 %v3445, 1.0
    %v3460 = vadd.f32 %v3447, 1.0
    %v3461 = vadd.f32 %v3449, 1.0
    %v3462 = vrcp.pop %v3450
    %v3463 = vmul.f32 1.0, %v3462
    %v3464 = vrcp.pop %v3451
    %v3465 = vmul.f32 1.0, %v3464
    %v3466 = vrcp.pop %v3452
    %v3467 = vmul.f32 1.0, %v3466
    %v3468 = vrcp.pop %v3453
    %v3469 = vmul.f32 1.0, %v3468
    %v3470 = vrcp.pop %v3454
    %v3471 = vmul.f32 1.0, %v3470
    %v3472 = vrcp.pop %v3455
    %v3473 = vmul.f32 1.0, %v3472
    %v3474 = vrcp.pop %v3456
    %v3475 = vmul.f32 1.0, %v3474
    %v3476 = vrcp.pop %v3457
    %v3477 = vmul.f32 1.0, %v3476
    %v3478 = vrcp.pop %v3458
    %v3479 = vmul.f32 1.0, %v3478
    %v3480 = vrcp.pop %v3459
    %v3481 = vmul.f32 1.0, %v3480
    %v3482 = vrcp.pop %v3460
    %v3483 = vmul.f32 1.0, %v3482
    %v3484 = vrcp.pop %v3461
    %v3485 = vmul.f32 1.0, %v3484
    %v3486 = vtanh.pop %v3404
    %v3487 = vtanh.pop %v3405
    %v3488 = vtanh.pop %v3412
    %v3489 = vtanh.pop %v3413
    %v3490 = vmul.f32 %v3467, %v3188
    %v3491 = vmul.f32 %v3469, %v3189
    %v3492 = vmul.f32 %v3479, %v3190
    %v3493 = vmul.f32 %v3481, %v3191
    %v3494 = vmul.f32 %v3463, %v3486
    %v3495 = vmul.f32 %v3465, %v3487
    %v3496 = vmul.f32 %v3475, %v3488
    %v3497 = vmul.f32 %v3477, %v3489
    %v3498 = vadd.f32 %v3490, %v3494
    %v3499 = vadd.f32 %v3491, %v3495
    %v3500 = vadd.f32 %v3492, %v3496
    %v3501 = vadd.f32 %v3493, %v3497
    %v3502 = vtanh.pop %v3498
    %v3503 = vtanh.pop %v3499
    %v3504 = vtanh.pop %v3500
    %v3505 = vtanh.pop %v3501
    %v3506 = vmul.f32 %v3471, %v3502
    %v3507 = vmul.f32 %v3473, %v3503
    %v3508 = vmul.f32 %v3483, %v3504
    %v3509 = vmul.f32 %v3485, %v3505
    %v3510 = vld [vmem:[#allocation2 + $0x100] sm:$0xff]
    %v3511 = vld [vmem:[#allocation2 + $0x108] sm:$0xff]
    %v3512 = vld [vmem:[#allocation2 + $0x110] sm:$0xff]
    %v3513 = vld [vmem:[#allocation2 + $0x118] sm:$0xff]
    %v3514 = vld [vmem:[#allocation2 + $0x120] sm:$0xff]
    %v3515 = vld [vmem:[#allocation2 + $0x128] sm:$0xff]
    %v3516 = vld [vmem:[#allocation2 + $0x130] sm:$0xff]
    %v3517 = vld [vmem:[#allocation2 + $0x138] sm:$0xff]
    %v3518 = vpack.c.bf16 %v3508, %v3506
    %v3519 = vpack.c.bf16 %v3509, %v3507
    %3520 = vmatprep.subr.bf16.mxu0 %v2081
    %3521 = vmatpush1.bf16.msra.mxu0 %v2080
    %3522 = vmatprep.subr.bf16.mxu0 %v2073
    %3523 = vmatpush1.bf16.msra.mxu0 %v2072
    %3524 = vmatprep.subr.bf16.mxu0 %v2065
    %3525 = vmatpush1.bf16.msra.mxu0 %v2064
    %3526 = vmatprep.subr.bf16.mxu0 %v2057
    %3527 = vmatpush1.bf16.msra.mxu0 %v2056
    %3528 = vmatprep.subr.bf16.mxu0 %v2049
    %3529 = vmatpush1.bf16.msra.mxu0 %v2048
    %3530 = vmatprep.subr.bf16.mxu0 %v2041
    %3531 = vmatpush1.bf16.msra.mxu0 %v2040
    %3532 = vmatprep.subr.bf16.mxu0 %v2033
    %3533 = vmatpush1.bf16.msra.mxu0 %v2032
    %3534 = vmatprep.subr.bf16.mxu0 %v2025
    %3535 = vmatpush1.bf16.msra.mxu0 %v2024
    %3536 = vmatprep.subr.bf16.mxu0 %v2145
    %3537 = vmatpush2.bf16.msra.mxu0 %v2144
    %3538 = vmatprep.subr.bf16.mxu0 %v2137
    %3539 = vmatpush2.bf16.msra.mxu0 %v2136
    %3540 = vmatprep.subr.bf16.mxu0 %v2129
    %3541 = vmatpush2.bf16.msra.mxu0 %v2128
    %3542 = vmatprep.subr.bf16.mxu0 %v2121
    %3543 = vmatpush2.bf16.msra.mxu0 %v2120
    %3544 = vmatprep.subr.bf16.mxu0 %v2113
    %3545 = vmatpush2.bf16.msra.mxu0 %v2112
    %3546 = vmatprep.subr.bf16.mxu0 %v2105
    %3547 = vmatpush2.bf16.msra.mxu0 %v2104
    %3548 = vmatprep.subr.bf16.mxu0 %v2097
    %3549 = vmatpush2.bf16.msra.mxu0 %v2096
    %3550 = vmatprep.subr.bf16.mxu0 %v2089
    %3551 = vmatpush2.bf16.msra.mxu0 %v2088
    %3552 = vmatprep.mubr.bf16.mxu0 %v3519
    %3553 = vmatmul.mubr.bf16.gmra.mxu0 %v3518
    %v3554 = vpop.f32.mrf.mxu0
    %v3555 = vadd.f32 0.0, %v3554
    %v3556 = vpop.f32.mrf.mxu0
    %v3557 = vadd.f32 0.0, %v3556
    %v3558 = vpop.f32.mrf.mxu0
    %v3559 = vadd.f32 0.0, %v3558
    %v3560 = vpop.f32.mrf.mxu0
    %v3561 = vadd.f32 0.0, %v3560
    %3562 = vdwg.mxu0
    %3563 = vmatprep.subr.bf16.mxu0 %v2083
    %3564 = vmatpush1.bf16.msra.mxu0 %v2082
    %3565 = vmatprep.subr.bf16.mxu0 %v2075
    %3566 = vmatpush1.bf16.msra.mxu0 %v2074
    %3567 = vmatprep.subr.bf16.mxu0 %v2067
    %3568 = vmatpush1.bf16.msra.mxu0 %v2066
    %3569 = vmatprep.subr.bf16.mxu0 %v2059
    %3570 = vmatpush1.bf16.msra.mxu0 %v2058
    %3571 = vmatprep.subr.bf16.mxu0 %v2051
    %3572 = vmatpush1.bf16.msra.mxu0 %v2050
    %3573 = vmatprep.subr.bf16.mxu0 %v2043
    %3574 = vmatpush1.bf16.msra.mxu0 %v2042
    %3575 = vmatprep.subr.bf16.mxu0 %v2035
    %3576 = vmatpush1.bf16.msra.mxu0 %v2034
    %3577 = vmatprep.subr.bf16.mxu0 %v2027
    %3578 = vmatpush1.bf16.msra.mxu0 %v2026
    %3579 = vmatprep.subr.bf16.mxu0 %v2147
    %3580 = vmatpush2.bf16.msra.mxu0 %v2146
    %3581 = vmatprep.subr.bf16.mxu0 %v2139
    %3582 = vmatpush2.bf16.msra.mxu0 %v2138
    %3583 = vmatprep.subr.bf16.mxu0 %v2131
    %3584 = vmatpush2.bf16.msra.mxu0 %v2130
    %3585 = vmatprep.subr.bf16.mxu0 %v2123
    %3586 = vmatpush2.bf16.msra.mxu0 %v2122
    %3587 = vmatprep.subr.bf16.mxu0 %v2115
    %3588 = vmatpush2.bf16.msra.mxu0 %v2114
    %3589 = vmatprep.subr.bf16.mxu0 %v2107
    %3590 = vmatpush2.bf16.msra.mxu0 %v2106
    %3591 = vmatprep.subr.bf16.mxu0 %v2099
    %3592 = vmatpush2.bf16.msra.mxu0 %v2098
    %3593 = vmatprep.subr.bf16.mxu0 %v2091
    %3594 = vmatpush2.bf16.msra.mxu0 %v2090
    %3595 = vmatprep.mubr.bf16.mxu0 %v3519
    %3596 = vmatmul.mubr.bf16.gmra.mxu0 %v3518
    %v3597 = vpop.f32.mrf.mxu0
    %v3598 = vadd.f32 0.0, %v3597
    %v3599 = vpop.f32.mrf.mxu0
    %v3600 = vadd.f32 0.0, %v3599
    %v3601 = vpop.f32.mrf.mxu0
    %v3602 = vadd.f32 0.0, %v3601
    %v3603 = vpop.f32.mrf.mxu0
    %v3604 = vadd.f32 0.0, %v3603
    %3605 = vdwg.mxu0
    %3606 = vmatprep.subr.bf16.mxu0 %v2085
    %3607 = vmatpush1.bf16.msra.mxu0 %v2084
    %3608 = vmatprep.subr.bf16.mxu0 %v2077
    %3609 = vmatpush1.bf16.msra.mxu0 %v2076
    %3610 = vmatprep.subr.bf16.mxu0 %v2069
    %3611 = vmatpush1.bf16.msra.mxu0 %v2068
    %3612 = vmatprep.subr.bf16.mxu0 %v2061
    %3613 = vmatpush1.bf16.msra.mxu0 %v2060
    %3614 = vmatprep.subr.bf16.mxu0 %v2053
    %3615 = vmatpush1.bf16.msra.mxu0 %v2052
    %3616 = vmatprep.subr.bf16.mxu0 %v2045
    %3617 = vmatpush1.bf16.msra.mxu0 %v2044
    %3618 = vmatprep.subr.bf16.mxu0 %v2037
    %3619 = vmatpush1.bf16.msra.mxu0 %v2036
    %3620 = vmatprep.subr.bf16.mxu0 %v2029
    %3621 = vmatpush1.bf16.msra.mxu0 %v2028
    %3622 = vmatprep.subr.bf16.mxu0 %v2149
    %3623 = vmatpush2.bf16.msra.mxu0 %v2148
    %3624 = vmatprep.subr.bf16.mxu0 %v2141
    %3625 = vmatpush2.bf16.msra.mxu0 %v2140
    %3626 = vmatprep.subr.bf16.mxu0 %v2133
    %3627 = vmatpush2.bf16.msra.mxu0 %v2132
    %3628 = vmatprep.subr.bf16.mxu0 %v2125
    %3629 = vmatpush2.bf16.msra.mxu0 %v2124
    %3630 = vmatprep.subr.bf16.mxu0 %v2117
    %3631 = vmatpush2.bf16.msra.mxu0 %v2116
    %3632 = vmatprep.subr.bf16.mxu0 %v2109
    %3633 = vmatpush2.bf16.msra.mxu0 %v2108
    %3634 = vmatprep.subr.bf16.mxu0 %v2101
    %3635 = vmatpush2.bf16.msra.mxu0 %v2100
    %3636 = vmatprep.subr.bf16.mxu0 %v2093
    %3637 = vmatpush2.bf16.msra.mxu0 %v2092
    %3638 = vmatprep.mubr.bf16.mxu0 %v3519
    %3639 = vmatmul.mubr.bf16.gmra.mxu0 %v3518
    %v3640 = vpop.f32.mrf.mxu0
    %v3641 = vadd.f32 0.0, %v3640
    %v3642 = vpop.f32.mrf.mxu0
    %v3643 = vadd.f32 0.0, %v3642
    %v3644 = vpop.f32.mrf.mxu0
    %v3645 = vadd.f32 0.0, %v3644
    %v3646 = vpop.f32.mrf.mxu0
    %v3647 = vadd.f32 0.0, %v3646
    %3648 = vdwg.mxu0
    %3649 = vmatprep.subr.bf16.mxu0 %v2087
    %3650 = vmatpush1.bf16.msra.mxu0 %v2086
    %3651 = vmatprep.subr.bf16.mxu0 %v2079
    %3652 = vmatpush1.bf16.msra.mxu0 %v2078
    %3653 = vmatprep.subr.bf16.mxu0 %v2071
    %3654 = vmatpush1.bf16.msra.mxu0 %v2070
    %3655 = vmatprep.subr.bf16.mxu0 %v2063
    %3656 = vmatpush1.bf16.msra.mxu0 %v2062
    %3657 = vmatprep.subr.bf16.mxu0 %v2055
    %3658 = vmatpush1.bf16.msra.mxu0 %v2054
    %3659 = vmatprep.subr.bf16.mxu0 %v2047
    %3660 = vmatpush1.bf16.msra.mxu0 %v2046
    %3661 = vmatprep.subr.bf16.mxu0 %v2039
    %3662 = vmatpush1.bf16.msra.mxu0 %v2038
    %3663 = vmatprep.subr.bf16.mxu0 %v2031
    %3664 = vmatpush1.bf16.msra.mxu0 %v2030
    %3665 = vmatprep.subr.bf16.mxu0 %v2151
    %3666 = vmatpush2.bf16.msra.mxu0 %v2150
    %3667 = vmatprep.subr.bf16.mxu0 %v2143
    %3668 = vmatpush2.bf16.msra.mxu0 %v2142
    %3669 = vmatprep.subr.bf16.mxu0 %v2135
    %3670 = vmatpush2.bf16.msra.mxu0 %v2134
    %3671 = vmatprep.subr.bf16.mxu0 %v2127
    %3672 = vmatpush2.bf16.msra.mxu0 %v2126
    %3673 = vmatprep.subr.bf16.mxu0 %v2119
    %3674 = vmatpush2.bf16.msra.mxu0 %v2118
    %3675 = vmatprep.subr.bf16.mxu0 %v2111
    %3676 = vmatpush2.bf16.msra.mxu0 %v2110
    %3677 = vmatprep.subr.bf16.mxu0 %v2103
    %3678 = vmatpush2.bf16.msra.mxu0 %v2102
    %3679 = vmatprep.subr.bf16.mxu0 %v2095
    %3680 = vmatpush2.bf16.msra.mxu0 %v2094
    %3681 = vmatprep.mubr.bf16.mxu0 %v3519
    %3682 = vmatmul.mubr.bf16.gmra.mxu0 %v3518
    %v3683 = vpop.f32.mrf.mxu0
    %v3684 = vadd.f32 0.0, %v3683
    %v3685 = vpop.f32.mrf.mxu0
    %v3686 = vadd.f32 0.0, %v3685
    %v3687 = vpop.f32.mrf.mxu0
    %v3688 = vadd.f32 0.0, %v3687
    %v3689 = vpop.f32.mrf.mxu0
    %v3690 = vadd.f32 0.0, %v3689
    %3691 = vdwg.mxu0
    %v3692 = vunpack.c.l.bf16 %v3510
    %v3693 = vunpack.c.h.bf16 %v3510
    %v3694 = vunpack.c.l.bf16 %v3511
    %v3695 = vunpack.c.h.bf16 %v3511
    %v3696 = vunpack.c.l.bf16 %v3512
    %v3697 = vunpack.c.h.bf16 %v3512
    %v3698 = vunpack.c.l.bf16 %v3513
    %v3699 = vunpack.c.h.bf16 %v3513
    %v3700 = vunpack.c.l.bf16 %v3514
    %v3701 = vunpack.c.h.bf16 %v3514
    %v3702 = vunpack.c.l.bf16 %v3515
    %v3703 = vunpack.c.h.bf16 %v3515
    %v3704 = vunpack.c.l.bf16 %v3516
    %v3705 = vunpack.c.h.bf16 %v3516
    %v3706 = vunpack.c.l.bf16 %v3517
    %v3707 = vunpack.c.h.bf16 %v3517
    %v3708 = vadd.f32 %v3692, %v3555
    %v3709 = vadd.f32 %v3693, %v3557
    %v3710 = vadd.f32 %v3694, %v3598
    %v3711 = vadd.f32 %v3695, %v3600
    %v3712 = vadd.f32 %v3696, %v3641
    %v3713 = vadd.f32 %v3697, %v3643
    %v3714 = vadd.f32 %v3698, %v3684
    %v3715 = vadd.f32 %v3699, %v3686
    %v3716 = vadd.f32 %v3700, %v3559
    %v3717 = vadd.f32 %v3701, %v3561
    %v3718 = vadd.f32 %v3702, %v3602
    %v3719 = vadd.f32 %v3703, %v3604
    %v3720 = vadd.f32 %v3704, %v3645
    %v3721 = vadd.f32 %v3705, %v3647
    %v3722 = vadd.f32 %v3706, %v3688
    %v3723 = vadd.f32 %v3707, %v3690
    %v3724 = vxor.u32 %v3708, 2147483648
    %v3725 = vxor.u32 %v3709, 2147483648
    %v3726 = vxor.u32 %v3710, 2147483648
    %v3727 = vxor.u32 %v3711, 2147483648
    %v3728 = vxor.u32 %v3712, 2147483648
    %v3729 = vxor.u32 %v3713, 2147483648
    %v3730 = vxor.u32 %v3716, 2147483648
    %v3731 = vxor.u32 %v3717, 2147483648
    %v3732 = vxor.u32 %v3718, 2147483648
    %v3733 = vxor.u32 %v3719, 2147483648
    %v3734 = vxor.u32 %v3720, 2147483648
    %v3735 = vxor.u32 %v3721, 2147483648
    %v3736 = vmul.f32 %v3724, 1.442695
    %v3737 = vpow.pop %v3736
    %v3738 = vmul.f32 %v3725, 1.442695
    %v3739 = vpow.pop %v3738
    %v3740 = vmul.f32 %v3726, 1.442695
    %v3741 = vpow.pop %v3740
    %v3742 = vmul.f32 %v3727, 1.442695
    %v3743 = vpow.pop %v3742
    %v3744 = vmul.f32 %v3728, 1.442695
    %v3745 = vpow.pop %v3744
    %v3746 = vmul.f32 %v3729, 1.442695
    %v3747 = vpow.pop %v3746
    %v3748 = vmul.f32 %v3730, 1.442695
    %v3749 = vpow.pop %v3748
    %v3750 = vmul.f32 %v3731, 1.442695
    %v3751 = vpow.pop %v3750
    %v3752 = vmul.f32 %v3732, 1.442695
    %v3753 = vpow.pop %v3752
    %v3754 = vmul.f32 %v3733, 1.442695
    %v3755 = vpow.pop %v3754
    %v3756 = vmul.f32 %v3734, 1.442695
    %v3757 = vpow.pop %v3756
    %v3758 = vmul.f32 %v3735, 1.442695
    %v3759 = vpow.pop %v3758
    %v3760 = vadd.f32 %v3737, 1.0
    %v3761 = vadd.f32 %v3739, 1.0
    %v3762 = vadd.f32 %v3741, 1.0
    %v3763 = vadd.f32 %v3743, 1.0
    %v3764 = vadd.f32 %v3745, 1.0
    %v3765 = vadd.f32 %v3747, 1.0
    %v3766 = vadd.f32 %v3749, 1.0
    %v3767 = vadd.f32 %v3751, 1.0
    %v3768 = vadd.f32 %v3753, 1.0
    %v3769 = vadd.f32 %v3755, 1.0
    %v3770 = vadd.f32 %v3757, 1.0
    %v3771 = vadd.f32 %v3759, 1.0
    %v3772 = vrcp.pop %v3760
    %v3773 = vmul.f32 1.0, %v3772
    %v3774 = vrcp.pop %v3761
    %v3775 = vmul.f32 1.0, %v3774
    %v3776 = vrcp.pop %v3762
    %v3777 = vmul.f32 1.0, %v3776
    %v3778 = vrcp.pop %v3763
    %v3779 = vmul.f32 1.0, %v3778
    %v3780 = vrcp.pop %v3764
    %v3781 = vmul.f32 1.0, %v3780
    %v3782 = vrcp.pop %v3765
    %v3783 = vmul.f32 1.0, %v3782
    %v3784 = vrcp.pop %v3766
    %v3785 = vmul.f32 1.0, %v3784
    %v3786 = vrcp.pop %v3767
    %v3787 = vmul.f32 1.0, %v3786
    %v3788 = vrcp.pop %v3768
    %v3789 = vmul.f32 1.0, %v3788
    %v3790 = vrcp.pop %v3769
    %v3791 = vmul.f32 1.0, %v3790
    %v3792 = vrcp.pop %v3770
    %v3793 = vmul.f32 1.0, %v3792
    %v3794 = vrcp.pop %v3771
    %v3795 = vmul.f32 1.0, %v3794
    %v3796 = vtanh.pop %v3714
    %v3797 = vtanh.pop %v3715
    %v3798 = vtanh.pop %v3722
    %v3799 = vtanh.pop %v3723
    %v3800 = vmul.f32 %v3777, %v3498
    %v3801 = vmul.f32 %v3779, %v3499
    %v3802 = vmul.f32 %v3789, %v3500
    %v3803 = vmul.f32 %v3791, %v3501
    %v3804 = vmul.f32 %v3773, %v3796
    %v3805 = vmul.f32 %v3775, %v3797
    %v3806 = vmul.f32 %v3785, %v3798
    %v3807 = vmul.f32 %v3787, %v3799
    %v3808 = vadd.f32 %v3800, %v3804
    %v3809 = vadd.f32 %v3801, %v3805
    %v3810 = vadd.f32 %v3802, %v3806
    %v3811 = vadd.f32 %v3803, %v3807
    %v3812 = vtanh.pop %v3808
    %v3813 = vtanh.pop %v3809
    %v3814 = vtanh.pop %v3810
    %v3815 = vtanh.pop %v3811
    %v3816 = vmul.f32 %v3781, %v3812
    %v3817 = vmul.f32 %v3783, %v3813
    %v3818 = vmul.f32 %v3793, %v3814
    %v3819 = vmul.f32 %v3795, %v3815
    %v3820 = vld [vmem:[#allocation2 + $0x140] sm:$0xff]
    %v3821 = vld [vmem:[#allocation2 + $0x148] sm:$0xff]
    %v3822 = vld [vmem:[#allocation2 + $0x150] sm:$0xff]
    %v3823 = vld [vmem:[#allocation2 + $0x158] sm:$0xff]
    %v3824 = vld [vmem:[#allocation2 + $0x160] sm:$0xff]
    %v3825 = vld [vmem:[#allocation2 + $0x168] sm:$0xff]
    %v3826 = vld [vmem:[#allocation2 + $0x170] sm:$0xff]
    %v3827 = vld [vmem:[#allocation2 + $0x178] sm:$0xff]
    %v3828 = vpack.c.bf16 %v3818, %v3816
    %v3829 = vpack.c.bf16 %v3819, %v3817
    %3830 = vmatprep.subr.bf16.mxu0 %v2081
    %3831 = vmatpush1.bf16.msra.mxu0 %v2080
    %3832 = vmatprep.subr.bf16.mxu0 %v2073
    %3833 = vmatpush1.bf16.msra.mxu0 %v2072
    %3834 = vmatprep.subr.bf16.mxu0 %v2065
    %3835 = vmatpush1.bf16.msra.mxu0 %v2064
    %3836 = vmatprep.subr.bf16.mxu0 %v2057
    %3837 = vmatpush1.bf16.msra.mxu0 %v2056
    %3838 = vmatprep.subr.bf16.mxu0 %v2049
    %3839 = vmatpush1.bf16.msra.mxu0 %v2048
    %3840 = vmatprep.subr.bf16.mxu0 %v2041
    %3841 = vmatpush1.bf16.msra.mxu0 %v2040
    %3842 = vmatprep.subr.bf16.mxu0 %v2033
    %3843 = vmatpush1.bf16.msra.mxu0 %v2032
    %3844 = vmatprep.subr.bf16.mxu0 %v2025
    %3845 = vmatpush1.bf16.msra.mxu0 %v2024
    %3846 = vmatprep.subr.bf16.mxu0 %v2145
    %3847 = vmatpush2.bf16.msra.mxu0 %v2144
    %3848 = vmatprep.subr.bf16.mxu0 %v2137
    %3849 = vmatpush2.bf16.msra.mxu0 %v2136
    %3850 = vmatprep.subr.bf16.mxu0 %v2129
    %3851 = vmatpush2.bf16.msra.mxu0 %v2128
    %3852 = vmatprep.subr.bf16.mxu0 %v2121
    %3853 = vmatpush2.bf16.msra.mxu0 %v2120
    %3854 = vmatprep.subr.bf16.mxu0 %v2113
    %3855 = vmatpush2.bf16.msra.mxu0 %v2112
    %3856 = vmatprep.subr.bf16.mxu0 %v2105
    %3857 = vmatpush2.bf16.msra.mxu0 %v2104
    %3858 = vmatprep.subr.bf16.mxu0 %v2097
    %3859 = vmatpush2.bf16.msra.mxu0 %v2096
    %3860 = vmatprep.subr.bf16.mxu0 %v2089
    %3861 = vmatpush2.bf16.msra.mxu0 %v2088
    %3862 = vmatprep.mubr.bf16.mxu0 %v3829
    %3863 = vmatmul.mubr.bf16.gmra.mxu0 %v3828
    %v3864 = vpop.f32.mrf.mxu0
    %v3865 = vadd.f32 0.0, %v3864
    %v3866 = vpop.f32.mrf.mxu0
    %v3867 = vadd.f32 0.0, %v3866
    %v3868 = vpop.f32.mrf.mxu0
    %v3869 = vadd.f32 0.0, %v3868
    %v3870 = vpop.f32.mrf.mxu0
    %v3871 = vadd.f32 0.0, %v3870
    %3872 = vdwg.mxu0
    %3873 = vmatprep.subr.bf16.mxu0 %v2083
    %3874 = vmatpush1.bf16.msra.mxu0 %v2082
    %3875 = vmatprep.subr.bf16.mxu0 %v2075
    %3876 = vmatpush1.bf16.msra.mxu0 %v2074
    %3877 = vmatprep.subr.bf16.mxu0 %v2067
    %3878 = vmatpush1.bf16.msra.mxu0 %v2066
    %3879 = vmatprep.subr.bf16.mxu0 %v2059
    %3880 = vmatpush1.bf16.msra.mxu0 %v2058
    %3881 = vmatprep.subr.bf16.mxu0 %v2051
    %3882 = vmatpush1.bf16.msra.mxu0 %v2050
    %3883 = vmatprep.subr.bf16.mxu0 %v2043
    %3884 = vmatpush1.bf16.msra.mxu0 %v2042
    %3885 = vmatprep.subr.bf16.mxu0 %v2035
    %3886 = vmatpush1.bf16.msra.mxu0 %v2034
    %3887 = vmatprep.subr.bf16.mxu0 %v2027
    %3888 = vmatpush1.bf16.msra.mxu0 %v2026
    %3889 = vmatprep.subr.bf16.mxu0 %v2147
    %3890 = vmatpush2.bf16.msra.mxu0 %v2146
    %3891 = vmatprep.subr.bf16.mxu0 %v2139
    %3892 = vmatpush2.bf16.msra.mxu0 %v2138
    %3893 = vmatprep.subr.bf16.mxu0 %v2131
    %3894 = vmatpush2.bf16.msra.mxu0 %v2130
    %3895 = vmatprep.subr.bf16.mxu0 %v2123
    %3896 = vmatpush2.bf16.msra.mxu0 %v2122
    %3897 = vmatprep.subr.bf16.mxu0 %v2115
    %3898 = vmatpush2.bf16.msra.mxu0 %v2114
    %3899 = vmatprep.subr.bf16.mxu0 %v2107
    %3900 = vmatpush2.bf16.msra.mxu0 %v2106
    %3901 = vmatprep.subr.bf16.mxu0 %v2099
    %3902 = vmatpush2.bf16.msra.mxu0 %v2098
    %3903 = vmatprep.subr.bf16.mxu0 %v2091
    %3904 = vmatpush2.bf16.msra.mxu0 %v2090
    %3905 = vmatprep.mubr.bf16.mxu0 %v3829
    %3906 = vmatmul.mubr.bf16.gmra.mxu0 %v3828
    %v3907 = vpop.f32.mrf.mxu0
    %v3908 = vadd.f32 0.0, %v3907
    %v3909 = vpop.f32.mrf.mxu0
    %v3910 = vadd.f32 0.0, %v3909
    %v3911 = vpop.f32.mrf.mxu0
    %v3912 = vadd.f32 0.0, %v3911
    %v3913 = vpop.f32.mrf.mxu0
    %v3914 = vadd.f32 0.0, %v3913
    %3915 = vdwg.mxu0
    %3916 = vmatprep.subr.bf16.mxu0 %v2085
    %3917 = vmatpush1.bf16.msra.mxu0 %v2084
    %3918 = vmatprep.subr.bf16.mxu0 %v2077
    %3919 = vmatpush1.bf16.msra.mxu0 %v2076
    %3920 = vmatprep.subr.bf16.mxu0 %v2069
    %3921 = vmatpush1.bf16.msra.mxu0 %v2068
    %3922 = vmatprep.subr.bf16.mxu0 %v2061
    %3923 = vmatpush1.bf16.msra.mxu0 %v2060
    %3924 = vmatprep.subr.bf16.mxu0 %v2053
    %3925 = vmatpush1.bf16.msra.mxu0 %v2052
    %3926 = vmatprep.subr.bf16.mxu0 %v2045
    %3927 = vmatpush1.bf16.msra.mxu0 %v2044
    %3928 = vmatprep.subr.bf16.mxu0 %v2037
    %3929 = vmatpush1.bf16.msra.mxu0 %v2036
    %3930 = vmatprep.subr.bf16.mxu0 %v2029
    %3931 = vmatpush1.bf16.msra.mxu0 %v2028
    %3932 = vmatprep.subr.bf16.mxu0 %v2149
    %3933 = vmatpush2.bf16.msra.mxu0 %v2148
    %3934 = vmatprep.subr.bf16.mxu0 %v2141
    %3935 = vmatpush2.bf16.msra.mxu0 %v2140
    %3936 = vmatprep.subr.bf16.mxu0 %v2133
    %3937 = vmatpush2.bf16.msra.mxu0 %v2132
    %3938 = vmatprep.subr.bf16.mxu0 %v2125
    %3939 = vmatpush2.bf16.msra.mxu0 %v2124
    %3940 = vmatprep.subr.bf16.mxu0 %v2117
    %3941 = vmatpush2.bf16.msra.mxu0 %v2116
    %3942 = vmatprep.subr.bf16.mxu0 %v2109
    %3943 = vmatpush2.bf16.msra.mxu0 %v2108
    %3944 = vmatprep.subr.bf16.mxu0 %v2101
    %3945 = vmatpush2.bf16.msra.mxu0 %v2100
    %3946 = vmatprep.subr.bf16.mxu0 %v2093
    %3947 = vmatpush2.bf16.msra.mxu0 %v2092
    %3948 = vmatprep.mubr.bf16.mxu0 %v3829
    %3949 = vmatmul.mubr.bf16.gmra.mxu0 %v3828
    %v3950 = vpop.f32.mrf.mxu0
    %v3951 = vadd.f32 0.0, %v3950
    %v3952 = vpop.f32.mrf.mxu0
    %v3953 = vadd.f32 0.0, %v3952
    %v3954 = vpop.f32.mrf.mxu0
    %v3955 = vadd.f32 0.0, %v3954
    %v3956 = vpop.f32.mrf.mxu0
    %v3957 = vadd.f32 0.0, %v3956
    %3958 = vdwg.mxu0
    %3959 = vmatprep.subr.bf16.mxu0 %v2087
    %3960 = vmatpush1.bf16.msra.mxu0 %v2086
    %3961 = vmatprep.subr.bf16.mxu0 %v2079
    %3962 = vmatpush1.bf16.msra.mxu0 %v2078
    %3963 = vmatprep.subr.bf16.mxu0 %v2071
    %3964 = vmatpush1.bf16.msra.mxu0 %v2070
    %3965 = vmatprep.subr.bf16.mxu0 %v2063
    %3966 = vmatpush1.bf16.msra.mxu0 %v2062
    %3967 = vmatprep.subr.bf16.mxu0 %v2055
    %3968 = vmatpush1.bf16.msra.mxu0 %v2054
    %3969 = vmatprep.subr.bf16.mxu0 %v2047
    %3970 = vmatpush1.bf16.msra.mxu0 %v2046
    %3971 = vmatprep.subr.bf16.mxu0 %v2039
    %3972 = vmatpush1.bf16.msra.mxu0 %v2038
    %3973 = vmatprep.subr.bf16.mxu0 %v2031
    %3974 = vmatpush1.bf16.msra.mxu0 %v2030
    %3975 = vmatprep.subr.bf16.mxu0 %v2151
    %3976 = vmatpush2.bf16.msra.mxu0 %v2150
    %3977 = vmatprep.subr.bf16.mxu0 %v2143
    %3978 = vmatpush2.bf16.msra.mxu0 %v2142
    %3979 = vmatprep.subr.bf16.mxu0 %v2135
    %3980 = vmatpush2.bf16.msra.mxu0 %v2134
    %3981 = vmatprep.subr.bf16.mxu0 %v2127
    %3982 = vmatpush2.bf16.msra.mxu0 %v2126
    %3983 = vmatprep.subr.bf16.mxu0 %v2119
    %3984 = vmatpush2.bf16.msra.mxu0 %v2118
    %3985 = vmatprep.subr.bf16.mxu0 %v2111
    %3986 = vmatpush2.bf16.msra.mxu0 %v2110
    %3987 = vmatprep.subr.bf16.mxu0 %v2103
    %3988 = vmatpush2.bf16.msra.mxu0 %v2102
    %3989 = vmatprep.subr.bf16.mxu0 %v2095
    %3990 = vmatpush2.bf16.msra.mxu0 %v2094
    %3991 = vmatprep.mubr.bf16.mxu0 %v3829
    %3992 = vmatmul.mubr.bf16.gmra.mxu0 %v3828
    %v3993 = vpop.f32.mrf.mxu0
    %v3994 = vadd.f32 0.0, %v3993
    %v3995 = vpop.f32.mrf.mxu0
    %v3996 = vadd.f32 0.0, %v3995
    %v3997 = vpop.f32.mrf.mxu0
    %v3998 = vadd.f32 0.0, %v3997
    %v3999 = vpop.f32.mrf.mxu0
    %v4000 = vadd.f32 0.0, %v3999
    %4001 = vdwg.mxu0
    %v4002 = vunpack.c.l.bf16 %v3820
    %v4003 = vunpack.c.h.bf16 %v3820
    %v4004 = vunpack.c.l.bf16 %v3821
    %v4005 = vunpack.c.h.bf16 %v3821
    %v4006 = vunpack.c.l.bf16 %v3822
    %v4007 = vunpack.c.h.bf16 %v3822
    %v4008 = vunpack.c.l.bf16 %v3823
    %v4009 = vunpack.c.h.bf16 %v3823
    %v4010 = vunpack.c.l.bf16 %v3824
    %v4011 = vunpack.c.h.bf16 %v3824
    %v4012 = vunpack.c.l.bf16 %v3825
    %v4013 = vunpack.c.h.bf16 %v3825
    %v4014 = vunpack.c.l.bf16 %v3826
    %v4015 = vunpack.c.h.bf16 %v3826
    %v4016 = vunpack.c.l.bf16 %v3827
    %v4017 = vunpack.c.h.bf16 %v3827
    %v4018 = vadd.f32 %v4002, %v3865
    %v4019 = vadd.f32 %v4003, %v3867
    %v4020 = vadd.f32 %v4004, %v3908
    %v4021 = vadd.f32 %v4005, %v3910
    %v4022 = vadd.f32 %v4006, %v3951
    %v4023 = vadd.f32 %v4007, %v3953
    %v4024 = vadd.f32 %v4008, %v3994
    %v4025 = vadd.f32 %v4009, %v3996
    %v4026 = vadd.f32 %v4010, %v3869
    %v4027 = vadd.f32 %v4011, %v3871
    %v4028 = vadd.f32 %v4012, %v3912
    %v4029 = vadd.f32 %v4013, %v3914
    %v4030 = vadd.f32 %v4014, %v3955
    %v4031 = vadd.f32 %v4015, %v3957
    %v4032 = vadd.f32 %v4016, %v3998
    %v4033 = vadd.f32 %v4017, %v4000
    %v4034 = vxor.u32 %v4018, 2147483648
    %v4035 = vxor.u32 %v4019, 2147483648
    %v4036 = vxor.u32 %v4020, 2147483648
    %v4037 = vxor.u32 %v4021, 2147483648
    %v4038 = vxor.u32 %v4022, 2147483648
    %v4039 = vxor.u32 %v4023, 2147483648
    %v4040 = vxor.u32 %v4026, 2147483648
    %v4041 = vxor.u32 %v4027, 2147483648
    %v4042 = vxor.u32 %v4028, 2147483648
    %v4043 = vxor.u32 %v4029, 2147483648
    %v4044 = vxor.u32 %v4030, 2147483648
    %v4045 = vxor.u32 %v4031, 2147483648
    %v4046 = vmul.f32 %v4034, 1.442695
    %v4047 = vpow.pop %v4046
    %v4048 = vmul.f32 %v4035, 1.442695
    %v4049 = vpow.pop %v4048
    %v4050 = vmul.f32 %v4036, 1.442695
    %v4051 = vpow.pop %v4050
    %v4052 = vmul.f32 %v4037, 1.442695
    %v4053 = vpow.pop %v4052
    %v4054 = vmul.f32 %v4038, 1.442695
    %v4055 = vpow.pop %v4054
    %v4056 = vmul.f32 %v4039, 1.442695
    %v4057 = vpow.pop %v4056
    %v4058 = vmul.f32 %v4040, 1.442695
    %v4059 = vpow.pop %v4058
    %v4060 = vmul.f32 %v4041, 1.442695
    %v4061 = vpow.pop %v4060
    %v4062 = vmul.f32 %v4042, 1.442695
    %v4063 = vpow.pop %v4062
    %v4064 = vmul.f32 %v4043, 1.442695
    %v4065 = vpow.pop %v4064
    %v4066 = vmul.f32 %v4044, 1.442695
    %v4067 = vpow.pop %v4066
    %v4068 = vmul.f32 %v4045, 1.442695
    %v4069 = vpow.pop %v4068
    %v4070 = vadd.f32 %v4047, 1.0
    %v4071 = vadd.f32 %v4049, 1.0
    %v4072 = vadd.f32 %v4051, 1.0
    %v4073 = vadd.f32 %v4053, 1.0
    %v4074 = vadd.f32 %v4055, 1.0
    %v4075 = vadd.f32 %v4057, 1.0
    %v4076 = vadd.f32 %v4059, 1.0
    %v4077 = vadd.f32 %v4061, 1.0
    %v4078 = vadd.f32 %v4063, 1.0
    %v4079 = vadd.f32 %v4065, 1.0
    %v4080 = vadd.f32 %v4067, 1.0
    %v4081 = vadd.f32 %v4069, 1.0
    %v4082 = vrcp.pop %v4070
    %v4083 = vmul.f32 1.0, %v4082
    %v4084 = vrcp.pop %v4071
    %v4085 = vmul.f32 1.0, %v4084
    %v4086 = vrcp.pop %v4072
    %v4087 = vmul.f32 1.0, %v4086
    %v4088 = vrcp.pop %v4073
    %v4089 = vmul.f32 1.0, %v4088
    %v4090 = vrcp.pop %v4074
    %v4091 = vmul.f32 1.0, %v4090
    %v4092 = vrcp.pop %v4075
    %v4093 = vmul.f32 1.0, %v4092
    %v4094 = vrcp.pop %v4076
    %v4095 = vmul.f32 1.0, %v4094
    %v4096 = vrcp.pop %v4077
    %v4097 = vmul.f32 1.0, %v4096
    %v4098 = vrcp.pop %v4078
    %v4099 = vmul.f32 1.0, %v4098
    %v4100 = vrcp.pop %v4079
    %v4101 = vmul.f32 1.0, %v4100
    %v4102 = vrcp.pop %v4080
    %v4103 = vmul.f32 1.0, %v4102
    %v4104 = vrcp.pop %v4081
    %v4105 = vmul.f32 1.0, %v4104
    %v4106 = vtanh.pop %v4024
    %v4107 = vtanh.pop %v4025
    %v4108 = vtanh.pop %v4032
    %v4109 = vtanh.pop %v4033
    %v4110 = vmul.f32 %v4087, %v3808
    %v4111 = vmul.f32 %v4089, %v3809
    %v4112 = vmul.f32 %v4099, %v3810
    %v4113 = vmul.f32 %v4101, %v3811
    %v4114 = vmul.f32 %v4083, %v4106
    %v4115 = vmul.f32 %v4085, %v4107
    %v4116 = vmul.f32 %v4095, %v4108
    %v4117 = vmul.f32 %v4097, %v4109
    %v4118 = vadd.f32 %v4110, %v4114
    %v4119 = vadd.f32 %v4111, %v4115
    %v4120 = vadd.f32 %v4112, %v4116
    %v4121 = vadd.f32 %v4113, %v4117
    %v4122 = vtanh.pop %v4118
    %v4123 = vtanh.pop %v4119
    %v4124 = vtanh.pop %v4120
    %v4125 = vtanh.pop %v4121
    %v4126 = vmul.f32 %v4091, %v4122
    %v4127 = vmul.f32 %v4093, %v4123
    %v4128 = vmul.f32 %v4103, %v4124
    %v4129 = vmul.f32 %v4105, %v4125
    %v4130 = vld [vmem:[#allocation2 + $0x180] sm:$0xff]
    %v4131 = vld [vmem:[#allocation2 + $0x188] sm:$0xff]
    %v4132 = vld [vmem:[#allocation2 + $0x190] sm:$0xff]
    %v4133 = vld [vmem:[#allocation2 + $0x198] sm:$0xff]
    %v4134 = vld [vmem:[#allocation2 + $0x1a0] sm:$0xff]
    %v4135 = vld [vmem:[#allocation2 + $0x1a8] sm:$0xff]
    %v4136 = vld [vmem:[#allocation2 + $0x1b0] sm:$0xff]
    %v4137 = vld [vmem:[#allocation2 + $0x1b8] sm:$0xff]
    %v4138 = vpack.c.bf16 %v4128, %v4126
    %v4139 = vpack.c.bf16 %v4129, %v4127
    %4140 = vmatprep.subr.bf16.mxu0 %v2081
    %4141 = vmatpush1.bf16.msra.mxu0 %v2080
    %4142 = vmatprep.subr.bf16.mxu0 %v2073
    %4143 = vmatpush1.bf16.msra.mxu0 %v2072
    %4144 = vmatprep.subr.bf16.mxu0 %v2065
    %4145 = vmatpush1.bf16.msra.mxu0 %v2064
    %4146 = vmatprep.subr.bf16.mxu0 %v2057
    %4147 = vmatpush1.bf16.msra.mxu0 %v2056
    %4148 = vmatprep.subr.bf16.mxu0 %v2049
    %4149 = vmatpush1.bf16.msra.mxu0 %v2048
    %4150 = vmatprep.subr.bf16.mxu0 %v2041
    %4151 = vmatpush1.bf16.msra.mxu0 %v2040
    %4152 = vmatprep.subr.bf16.mxu0 %v2033
    %4153 = vmatpush1.bf16.msra.mxu0 %v2032
    %4154 = vmatprep.subr.bf16.mxu0 %v2025
    %4155 = vmatpush1.bf16.msra.mxu0 %v2024
    %4156 = vmatprep.subr.bf16.mxu0 %v2145
    %4157 = vmatpush2.bf16.msra.mxu0 %v2144
    %4158 = vmatprep.subr.bf16.mxu0 %v2137
    %4159 = vmatpush2.bf16.msra.mxu0 %v2136
    %4160 = vmatprep.subr.bf16.mxu0 %v2129
    %4161 = vmatpush2.bf16.msra.mxu0 %v2128
    %4162 = vmatprep.subr.bf16.mxu0 %v2121
    %4163 = vmatpush2.bf16.msra.mxu0 %v2120
    %4164 = vmatprep.subr.bf16.mxu0 %v2113
    %4165 = vmatpush2.bf16.msra.mxu0 %v2112
    %4166 = vmatprep.subr.bf16.mxu0 %v2105
    %4167 = vmatpush2.bf16.msra.mxu0 %v2104
    %4168 = vmatprep.subr.bf16.mxu0 %v2097
    %4169 = vmatpush2.bf16.msra.mxu0 %v2096
    %4170 = vmatprep.subr.bf16.mxu0 %v2089
    %4171 = vmatpush2.bf16.msra.mxu0 %v2088
    %4172 = vmatprep.mubr.bf16.mxu0 %v4139
    %4173 = vmatmul.mubr.bf16.gmra.mxu0 %v4138
    %v4174 = vpop.f32.mrf.mxu0
    %v4175 = vadd.f32 0.0, %v4174
    %v4176 = vpop.f32.mrf.mxu0
    %v4177 = vadd.f32 0.0, %v4176
    %v4178 = vpop.f32.mrf.mxu0
    %v4179 = vadd.f32 0.0, %v4178
    %v4180 = vpop.f32.mrf.mxu0
    %v4181 = vadd.f32 0.0, %v4180
    %4182 = vdwg.mxu0
    %4183 = vmatprep.subr.bf16.mxu0 %v2083
    %4184 = vmatpush1.bf16.msra.mxu0 %v2082
    %4185 = vmatprep.subr.bf16.mxu0 %v2075
    %4186 = vmatpush1.bf16.msra.mxu0 %v2074
    %4187 = vmatprep.subr.bf16.mxu0 %v2067
    %4188 = vmatpush1.bf16.msra.mxu0 %v2066
    %4189 = vmatprep.subr.bf16.mxu0 %v2059
    %4190 = vmatpush1.bf16.msra.mxu0 %v2058
    %4191 = vmatprep.subr.bf16.mxu0 %v2051
    %4192 = vmatpush1.bf16.msra.mxu0 %v2050
    %4193 = vmatprep.subr.bf16.mxu0 %v2043
    %4194 = vmatpush1.bf16.msra.mxu0 %v2042
    %4195 = vmatprep.subr.bf16.mxu0 %v2035
    %4196 = vmatpush1.bf16.msra.mxu0 %v2034
    %4197 = vmatprep.subr.bf16.mxu0 %v2027
    %4198 = vmatpush1.bf16.msra.mxu0 %v2026
    %4199 = vmatprep.subr.bf16.mxu0 %v2147
    %4200 = vmatpush2.bf16.msra.mxu0 %v2146
    %4201 = vmatprep.subr.bf16.mxu0 %v2139
    %4202 = vmatpush2.bf16.msra.mxu0 %v2138
    %4203 = vmatprep.subr.bf16.mxu0 %v2131
    %4204 = vmatpush2.bf16.msra.mxu0 %v2130
    %4205 = vmatprep.subr.bf16.mxu0 %v2123
    %4206 = vmatpush2.bf16.msra.mxu0 %v2122
    %4207 = vmatprep.subr.bf16.mxu0 %v2115
    %4208 = vmatpush2.bf16.msra.mxu0 %v2114
    %4209 = vmatprep.subr.bf16.mxu0 %v2107
    %4210 = vmatpush2.bf16.msra.mxu0 %v2106
    %4211 = vmatprep.subr.bf16.mxu0 %v2099
    %4212 = vmatpush2.bf16.msra.mxu0 %v2098
    %4213 = vmatprep.subr.bf16.mxu0 %v2091
    %4214 = vmatpush2.bf16.msra.mxu0 %v2090
    %4215 = vmatprep.mubr.bf16.mxu0 %v4139
    %4216 = vmatmul.mubr.bf16.gmra.mxu0 %v4138
    %v4217 = vpop.f32.mrf.mxu0
    %v4218 = vadd.f32 0.0, %v4217
    %v4219 = vpop.f32.mrf.mxu0
    %v4220 = vadd.f32 0.0, %v4219
    %v4221 = vpop.f32.mrf.mxu0
    %v4222 = vadd.f32 0.0, %v4221
    %v4223 = vpop.f32.mrf.mxu0
    %v4224 = vadd.f32 0.0, %v4223
    %4225 = vdwg.mxu0
    %4226 = vmatprep.subr.bf16.mxu0 %v2085
    %4227 = vmatpush1.bf16.msra.mxu0 %v2084
    %4228 = vmatprep.subr.bf16.mxu0 %v2077
    %4229 = vmatpush1.bf16.msra.mxu0 %v2076
    %4230 = vmatprep.subr.bf16.mxu0 %v2069
    %4231 = vmatpush1.bf16.msra.mxu0 %v2068
    %4232 = vmatprep.subr.bf16.mxu0 %v2061
    %4233 = vmatpush1.bf16.msra.mxu0 %v2060
    %4234 = vmatprep.subr.bf16.mxu0 %v2053
    %4235 = vmatpush1.bf16.msra.mxu0 %v2052
    %4236 = vmatprep.subr.bf16.mxu0 %v2045
    %4237 = vmatpush1.bf16.msra.mxu0 %v2044
    %4238 = vmatprep.subr.bf16.mxu0 %v2037
    %4239 = vmatpush1.bf16.msra.mxu0 %v2036
    %4240 = vmatprep.subr.bf16.mxu0 %v2029
    %4241 = vmatpush1.bf16.msra.mxu0 %v2028
    %4242 = vmatprep.subr.bf16.mxu0 %v2149
    %4243 = vmatpush2.bf16.msra.mxu0 %v2148
    %4244 = vmatprep.subr.bf16.mxu0 %v2141
    %4245 = vmatpush2.bf16.msra.mxu0 %v2140
    %4246 = vmatprep.subr.bf16.mxu0 %v2133
    %4247 = vmatpush2.bf16.msra.mxu0 %v2132
    %4248 = vmatprep.subr.bf16.mxu0 %v2125
    %4249 = vmatpush2.bf16.msra.mxu0 %v2124
    %4250 = vmatprep.subr.bf16.mxu0 %v2117
    %4251 = vmatpush2.bf16.msra.mxu0 %v2116
    %4252 = vmatprep.subr.bf16.mxu0 %v2109
    %4253 = vmatpush2.bf16.msra.mxu0 %v2108
    %4254 = vmatprep.subr.bf16.mxu0 %v2101
    %4255 = vmatpush2.bf16.msra.mxu0 %v2100
    %4256 = vmatprep.subr.bf16.mxu0 %v2093
    %4257 = vmatpush2.bf16.msra.mxu0 %v2092
    %4258 = vmatprep.mubr.bf16.mxu0 %v4139
    %4259 = vmatmul.mubr.bf16.gmra.mxu0 %v4138
    %v4260 = vpop.f32.mrf.mxu0
    %v4261 = vadd.f32 0.0, %v4260
    %v4262 = vpop.f32.mrf.mxu0
    %v4263 = vadd.f32 0.0, %v4262
    %v4264 = vpop.f32.mrf.mxu0
    %v4265 = vadd.f32 0.0, %v4264
    %v4266 = vpop.f32.mrf.mxu0
    %v4267 = vadd.f32 0.0, %v4266
    %4268 = vdwg.mxu0
    %4269 = vmatprep.subr.bf16.mxu0 %v2087
    %4270 = vmatpush1.bf16.msra.mxu0 %v2086
    %4271 = vmatprep.subr.bf16.mxu0 %v2079
    %4272 = vmatpush1.bf16.msra.mxu0 %v2078
    %4273 = vmatprep.subr.bf16.mxu0 %v2071
    %4274 = vmatpush1.bf16.msra.mxu0 %v2070
    %4275 = vmatprep.subr.bf16.mxu0 %v2063
    %4276 = vmatpush1.bf16.msra.mxu0 %v2062
    %4277 = vmatprep.subr.bf16.mxu0 %v2055
    %4278 = vmatpush1.bf16.msra.mxu0 %v2054
    %4279 = vmatprep.subr.bf16.mxu0 %v2047
    %4280 = vmatpush1.bf16.msra.mxu0 %v2046
    %4281 = vmatprep.subr.bf16.mxu0 %v2039
    %4282 = vmatpush1.bf16.msra.mxu0 %v2038
    %4283 = vmatprep.subr.bf16.mxu0 %v2031
    %4284 = vmatpush1.bf16.msra.mxu0 %v2030
    %4285 = vmatprep.subr.bf16.mxu0 %v2151
    %4286 = vmatpush2.bf16.msra.mxu0 %v2150
    %4287 = vmatprep.subr.bf16.mxu0 %v2143
    %4288 = vmatpush2.bf16.msra.mxu0 %v2142
    %4289 = vmatprep.subr.bf16.mxu0 %v2135
    %4290 = vmatpush2.bf16.msra.mxu0 %v2134
    %4291 = vmatprep.subr.bf16.mxu0 %v2127
    %4292 = vmatpush2.bf16.msra.mxu0 %v2126
    %4293 = vmatprep.subr.bf16.mxu0 %v2119
    %4294 = vmatpush2.bf16.msra.mxu0 %v2118
    %4295 = vmatprep.subr.bf16.mxu0 %v2111
    %4296 = vmatpush2.bf16.msra.mxu0 %v2110
    %4297 = vmatprep.subr.bf16.mxu0 %v2103
    %4298 = vmatpush2.bf16.msra.mxu0 %v2102
    %4299 = vmatprep.subr.bf16.mxu0 %v2095
    %4300 = vmatpush2.bf16.msra.mxu0 %v2094
    %4301 = vmatprep.mubr.bf16.mxu0 %v4139
    %4302 = vmatmul.mubr.bf16.gmra.mxu0 %v4138
    %v4303 = vpop.f32.mrf.mxu0
    %v4304 = vadd.f32 0.0, %v4303
    %v4305 = vpop.f32.mrf.mxu0
    %v4306 = vadd.f32 0.0, %v4305
    %v4307 = vpop.f32.mrf.mxu0
    %v4308 = vadd.f32 0.0, %v4307
    %v4309 = vpop.f32.mrf.mxu0
    %v4310 = vadd.f32 0.0, %v4309
    %4311 = vdwg.mxu0
    %v4312 = vunpack.c.l.bf16 %v4130
    %v4313 = vunpack.c.h.bf16 %v4130
    %v4314 = vunpack.c.l.bf16 %v4131
    %v4315 = vunpack.c.h.bf16 %v4131
    %v4316 = vunpack.c.l.bf16 %v4132
    %v4317 = vunpack.c.h.bf16 %v4132
    %v4318 = vunpack.c.l.bf16 %v4133
    %v4319 = vunpack.c.h.bf16 %v4133
    %v4320 = vunpack.c.l.bf16 %v4134
    %v4321 = vunpack.c.h.bf16 %v4134
    %v4322 = vunpack.c.l.bf16 %v4135
    %v4323 = vunpack.c.h.bf16 %v4135
    %v4324 = vunpack.c.l.bf16 %v4136
    %v4325 = vunpack.c.h.bf16 %v4136
    %v4326 = vunpack.c.l.bf16 %v4137
    %v4327 = vunpack.c.h.bf16 %v4137
    %v4328 = vadd.f32 %v4312, %v4175
    %v4329 = vadd.f32 %v4313, %v4177
    %v4330 = vadd.f32 %v4314, %v4218
    %v4331 = vadd.f32 %v4315, %v4220
    %v4332 = vadd.f32 %v4316, %v4261
    %v4333 = vadd.f32 %v4317, %v4263
    %v4334 = vadd.f32 %v4318, %v4304
    %v4335 = vadd.f32 %v4319, %v4306
    %v4336 = vadd.f32 %v4320, %v4179
    %v4337 = vadd.f32 %v4321, %v4181
    %v4338 = vadd.f32 %v4322, %v4222
    %v4339 = vadd.f32 %v4323, %v4224
    %v4340 = vadd.f32 %v4324, %v4265
    %v4341 = vadd.f32 %v4325, %v4267
    %v4342 = vadd.f32 %v4326, %v4308
    %v4343 = vadd.f32 %v4327, %v4310
    %v4344 = vxor.u32 %v4328, 2147483648
    %v4345 = vxor.u32 %v4329, 2147483648
    %v4346 = vxor.u32 %v4330, 2147483648
    %v4347 = vxor.u32 %v4331, 2147483648
    %v4348 = vxor.u32 %v4332, 2147483648
    %v4349 = vxor.u32 %v4333, 2147483648
    %v4350 = vxor.u32 %v4336, 2147483648
    %v4351 = vxor.u32 %v4337, 2147483648
    %v4352 = vxor.u32 %v4338, 2147483648
    %v4353 = vxor.u32 %v4339, 2147483648
    %v4354 = vxor.u32 %v4340, 2147483648
    %v4355 = vxor.u32 %v4341, 2147483648
    %v4356 = vmul.f32 %v4344, 1.442695
    %v4357 = vpow.pop %v4356
    %v4358 = vmul.f32 %v4345, 1.442695
    %v4359 = vpow.pop %v4358
    %v4360 = vmul.f32 %v4346, 1.442695
    %v4361 = vpow.pop %v4360
    %v4362 = vmul.f32 %v4347, 1.442695
    %v4363 = vpow.pop %v4362
    %v4364 = vmul.f32 %v4348, 1.442695
    %v4365 = vpow.pop %v4364
    %v4366 = vmul.f32 %v4349, 1.442695
    %v4367 = vpow.pop %v4366
    %v4368 = vmul.f32 %v4350, 1.442695
    %v4369 = vpow.pop %v4368
    %v4370 = vmul.f32 %v4351, 1.442695
    %v4371 = vpow.pop %v4370
    %v4372 = vmul.f32 %v4352, 1.442695
    %v4373 = vpow.pop %v4372
    %v4374 = vmul.f32 %v4353, 1.442695
    %v4375 = vpow.pop %v4374
    %v4376 = vmul.f32 %v4354, 1.442695
    %v4377 = vpow.pop %v4376
    %v4378 = vmul.f32 %v4355, 1.442695
    %v4379 = vpow.pop %v4378
    %v4380 = vadd.f32 %v4357, 1.0
    %v4381 = vadd.f32 %v4359, 1.0
    %v4382 = vadd.f32 %v4361, 1.0
    %v4383 = vadd.f32 %v4363, 1.0
    %v4384 = vadd.f32 %v4365, 1.0
    %v4385 = vadd.f32 %v4367, 1.0
    %v4386 = vadd.f32 %v4369, 1.0
    %v4387 = vadd.f32 %v4371, 1.0
    %v4388 = vadd.f32 %v4373, 1.0
    %v4389 = vadd.f32 %v4375, 1.0
    %v4390 = vadd.f32 %v4377, 1.0
    %v4391 = vadd.f32 %v4379, 1.0
    %v4392 = vrcp.pop %v4380
    %v4393 = vmul.f32 1.0, %v4392
    %v4394 = vrcp.pop %v4381
    %v4395 = vmul.f32 1.0, %v4394
    %v4396 = vrcp.pop %v4382
    %v4397 = vmul.f32 1.0, %v4396
    %v4398 = vrcp.pop %v4383
    %v4399 = vmul.f32 1.0, %v4398
    %v4400 = vrcp.pop %v4384
    %v4401 = vmul.f32 1.0, %v4400
    %v4402 = vrcp.pop %v4385
    %v4403 = vmul.f32 1.0, %v4402
    %v4404 = vrcp.pop %v4386
    %v4405 = vmul.f32 1.0, %v4404
    %v4406 = vrcp.pop %v4387
    %v4407 = vmul.f32 1.0, %v4406
    %v4408 = vrcp.pop %v4388
    %v4409 = vmul.f32 1.0, %v4408
    %v4410 = vrcp.pop %v4389
    %v4411 = vmul.f32 1.0, %v4410
    %v4412 = vrcp.pop %v4390
    %v4413 = vmul.f32 1.0, %v4412
    %v4414 = vrcp.pop %v4391
    %v4415 = vmul.f32 1.0, %v4414
    %v4416 = vtanh.pop %v4334
    %v4417 = vtanh.pop %v4335
    %v4418 = vtanh.pop %v4342
    %v4419 = vtanh.pop %v4343
    %v4420 = vmul.f32 %v4397, %v4118
    %v4421 = vmul.f32 %v4399, %v4119
    %v4422 = vmul.f32 %v4409, %v4120
    %v4423 = vmul.f32 %v4411, %v4121
    %v4424 = vmul.f32 %v4393, %v4416
    %v4425 = vmul.f32 %v4395, %v4417
    %v4426 = vmul.f32 %v4405, %v4418
    %v4427 = vmul.f32 %v4407, %v4419
    %v4428 = vadd.f32 %v4420, %v4424
    %v4429 = vadd.f32 %v4421, %v4425
    %v4430 = vadd.f32 %v4422, %v4426
    %v4431 = vadd.f32 %v4423, %v4427
    %v4432 = vtanh.pop %v4428
    %v4433 = vtanh.pop %v4429
    %v4434 = vtanh.pop %v4430
    %v4435 = vtanh.pop %v4431
    %v4436 = vmul.f32 %v4401, %v4432
    %v4437 = vmul.f32 %v4403, %v4433
    %v4438 = vmul.f32 %v4413, %v4434
    %v4439 = vmul.f32 %v4415, %v4435
    %v4440 = vld [vmem:[#allocation2 + $0x1c0] sm:$0xff]
    %v4441 = vld [vmem:[#allocation2 + $0x1c8] sm:$0xff]
    %v4442 = vld [vmem:[#allocation2 + $0x1d0] sm:$0xff]
    %v4443 = vld [vmem:[#allocation2 + $0x1d8] sm:$0xff]
    %v4444 = vld [vmem:[#allocation2 + $0x1e0] sm:$0xff]
    %v4445 = vld [vmem:[#allocation2 + $0x1e8] sm:$0xff]
    %v4446 = vld [vmem:[#allocation2 + $0x1f0] sm:$0xff]
    %v4447 = vld [vmem:[#allocation2 + $0x1f8] sm:$0xff]
    %v4448 = vpack.c.bf16 %v4438, %v4436
    %v4449 = vpack.c.bf16 %v4439, %v4437
    %4450 = vmatprep.subr.bf16.mxu0 %v2081
    %4451 = vmatpush1.bf16.msra.mxu0 %v2080
    %4452 = vmatprep.subr.bf16.mxu0 %v2073
    %4453 = vmatpush1.bf16.msra.mxu0 %v2072
    %4454 = vmatprep.subr.bf16.mxu0 %v2065
    %4455 = vmatpush1.bf16.msra.mxu0 %v2064
    %4456 = vmatprep.subr.bf16.mxu0 %v2057
    %4457 = vmatpush1.bf16.msra.mxu0 %v2056
    %4458 = vmatprep.subr.bf16.mxu0 %v2049
    %4459 = vmatpush1.bf16.msra.mxu0 %v2048
    %4460 = vmatprep.subr.bf16.mxu0 %v2041
    %4461 = vmatpush1.bf16.msra.mxu0 %v2040
    %4462 = vmatprep.subr.bf16.mxu0 %v2033
    %4463 = vmatpush1.bf16.msra.mxu0 %v2032
    %4464 = vmatprep.subr.bf16.mxu0 %v2025
    %4465 = vmatpush1.bf16.msra.mxu0 %v2024
    %4466 = vmatprep.subr.bf16.mxu0 %v2145
    %4467 = vmatpush2.bf16.msra.mxu0 %v2144
    %4468 = vmatprep.subr.bf16.mxu0 %v2137
    %4469 = vmatpush2.bf16.msra.mxu0 %v2136
    %4470 = vmatprep.subr.bf16.mxu0 %v2129
    %4471 = vmatpush2.bf16.msra.mxu0 %v2128
    %4472 = vmatprep.subr.bf16.mxu0 %v2121
    %4473 = vmatpush2.bf16.msra.mxu0 %v2120
    %4474 = vmatprep.subr.bf16.mxu0 %v2113
    %4475 = vmatpush2.bf16.msra.mxu0 %v2112
    %4476 = vmatprep.subr.bf16.mxu0 %v2105
    %4477 = vmatpush2.bf16.msra.mxu0 %v2104
    %4478 = vmatprep.subr.bf16.mxu0 %v2097
    %4479 = vmatpush2.bf16.msra.mxu0 %v2096
    %4480 = vmatprep.subr.bf16.mxu0 %v2089
    %4481 = vmatpush2.bf16.msra.mxu0 %v2088
    %4482 = vmatprep.mubr.bf16.mxu0 %v4449
    %4483 = vmatmul.mubr.bf16.gmra.mxu0 %v4448
    %v4484 = vpop.f32.mrf.mxu0
    %v4485 = vadd.f32 0.0, %v4484
    %v4486 = vpop.f32.mrf.mxu0
    %v4487 = vadd.f32 0.0, %v4486
    %v4488 = vpop.f32.mrf.mxu0
    %v4489 = vadd.f32 0.0, %v4488
    %v4490 = vpop.f32.mrf.mxu0
    %v4491 = vadd.f32 0.0, %v4490
    %4492 = vdwg.mxu0
    %4493 = vmatprep.subr.bf16.mxu0 %v2083
    %4494 = vmatpush1.bf16.msra.mxu0 %v2082
    %4495 = vmatprep.subr.bf16.mxu0 %v2075
    %4496 = vmatpush1.bf16.msra.mxu0 %v2074
    %4497 = vmatprep.subr.bf16.mxu0 %v2067
    %4498 = vmatpush1.bf16.msra.mxu0 %v2066
    %4499 = vmatprep.subr.bf16.mxu0 %v2059
    %4500 = vmatpush1.bf16.msra.mxu0 %v2058
    %4501 = vmatprep.subr.bf16.mxu0 %v2051
    %4502 = vmatpush1.bf16.msra.mxu0 %v2050
    %4503 = vmatprep.subr.bf16.mxu0 %v2043
    %4504 = vmatpush1.bf16.msra.mxu0 %v2042
    %4505 = vmatprep.subr.bf16.mxu0 %v2035
    %4506 = vmatpush1.bf16.msra.mxu0 %v2034
    %4507 = vmatprep.subr.bf16.mxu0 %v2027
    %4508 = vmatpush1.bf16.msra.mxu0 %v2026
    %4509 = vmatprep.subr.bf16.mxu0 %v2147
    %4510 = vmatpush2.bf16.msra.mxu0 %v2146
    %4511 = vmatprep.subr.bf16.mxu0 %v2139
    %4512 = vmatpush2.bf16.msra.mxu0 %v2138
    %4513 = vmatprep.subr.bf16.mxu0 %v2131
    %4514 = vmatpush2.bf16.msra.mxu0 %v2130
    %4515 = vmatprep.subr.bf16.mxu0 %v2123
    %4516 = vmatpush2.bf16.msra.mxu0 %v2122
    %4517 = vmatprep.subr.bf16.mxu0 %v2115
    %4518 = vmatpush2.bf16.msra.mxu0 %v2114
    %4519 = vmatprep.subr.bf16.mxu0 %v2107
    %4520 = vmatpush2.bf16.msra.mxu0 %v2106
    %4521 = vmatprep.subr.bf16.mxu0 %v2099
    %4522 = vmatpush2.bf16.msra.mxu0 %v2098
    %4523 = vmatprep.subr.bf16.mxu0 %v2091
    %4524 = vmatpush2.bf16.msra.mxu0 %v2090
    %4525 = vmatprep.mubr.bf16.mxu0 %v4449
    %4526 = vmatmul.mubr.bf16.gmra.mxu0 %v4448
    %v4527 = vpop.f32.mrf.mxu0
    %v4528 = vadd.f32 0.0, %v4527
    %v4529 = vpop.f32.mrf.mxu0
    %v4530 = vadd.f32 0.0, %v4529
    %v4531 = vpop.f32.mrf.mxu0
    %v4532 = vadd.f32 0.0, %v4531
    %v4533 = vpop.f32.mrf.mxu0
    %v4534 = vadd.f32 0.0, %v4533
    %4535 = vdwg.mxu0
    %4536 = vmatprep.subr.bf16.mxu0 %v2085
    %4537 = vmatpush1.bf16.msra.mxu0 %v2084
    %4538 = vmatprep.subr.bf16.mxu0 %v2077
    %4539 = vmatpush1.bf16.msra.mxu0 %v2076
    %4540 = vmatprep.subr.bf16.mxu0 %v2069
    %4541 = vmatpush1.bf16.msra.mxu0 %v2068
    %4542 = vmatprep.subr.bf16.mxu0 %v2061
    %4543 = vmatpush1.bf16.msra.mxu0 %v2060
    %4544 = vmatprep.subr.bf16.mxu0 %v2053
    %4545 = vmatpush1.bf16.msra.mxu0 %v2052
    %4546 = vmatprep.subr.bf16.mxu0 %v2045
    %4547 = vmatpush1.bf16.msra.mxu0 %v2044
    %4548 = vmatprep.subr.bf16.mxu0 %v2037
    %4549 = vmatpush1.bf16.msra.mxu0 %v2036
    %4550 = vmatprep.subr.bf16.mxu0 %v2029
    %4551 = vmatpush1.bf16.msra.mxu0 %v2028
    %4552 = vmatprep.subr.bf16.mxu0 %v2149
    %4553 = vmatpush2.bf16.msra.mxu0 %v2148
    %4554 = vmatprep.subr.bf16.mxu0 %v2141
    %4555 = vmatpush2.bf16.msra.mxu0 %v2140
    %4556 = vmatprep.subr.bf16.mxu0 %v2133
    %4557 = vmatpush2.bf16.msra.mxu0 %v2132
    %4558 = vmatprep.subr.bf16.mxu0 %v2125
    %4559 = vmatpush2.bf16.msra.mxu0 %v2124
    %4560 = vmatprep.subr.bf16.mxu0 %v2117
    %4561 = vmatpush2.bf16.msra.mxu0 %v2116
    %4562 = vmatprep.subr.bf16.mxu0 %v2109
    %4563 = vmatpush2.bf16.msra.mxu0 %v2108
    %4564 = vmatprep.subr.bf16.mxu0 %v2101
    %4565 = vmatpush2.bf16.msra.mxu0 %v2100
    %4566 = vmatprep.subr.bf16.mxu0 %v2093
    %4567 = vmatpush2.bf16.msra.mxu0 %v2092
    %4568 = vmatprep.mubr.bf16.mxu0 %v4449
    %4569 = vmatmul.mubr.bf16.gmra.mxu0 %v4448
    %v4570 = vpop.f32.mrf.mxu0
    %v4571 = vadd.f32 0.0, %v4570
    %v4572 = vpop.f32.mrf.mxu0
    %v4573 = vadd.f32 0.0, %v4572
    %v4574 = vpop.f32.mrf.mxu0
    %v4575 = vadd.f32 0.0, %v4574
    %v4576 = vpop.f32.mrf.mxu0
    %v4577 = vadd.f32 0.0, %v4576
    %4578 = vdwg.mxu0
    %4579 = vmatprep.subr.bf16.mxu0 %v2087
    %4580 = vmatpush1.bf16.msra.mxu0 %v2086
    %4581 = vmatprep.subr.bf16.mxu0 %v2079
    %4582 = vmatpush1.bf16.msra.mxu0 %v2078
    %4583 = vmatprep.subr.bf16.mxu0 %v2071
    %4584 = vmatpush1.bf16.msra.mxu0 %v2070
    %4585 = vmatprep.subr.bf16.mxu0 %v2063
    %4586 = vmatpush1.bf16.msra.mxu0 %v2062
    %4587 = vmatprep.subr.bf16.mxu0 %v2055
    %4588 = vmatpush1.bf16.msra.mxu0 %v2054
    %4589 = vmatprep.subr.bf16.mxu0 %v2047
    %4590 = vmatpush1.bf16.msra.mxu0 %v2046
    %4591 = vmatprep.subr.bf16.mxu0 %v2039
    %4592 = vmatpush1.bf16.msra.mxu0 %v2038
    %4593 = vmatprep.subr.bf16.mxu0 %v2031
    %4594 = vmatpush1.bf16.msra.mxu0 %v2030
    %4595 = vmatprep.subr.bf16.mxu0 %v2151
    %4596 = vmatpush2.bf16.msra.mxu0 %v2150
    %4597 = vmatprep.subr.bf16.mxu0 %v2143
    %4598 = vmatpush2.bf16.msra.mxu0 %v2142
    %4599 = vmatprep.subr.bf16.mxu0 %v2135
    %4600 = vmatpush2.bf16.msra.mxu0 %v2134
    %4601 = vmatprep.subr.bf16.mxu0 %v2127
    %4602 = vmatpush2.bf16.msra.mxu0 %v2126
    %4603 = vmatprep.subr.bf16.mxu0 %v2119
    %4604 = vmatpush2.bf16.msra.mxu0 %v2118
    %4605 = vmatprep.subr.bf16.mxu0 %v2111
    %4606 = vmatpush2.bf16.msra.mxu0 %v2110
    %4607 = vmatprep.subr.bf16.mxu0 %v2103
    %4608 = vmatpush2.bf16.msra.mxu0 %v2102
    %4609 = vmatprep.subr.bf16.mxu0 %v2095
    %4610 = vmatpush2.bf16.msra.mxu0 %v2094
    %4611 = vmatprep.mubr.bf16.mxu0 %v4449
    %4612 = vmatmul.mubr.bf16.gmra.mxu0 %v4448
    %v4613 = vpop.f32.mrf.mxu0
    %v4614 = vadd.f32 0.0, %v4613
    %v4615 = vpop.f32.mrf.mxu0
    %v4616 = vadd.f32 0.0, %v4615
    %v4617 = vpop.f32.mrf.mxu0
    %v4618 = vadd.f32 0.0, %v4617
    %v4619 = vpop.f32.mrf.mxu0
    %v4620 = vadd.f32 0.0, %v4619
    %4621 = vdwg.mxu0
    %v4622 = vunpack.c.l.bf16 %v4440
    %v4623 = vunpack.c.h.bf16 %v4440
    %v4624 = vunpack.c.l.bf16 %v4441
    %v4625 = vunpack.c.h.bf16 %v4441
    %v4626 = vunpack.c.l.bf16 %v4442
    %v4627 = vunpack.c.h.bf16 %v4442
    %v4628 = vunpack.c.l.bf16 %v4443
    %v4629 = vunpack.c.h.bf16 %v4443
    %v4630 = vunpack.c.l.bf16 %v4444
    %v4631 = vunpack.c.h.bf16 %v4444
    %v4632 = vunpack.c.l.bf16 %v4445
    %v4633 = vunpack.c.h.bf16 %v4445
    %v4634 = vunpack.c.l.bf16 %v4446
    %v4635 = vunpack.c.h.bf16 %v4446
    %v4636 = vunpack.c.l.bf16 %v4447
    %v4637 = vunpack.c.h.bf16 %v4447
    %v4638 = vadd.f32 %v4622, %v4485
    %v4639 = vadd.f32 %v4623, %v4487
    %v4640 = vadd.f32 %v4624, %v4528
    %v4641 = vadd.f32 %v4625, %v4530
    %v4642 = vadd.f32 %v4626, %v4571
    %v4643 = vadd.f32 %v4627, %v4573
    %v4644 = vadd.f32 %v4628, %v4614
    %v4645 = vadd.f32 %v4629, %v4616
    %v4646 = vadd.f32 %v4630, %v4489
    %v4647 = vadd.f32 %v4631, %v4491
    %v4648 = vadd.f32 %v4632, %v4532
    %v4649 = vadd.f32 %v4633, %v4534
    %v4650 = vadd.f32 %v4634, %v4575
    %v4651 = vadd.f32 %v4635, %v4577
    %v4652 = vadd.f32 %v4636, %v4618
    %v4653 = vadd.f32 %v4637, %v4620
    %v4654 = vxor.u32 %v4638, 2147483648
    %v4655 = vxor.u32 %v4639, 2147483648
    %v4656 = vxor.u32 %v4640, 2147483648
    %v4657 = vxor.u32 %v4641, 2147483648
    %v4658 = vxor.u32 %v4642, 2147483648
    %v4659 = vxor.u32 %v4643, 2147483648
    %v4660 = vxor.u32 %v4646, 2147483648
    %v4661 = vxor.u32 %v4647, 2147483648
    %v4662 = vxor.u32 %v4648, 2147483648
    %v4663 = vxor.u32 %v4649, 2147483648
    %v4664 = vxor.u32 %v4650, 2147483648
    %v4665 = vxor.u32 %v4651, 2147483648
    %v4666 = vmul.f32 %v4654, 1.442695
    %v4667 = vpow.pop %v4666
    %v4668 = vmul.f32 %v4655, 1.442695
    %v4669 = vpow.pop %v4668
    %v4670 = vmul.f32 %v4656, 1.442695
    %v4671 = vpow.pop %v4670
    %v4672 = vmul.f32 %v4657, 1.442695
    %v4673 = vpow.pop %v4672
    %v4674 = vmul.f32 %v4658, 1.442695
    %v4675 = vpow.pop %v4674
    %v4676 = vmul.f32 %v4659, 1.442695
    %v4677 = vpow.pop %v4676
    %v4678 = vmul.f32 %v4660, 1.442695
    %v4679 = vpow.pop %v4678
    %v4680 = vmul.f32 %v4661, 1.442695
    %v4681 = vpow.pop %v4680
    %v4682 = vmul.f32 %v4662, 1.442695
    %v4683 = vpow.pop %v4682
    %v4684 = vmul.f32 %v4663, 1.442695
    %v4685 = vpow.pop %v4684
    %v4686 = vmul.f32 %v4664, 1.442695
    %v4687 = vpow.pop %v4686
    %v4688 = vmul.f32 %v4665, 1.442695
    %v4689 = vpow.pop %v4688
    %v4690 = vadd.f32 %v4667, 1.0
    %v4691 = vadd.f32 %v4669, 1.0
    %v4692 = vadd.f32 %v4671, 1.0
    %v4693 = vadd.f32 %v4673, 1.0
    %v4694 = vadd.f32 %v4675, 1.0
    %v4695 = vadd.f32 %v4677, 1.0
    %v4696 = vadd.f32 %v4679, 1.0
    %v4697 = vadd.f32 %v4681, 1.0
    %v4698 = vadd.f32 %v4683, 1.0
    %v4699 = vadd.f32 %v4685, 1.0
    %v4700 = vadd.f32 %v4687, 1.0
    %v4701 = vadd.f32 %v4689, 1.0
    %v4702 = vrcp.pop %v4690
    %v4703 = vmul.f32 1.0, %v4702
    %v4704 = vrcp.pop %v4691
    %v4705 = vmul.f32 1.0, %v4704
    %v4706 = vrcp.pop %v4692
    %v4707 = vmul.f32 1.0, %v4706
    %v4708 = vrcp.pop %v4693
    %v4709 = vmul.f32 1.0, %v4708
    %v4710 = vrcp.pop %v4694
    %v4711 = vmul.f32 1.0, %v4710
    %v4712 = vrcp.pop %v4695
    %v4713 = vmul.f32 1.0, %v4712
    %v4714 = vrcp.pop %v4696
    %v4715 = vmul.f32 1.0, %v4714
    %v4716 = vrcp.pop %v4697
    %v4717 = vmul.f32 1.0, %v4716
    %v4718 = vrcp.pop %v4698
    %v4719 = vmul.f32 1.0, %v4718
    %v4720 = vrcp.pop %v4699
    %v4721 = vmul.f32 1.0, %v4720
    %v4722 = vrcp.pop %v4700
    %v4723 = vmul.f32 1.0, %v4722
    %v4724 = vrcp.pop %v4701
    %v4725 = vmul.f32 1.0, %v4724
    %v4726 = vtanh.pop %v4644
    %v4727 = vtanh.pop %v4645
    %v4728 = vtanh.pop %v4652
    %v4729 = vtanh.pop %v4653
    %v4730 = vmul.f32 %v4707, %v4428
    %v4731 = vmul.f32 %v4709, %v4429
    %v4732 = vmul.f32 %v4719, %v4430
    %v4733 = vmul.f32 %v4721, %v4431
    %v4734 = vmul.f32 %v4703, %v4726
    %v4735 = vmul.f32 %v4705, %v4727
    %v4736 = vmul.f32 %v4715, %v4728
    %v4737 = vmul.f32 %v4717, %v4729
    %v4738 = vadd.f32 %v4730, %v4734
    %v4739 = vadd.f32 %v4731, %v4735
    %v4740 = vadd.f32 %v4732, %v4736
    %v4741 = vadd.f32 %v4733, %v4737
    %v4742 = vtanh.pop %v4738
    %v4743 = vtanh.pop %v4739
    %v4744 = vtanh.pop %v4740
    %v4745 = vtanh.pop %v4741
    %v4746 = vmul.f32 %v4711, %v4742
    %v4747 = vmul.f32 %v4713, %v4743
    %v4748 = vmul.f32 %v4723, %v4744
    %v4749 = vmul.f32 %v4725, %v4745
    %s4750 = smul.u32 4, 32
    %s4751 = smul.u32 %s4750, 8
    %s4752 = sshll.u32 %s4751, 4
    %4753 = dma.done [#allocation6], %s4752
    %v4754 = vld [vmem:[#allocation15] sm:$0xff]
    %v4756 = vlaneseq
    %v4757 = vshrl.u32 %v4756, 7
    %v4758 = vsub.s32 0, %v4757
    %v4759 = vrot.slane %v4754, %v4758
    %v4760 = vlaneseq
    %v4761 = vshrl.u32 %v4760, 7
    %v4762 = vsub.s32 1, %v4761
    %v4763 = vrot.slane %v4754, %v4762
    %v4764 = vlaneseq
    %v4765 = vshrl.u32 %v4764, 7
    %v4766 = vsub.s32 2, %v4765
    %v4767 = vrot.slane %v4754, %v4766
    %v4768 = vlaneseq
    %v4769 = vshrl.u32 %v4768, 7
    %v4770 = vsub.s32 3, %v4769
    %v4771 = vrot.slane %v4754, %v4770
    %v4772 = vlaneseq
    %v4773 = vshrl.u32 %v4772, 7
    %v4774 = vsub.s32 4, %v4773
    %v4775 = vrot.slane %v4754, %v4774
    %v4776 = vlaneseq
    %v4777 = vshrl.u32 %v4776, 7
    %v4778 = vsub.s32 5, %v4777
    %v4779 = vrot.slane %v4754, %v4778
    %v4780 = vlaneseq
    %v4781 = vshrl.u32 %v4780, 7
    %v4782 = vsub.s32 6, %v4781
    %v4783 = vrot.slane %v4754, %v4782
    %v4784 = vlaneseq
    %v4785 = vshrl.u32 %v4784, 7
    %v4786 = vsub.s32 7, %v4785
    %v4787 = vrot.slane %v4754, %v4786
    %v4796 = vpack.c.bf16 %v4748, %v4746
    %v4797 = vpack.c.bf16 %v4749, %v4747
    %v4798 = vld [vmem:[#allocation4] sm:$0xff]
    %v4799 = vld [vmem:[#allocation4 + $0x8] sm:$0xff]
    %v4800 = vld [vmem:[#allocation4 + $0x10] sm:$0xff]
    %v4801 = vld [vmem:[#allocation4 + $0x18] sm:$0xff]
    %v4802 = vld [vmem:[#allocation4 + $0x20] sm:$0xff]
    %v4803 = vld [vmem:[#allocation4 + $0x28] sm:$0xff]
    %v4804 = vld [vmem:[#allocation4 + $0x30] sm:$0xff]
    %v4805 = vld [vmem:[#allocation4 + $0x38] sm:$0xff]
    %v4806 = vld [vmem:[#allocation4 + $0x40] sm:$0xff]
    %v4807 = vld [vmem:[#allocation4 + $0x48] sm:$0xff]
    %v4808 = vld [vmem:[#allocation4 + $0x50] sm:$0xff]
    %v4809 = vld [vmem:[#allocation4 + $0x58] sm:$0xff]
    %v4810 = vld [vmem:[#allocation4 + $0x60] sm:$0xff]
    %v4811 = vld [vmem:[#allocation4 + $0x68] sm:$0xff]
    %v4812 = vld [vmem:[#allocation4 + $0x70] sm:$0xff]
    %v4813 = vld [vmem:[#allocation4 + $0x78] sm:$0xff]
    %v4814 = vld [vmem:[#allocation4 + $0x80] sm:$0xff]
    %v4815 = vld [vmem:[#allocation4 + $0x88] sm:$0xff]
    %v4816 = vld [vmem:[#allocation4 + $0x90] sm:$0xff]
    %v4817 = vld [vmem:[#allocation4 + $0x98] sm:$0xff]
    %v4818 = vld [vmem:[#allocation4 + $0xa0] sm:$0xff]
    %v4819 = vld [vmem:[#allocation4 + $0xa8] sm:$0xff]
    %v4820 = vld [vmem:[#allocation4 + $0xb0] sm:$0xff]
    %v4821 = vld [vmem:[#allocation4 + $0xb8] sm:$0xff]
    %v4822 = vld [vmem:[#allocation4 + $0xc0] sm:$0xff]
    %v4823 = vld [vmem:[#allocation4 + $0xc8] sm:$0xff]
    %v4824 = vld [vmem:[#allocation4 + $0xd0] sm:$0xff]
    %v4825 = vld [vmem:[#allocation4 + $0xd8] sm:$0xff]
    %v4826 = vld [vmem:[#allocation4 + $0xe0] sm:$0xff]
    %v4827 = vld [vmem:[#allocation4 + $0xe8] sm:$0xff]
    %v4828 = vld [vmem:[#allocation4 + $0xf0] sm:$0xff]
    %v4829 = vld [vmem:[#allocation4 + $0xf8] sm:$0xff]
    %v4830 = vld [vmem:[#allocation4 + $0x100] sm:$0xff]
    %v4831 = vld [vmem:[#allocation4 + $0x108] sm:$0xff]
    %v4832 = vld [vmem:[#allocation4 + $0x110] sm:$0xff]
    %v4833 = vld [vmem:[#allocation4 + $0x118] sm:$0xff]
    %v4834 = vld [vmem:[#allocation4 + $0x120] sm:$0xff]
    %v4835 = vld [vmem:[#allocation4 + $0x128] sm:$0xff]
    %v4836 = vld [vmem:[#allocation4 + $0x130] sm:$0xff]
    %v4837 = vld [vmem:[#allocation4 + $0x138] sm:$0xff]
    %v4838 = vld [vmem:[#allocation4 + $0x140] sm:$0xff]
    %v4839 = vld [vmem:[#allocation4 + $0x148] sm:$0xff]
    %v4840 = vld [vmem:[#allocation4 + $0x150] sm:$0xff]
    %v4841 = vld [vmem:[#allocation4 + $0x158] sm:$0xff]
    %v4842 = vld [vmem:[#allocation4 + $0x160] sm:$0xff]
    %v4843 = vld [vmem:[#allocation4 + $0x168] sm:$0xff]
    %v4844 = vld [vmem:[#allocation4 + $0x170] sm:$0xff]
    %v4845 = vld [vmem:[#allocation4 + $0x178] sm:$0xff]
    %v4846 = vld [vmem:[#allocation4 + $0x180] sm:$0xff]
    %v4847 = vld [vmem:[#allocation4 + $0x188] sm:$0xff]
    %v4848 = vld [vmem:[#allocation4 + $0x190] sm:$0xff]
    %v4849 = vld [vmem:[#allocation4 + $0x198] sm:$0xff]
    %v4850 = vld [vmem:[#allocation4 + $0x1a0] sm:$0xff]
    %v4851 = vld [vmem:[#allocation4 + $0x1a8] sm:$0xff]
    %v4852 = vld [vmem:[#allocation4 + $0x1b0] sm:$0xff]
    %v4853 = vld [vmem:[#allocation4 + $0x1b8] sm:$0xff]
    %v4854 = vld [vmem:[#allocation4 + $0x1c0] sm:$0xff]
    %v4855 = vld [vmem:[#allocation4 + $0x1c8] sm:$0xff]
    %v4856 = vld [vmem:[#allocation4 + $0x1d0] sm:$0xff]
    %v4857 = vld [vmem:[#allocation4 + $0x1d8] sm:$0xff]
    %v4858 = vld [vmem:[#allocation4 + $0x1e0] sm:$0xff]
    %v4859 = vld [vmem:[#allocation4 + $0x1e8] sm:$0xff]
    %v4860 = vld [vmem:[#allocation4 + $0x1f0] sm:$0xff]
    %v4861 = vld [vmem:[#allocation4 + $0x1f8] sm:$0xff]
    %v4862 = vld [vmem:[#allocation4 + $0x200] sm:$0xff]
    %v4863 = vld [vmem:[#allocation4 + $0x208] sm:$0xff]
    %v4864 = vld [vmem:[#allocation4 + $0x210] sm:$0xff]
    %v4865 = vld [vmem:[#allocation4 + $0x218] sm:$0xff]
    %v4866 = vld [vmem:[#allocation4 + $0x220] sm:$0xff]
    %v4867 = vld [vmem:[#allocation4 + $0x228] sm:$0xff]
    %v4868 = vld [vmem:[#allocation4 + $0x230] sm:$0xff]
    %v4869 = vld [vmem:[#allocation4 + $0x238] sm:$0xff]
    %v4870 = vld [vmem:[#allocation4 + $0x240] sm:$0xff]
    %v4871 = vld [vmem:[#allocation4 + $0x248] sm:$0xff]
    %v4872 = vld [vmem:[#allocation4 + $0x250] sm:$0xff]
    %v4873 = vld [vmem:[#allocation4 + $0x258] sm:$0xff]
    %v4874 = vld [vmem:[#allocation4 + $0x260] sm:$0xff]
    %v4875 = vld [vmem:[#allocation4 + $0x268] sm:$0xff]
    %v4876 = vld [vmem:[#allocation4 + $0x270] sm:$0xff]
    %v4877 = vld [vmem:[#allocation4 + $0x278] sm:$0xff]
    %v4878 = vld [vmem:[#allocation4 + $0x280] sm:$0xff]
    %v4879 = vld [vmem:[#allocation4 + $0x288] sm:$0xff]
    %v4880 = vld [vmem:[#allocation4 + $0x290] sm:$0xff]
    %v4881 = vld [vmem:[#allocation4 + $0x298] sm:$0xff]
    %v4882 = vld [vmem:[#allocation4 + $0x2a0] sm:$0xff]
    %v4883 = vld [vmem:[#allocation4 + $0x2a8] sm:$0xff]
    %v4884 = vld [vmem:[#allocation4 + $0x2b0] sm:$0xff]
    %v4885 = vld [vmem:[#allocation4 + $0x2b8] sm:$0xff]
    %v4886 = vld [vmem:[#allocation4 + $0x2c0] sm:$0xff]
    %v4887 = vld [vmem:[#allocation4 + $0x2c8] sm:$0xff]
    %v4888 = vld [vmem:[#allocation4 + $0x2d0] sm:$0xff]
    %v4889 = vld [vmem:[#allocation4 + $0x2d8] sm:$0xff]
    %v4890 = vld [vmem:[#allocation4 + $0x2e0] sm:$0xff]
    %v4891 = vld [vmem:[#allocation4 + $0x2e8] sm:$0xff]
    %v4892 = vld [vmem:[#allocation4 + $0x2f0] sm:$0xff]
    %v4893 = vld [vmem:[#allocation4 + $0x2f8] sm:$0xff]
    %v4894 = vld [vmem:[#allocation4 + $0x300] sm:$0xff]
    %v4895 = vld [vmem:[#allocation4 + $0x308] sm:$0xff]
    %v4896 = vld [vmem:[#allocation4 + $0x310] sm:$0xff]
    %v4897 = vld [vmem:[#allocation4 + $0x318] sm:$0xff]
    %v4898 = vld [vmem:[#allocation4 + $0x320] sm:$0xff]
    %v4899 = vld [vmem:[#allocation4 + $0x328] sm:$0xff]
    %v4900 = vld [vmem:[#allocation4 + $0x330] sm:$0xff]
    %v4901 = vld [vmem:[#allocation4 + $0x338] sm:$0xff]
    %v4902 = vld [vmem:[#allocation4 + $0x340] sm:$0xff]
    %v4903 = vld [vmem:[#allocation4 + $0x348] sm:$0xff]
    %v4904 = vld [vmem:[#allocation4 + $0x350] sm:$0xff]
    %v4905 = vld [vmem:[#allocation4 + $0x358] sm:$0xff]
    %v4906 = vld [vmem:[#allocation4 + $0x360] sm:$0xff]
    %v4907 = vld [vmem:[#allocation4 + $0x368] sm:$0xff]
    %v4908 = vld [vmem:[#allocation4 + $0x370] sm:$0xff]
    %v4909 = vld [vmem:[#allocation4 + $0x378] sm:$0xff]
    %v4910 = vld [vmem:[#allocation4 + $0x380] sm:$0xff]
    %v4911 = vld [vmem:[#allocation4 + $0x388] sm:$0xff]
    %v4912 = vld [vmem:[#allocation4 + $0x390] sm:$0xff]
    %v4913 = vld [vmem:[#allocation4 + $0x398] sm:$0xff]
    %v4914 = vld [vmem:[#allocation4 + $0x3a0] sm:$0xff]
    %v4915 = vld [vmem:[#allocation4 + $0x3a8] sm:$0xff]
    %v4916 = vld [vmem:[#allocation4 + $0x3b0] sm:$0xff]
    %v4917 = vld [vmem:[#allocation4 + $0x3b8] sm:$0xff]
    %v4918 = vld [vmem:[#allocation4 + $0x3c0] sm:$0xff]
    %v4919 = vld [vmem:[#allocation4 + $0x3c8] sm:$0xff]
    %v4920 = vld [vmem:[#allocation4 + $0x3d0] sm:$0xff]
    %v4921 = vld [vmem:[#allocation4 + $0x3d8] sm:$0xff]
    %v4922 = vld [vmem:[#allocation4 + $0x3e0] sm:$0xff]
    %v4923 = vld [vmem:[#allocation4 + $0x3e8] sm:$0xff]
    %v4924 = vld [vmem:[#allocation4 + $0x3f0] sm:$0xff]
    %v4925 = vld [vmem:[#allocation4 + $0x3f8] sm:$0xff]
    %v5054 = vunpack.c.l.b16 %v4798
    %v5055 = vunpack.c.h.b16 %v4798
    %v5056 = vunpack.c.l.b16 %v4799
    %v5057 = vunpack.c.h.b16 %v4799
    %v5058 = vunpack.c.l.b16 %v4800
    %v5059 = vunpack.c.h.b16 %v4800
    %v5060 = vunpack.c.l.b16 %v4801
    %v5061 = vunpack.c.h.b16 %v4801
    %v5062 = vunpack.c.l.b16 %v4802
    %v5063 = vunpack.c.h.b16 %v4802
    %v5064 = vunpack.c.l.b16 %v4803
    %v5065 = vunpack.c.h.b16 %v4803
    %v5066 = vunpack.c.l.b16 %v4804
    %v5067 = vunpack.c.h.b16 %v4804
    %v5068 = vunpack.c.l.b16 %v4805
    %v5069 = vunpack.c.h.b16 %v4805
    %v5070 = vunpack.c.l.b16 %v4806
    %v5071 = vunpack.c.h.b16 %v4806
    %v5072 = vunpack.c.l.b16 %v4807
    %v5073 = vunpack.c.h.b16 %v4807
    %v5074 = vunpack.c.l.b16 %v4808
    %v5075 = vunpack.c.h.b16 %v4808
    %v5076 = vunpack.c.l.b16 %v4809
    %v5077 = vunpack.c.h.b16 %v4809
    %v5078 = vunpack.c.l.b16 %v4810
    %v5079 = vunpack.c.h.b16 %v4810
    %v5080 = vunpack.c.l.b16 %v4811
    %v5081 = vunpack.c.h.b16 %v4811
    %v5082 = vunpack.c.l.b16 %v4812
    %v5083 = vunpack.c.h.b16 %v4812
    %v5084 = vunpack.c.l.b16 %v4813
    %v5085 = vunpack.c.h.b16 %v4813
    %v5086 = vunpack.c.l.b16 %v4814
    %v5087 = vunpack.c.h.b16 %v4814
    %v5088 = vunpack.c.l.b16 %v4815
    %v5089 = vunpack.c.h.b16 %v4815
    %v5090 = vunpack.c.l.b16 %v4816
    %v5091 = vunpack.c.h.b16 %v4816
    %v5092 = vunpack.c.l.b16 %v4817
    %v5093 = vunpack.c.h.b16 %v4817
    %v5094 = vunpack.c.l.b16 %v4818
    %v5095 = vunpack.c.h.b16 %v4818
    %v5096 = vunpack.c.l.b16 %v4819
    %v5097 = vunpack.c.h.b16 %v4819
    %v5098 = vunpack.c.l.b16 %v4820
    %v5099 = vunpack.c.h.b16 %v4820
    %v5100 = vunpack.c.l.b16 %v4821
    %v5101 = vunpack.c.h.b16 %v4821
    %v5102 = vunpack.c.l.b16 %v4822
    %v5103 = vunpack.c.h.b16 %v4822
    %v5104 = vunpack.c.l.b16 %v4823
    %v5105 = vunpack.c.h.b16 %v4823
    %v5106 = vunpack.c.l.b16 %v4824
    %v5107 = vunpack.c.h.b16 %v4824
    %v5108 = vunpack.c.l.b16 %v4825
    %v5109 = vunpack.c.h.b16 %v4825
    %v5110 = vunpack.c.l.b16 %v4826
    %v5111 = vunpack.c.h.b16 %v4826
    %v5112 = vunpack.c.l.b16 %v4827
    %v5113 = vunpack.c.h.b16 %v4827
    %v5114 = vunpack.c.l.b16 %v4828
    %v5115 = vunpack.c.h.b16 %v4828
    %v5116 = vunpack.c.l.b16 %v4829
    %v5117 = vunpack.c.h.b16 %v4829
    %v5118 = vunpack.c.l.b16 %v4830
    %v5119 = vunpack.c.h.b16 %v4830
    %v5120 = vunpack.c.l.b16 %v4831
    %v5121 = vunpack.c.h.b16 %v4831
    %v5122 = vunpack.c.l.b16 %v4832
    %v5123 = vunpack.c.h.b16 %v4832
    %v5124 = vunpack.c.l.b16 %v4833
    %v5125 = vunpack.c.h.b16 %v4833
    %v5126 = vunpack.c.l.b16 %v4834
    %v5127 = vunpack.c.h.b16 %v4834
    %v5128 = vunpack.c.l.b16 %v4835
    %v5129 = vunpack.c.h.b16 %v4835
    %v5130 = vunpack.c.l.b16 %v4836
    %v5131 = vunpack.c.h.b16 %v4836
    %v5132 = vunpack.c.l.b16 %v4837
    %v5133 = vunpack.c.h.b16 %v4837
    %v5134 = vunpack.c.l.b16 %v4838
    %v5135 = vunpack.c.h.b16 %v4838
    %v5136 = vunpack.c.l.b16 %v4839
    %v5137 = vunpack.c.h.b16 %v4839
    %v5138 = vunpack.c.l.b16 %v4840
    %v5139 = vunpack.c.h.b16 %v4840
    %v5140 = vunpack.c.l.b16 %v4841
    %v5141 = vunpack.c.h.b16 %v4841
    %v5142 = vunpack.c.l.b16 %v4842
    %v5143 = vunpack.c.h.b16 %v4842
    %v5144 = vunpack.c.l.b16 %v4843
    %v5145 = vunpack.c.h.b16 %v4843
    %v5146 = vunpack.c.l.b16 %v4844
    %v5147 = vunpack.c.h.b16 %v4844
    %v5148 = vunpack.c.l.b16 %v4845
    %v5149 = vunpack.c.h.b16 %v4845
    %v5150 = vunpack.c.l.b16 %v4846
    %v5151 = vunpack.c.h.b16 %v4846
    %v5152 = vunpack.c.l.b16 %v4847
    %v5153 = vunpack.c.h.b16 %v4847
    %v5154 = vunpack.c.l.b16 %v4848
    %v5155 = vunpack.c.h.b16 %v4848
    %v5156 = vunpack.c.l.b16 %v4849
    %v5157 = vunpack.c.h.b16 %v4849
    %v5158 = vunpack.c.l.b16 %v4850
    %v5159 = vunpack.c.h.b16 %v4850
    %v5160 = vunpack.c.l.b16 %v4851
    %v5161 = vunpack.c.h.b16 %v4851
    %v5162 = vunpack.c.l.b16 %v4852
    %v5163 = vunpack.c.h.b16 %v4852
    %v5164 = vunpack.c.l.b16 %v4853
    %v5165 = vunpack.c.h.b16 %v4853
    %v5166 = vunpack.c.l.b16 %v4854
    %v5167 = vunpack.c.h.b16 %v4854
    %v5168 = vunpack.c.l.b16 %v4855
    %v5169 = vunpack.c.h.b16 %v4855
    %v5170 = vunpack.c.l.b16 %v4856
    %v5171 = vunpack.c.h.b16 %v4856
    %v5172 = vunpack.c.l.b16 %v4857
    %v5173 = vunpack.c.h.b16 %v4857
    %v5174 = vunpack.c.l.b16 %v4858
    %v5175 = vunpack.c.h.b16 %v4858
    %v5176 = vunpack.c.l.b16 %v4859
    %v5177 = vunpack.c.h.b16 %v4859
    %v5178 = vunpack.c.l.b16 %v4860
    %v5179 = vunpack.c.h.b16 %v4860
    %v5180 = vunpack.c.l.b16 %v4861
    %v5181 = vunpack.c.h.b16 %v4861
    %v5182 = vunpack.c.l.b16 %v4862
    %v5183 = vunpack.c.h.b16 %v4862
    %v5184 = vunpack.c.l.b16 %v4863
    %v5185 = vunpack.c.h.b16 %v4863
    %v5186 = vunpack.c.l.b16 %v4864
    %v5187 = vunpack.c.h.b16 %v4864
    %v5188 = vunpack.c.l.b16 %v4865
    %v5189 = vunpack.c.h.b16 %v4865
    %v5190 = vunpack.c.l.b16 %v4866
    %v5191 = vunpack.c.h.b16 %v4866
    %v5192 = vunpack.c.l.b16 %v4867
    %v5193 = vunpack.c.h.b16 %v4867
    %v5194 = vunpack.c.l.b16 %v4868
    %v5195 = vunpack.c.h.b16 %v4868
    %v5196 = vunpack.c.l.b16 %v4869
    %v5197 = vunpack.c.h.b16 %v4869
    %v5198 = vunpack.c.l.b16 %v4870
    %v5199 = vunpack.c.h.b16 %v4870
    %v5200 = vunpack.c.l.b16 %v4871
    %v5201 = vunpack.c.h.b16 %v4871
    %v5202 = vunpack.c.l.b16 %v4872
    %v5203 = vunpack.c.h.b16 %v4872
    %v5204 = vunpack.c.l.b16 %v4873
    %v5205 = vunpack.c.h.b16 %v4873
    %v5206 = vunpack.c.l.b16 %v4874
    %v5207 = vunpack.c.h.b16 %v4874
    %v5208 = vunpack.c.l.b16 %v4875
    %v5209 = vunpack.c.h.b16 %v4875
    %v5210 = vunpack.c.l.b16 %v4876
    %v5211 = vunpack.c.h.b16 %v4876
    %v5212 = vunpack.c.l.b16 %v4877
    %v5213 = vunpack.c.h.b16 %v4877
    %v5214 = vunpack.c.l.b16 %v4878
    %v5215 = vunpack.c.h.b16 %v4878
    %v5216 = vunpack.c.l.b16 %v4879
    %v5217 = vunpack.c.h.b16 %v4879
    %v5218 = vunpack.c.l.b16 %v4880
    %v5219 = vunpack.c.h.b16 %v4880
    %v5220 = vunpack.c.l.b16 %v4881
    %v5221 = vunpack.c.h.b16 %v4881
    %v5222 = vunpack.c.l.b16 %v4882
    %v5223 = vunpack.c.h.b16 %v4882
    %v5224 = vunpack.c.l.b16 %v4883
    %v5225 = vunpack.c.h.b16 %v4883
    %v5226 = vunpack.c.l.b16 %v4884
    %v5227 = vunpack.c.h.b16 %v4884
    %v5228 = vunpack.c.l.b16 %v4885
    %v5229 = vunpack.c.h.b16 %v4885
    %v5230 = vunpack.c.l.b16 %v4886
    %v5231 = vunpack.c.h.b16 %v4886
    %v5232 = vunpack.c.l.b16 %v4887
    %v5233 = vunpack.c.h.b16 %v4887
    %v5234 = vunpack.c.l.b16 %v4888
    %v5235 = vunpack.c.h.b16 %v4888
    %v5236 = vunpack.c.l.b16 %v4889
    %v5237 = vunpack.c.h.b16 %v4889
    %v5238 = vunpack.c.l.b16 %v4890
    %v5239 = vunpack.c.h.b16 %v4890
    %v5240 = vunpack.c.l.b16 %v4891
    %v5241 = vunpack.c.h.b16 %v4891
    %v5242 = vunpack.c.l.b16 %v4892
    %v5243 = vunpack.c.h.b16 %v4892
    %v5244 = vunpack.c.l.b16 %v4893
    %v5245 = vunpack.c.h.b16 %v4893
    %v5246 = vunpack.c.l.b16 %v4894
    %v5247 = vunpack.c.h.b16 %v4894
    %v5248 = vunpack.c.l.b16 %v4895
    %v5249 = vunpack.c.h.b16 %v4895
    %v5250 = vunpack.c.l.b16 %v4896
    %v5251 = vunpack.c.h.b16 %v4896
    %v5252 = vunpack.c.l.b16 %v4897
    %v5253 = vunpack.c.h.b16 %v4897
    %v5254 = vunpack.c.l.b16 %v4898
    %v5255 = vunpack.c.h.b16 %v4898
    %v5256 = vunpack.c.l.b16 %v4899
    %v5257 = vunpack.c.h.b16 %v4899
    %v5258 = vunpack.c.l.b16 %v4900
    %v5259 = vunpack.c.h.b16 %v4900
    %v5260 = vunpack.c.l.b16 %v4901
    %v5261 = vunpack.c.h.b16 %v4901
    %v5262 = vunpack.c.l.b16 %v4902
    %v5263 = vunpack.c.h.b16 %v4902
    %v5264 = vunpack.c.l.b16 %v4903
    %v5265 = vunpack.c.h.b16 %v4903
    %v5266 = vunpack.c.l.b16 %v4904
    %v5267 = vunpack.c.h.b16 %v4904
    %v5268 = vunpack.c.l.b16 %v4905
    %v5269 = vunpack.c.h.b16 %v4905
    %v5270 = vunpack.c.l.b16 %v4906
    %v5271 = vunpack.c.h.b16 %v4906
    %v5272 = vunpack.c.l.b16 %v4907
    %v5273 = vunpack.c.h.b16 %v4907
    %v5274 = vunpack.c.l.b16 %v4908
    %v5275 = vunpack.c.h.b16 %v4908
    %v5276 = vunpack.c.l.b16 %v4909
    %v5277 = vunpack.c.h.b16 %v4909
    %v5278 = vunpack.c.l.b16 %v4910
    %v5279 = vunpack.c.h.b16 %v4910
    %v5280 = vunpack.c.l.b16 %v4911
    %v5281 = vunpack.c.h.b16 %v4911
    %v5282 = vunpack.c.l.b16 %v4912
    %v5283 = vunpack.c.h.b16 %v4912
    %v5284 = vunpack.c.l.b16 %v4913
    %v5285 = vunpack.c.h.b16 %v4913
    %v5286 = vunpack.c.l.b16 %v4914
    %v5287 = vunpack.c.h.b16 %v4914
    %v5288 = vunpack.c.l.b16 %v4915
    %v5289 = vunpack.c.h.b16 %v4915
    %v5290 = vunpack.c.l.b16 %v4916
    %v5291 = vunpack.c.h.b16 %v4916
    %v5292 = vunpack.c.l.b16 %v4917
    %v5293 = vunpack.c.h.b16 %v4917
    %v5294 = vunpack.c.l.b16 %v4918
    %v5295 = vunpack.c.h.b16 %v4918
    %v5296 = vunpack.c.l.b16 %v4919
    %v5297 = vunpack.c.h.b16 %v4919
    %v5298 = vunpack.c.l.b16 %v4920
    %v5299 = vunpack.c.h.b16 %v4920
    %v5300 = vunpack.c.l.b16 %v4921
    %v5301 = vunpack.c.h.b16 %v4921
    %v5302 = vunpack.c.l.b16 %v4922
    %v5303 = vunpack.c.h.b16 %v4922
    %v5304 = vunpack.c.l.b16 %v4923
    %v5305 = vunpack.c.h.b16 %v4923
    %v5306 = vunpack.c.l.b16 %v4924
    %v5307 = vunpack.c.h.b16 %v4924
    %v5308 = vunpack.c.l.b16 %v4925
    %v5309 = vunpack.c.h.b16 %v4925
    %v5310 = vpack.c.b16 %v5062, %v5054
    %v5311 = vpack.c.b16 %v5063, %v5055
    %v5312 = vpack.c.b16 %v5064, %v5056
    %v5313 = vpack.c.b16 %v5065, %v5057
    %v5314 = vpack.c.b16 %v5066, %v5058
    %v5315 = vpack.c.b16 %v5067, %v5059
    %v5316 = vpack.c.b16 %v5068, %v5060
    %v5317 = vpack.c.b16 %v5069, %v5061
    %v5318 = vpack.c.b16 %v5078, %v5070
    %v5319 = vpack.c.b16 %v5079, %v5071
    %v5320 = vpack.c.b16 %v5080, %v5072
    %v5321 = vpack.c.b16 %v5081, %v5073
    %v5322 = vpack.c.b16 %v5082, %v5074
    %v5323 = vpack.c.b16 %v5083, %v5075
    %v5324 = vpack.c.b16 %v5084, %v5076
    %v5325 = vpack.c.b16 %v5085, %v5077
    %v5326 = vpack.c.b16 %v5094, %v5086
    %v5327 = vpack.c.b16 %v5095, %v5087
    %v5328 = vpack.c.b16 %v5096, %v5088
    %v5329 = vpack.c.b16 %v5097, %v5089
    %v5330 = vpack.c.b16 %v5098, %v5090
    %v5331 = vpack.c.b16 %v5099, %v5091
    %v5332 = vpack.c.b16 %v5100, %v5092
    %v5333 = vpack.c.b16 %v5101, %v5093
    %v5334 = vpack.c.b16 %v5110, %v5102
    %v5335 = vpack.c.b16 %v5111, %v5103
    %v5336 = vpack.c.b16 %v5112, %v5104
    %v5337 = vpack.c.b16 %v5113, %v5105
    %v5338 = vpack.c.b16 %v5114, %v5106
    %v5339 = vpack.c.b16 %v5115, %v5107
    %v5340 = vpack.c.b16 %v5116, %v5108
    %v5341 = vpack.c.b16 %v5117, %v5109
    %v5342 = vpack.c.b16 %v5126, %v5118
    %v5343 = vpack.c.b16 %v5127, %v5119
    %v5344 = vpack.c.b16 %v5128, %v5120
    %v5345 = vpack.c.b16 %v5129, %v5121
    %v5346 = vpack.c.b16 %v5130, %v5122
    %v5347 = vpack.c.b16 %v5131, %v5123
    %v5348 = vpack.c.b16 %v5132, %v5124
    %v5349 = vpack.c.b16 %v5133, %v5125
    %v5350 = vpack.c.b16 %v5142, %v5134
    %v5351 = vpack.c.b16 %v5143, %v5135
    %v5352 = vpack.c.b16 %v5144, %v5136
    %v5353 = vpack.c.b16 %v5145, %v5137
    %v5354 = vpack.c.b16 %v5146, %v5138
    %v5355 = vpack.c.b16 %v5147, %v5139
    %v5356 = vpack.c.b16 %v5148, %v5140
    %v5357 = vpack.c.b16 %v5149, %v5141
    %v5358 = vpack.c.b16 %v5158, %v5150
    %v5359 = vpack.c.b16 %v5159, %v5151
    %v5360 = vpack.c.b16 %v5160, %v5152
    %v5361 = vpack.c.b16 %v5161, %v5153
    %v5362 = vpack.c.b16 %v5162, %v5154
    %v5363 = vpack.c.b16 %v5163, %v5155
    %v5364 = vpack.c.b16 %v5164, %v5156
    %v5365 = vpack.c.b16 %v5165, %v5157
    %v5366 = vpack.c.b16 %v5174, %v5166
    %v5367 = vpack.c.b16 %v5175, %v5167
    %v5368 = vpack.c.b16 %v5176, %v5168
    %v5369 = vpack.c.b16 %v5177, %v5169
    %v5370 = vpack.c.b16 %v5178, %v5170
    %v5371 = vpack.c.b16 %v5179, %v5171
    %v5372 = vpack.c.b16 %v5180, %v5172
    %v5373 = vpack.c.b16 %v5181, %v5173
    %v5374 = vpack.c.b16 %v5190, %v5182
    %v5375 = vpack.c.b16 %v5191, %v5183
    %v5376 = vpack.c.b16 %v5192, %v5184
    %v5377 = vpack.c.b16 %v5193, %v5185
    %v5378 = vpack.c.b16 %v5194, %v5186
    %v5379 = vpack.c.b16 %v5195, %v5187
    %v5380 = vpack.c.b16 %v5196, %v5188
    %v5381 = vpack.c.b16 %v5197, %v5189
    %v5382 = vpack.c.b16 %v5206, %v5198
    %v5383 = vpack.c.b16 %v5207, %v5199
    %v5384 = vpack.c.b16 %v5208, %v5200
    %v5385 = vpack.c.b16 %v5209, %v5201
    %v5386 = vpack.c.b16 %v5210, %v5202
    %v5387 = vpack.c.b16 %v5211, %v5203
    %v5388 = vpack.c.b16 %v5212, %v5204
    %v5389 = vpack.c.b16 %v5213, %v5205
    %v5390 = vpack.c.b16 %v5222, %v5214
    %v5391 = vpack.c.b16 %v5223, %v5215
    %v5392 = vpack.c.b16 %v5224, %v5216
    %v5393 = vpack.c.b16 %v5225, %v5217
    %v5394 = vpack.c.b16 %v5226, %v5218
    %v5395 = vpack.c.b16 %v5227, %v5219
    %v5396 = vpack.c.b16 %v5228, %v5220
    %v5397 = vpack.c.b16 %v5229, %v5221
    %v5398 = vpack.c.b16 %v5238, %v5230
    %v5399 = vpack.c.b16 %v5239, %v5231
    %v5400 = vpack.c.b16 %v5240, %v5232
    %v5401 = vpack.c.b16 %v5241, %v5233
    %v5402 = vpack.c.b16 %v5242, %v5234
    %v5403 = vpack.c.b16 %v5243, %v5235
    %v5404 = vpack.c.b16 %v5244, %v5236
    %v5405 = vpack.c.b16 %v5245, %v5237
    %v5406 = vpack.c.b16 %v5254, %v5246
    %v5407 = vpack.c.b16 %v5255, %v5247
    %v5408 = vpack.c.b16 %v5256, %v5248
    %v5409 = vpack.c.b16 %v5257, %v5249
    %v5410 = vpack.c.b16 %v5258, %v5250
    %v5411 = vpack.c.b16 %v5259, %v5251
    %v5412 = vpack.c.b16 %v5260, %v5252
    %v5413 = vpack.c.b16 %v5261, %v5253
    %v5414 = vpack.c.b16 %v5270, %v5262
    %v5415 = vpack.c.b16 %v5271, %v5263
    %v5416 = vpack.c.b16 %v5272, %v5264
    %v5417 = vpack.c.b16 %v5273, %v5265
    %v5418 = vpack.c.b16 %v5274, %v5266
    %v5419 = vpack.c.b16 %v5275, %v5267
    %v5420 = vpack.c.b16 %v5276, %v5268
    %v5421 = vpack.c.b16 %v5277, %v5269
    %v5422 = vpack.c.b16 %v5286, %v5278
    %v5423 = vpack.c.b16 %v5287, %v5279
    %v5424 = vpack.c.b16 %v5288, %v5280
    %v5425 = vpack.c.b16 %v5289, %v5281
    %v5426 = vpack.c.b16 %v5290, %v5282
    %v5427 = vpack.c.b16 %v5291, %v5283
    %v5428 = vpack.c.b16 %v5292, %v5284
    %v5429 = vpack.c.b16 %v5293, %v5285
    %v5430 = vpack.c.b16 %v5302, %v5294
    %v5431 = vpack.c.b16 %v5303, %v5295
    %v5432 = vpack.c.b16 %v5304, %v5296
    %v5433 = vpack.c.b16 %v5305, %v5297
    %v5434 = vpack.c.b16 %v5306, %v5298
    %v5435 = vpack.c.b16 %v5307, %v5299
    %v5436 = vpack.c.b16 %v5308, %v5300
    %v5437 = vpack.c.b16 %v5309, %v5301
    %5566 = vmatprep.subr.bf16.mxu0 %v5367
    %5567 = vmatpush1.bf16.msra.mxu0 %v5366
    %5568 = vmatprep.subr.bf16.mxu0 %v5359
    %5569 = vmatpush1.bf16.msra.mxu0 %v5358
    %5570 = vmatprep.subr.bf16.mxu0 %v5351
    %5571 = vmatpush1.bf16.msra.mxu0 %v5350
    %5572 = vmatprep.subr.bf16.mxu0 %v5343
    %5573 = vmatpush1.bf16.msra.mxu0 %v5342
    %5574 = vmatprep.subr.bf16.mxu0 %v5335
    %5575 = vmatpush1.bf16.msra.mxu0 %v5334
    %5576 = vmatprep.subr.bf16.mxu0 %v5327
    %5577 = vmatpush1.bf16.msra.mxu0 %v5326
    %5578 = vmatprep.subr.bf16.mxu0 %v5319
    %5579 = vmatpush1.bf16.msra.mxu0 %v5318
    %5580 = vmatprep.subr.bf16.mxu0 %v5311
    %5581 = vmatpush1.bf16.msra.mxu0 %v5310
    %5582 = vmatprep.subr.bf16.mxu0 %v5431
    %5583 = vmatpush2.bf16.msra.mxu0 %v5430
    %5584 = vmatprep.subr.bf16.mxu0 %v5423
    %5585 = vmatpush2.bf16.msra.mxu0 %v5422
    %5586 = vmatprep.subr.bf16.mxu0 %v5415
    %5587 = vmatpush2.bf16.msra.mxu0 %v5414
    %5588 = vmatprep.subr.bf16.mxu0 %v5407
    %5589 = vmatpush2.bf16.msra.mxu0 %v5406
    %5590 = vmatprep.subr.bf16.mxu0 %v5399
    %5591 = vmatpush2.bf16.msra.mxu0 %v5398
    %5592 = vmatprep.subr.bf16.mxu0 %v5391
    %5593 = vmatpush2.bf16.msra.mxu0 %v5390
    %5594 = vmatprep.subr.bf16.mxu0 %v5383
    %5595 = vmatpush2.bf16.msra.mxu0 %v5382
    %5596 = vmatprep.subr.bf16.mxu0 %v5375
    %5597 = vmatpush2.bf16.msra.mxu0 %v5374
    %5598 = vmatprep.mubr.bf16.mxu0 %v4797
    %5599 = vmatmul.mubr.bf16.gmra.mxu0 %v4796
    %v5600 = vpop.f32.mrf.mxu0
    %v5601 = vadd.f32 %v4759, %v5600
    %v5602 = vpop.f32.mrf.mxu0
    %v5603 = vadd.f32 %v4763, %v5602
    %v5604 = vpop.f32.mrf.mxu0
    %v5605 = vadd.f32 %v4759, %v5604
    %v5606 = vpop.f32.mrf.mxu0
    %v5607 = vadd.f32 %v4763, %v5606
    %5608 = vdwg.mxu0
    %5609 = vmatprep.subr.bf16.mxu0 %v5369
    %5610 = vmatpush1.bf16.msra.mxu0 %v5368
    %5611 = vmatprep.subr.bf16.mxu0 %v5361
    %5612 = vmatpush1.bf16.msra.mxu0 %v5360
    %5613 = vmatprep.subr.bf16.mxu0 %v5353
    %5614 = vmatpush1.bf16.msra.mxu0 %v5352
    %5615 = vmatprep.subr.bf16.mxu0 %v5345
    %5616 = vmatpush1.bf16.msra.mxu0 %v5344
    %5617 = vmatprep.subr.bf16.mxu0 %v5337
    %5618 = vmatpush1.bf16.msra.mxu0 %v5336
    %5619 = vmatprep.subr.bf16.mxu0 %v5329
    %5620 = vmatpush1.bf16.msra.mxu0 %v5328
    %5621 = vmatprep.subr.bf16.mxu0 %v5321
    %5622 = vmatpush1.bf16.msra.mxu0 %v5320
    %5623 = vmatprep.subr.bf16.mxu0 %v5313
    %5624 = vmatpush1.bf16.msra.mxu0 %v5312
    %5625 = vmatprep.subr.bf16.mxu0 %v5433
    %5626 = vmatpush2.bf16.msra.mxu0 %v5432
    %5627 = vmatprep.subr.bf16.mxu0 %v5425
    %5628 = vmatpush2.bf16.msra.mxu0 %v5424
    %5629 = vmatprep.subr.bf16.mxu0 %v5417
    %5630 = vmatpush2.bf16.msra.mxu0 %v5416
    %5631 = vmatprep.subr.bf16.mxu0 %v5409
    %5632 = vmatpush2.bf16.msra.mxu0 %v5408
    %5633 = vmatprep.subr.bf16.mxu0 %v5401
    %5634 = vmatpush2.bf16.msra.mxu0 %v5400
    %5635 = vmatprep.subr.bf16.mxu0 %v5393
    %5636 = vmatpush2.bf16.msra.mxu0 %v5392
    %5637 = vmatprep.subr.bf16.mxu0 %v5385
    %5638 = vmatpush2.bf16.msra.mxu0 %v5384
    %5639 = vmatprep.subr.bf16.mxu0 %v5377
    %5640 = vmatpush2.bf16.msra.mxu0 %v5376
    %5641 = vmatprep.mubr.bf16.mxu0 %v4797
    %5642 = vmatmul.mubr.bf16.gmra.mxu0 %v4796
    %v5643 = vpop.f32.mrf.mxu0
    %v5644 = vadd.f32 %v4767, %v5643
    %v5645 = vpop.f32.mrf.mxu0
    %v5646 = vadd.f32 %v4771, %v5645
    %v5647 = vpop.f32.mrf.mxu0
    %v5648 = vadd.f32 %v4767, %v5647
    %v5649 = vpop.f32.mrf.mxu0
    %v5650 = vadd.f32 %v4771, %v5649
    %5651 = vdwg.mxu0
    %5652 = vmatprep.subr.bf16.mxu0 %v5371
    %5653 = vmatpush1.bf16.msra.mxu0 %v5370
    %5654 = vmatprep.subr.bf16.mxu0 %v5363
    %5655 = vmatpush1.bf16.msra.mxu0 %v5362
    %5656 = vmatprep.subr.bf16.mxu0 %v5355
    %5657 = vmatpush1.bf16.msra.mxu0 %v5354
    %5658 = vmatprep.subr.bf16.mxu0 %v5347
    %5659 = vmatpush1.bf16.msra.mxu0 %v5346
    %5660 = vmatprep.subr.bf16.mxu0 %v5339
    %5661 = vmatpush1.bf16.msra.mxu0 %v5338
    %5662 = vmatprep.subr.bf16.mxu0 %v5331
    %5663 = vmatpush1.bf16.msra.mxu0 %v5330
    %5664 = vmatprep.subr.bf16.mxu0 %v5323
    %5665 = vmatpush1.bf16.msra.mxu0 %v5322
    %5666 = vmatprep.subr.bf16.mxu0 %v5315
    %5667 = vmatpush1.bf16.msra.mxu0 %v5314
    %5668 = vmatprep.subr.bf16.mxu0 %v5435
    %5669 = vmatpush2.bf16.msra.mxu0 %v5434
    %5670 = vmatprep.subr.bf16.mxu0 %v5427
    %5671 = vmatpush2.bf16.msra.mxu0 %v5426
    %5672 = vmatprep.subr.bf16.mxu0 %v5419
    %5673 = vmatpush2.bf16.msra.mxu0 %v5418
    %5674 = vmatprep.subr.bf16.mxu0 %v5411
    %5675 = vmatpush2.bf16.msra.mxu0 %v5410
    %5676 = vmatprep.subr.bf16.mxu0 %v5403
    %5677 = vmatpush2.bf16.msra.mxu0 %v5402
    %5678 = vmatprep.subr.bf16.mxu0 %v5395
    %5679 = vmatpush2.bf16.msra.mxu0 %v5394
    %5680 = vmatprep.subr.bf16.mxu0 %v5387
    %5681 = vmatpush2.bf16.msra.mxu0 %v5386
    %5682 = vmatprep.subr.bf16.mxu0 %v5379
    %5683 = vmatpush2.bf16.msra.mxu0 %v5378
    %5684 = vmatprep.mubr.bf16.mxu0 %v4797
    %5685 = vmatmul.mubr.bf16.gmra.mxu0 %v4796
    %v5686 = vpop.f32.mrf.mxu0
    %v5687 = vadd.f32 %v4775, %v5686
    %v5688 = vpop.f32.mrf.mxu0
    %v5689 = vadd.f32 %v4779, %v5688
    %v5690 = vpop.f32.mrf.mxu0
    %v5691 = vadd.f32 %v4775, %v5690
    %v5692 = vpop.f32.mrf.mxu0
    %v5693 = vadd.f32 %v4779, %v5692
    %5694 = vdwg.mxu0
    %5695 = vmatprep.subr.bf16.mxu0 %v5373
    %5696 = vmatpush1.bf16.msra.mxu0 %v5372
    %5697 = vmatprep.subr.bf16.mxu0 %v5365
    %5698 = vmatpush1.bf16.msra.mxu0 %v5364
    %5699 = vmatprep.subr.bf16.mxu0 %v5357
    %5700 = vmatpush1.bf16.msra.mxu0 %v5356
    %5701 = vmatprep.subr.bf16.mxu0 %v5349
    %5702 = vmatpush1.bf16.msra.mxu0 %v5348
    %5703 = vmatprep.subr.bf16.mxu0 %v5341
    %5704 = vmatpush1.bf16.msra.mxu0 %v5340
    %5705 = vmatprep.subr.bf16.mxu0 %v5333
    %5706 = vmatpush1.bf16.msra.mxu0 %v5332
    %5707 = vmatprep.subr.bf16.mxu0 %v5325
    %5708 = vmatpush1.bf16.msra.mxu0 %v5324
    %5709 = vmatprep.subr.bf16.mxu0 %v5317
    %5710 = vmatpush1.bf16.msra.mxu0 %v5316
    %5711 = vmatprep.subr.bf16.mxu0 %v5437
    %5712 = vmatpush2.bf16.msra.mxu0 %v5436
    %5713 = vmatprep.subr.bf16.mxu0 %v5429
    %5714 = vmatpush2.bf16.msra.mxu0 %v5428
    %5715 = vmatprep.subr.bf16.mxu0 %v5421
    %5716 = vmatpush2.bf16.msra.mxu0 %v5420
    %5717 = vmatprep.subr.bf16.mxu0 %v5413
    %5718 = vmatpush2.bf16.msra.mxu0 %v5412
    %5719 = vmatprep.subr.bf16.mxu0 %v5405
    %5720 = vmatpush2.bf16.msra.mxu0 %v5404
    %5721 = vmatprep.subr.bf16.mxu0 %v5397
    %5722 = vmatpush2.bf16.msra.mxu0 %v5396
    %5723 = vmatprep.subr.bf16.mxu0 %v5389
    %5724 = vmatpush2.bf16.msra.mxu0 %v5388
    %5725 = vmatprep.subr.bf16.mxu0 %v5381
    %5726 = vmatpush2.bf16.msra.mxu0 %v5380
    %5727 = vmatprep.mubr.bf16.mxu0 %v4797
    %5728 = vmatmul.mubr.bf16.gmra.mxu0 %v4796
    %v5729 = vpop.f32.mrf.mxu0
    %v5730 = vadd.f32 %v4783, %v5729
    %v5731 = vpop.f32.mrf.mxu0
    %v5732 = vadd.f32 %v4787, %v5731
    %v5733 = vpop.f32.mrf.mxu0
    %v5734 = vadd.f32 %v4783, %v5733
    %v5735 = vpop.f32.mrf.mxu0
    %v5736 = vadd.f32 %v4787, %v5735
    %5737 = vdwg.mxu0
    %v5738 = vxor.u32 %v5601, 2147483648
    %v5739 = vxor.u32 %v5603, 2147483648
    %v5740 = vxor.u32 %v5644, 2147483648
    %v5741 = vxor.u32 %v5646, 2147483648
    %v5742 = vxor.u32 %v5687, 2147483648
    %v5743 = vxor.u32 %v5689, 2147483648
    %v5744 = vxor.u32 %v5605, 2147483648
    %v5745 = vxor.u32 %v5607, 2147483648
    %v5746 = vxor.u32 %v5648, 2147483648
    %v5747 = vxor.u32 %v5650, 2147483648
    %v5748 = vxor.u32 %v5691, 2147483648
    %v5749 = vxor.u32 %v5693, 2147483648
    %v5750 = vmul.f32 %v5738, 1.442695
    %v5751 = vpow.pop %v5750
    %v5752 = vmul.f32 %v5739, 1.442695
    %v5753 = vpow.pop %v5752
    %v5754 = vmul.f32 %v5740, 1.442695
    %v5755 = vpow.pop %v5754
    %v5756 = vmul.f32 %v5741, 1.442695
    %v5757 = vpow.pop %v5756
    %v5758 = vmul.f32 %v5742, 1.442695
    %v5759 = vpow.pop %v5758
    %v5760 = vmul.f32 %v5743, 1.442695
    %v5761 = vpow.pop %v5760
    %v5762 = vmul.f32 %v5744, 1.442695
    %v5763 = vpow.pop %v5762
    %v5764 = vmul.f32 %v5745, 1.442695
    %v5765 = vpow.pop %v5764
    %v5766 = vmul.f32 %v5746, 1.442695
    %v5767 = vpow.pop %v5766
    %v5768 = vmul.f32 %v5747, 1.442695
    %v5769 = vpow.pop %v5768
    %v5770 = vmul.f32 %v5748, 1.442695
    %v5771 = vpow.pop %v5770
    %v5772 = vmul.f32 %v5749, 1.442695
    %v5773 = vpow.pop %v5772
    %v5774 = vadd.f32 %v5751, 1.0
    %v5775 = vadd.f32 %v5753, 1.0
    %v5776 = vadd.f32 %v5755, 1.0
    %v5777 = vadd.f32 %v5757, 1.0
    %v5778 = vadd.f32 %v5759, 1.0
    %v5779 = vadd.f32 %v5761, 1.0
    %v5780 = vadd.f32 %v5763, 1.0
    %v5781 = vadd.f32 %v5765, 1.0
    %v5782 = vadd.f32 %v5767, 1.0
    %v5783 = vadd.f32 %v5769, 1.0
    %v5784 = vadd.f32 %v5771, 1.0
    %v5785 = vadd.f32 %v5773, 1.0
    %v5786 = vrcp.pop %v5774
    %v5787 = vmul.f32 1.0, %v5786
    %v5788 = vrcp.pop %v5775
    %v5789 = vmul.f32 1.0, %v5788
    %v5790 = vrcp.pop %v5776
    %v5791 = vmul.f32 1.0, %v5790
    %v5792 = vrcp.pop %v5777
    %v5793 = vmul.f32 1.0, %v5792
    %v5794 = vrcp.pop %v5778
    %v5795 = vmul.f32 1.0, %v5794
    %v5796 = vrcp.pop %v5779
    %v5797 = vmul.f32 1.0, %v5796
    %v5798 = vrcp.pop %v5780
    %v5799 = vmul.f32 1.0, %v5798
    %v5800 = vrcp.pop %v5781
    %v5801 = vmul.f32 1.0, %v5800
    %v5802 = vrcp.pop %v5782
    %v5803 = vmul.f32 1.0, %v5802
    %v5804 = vrcp.pop %v5783
    %v5805 = vmul.f32 1.0, %v5804
    %v5806 = vrcp.pop %v5784
    %v5807 = vmul.f32 1.0, %v5806
    %v5808 = vrcp.pop %v5785
    %v5809 = vmul.f32 1.0, %v5808
    %v5810 = vtanh.pop %v5730
    %v5811 = vtanh.pop %v5732
    %v5812 = vtanh.pop %v5734
    %v5813 = vtanh.pop %v5736
    %v5814 = vmul.f32 %v5791, %v4738
    %v5815 = vmul.f32 %v5793, %v4739
    %v5816 = vmul.f32 %v5803, %v4740
    %v5817 = vmul.f32 %v5805, %v4741
    %v5818 = vmul.f32 %v5787, %v5810
    %v5819 = vmul.f32 %v5789, %v5811
    %v5820 = vmul.f32 %v5799, %v5812
    %v5821 = vmul.f32 %v5801, %v5813
    %v5822 = vadd.f32 %v5814, %v5818
    %v5823 = vadd.f32 %v5815, %v5819
    %v5824 = vadd.f32 %v5816, %v5820
    %v5825 = vadd.f32 %v5817, %v5821
    %v5826 = vtanh.pop %v5822
    %v5827 = vtanh.pop %v5823
    %v5828 = vtanh.pop %v5824
    %v5829 = vtanh.pop %v5825
    %v5830 = vmul.f32 %v5795, %v5826
    %v5831 = vmul.f32 %v5797, %v5827
    %v5832 = vmul.f32 %v5807, %v5828
    %v5833 = vmul.f32 %v5809, %v5829
    %v5834 = vpack.c.bf16 %v5832, %v5830
    %v5835 = vpack.c.bf16 %v5833, %v5831
    %v5838 = vunpack.c.l.b16 %v5834
    %v5839 = vunpack.c.l.b16 %v5835
    %v5840 = vunpack.c.h.b16 %v5834
    %v5841 = vunpack.c.h.b16 %v5835
    %v5842 = vpack.c.b16 %v5839, %v5838
    %v5843 = vpack.c.b16 %v5841, %v5840
    %5846 = vst [vmem:[#allocation3] sm:$0xff] %v5842
    %5847 = vst [vmem:[#allocation3 + $0x18] sm:$0xff] %v5843
    %v5848 = vld [vmem:[#allocation4] sm:$0xff]
    %v5849 = vld [vmem:[#allocation4 + $0x8] sm:$0xff]
    %v5850 = vld [vmem:[#allocation4 + $0x10] sm:$0xff]
    %v5851 = vld [vmem:[#allocation4 + $0x18] sm:$0xff]
    %v5852 = vld [vmem:[#allocation4 + $0x20] sm:$0xff]
    %v5853 = vld [vmem:[#allocation4 + $0x28] sm:$0xff]
    %v5854 = vld [vmem:[#allocation4 + $0x30] sm:$0xff]
    %v5855 = vld [vmem:[#allocation4 + $0x38] sm:$0xff]
    %v5856 = vld [vmem:[#allocation4 + $0x40] sm:$0xff]
    %v5857 = vld [vmem:[#allocation4 + $0x48] sm:$0xff]
    %v5858 = vld [vmem:[#allocation4 + $0x50] sm:$0xff]
    %v5859 = vld [vmem:[#allocation4 + $0x58] sm:$0xff]
    %v5860 = vld [vmem:[#allocation4 + $0x60] sm:$0xff]
    %v5861 = vld [vmem:[#allocation4 + $0x68] sm:$0xff]
    %v5862 = vld [vmem:[#allocation4 + $0x70] sm:$0xff]
    %v5863 = vld [vmem:[#allocation4 + $0x78] sm:$0xff]
    %v5864 = vld [vmem:[#allocation4 + $0x80] sm:$0xff]
    %v5865 = vld [vmem:[#allocation4 + $0x88] sm:$0xff]
    %v5866 = vld [vmem:[#allocation4 + $0x90] sm:$0xff]
    %v5867 = vld [vmem:[#allocation4 + $0x98] sm:$0xff]
    %v5868 = vld [vmem:[#allocation4 + $0xa0] sm:$0xff]
    %v5869 = vld [vmem:[#allocation4 + $0xa8] sm:$0xff]
    %v5870 = vld [vmem:[#allocation4 + $0xb0] sm:$0xff]
    %v5871 = vld [vmem:[#allocation4 + $0xb8] sm:$0xff]
    %v5872 = vld [vmem:[#allocation4 + $0xc0] sm:$0xff]
    %v5873 = vld [vmem:[#allocation4 + $0xc8] sm:$0xff]
    %v5874 = vld [vmem:[#allocation4 + $0xd0] sm:$0xff]
    %v5875 = vld [vmem:[#allocation4 + $0xd8] sm:$0xff]
    %v5876 = vld [vmem:[#allocation4 + $0xe0] sm:$0xff]
    %v5877 = vld [vmem:[#allocation4 + $0xe8] sm:$0xff]
    %v5878 = vld [vmem:[#allocation4 + $0xf0] sm:$0xff]
    %v5879 = vld [vmem:[#allocation4 + $0xf8] sm:$0xff]
    %v5880 = vld [vmem:[#allocation4 + $0x100] sm:$0xff]
    %v5881 = vld [vmem:[#allocation4 + $0x108] sm:$0xff]
    %v5882 = vld [vmem:[#allocation4 + $0x110] sm:$0xff]
    %v5883 = vld [vmem:[#allocation4 + $0x118] sm:$0xff]
    %v5884 = vld [vmem:[#allocation4 + $0x120] sm:$0xff]
    %v5885 = vld [vmem:[#allocation4 + $0x128] sm:$0xff]
    %v5886 = vld [vmem:[#allocation4 + $0x130] sm:$0xff]
    %v5887 = vld [vmem:[#allocation4 + $0x138] sm:$0xff]
    %v5888 = vld [vmem:[#allocation4 + $0x140] sm:$0xff]
    %v5889 = vld [vmem:[#allocation4 + $0x148] sm:$0xff]
    %v5890 = vld [vmem:[#allocation4 + $0x150] sm:$0xff]
    %v5891 = vld [vmem:[#allocation4 + $0x158] sm:$0xff]
    %v5892 = vld [vmem:[#allocation4 + $0x160] sm:$0xff]
    %v5893 = vld [vmem:[#allocation4 + $0x168] sm:$0xff]
    %v5894 = vld [vmem:[#allocation4 + $0x170] sm:$0xff]
    %v5895 = vld [vmem:[#allocation4 + $0x178] sm:$0xff]
    %v5896 = vld [vmem:[#allocation4 + $0x180] sm:$0xff]
    %v5897 = vld [vmem:[#allocation4 + $0x188] sm:$0xff]
    %v5898 = vld [vmem:[#allocation4 + $0x190] sm:$0xff]
    %v5899 = vld [vmem:[#allocation4 + $0x198] sm:$0xff]
    %v5900 = vld [vmem:[#allocation4 + $0x1a0] sm:$0xff]
    %v5901 = vld [vmem:[#allocation4 + $0x1a8] sm:$0xff]
    %v5902 = vld [vmem:[#allocation4 + $0x1b0] sm:$0xff]
    %v5903 = vld [vmem:[#allocation4 + $0x1b8] sm:$0xff]
    %v5904 = vld [vmem:[#allocation4 + $0x1c0] sm:$0xff]
    %v5905 = vld [vmem:[#allocation4 + $0x1c8] sm:$0xff]
    %v5906 = vld [vmem:[#allocation4 + $0x1d0] sm:$0xff]
    %v5907 = vld [vmem:[#allocation4 + $0x1d8] sm:$0xff]
    %v5908 = vld [vmem:[#allocation4 + $0x1e0] sm:$0xff]
    %v5909 = vld [vmem:[#allocation4 + $0x1e8] sm:$0xff]
    %v5910 = vld [vmem:[#allocation4 + $0x1f0] sm:$0xff]
    %v5911 = vld [vmem:[#allocation4 + $0x1f8] sm:$0xff]
    %v5912 = vld [vmem:[#allocation4 + $0x200] sm:$0xff]
    %v5913 = vld [vmem:[#allocation4 + $0x208] sm:$0xff]
    %v5914 = vld [vmem:[#allocation4 + $0x210] sm:$0xff]
    %v5915 = vld [vmem:[#allocation4 + $0x218] sm:$0xff]
    %v5916 = vld [vmem:[#allocation4 + $0x220] sm:$0xff]
    %v5917 = vld [vmem:[#allocation4 + $0x228] sm:$0xff]
    %v5918 = vld [vmem:[#allocation4 + $0x230] sm:$0xff]
    %v5919 = vld [vmem:[#allocation4 + $0x238] sm:$0xff]
    %v5920 = vld [vmem:[#allocation4 + $0x240] sm:$0xff]
    %v5921 = vld [vmem:[#allocation4 + $0x248] sm:$0xff]
    %v5922 = vld [vmem:[#allocation4 + $0x250] sm:$0xff]
    %v5923 = vld [vmem:[#allocation4 + $0x258] sm:$0xff]
    %v5924 = vld [vmem:[#allocation4 + $0x260] sm:$0xff]
    %v5925 = vld [vmem:[#allocation4 + $0x268] sm:$0xff]
    %v5926 = vld [vmem:[#allocation4 + $0x270] sm:$0xff]
    %v5927 = vld [vmem:[#allocation4 + $0x278] sm:$0xff]
    %v5928 = vld [vmem:[#allocation4 + $0x280] sm:$0xff]
    %v5929 = vld [vmem:[#allocation4 + $0x288] sm:$0xff]
    %v5930 = vld [vmem:[#allocation4 + $0x290] sm:$0xff]
    %v5931 = vld [vmem:[#allocation4 + $0x298] sm:$0xff]
    %v5932 = vld [vmem:[#allocation4 + $0x2a0] sm:$0xff]
    %v5933 = vld [vmem:[#allocation4 + $0x2a8] sm:$0xff]
    %v5934 = vld [vmem:[#allocation4 + $0x2b0] sm:$0xff]
    %v5935 = vld [vmem:[#allocation4 + $0x2b8] sm:$0xff]
    %v5936 = vld [vmem:[#allocation4 + $0x2c0] sm:$0xff]
    %v5937 = vld [vmem:[#allocation4 + $0x2c8] sm:$0xff]
    %v5938 = vld [vmem:[#allocation4 + $0x2d0] sm:$0xff]
    %v5939 = vld [vmem:[#allocation4 + $0x2d8] sm:$0xff]
    %v5940 = vld [vmem:[#allocation4 + $0x2e0] sm:$0xff]
    %v5941 = vld [vmem:[#allocation4 + $0x2e8] sm:$0xff]
    %v5942 = vld [vmem:[#allocation4 + $0x2f0] sm:$0xff]
    %v5943 = vld [vmem:[#allocation4 + $0x2f8] sm:$0xff]
    %v5944 = vld [vmem:[#allocation4 + $0x300] sm:$0xff]
    %v5945 = vld [vmem:[#allocation4 + $0x308] sm:$0xff]
    %v5946 = vld [vmem:[#allocation4 + $0x310] sm:$0xff]
    %v5947 = vld [vmem:[#allocation4 + $0x318] sm:$0xff]
    %v5948 = vld [vmem:[#allocation4 + $0x320] sm:$0xff]
    %v5949 = vld [vmem:[#allocation4 + $0x328] sm:$0xff]
    %v5950 = vld [vmem:[#allocation4 + $0x330] sm:$0xff]
    %v5951 = vld [vmem:[#allocation4 + $0x338] sm:$0xff]
    %v5952 = vld [vmem:[#allocation4 + $0x340] sm:$0xff]
    %v5953 = vld [vmem:[#allocation4 + $0x348] sm:$0xff]
    %v5954 = vld [vmem:[#allocation4 + $0x350] sm:$0xff]
    %v5955 = vld [vmem:[#allocation4 + $0x358] sm:$0xff]
    %v5956 = vld [vmem:[#allocation4 + $0x360] sm:$0xff]
    %v5957 = vld [vmem:[#allocation4 + $0x368] sm:$0xff]
    %v5958 = vld [vmem:[#allocation4 + $0x370] sm:$0xff]
    %v5959 = vld [vmem:[#allocation4 + $0x378] sm:$0xff]
    %v5960 = vld [vmem:[#allocation4 + $0x380] sm:$0xff]
    %v5961 = vld [vmem:[#allocation4 + $0x388] sm:$0xff]
    %v5962 = vld [vmem:[#allocation4 + $0x390] sm:$0xff]
    %v5963 = vld [vmem:[#allocation4 + $0x398] sm:$0xff]
    %v5964 = vld [vmem:[#allocation4 + $0x3a0] sm:$0xff]
    %v5965 = vld [vmem:[#allocation4 + $0x3a8] sm:$0xff]
    %v5966 = vld [vmem:[#allocation4 + $0x3b0] sm:$0xff]
    %v5967 = vld [vmem:[#allocation4 + $0x3b8] sm:$0xff]
    %v5968 = vld [vmem:[#allocation4 + $0x3c0] sm:$0xff]
    %v5969 = vld [vmem:[#allocation4 + $0x3c8] sm:$0xff]
    %v5970 = vld [vmem:[#allocation4 + $0x3d0] sm:$0xff]
    %v5971 = vld [vmem:[#allocation4 + $0x3d8] sm:$0xff]
    %v5972 = vld [vmem:[#allocation4 + $0x3e0] sm:$0xff]
    %v5973 = vld [vmem:[#allocation4 + $0x3e8] sm:$0xff]
    %v5974 = vld [vmem:[#allocation4 + $0x3f0] sm:$0xff]
    %v5975 = vld [vmem:[#allocation4 + $0x3f8] sm:$0xff]
    %v6104 = vunpack.c.l.b16 %v5848
    %v6105 = vunpack.c.h.b16 %v5848
    %v6106 = vunpack.c.l.b16 %v5849
    %v6107 = vunpack.c.h.b16 %v5849
    %v6108 = vunpack.c.l.b16 %v5850
    %v6109 = vunpack.c.h.b16 %v5850
    %v6110 = vunpack.c.l.b16 %v5851
    %v6111 = vunpack.c.h.b16 %v5851
    %v6112 = vunpack.c.l.b16 %v5852
    %v6113 = vunpack.c.h.b16 %v5852
    %v6114 = vunpack.c.l.b16 %v5853
    %v6115 = vunpack.c.h.b16 %v5853
    %v6116 = vunpack.c.l.b16 %v5854
    %v6117 = vunpack.c.h.b16 %v5854
    %v6118 = vunpack.c.l.b16 %v5855
    %v6119 = vunpack.c.h.b16 %v5855
    %v6120 = vunpack.c.l.b16 %v5856
    %v6121 = vunpack.c.h.b16 %v5856
    %v6122 = vunpack.c.l.b16 %v5857
    %v6123 = vunpack.c.h.b16 %v5857
    %v6124 = vunpack.c.l.b16 %v5858
    %v6125 = vunpack.c.h.b16 %v5858
    %v6126 = vunpack.c.l.b16 %v5859
    %v6127 = vunpack.c.h.b16 %v5859
    %v6128 = vunpack.c.l.b16 %v5860
    %v6129 = vunpack.c.h.b16 %v5860
    %v6130 = vunpack.c.l.b16 %v5861
    %v6131 = vunpack.c.h.b16 %v5861
    %v6132 = vunpack.c.l.b16 %v5862
    %v6133 = vunpack.c.h.b16 %v5862
    %v6134 = vunpack.c.l.b16 %v5863
    %v6135 = vunpack.c.h.b16 %v5863
    %v6136 = vunpack.c.l.b16 %v5864
    %v6137 = vunpack.c.h.b16 %v5864
    %v6138 = vunpack.c.l.b16 %v5865
    %v6139 = vunpack.c.h.b16 %v5865
    %v6140 = vunpack.c.l.b16 %v5866
    %v6141 = vunpack.c.h.b16 %v5866
    %v6142 = vunpack.c.l.b16 %v5867
    %v6143 = vunpack.c.h.b16 %v5867
    %v6144 = vunpack.c.l.b16 %v5868
    %v6145 = vunpack.c.h.b16 %v5868
    %v6146 = vunpack.c.l.b16 %v5869
    %v6147 = vunpack.c.h.b16 %v5869
    %v6148 = vunpack.c.l.b16 %v5870
    %v6149 = vunpack.c.h.b16 %v5870
    %v6150 = vunpack.c.l.b16 %v5871
    %v6151 = vunpack.c.h.b16 %v5871
    %v6152 = vunpack.c.l.b16 %v5872
    %v6153 = vunpack.c.h.b16 %v5872
    %v6154 = vunpack.c.l.b16 %v5873
    %v6155 = vunpack.c.h.b16 %v5873
    %v6156 = vunpack.c.l.b16 %v5874
    %v6157 = vunpack.c.h.b16 %v5874
    %v6158 = vunpack.c.l.b16 %v5875
    %v6159 = vunpack.c.h.b16 %v5875
    %v6160 = vunpack.c.l.b16 %v5876
    %v6161 = vunpack.c.h.b16 %v5876
    %v6162 = vunpack.c.l.b16 %v5877
    %v6163 = vunpack.c.h.b16 %v5877
    %v6164 = vunpack.c.l.b16 %v5878
    %v6165 = vunpack.c.h.b16 %v5878
    %v6166 = vunpack.c.l.b16 %v5879
    %v6167 = vunpack.c.h.b16 %v5879
    %v6168 = vunpack.c.l.b16 %v5880
    %v6169 = vunpack.c.h.b16 %v5880
    %v6170 = vunpack.c.l.b16 %v5881
    %v6171 = vunpack.c.h.b16 %v5881
    %v6172 = vunpack.c.l.b16 %v5882
    %v6173 = vunpack.c.h.b16 %v5882
    %v6174 = vunpack.c.l.b16 %v5883
    %v6175 = vunpack.c.h.b16 %v5883
    %v6176 = vunpack.c.l.b16 %v5884
    %v6177 = vunpack.c.h.b16 %v5884
    %v6178 = vunpack.c.l.b16 %v5885
    %v6179 = vunpack.c.h.b16 %v5885
    %v6180 = vunpack.c.l.b16 %v5886
    %v6181 = vunpack.c.h.b16 %v5886
    %v6182 = vunpack.c.l.b16 %v5887
    %v6183 = vunpack.c.h.b16 %v5887
    %v6184 = vunpack.c.l.b16 %v5888
    %v6185 = vunpack.c.h.b16 %v5888
    %v6186 = vunpack.c.l.b16 %v5889
    %v6187 = vunpack.c.h.b16 %v5889
    %v6188 = vunpack.c.l.b16 %v5890
    %v6189 = vunpack.c.h.b16 %v5890
    %v6190 = vunpack.c.l.b16 %v5891
    %v6191 = vunpack.c.h.b16 %v5891
    %v6192 = vunpack.c.l.b16 %v5892
    %v6193 = vunpack.c.h.b16 %v5892
    %v6194 = vunpack.c.l.b16 %v5893
    %v6195 = vunpack.c.h.b16 %v5893
    %v6196 = vunpack.c.l.b16 %v5894
    %v6197 = vunpack.c.h.b16 %v5894
    %v6198 = vunpack.c.l.b16 %v5895
    %v6199 = vunpack.c.h.b16 %v5895
    %v6200 = vunpack.c.l.b16 %v5896
    %v6201 = vunpack.c.h.b16 %v5896
    %v6202 = vunpack.c.l.b16 %v5897
    %v6203 = vunpack.c.h.b16 %v5897
    %v6204 = vunpack.c.l.b16 %v5898
    %v6205 = vunpack.c.h.b16 %v5898
    %v6206 = vunpack.c.l.b16 %v5899
    %v6207 = vunpack.c.h.b16 %v5899
    %v6208 = vunpack.c.l.b16 %v5900
    %v6209 = vunpack.c.h.b16 %v5900
    %v6210 = vunpack.c.l.b16 %v5901
    %v6211 = vunpack.c.h.b16 %v5901
    %v6212 = vunpack.c.l.b16 %v5902
    %v6213 = vunpack.c.h.b16 %v5902
    %v6214 = vunpack.c.l.b16 %v5903
    %v6215 = vunpack.c.h.b16 %v5903
    %v6216 = vunpack.c.l.b16 %v5904
    %v6217 = vunpack.c.h.b16 %v5904
    %v6218 = vunpack.c.l.b16 %v5905
    %v6219 = vunpack.c.h.b16 %v5905
    %v6220 = vunpack.c.l.b16 %v5906
    %v6221 = vunpack.c.h.b16 %v5906
    %v6222 = vunpack.c.l.b16 %v5907
    %v6223 = vunpack.c.h.b16 %v5907
    %v6224 = vunpack.c.l.b16 %v5908
    %v6225 = vunpack.c.h.b16 %v5908
    %v6226 = vunpack.c.l.b16 %v5909
    %v6227 = vunpack.c.h.b16 %v5909
    %v6228 = vunpack.c.l.b16 %v5910
    %v6229 = vunpack.c.h.b16 %v5910
    %v6230 = vunpack.c.l.b16 %v5911
    %v6231 = vunpack.c.h.b16 %v5911
    %v6232 = vunpack.c.l.b16 %v5912
    %v6233 = vunpack.c.h.b16 %v5912
    %v6234 = vunpack.c.l.b16 %v5913
    %v6235 = vunpack.c.h.b16 %v5913
    %v6236 = vunpack.c.l.b16 %v5914
    %v6237 = vunpack.c.h.b16 %v5914
    %v6238 = vunpack.c.l.b16 %v5915
    %v6239 = vunpack.c.h.b16 %v5915
    %v6240 = vunpack.c.l.b16 %v5916
    %v6241 = vunpack.c.h.b16 %v5916
    %v6242 = vunpack.c.l.b16 %v5917
    %v6243 = vunpack.c.h.b16 %v5917
    %v6244 = vunpack.c.l.b16 %v5918
    %v6245 = vunpack.c.h.b16 %v5918
    %v6246 = vunpack.c.l.b16 %v5919
    %v6247 = vunpack.c.h.b16 %v5919
    %v6248 = vunpack.c.l.b16 %v5920
    %v6249 = vunpack.c.h.b16 %v5920
    %v6250 = vunpack.c.l.b16 %v5921
    %v6251 = vunpack.c.h.b16 %v5921
    %v6252 = vunpack.c.l.b16 %v5922
    %v6253 = vunpack.c.h.b16 %v5922
    %v6254 = vunpack.c.l.b16 %v5923
    %v6255 = vunpack.c.h.b16 %v5923
    %v6256 = vunpack.c.l.b16 %v5924
    %v6257 = vunpack.c.h.b16 %v5924
    %v6258 = vunpack.c.l.b16 %v5925
    %v6259 = vunpack.c.h.b16 %v5925
    %v6260 = vunpack.c.l.b16 %v5926
    %v6261 = vunpack.c.h.b16 %v5926
    %v6262 = vunpack.c.l.b16 %v5927
    %v6263 = vunpack.c.h.b16 %v5927
    %v6264 = vunpack.c.l.b16 %v5928
    %v6265 = vunpack.c.h.b16 %v5928
    %v6266 = vunpack.c.l.b16 %v5929
    %v6267 = vunpack.c.h.b16 %v5929
    %v6268 = vunpack.c.l.b16 %v5930
    %v6269 = vunpack.c.h.b16 %v5930
    %v6270 = vunpack.c.l.b16 %v5931
    %v6271 = vunpack.c.h.b16 %v5931
    %v6272 = vunpack.c.l.b16 %v5932
    %v6273 = vunpack.c.h.b16 %v5932
    %v6274 = vunpack.c.l.b16 %v5933
    %v6275 = vunpack.c.h.b16 %v5933
    %v6276 = vunpack.c.l.b16 %v5934
    %v6277 = vunpack.c.h.b16 %v5934
    %v6278 = vunpack.c.l.b16 %v5935
    %v6279 = vunpack.c.h.b16 %v5935
    %v6280 = vunpack.c.l.b16 %v5936
    %v6281 = vunpack.c.h.b16 %v5936
    %v6282 = vunpack.c.l.b16 %v5937
    %v6283 = vunpack.c.h.b16 %v5937
    %v6284 = vunpack.c.l.b16 %v5938
    %v6285 = vunpack.c.h.b16 %v5938
    %v6286 = vunpack.c.l.b16 %v5939
    %v6287 = vunpack.c.h.b16 %v5939
    %v6288 = vunpack.c.l.b16 %v5940
    %v6289 = vunpack.c.h.b16 %v5940
    %v6290 = vunpack.c.l.b16 %v5941
    %v6291 = vunpack.c.h.b16 %v5941
    %v6292 = vunpack.c.l.b16 %v5942
    %v6293 = vunpack.c.h.b16 %v5942
    %v6294 = vunpack.c.l.b16 %v5943
    %v6295 = vunpack.c.h.b16 %v5943
    %v6296 = vunpack.c.l.b16 %v5944
    %v6297 = vunpack.c.h.b16 %v5944
    %v6298 = vunpack.c.l.b16 %v5945
    %v6299 = vunpack.c.h.b16 %v5945
    %v6300 = vunpack.c.l.b16 %v5946
    %v6301 = vunpack.c.h.b16 %v5946
    %v6302 = vunpack.c.l.b16 %v5947
    %v6303 = vunpack.c.h.b16 %v5947
    %v6304 = vunpack.c.l.b16 %v5948
    %v6305 = vunpack.c.h.b16 %v5948
    %v6306 = vunpack.c.l.b16 %v5949
    %v6307 = vunpack.c.h.b16 %v5949
    %v6308 = vunpack.c.l.b16 %v5950
    %v6309 = vunpack.c.h.b16 %v5950
    %v6310 = vunpack.c.l.b16 %v5951
    %v6311 = vunpack.c.h.b16 %v5951
    %v6312 = vunpack.c.l.b16 %v5952
    %v6313 = vunpack.c.h.b16 %v5952
    %v6314 = vunpack.c.l.b16 %v5953
    %v6315 = vunpack.c.h.b16 %v5953
    %v6316 = vunpack.c.l.b16 %v5954
    %v6317 = vunpack.c.h.b16 %v5954
    %v6318 = vunpack.c.l.b16 %v5955
    %v6319 = vunpack.c.h.b16 %v5955
    %v6320 = vunpack.c.l.b16 %v5956
    %v6321 = vunpack.c.h.b16 %v5956
    %v6322 = vunpack.c.l.b16 %v5957
    %v6323 = vunpack.c.h.b16 %v5957
    %v6324 = vunpack.c.l.b16 %v5958
    %v6325 = vunpack.c.h.b16 %v5958
    %v6326 = vunpack.c.l.b16 %v5959
    %v6327 = vunpack.c.h.b16 %v5959
    %v6328 = vunpack.c.l.b16 %v5960
    %v6329 = vunpack.c.h.b16 %v5960
    %v6330 = vunpack.c.l.b16 %v5961
    %v6331 = vunpack.c.h.b16 %v5961
    %v6332 = vunpack.c.l.b16 %v5962
    %v6333 = vunpack.c.h.b16 %v5962
    %v6334 = vunpack.c.l.b16 %v5963
    %v6335 = vunpack.c.h.b16 %v5963
    %v6336 = vunpack.c.l.b16 %v5964
    %v6337 = vunpack.c.h.b16 %v5964
    %v6338 = vunpack.c.l.b16 %v5965
    %v6339 = vunpack.c.h.b16 %v5965
    %v6340 = vunpack.c.l.b16 %v5966
    %v6341 = vunpack.c.h.b16 %v5966
    %v6342 = vunpack.c.l.b16 %v5967
    %v6343 = vunpack.c.h.b16 %v5967
    %v6344 = vunpack.c.l.b16 %v5968
    %v6345 = vunpack.c.h.b16 %v5968
    %v6346 = vunpack.c.l.b16 %v5969
    %v6347 = vunpack.c.h.b16 %v5969
    %v6348 = vunpack.c.l.b16 %v5970
    %v6349 = vunpack.c.h.b16 %v5970
    %v6350 = vunpack.c.l.b16 %v5971
    %v6351 = vunpack.c.h.b16 %v5971
    %v6352 = vunpack.c.l.b16 %v5972
    %v6353 = vunpack.c.h.b16 %v5972
    %v6354 = vunpack.c.l.b16 %v5973
    %v6355 = vunpack.c.h.b16 %v5973
    %v6356 = vunpack.c.l.b16 %v5974
    %v6357 = vunpack.c.h.b16 %v5974
    %v6358 = vunpack.c.l.b16 %v5975
    %v6359 = vunpack.c.h.b16 %v5975
    %v6360 = vpack.c.b16 %v6112, %v6104
    %v6361 = vpack.c.b16 %v6113, %v6105
    %v6362 = vpack.c.b16 %v6114, %v6106
    %v6363 = vpack.c.b16 %v6115, %v6107
    %v6364 = vpack.c.b16 %v6116, %v6108
    %v6365 = vpack.c.b16 %v6117, %v6109
    %v6366 = vpack.c.b16 %v6118, %v6110
    %v6367 = vpack.c.b16 %v6119, %v6111
    %v6368 = vpack.c.b16 %v6128, %v6120
    %v6369 = vpack.c.b16 %v6129, %v6121
    %v6370 = vpack.c.b16 %v6130, %v6122
    %v6371 = vpack.c.b16 %v6131, %v6123
    %v6372 = vpack.c.b16 %v6132, %v6124
    %v6373 = vpack.c.b16 %v6133, %v6125
    %v6374 = vpack.c.b16 %v6134, %v6126
    %v6375 = vpack.c.b16 %v6135, %v6127
    %v6376 = vpack.c.b16 %v6144, %v6136
    %v6377 = vpack.c.b16 %v6145, %v6137
    %v6378 = vpack.c.b16 %v6146, %v6138
    %v6379 = vpack.c.b16 %v6147, %v6139
    %v6380 = vpack.c.b16 %v6148, %v6140
    %v6381 = vpack.c.b16 %v6149, %v6141
    %v6382 = vpack.c.b16 %v6150, %v6142
    %v6383 = vpack.c.b16 %v6151, %v6143
    %v6384 = vpack.c.b16 %v6160, %v6152
    %v6385 = vpack.c.b16 %v6161, %v6153
    %v6386 = vpack.c.b16 %v6162, %v6154
    %v6387 = vpack.c.b16 %v6163, %v6155
    %v6388 = vpack.c.b16 %v6164, %v6156
    %v6389 = vpack.c.b16 %v6165, %v6157
    %v6390 = vpack.c.b16 %v6166, %v6158
    %v6391 = vpack.c.b16 %v6167, %v6159
    %v6392 = vpack.c.b16 %v6176, %v6168
    %v6393 = vpack.c.b16 %v6177, %v6169
    %v6394 = vpack.c.b16 %v6178, %v6170
    %v6395 = vpack.c.b16 %v6179, %v6171
    %v6396 = vpack.c.b16 %v6180, %v6172
    %v6397 = vpack.c.b16 %v6181, %v6173
    %v6398 = vpack.c.b16 %v6182, %v6174
    %v6399 = vpack.c.b16 %v6183, %v6175
    %v6400 = vpack.c.b16 %v6192, %v6184
    %v6401 = vpack.c.b16 %v6193, %v6185
    %v6402 = vpack.c.b16 %v6194, %v6186
    %v6403 = vpack.c.b16 %v6195, %v6187
    %v6404 = vpack.c.b16 %v6196, %v6188
    %v6405 = vpack.c.b16 %v6197, %v6189
    %v6406 = vpack.c.b16 %v6198, %v6190
    %v6407 = vpack.c.b16 %v6199, %v6191
    %v6408 = vpack.c.b16 %v6208, %v6200
    %v6409 = vpack.c.b16 %v6209, %v6201
    %v6410 = vpack.c.b16 %v6210, %v6202
    %v6411 = vpack.c.b16 %v6211, %v6203
    %v6412 = vpack.c.b16 %v6212, %v6204
    %v6413 = vpack.c.b16 %v6213, %v6205
    %v6414 = vpack.c.b16 %v6214, %v6206
    %v6415 = vpack.c.b16 %v6215, %v6207
    %v6416 = vpack.c.b16 %v6224, %v6216
    %v6417 = vpack.c.b16 %v6225, %v6217
    %v6418 = vpack.c.b16 %v6226, %v6218
    %v6419 = vpack.c.b16 %v6227, %v6219
    %v6420 = vpack.c.b16 %v6228, %v6220
    %v6421 = vpack.c.b16 %v6229, %v6221
    %v6422 = vpack.c.b16 %v6230, %v6222
    %v6423 = vpack.c.b16 %v6231, %v6223
    %v6424 = vpack.c.b16 %v6240, %v6232
    %v6425 = vpack.c.b16 %v6241, %v6233
    %v6426 = vpack.c.b16 %v6242, %v6234
    %v6427 = vpack.c.b16 %v6243, %v6235
    %v6428 = vpack.c.b16 %v6244, %v6236
    %v6429 = vpack.c.b16 %v6245, %v6237
    %v6430 = vpack.c.b16 %v6246, %v6238
    %v6431 = vpack.c.b16 %v6247, %v6239
    %v6432 = vpack.c.b16 %v6256, %v6248
    %v6433 = vpack.c.b16 %v6257, %v6249
    %v6434 = vpack.c.b16 %v6258, %v6250
    %v6435 = vpack.c.b16 %v6259, %v6251
    %v6436 = vpack.c.b16 %v6260, %v6252
    %v6437 = vpack.c.b16 %v6261, %v6253
    %v6438 = vpack.c.b16 %v6262, %v6254
    %v6439 = vpack.c.b16 %v6263, %v6255
    %v6440 = vpack.c.b16 %v6272, %v6264
    %v6441 = vpack.c.b16 %v6273, %v6265
    %v6442 = vpack.c.b16 %v6274, %v6266
    %v6443 = vpack.c.b16 %v6275, %v6267
    %v6444 = vpack.c.b16 %v6276, %v6268
    %v6445 = vpack.c.b16 %v6277, %v6269
    %v6446 = vpack.c.b16 %v6278, %v6270
    %v6447 = vpack.c.b16 %v6279, %v6271
    %v6448 = vpack.c.b16 %v6288, %v6280
    %v6449 = vpack.c.b16 %v6289, %v6281
    %v6450 = vpack.c.b16 %v6290, %v6282
    %v6451 = vpack.c.b16 %v6291, %v6283
    %v6452 = vpack.c.b16 %v6292, %v6284
    %v6453 = vpack.c.b16 %v6293, %v6285
    %v6454 = vpack.c.b16 %v6294, %v6286
    %v6455 = vpack.c.b16 %v6295, %v6287
    %v6456 = vpack.c.b16 %v6304, %v6296
    %v6457 = vpack.c.b16 %v6305, %v6297
    %v6458 = vpack.c.b16 %v6306, %v6298
    %v6459 = vpack.c.b16 %v6307, %v6299
    %v6460 = vpack.c.b16 %v6308, %v6300
    %v6461 = vpack.c.b16 %v6309, %v6301
    %v6462 = vpack.c.b16 %v6310, %v6302
    %v6463 = vpack.c.b16 %v6311, %v6303
    %v6464 = vpack.c.b16 %v6320, %v6312
    %v6465 = vpack.c.b16 %v6321, %v6313
    %v6466 = vpack.c.b16 %v6322, %v6314
    %v6467 = vpack.c.b16 %v6323, %v6315
    %v6468 = vpack.c.b16 %v6324, %v6316
    %v6469 = vpack.c.b16 %v6325, %v6317
    %v6470 = vpack.c.b16 %v6326, %v6318
    %v6471 = vpack.c.b16 %v6327, %v6319
    %v6472 = vpack.c.b16 %v6336, %v6328
    %v6473 = vpack.c.b16 %v6337, %v6329
    %v6474 = vpack.c.b16 %v6338, %v6330
    %v6475 = vpack.c.b16 %v6339, %v6331
    %v6476 = vpack.c.b16 %v6340, %v6332
    %v6477 = vpack.c.b16 %v6341, %v6333
    %v6478 = vpack.c.b16 %v6342, %v6334
    %v6479 = vpack.c.b16 %v6343, %v6335
    %v6480 = vpack.c.b16 %v6352, %v6344
    %v6481 = vpack.c.b16 %v6353, %v6345
    %v6482 = vpack.c.b16 %v6354, %v6346
    %v6483 = vpack.c.b16 %v6355, %v6347
    %v6484 = vpack.c.b16 %v6356, %v6348
    %v6485 = vpack.c.b16 %v6357, %v6349
    %v6486 = vpack.c.b16 %v6358, %v6350
    %v6487 = vpack.c.b16 %v6359, %v6351
    %6616 = vmatprep.subr.bf16.mxu0 %v6417
    %6617 = vmatpush1.bf16.msra.mxu0 %v6416
    %6618 = vmatprep.subr.bf16.mxu0 %v6409
    %6619 = vmatpush1.bf16.msra.mxu0 %v6408
    %6620 = vmatprep.subr.bf16.mxu0 %v6401
    %6621 = vmatpush1.bf16.msra.mxu0 %v6400
    %6622 = vmatprep.subr.bf16.mxu0 %v6393
    %6623 = vmatpush1.bf16.msra.mxu0 %v6392
    %6624 = vmatprep.subr.bf16.mxu0 %v6385
    %6625 = vmatpush1.bf16.msra.mxu0 %v6384
    %6626 = vmatprep.subr.bf16.mxu0 %v6377
    %6627 = vmatpush1.bf16.msra.mxu0 %v6376
    %6628 = vmatprep.subr.bf16.mxu0 %v6369
    %6629 = vmatpush1.bf16.msra.mxu0 %v6368
    %6630 = vmatprep.subr.bf16.mxu0 %v6361
    %6631 = vmatpush1.bf16.msra.mxu0 %v6360
    %6632 = vmatprep.subr.bf16.mxu0 %v6481
    %6633 = vmatpush2.bf16.msra.mxu0 %v6480
    %6634 = vmatprep.subr.bf16.mxu0 %v6473
    %6635 = vmatpush2.bf16.msra.mxu0 %v6472
    %6636 = vmatprep.subr.bf16.mxu0 %v6465
    %6637 = vmatpush2.bf16.msra.mxu0 %v6464
    %6638 = vmatprep.subr.bf16.mxu0 %v6457
    %6639 = vmatpush2.bf16.msra.mxu0 %v6456
    %6640 = vmatprep.subr.bf16.mxu0 %v6449
    %6641 = vmatpush2.bf16.msra.mxu0 %v6448
    %6642 = vmatprep.subr.bf16.mxu0 %v6441
    %6643 = vmatpush2.bf16.msra.mxu0 %v6440
    %6644 = vmatprep.subr.bf16.mxu0 %v6433
    %6645 = vmatpush2.bf16.msra.mxu0 %v6432
    %6646 = vmatprep.subr.bf16.mxu0 %v6425
    %6647 = vmatpush2.bf16.msra.mxu0 %v6424
    %6648 = vmatprep.mubr.bf16.mxu0 %v5835
    %6649 = vmatmul.mubr.bf16.gmra.mxu0 %v5834
    %v6650 = vpop.f32.mrf.mxu0
    %v6651 = vadd.f32 %v4759, %v6650
    %v6652 = vpop.f32.mrf.mxu0
    %v6653 = vadd.f32 %v4763, %v6652
    %v6654 = vpop.f32.mrf.mxu0
    %v6655 = vadd.f32 %v4759, %v6654
    %v6656 = vpop.f32.mrf.mxu0
    %v6657 = vadd.f32 %v4763, %v6656
    %6658 = vdwg.mxu0
    %6659 = vmatprep.subr.bf16.mxu0 %v6419
    %6660 = vmatpush1.bf16.msra.mxu0 %v6418
    %6661 = vmatprep.subr.bf16.mxu0 %v6411
    %6662 = vmatpush1.bf16.msra.mxu0 %v6410
    %6663 = vmatprep.subr.bf16.mxu0 %v6403
    %6664 = vmatpush1.bf16.msra.mxu0 %v6402
    %6665 = vmatprep.subr.bf16.mxu0 %v6395
    %6666 = vmatpush1.bf16.msra.mxu0 %v6394
    %6667 = vmatprep.subr.bf16.mxu0 %v6387
    %6668 = vmatpush1.bf16.msra.mxu0 %v6386
    %6669 = vmatprep.subr.bf16.mxu0 %v6379
    %6670 = vmatpush1.bf16.msra.mxu0 %v6378
    %6671 = vmatprep.subr.bf16.mxu0 %v6371
    %6672 = vmatpush1.bf16.msra.mxu0 %v6370
    %6673 = vmatprep.subr.bf16.mxu0 %v6363
    %6674 = vmatpush1.bf16.msra.mxu0 %v6362
    %6675 = vmatprep.subr.bf16.mxu0 %v6483
    %6676 = vmatpush2.bf16.msra.mxu0 %v6482
    %6677 = vmatprep.subr.bf16.mxu0 %v6475
    %6678 = vmatpush2.bf16.msra.mxu0 %v6474
    %6679 = vmatprep.subr.bf16.mxu0 %v6467
    %6680 = vmatpush2.bf16.msra.mxu0 %v6466
    %6681 = vmatprep.subr.bf16.mxu0 %v6459
    %6682 = vmatpush2.bf16.msra.mxu0 %v6458
    %6683 = vmatprep.subr.bf16.mxu0 %v6451
    %6684 = vmatpush2.bf16.msra.mxu0 %v6450
    %6685 = vmatprep.subr.bf16.mxu0 %v6443
    %6686 = vmatpush2.bf16.msra.mxu0 %v6442
    %6687 = vmatprep.subr.bf16.mxu0 %v6435
    %6688 = vmatpush2.bf16.msra.mxu0 %v6434
    %6689 = vmatprep.subr.bf16.mxu0 %v6427
    %6690 = vmatpush2.bf16.msra.mxu0 %v6426
    %6691 = vmatprep.mubr.bf16.mxu0 %v5835
    %6692 = vmatmul.mubr.bf16.gmra.mxu0 %v5834
    %v6693 = vpop.f32.mrf.mxu0
    %v6694 = vadd.f32 %v4767, %v6693
    %v6695 = vpop.f32.mrf.mxu0
    %v6696 = vadd.f32 %v4771, %v6695
    %v6697 = vpop.f32.mrf.mxu0
    %v6698 = vadd.f32 %v4767, %v6697
    %v6699 = vpop.f32.mrf.mxu0
    %v6700 = vadd.f32 %v4771, %v6699
    %6701 = vdwg.mxu0
    %6702 = vmatprep.subr.bf16.mxu0 %v6421
    %6703 = vmatpush1.bf16.msra.mxu0 %v6420
    %6704 = vmatprep.subr.bf16.mxu0 %v6413
    %6705 = vmatpush1.bf16.msra.mxu0 %v6412
    %6706 = vmatprep.subr.bf16.mxu0 %v6405
    %6707 = vmatpush1.bf16.msra.mxu0 %v6404
    %6708 = vmatprep.subr.bf16.mxu0 %v6397
    %6709 = vmatpush1.bf16.msra.mxu0 %v6396
    %6710 = vmatprep.subr.bf16.mxu0 %v6389
    %6711 = vmatpush1.bf16.msra.mxu0 %v6388
    %6712 = vmatprep.subr.bf16.mxu0 %v6381
    %6713 = vmatpush1.bf16.msra.mxu0 %v6380
    %6714 = vmatprep.subr.bf16.mxu0 %v6373
    %6715 = vmatpush1.bf16.msra.mxu0 %v6372
    %6716 = vmatprep.subr.bf16.mxu0 %v6365
    %6717 = vmatpush1.bf16.msra.mxu0 %v6364
    %6718 = vmatprep.subr.bf16.mxu0 %v6485
    %6719 = vmatpush2.bf16.msra.mxu0 %v6484
    %6720 = vmatprep.subr.bf16.mxu0 %v6477
    %6721 = vmatpush2.bf16.msra.mxu0 %v6476
    %6722 = vmatprep.subr.bf16.mxu0 %v6469
    %6723 = vmatpush2.bf16.msra.mxu0 %v6468
    %6724 = vmatprep.subr.bf16.mxu0 %v6461
    %6725 = vmatpush2.bf16.msra.mxu0 %v6460
    %6726 = vmatprep.subr.bf16.mxu0 %v6453
    %6727 = vmatpush2.bf16.msra.mxu0 %v6452
    %6728 = vmatprep.subr.bf16.mxu0 %v6445
    %6729 = vmatpush2.bf16.msra.mxu0 %v6444
    %6730 = vmatprep.subr.bf16.mxu0 %v6437
    %6731 = vmatpush2.bf16.msra.mxu0 %v6436
    %6732 = vmatprep.subr.bf16.mxu0 %v6429
    %6733 = vmatpush2.bf16.msra.mxu0 %v6428
    %6734 = vmatprep.mubr.bf16.mxu0 %v5835
    %6735 = vmatmul.mubr.bf16.gmra.mxu0 %v5834
    %v6736 = vpop.f32.mrf.mxu0
    %v6737 = vadd.f32 %v4775, %v6736
    %v6738 = vpop.f32.mrf.mxu0
    %v6739 = vadd.f32 %v4779, %v6738
    %v6740 = vpop.f32.mrf.mxu0
    %v6741 = vadd.f32 %v4775, %v6740
    %v6742 = vpop.f32.mrf.mxu0
    %v6743 = vadd.f32 %v4779, %v6742
    %6744 = vdwg.mxu0
    %6745 = vmatprep.subr.bf16.mxu0 %v6423
    %6746 = vmatpush1.bf16.msra.mxu0 %v6422
    %6747 = vmatprep.subr.bf16.mxu0 %v6415
    %6748 = vmatpush1.bf16.msra.mxu0 %v6414
    %6749 = vmatprep.subr.bf16.mxu0 %v6407
    %6750 = vmatpush1.bf16.msra.mxu0 %v6406
    %6751 = vmatprep.subr.bf16.mxu0 %v6399
    %6752 = vmatpush1.bf16.msra.mxu0 %v6398
    %6753 = vmatprep.subr.bf16.mxu0 %v6391
    %6754 = vmatpush1.bf16.msra.mxu0 %v6390
    %6755 = vmatprep.subr.bf16.mxu0 %v6383
    %6756 = vmatpush1.bf16.msra.mxu0 %v6382
    %6757 = vmatprep.subr.bf16.mxu0 %v6375
    %6758 = vmatpush1.bf16.msra.mxu0 %v6374
    %6759 = vmatprep.subr.bf16.mxu0 %v6367
    %6760 = vmatpush1.bf16.msra.mxu0 %v6366
    %6761 = vmatprep.subr.bf16.mxu0 %v6487
    %6762 = vmatpush2.bf16.msra.mxu0 %v6486
    %6763 = vmatprep.subr.bf16.mxu0 %v6479
    %6764 = vmatpush2.bf16.msra.mxu0 %v6478
    %6765 = vmatprep.subr.bf16.mxu0 %v6471
    %6766 = vmatpush2.bf16.msra.mxu0 %v6470
    %6767 = vmatprep.subr.bf16.mxu0 %v6463
    %6768 = vmatpush2.bf16.msra.mxu0 %v6462
    %6769 = vmatprep.subr.bf16.mxu0 %v6455
    %6770 = vmatpush2.bf16.msra.mxu0 %v6454
    %6771 = vmatprep.subr.bf16.mxu0 %v6447
    %6772 = vmatpush2.bf16.msra.mxu0 %v6446
    %6773 = vmatprep.subr.bf16.mxu0 %v6439
    %6774 = vmatpush2.bf16.msra.mxu0 %v6438
    %6775 = vmatprep.subr.bf16.mxu0 %v6431
    %6776 = vmatpush2.bf16.msra.mxu0 %v6430
    %6777 = vmatprep.mubr.bf16.mxu0 %v5835
    %6778 = vmatmul.mubr.bf16.gmra.mxu0 %v5834
    %v6779 = vpop.f32.mrf.mxu0
    %v6780 = vadd.f32 %v4783, %v6779
    %v6781 = vpop.f32.mrf.mxu0
    %v6782 = vadd.f32 %v4787, %v6781
    %v6783 = vpop.f32.mrf.mxu0
    %v6784 = vadd.f32 %v4783, %v6783
    %v6785 = vpop.f32.mrf.mxu0
    %v6786 = vadd.f32 %v4787, %v6785
    %6787 = vdwg.mxu0
    %v6788 = vxor.u32 %v6651, 2147483648
    %v6789 = vxor.u32 %v6653, 2147483648
    %v6790 = vxor.u32 %v6694, 2147483648
    %v6791 = vxor.u32 %v6696, 2147483648
    %v6792 = vxor.u32 %v6737, 2147483648
    %v6793 = vxor.u32 %v6739, 2147483648
    %v6794 = vxor.u32 %v6655, 2147483648
    %v6795 = vxor.u32 %v6657, 2147483648
    %v6796 = vxor.u32 %v6698, 2147483648
    %v6797 = vxor.u32 %v6700, 2147483648
    %v6798 = vxor.u32 %v6741, 2147483648
    %v6799 = vxor.u32 %v6743, 2147483648
    %v6800 = vmul.f32 %v6788, 1.442695
    %v6801 = vpow.pop %v6800
    %v6802 = vmul.f32 %v6789, 1.442695
    %v6803 = vpow.pop %v6802
    %v6804 = vmul.f32 %v6790, 1.442695
    %v6805 = vpow.pop %v6804
    %v6806 = vmul.f32 %v6791, 1.442695
    %v6807 = vpow.pop %v6806
    %v6808 = vmul.f32 %v6792, 1.442695
    %v6809 = vpow.pop %v6808
    %v6810 = vmul.f32 %v6793, 1.442695
    %v6811 = vpow.pop %v6810
    %v6812 = vmul.f32 %v6794, 1.442695
    %v6813 = vpow.pop %v6812
    %v6814 = vmul.f32 %v6795, 1.442695
    %v6815 = vpow.pop %v6814
    %v6816 = vmul.f32 %v6796, 1.442695
    %v6817 = vpow.pop %v6816
    %v6818 = vmul.f32 %v6797, 1.442695
    %v6819 = vpow.pop %v6818
    %v6820 = vmul.f32 %v6798, 1.442695
    %v6821 = vpow.pop %v6820
    %v6822 = vmul.f32 %v6799, 1.442695
    %v6823 = vpow.pop %v6822
    %v6824 = vadd.f32 %v6801, 1.0
    %v6825 = vadd.f32 %v6803, 1.0
    %v6826 = vadd.f32 %v6805, 1.0
    %v6827 = vadd.f32 %v6807, 1.0
    %v6828 = vadd.f32 %v6809, 1.0
    %v6829 = vadd.f32 %v6811, 1.0
    %v6830 = vadd.f32 %v6813, 1.0
    %v6831 = vadd.f32 %v6815, 1.0
    %v6832 = vadd.f32 %v6817, 1.0
    %v6833 = vadd.f32 %v6819, 1.0
    %v6834 = vadd.f32 %v6821, 1.0
    %v6835 = vadd.f32 %v6823, 1.0
    %v6836 = vrcp.pop %v6824
    %v6837 = vmul.f32 1.0, %v6836
    %v6838 = vrcp.pop %v6825
    %v6839 = vmul.f32 1.0, %v6838
    %v6840 = vrcp.pop %v6826
    %v6841 = vmul.f32 1.0, %v6840
    %v6842 = vrcp.pop %v6827
    %v6843 = vmul.f32 1.0, %v6842
    %v6844 = vrcp.pop %v6828
    %v6845 = vmul.f32 1.0, %v6844
    %v6846 = vrcp.pop %v6829
    %v6847 = vmul.f32 1.0, %v6846
    %v6848 = vrcp.pop %v6830
    %v6849 = vmul.f32 1.0, %v6848
    %v6850 = vrcp.pop %v6831
    %v6851 = vmul.f32 1.0, %v6850
    %v6852 = vrcp.pop %v6832
    %v6853 = vmul.f32 1.0, %v6852
    %v6854 = vrcp.pop %v6833
    %v6855 = vmul.f32 1.0, %v6854
    %v6856 = vrcp.pop %v6834
    %v6857 = vmul.f32 1.0, %v6856
    %v6858 = vrcp.pop %v6835
    %v6859 = vmul.f32 1.0, %v6858
    %v6860 = vtanh.pop %v6780
    %v6861 = vtanh.pop %v6782
    %v6862 = vtanh.pop %v6784
    %v6863 = vtanh.pop %v6786
    %v6864 = vmul.f32 %v6841, %v5822
    %v6865 = vmul.f32 %v6843, %v5823
    %v6866 = vmul.f32 %v6853, %v5824
    %v6867 = vmul.f32 %v6855, %v5825
    %v6868 = vmul.f32 %v6837, %v6860
    %v6869 = vmul.f32 %v6839, %v6861
    %v6870 = vmul.f32 %v6849, %v6862
    %v6871 = vmul.f32 %v6851, %v6863
    %v6872 = vadd.f32 %v6864, %v6868
    %v6873 = vadd.f32 %v6865, %v6869
    %v6874 = vadd.f32 %v6866, %v6870
    %v6875 = vadd.f32 %v6867, %v6871
    %v6876 = vtanh.pop %v6872
    %v6877 = vtanh.pop %v6873
    %v6878 = vtanh.pop %v6874
    %v6879 = vtanh.pop %v6875
    %v6880 = vmul.f32 %v6845, %v6876
    %v6881 = vmul.f32 %v6847, %v6877
    %v6882 = vmul.f32 %v6857, %v6878
    %v6883 = vmul.f32 %v6859, %v6879
    %v6884 = vpack.c.bf16 %v6882, %v6880
    %v6885 = vpack.c.bf16 %v6883, %v6881
    %v6888 = vunpack.c.l.b16 %v6884
    %v6889 = vunpack.c.l.b16 %v6885
    %v6890 = vunpack.c.h.b16 %v6884
    %v6891 = vunpack.c.h.b16 %v6885
    %v6892 = vpack.c.b16 %v6889, %v6888
    %v6893 = vpack.c.b16 %v6891, %v6890
    %6896 = vst [vmem:[#allocation3 + $0x8] sm:$0xff] %v6892
    %6897 = vst [vmem:[#allocation3 + $0x20] sm:$0xff] %v6893
    %v6898 = vld [vmem:[#allocation4] sm:$0xff]
    %v6899 = vld [vmem:[#allocation4 + $0x8] sm:$0xff]
    %v6900 = vld [vmem:[#allocation4 + $0x10] sm:$0xff]
    %v6901 = vld [vmem:[#allocation4 + $0x18] sm:$0xff]
    %v6902 = vld [vmem:[#allocation4 + $0x20] sm:$0xff]
    %v6903 = vld [vmem:[#allocation4 + $0x28] sm:$0xff]
    %v6904 = vld [vmem:[#allocation4 + $0x30] sm:$0xff]
    %v6905 = vld [vmem:[#allocation4 + $0x38] sm:$0xff]
    %v6906 = vld [vmem:[#allocation4 + $0x40] sm:$0xff]
    %v6907 = vld [vmem:[#allocation4 + $0x48] sm:$0xff]
    %v6908 = vld [vmem:[#allocation4 + $0x50] sm:$0xff]
    %v6909 = vld [vmem:[#allocation4 + $0x58] sm:$0xff]
    %v6910 = vld [vmem:[#allocation4 + $0x60] sm:$0xff]
    %v6911 = vld [vmem:[#allocation4 + $0x68] sm:$0xff]
    %v6912 = vld [vmem:[#allocation4 + $0x70] sm:$0xff]
    %v6913 = vld [vmem:[#allocation4 + $0x78] sm:$0xff]
    %v6914 = vld [vmem:[#allocation4 + $0x80] sm:$0xff]
    %v6915 = vld [vmem:[#allocation4 + $0x88] sm:$0xff]
    %v6916 = vld [vmem:[#allocation4 + $0x90] sm:$0xff]
    %v6917 = vld [vmem:[#allocation4 + $0x98] sm:$0xff]
    %v6918 = vld [vmem:[#allocation4 + $0xa0] sm:$0xff]
    %v6919 = vld [vmem:[#allocation4 + $0xa8] sm:$0xff]
    %v6920 = vld [vmem:[#allocation4 + $0xb0] sm:$0xff]
    %v6921 = vld [vmem:[#allocation4 + $0xb8] sm:$0xff]
    %v6922 = vld [vmem:[#allocation4 + $0xc0] sm:$0xff]
    %v6923 = vld [vmem:[#allocation4 + $0xc8] sm:$0xff]
    %v6924 = vld [vmem:[#allocation4 + $0xd0] sm:$0xff]
    %v6925 = vld [vmem:[#allocation4 + $0xd8] sm:$0xff]
    %v6926 = vld [vmem:[#allocation4 + $0xe0] sm:$0xff]
    %v6927 = vld [vmem:[#allocation4 + $0xe8] sm:$0xff]
    %v6928 = vld [vmem:[#allocation4 + $0xf0] sm:$0xff]
    %v6929 = vld [vmem:[#allocation4 + $0xf8] sm:$0xff]
    %v6930 = vld [vmem:[#allocation4 + $0x100] sm:$0xff]
    %v6931 = vld [vmem:[#allocation4 + $0x108] sm:$0xff]
    %v6932 = vld [vmem:[#allocation4 + $0x110] sm:$0xff]
    %v6933 = vld [vmem:[#allocation4 + $0x118] sm:$0xff]
    %v6934 = vld [vmem:[#allocation4 + $0x120] sm:$0xff]
    %v6935 = vld [vmem:[#allocation4 + $0x128] sm:$0xff]
    %v6936 = vld [vmem:[#allocation4 + $0x130] sm:$0xff]
    %v6937 = vld [vmem:[#allocation4 + $0x138] sm:$0xff]
    %v6938 = vld [vmem:[#allocation4 + $0x140] sm:$0xff]
    %v6939 = vld [vmem:[#allocation4 + $0x148] sm:$0xff]
    %v6940 = vld [vmem:[#allocation4 + $0x150] sm:$0xff]
    %v6941 = vld [vmem:[#allocation4 + $0x158] sm:$0xff]
    %v6942 = vld [vmem:[#allocation4 + $0x160] sm:$0xff]
    %v6943 = vld [vmem:[#allocation4 + $0x168] sm:$0xff]
    %v6944 = vld [vmem:[#allocation4 + $0x170] sm:$0xff]
    %v6945 = vld [vmem:[#allocation4 + $0x178] sm:$0xff]
    %v6946 = vld [vmem:[#allocation4 + $0x180] sm:$0xff]
    %v6947 = vld [vmem:[#allocation4 + $0x188] sm:$0xff]
    %v6948 = vld [vmem:[#allocation4 + $0x190] sm:$0xff]
    %v6949 = vld [vmem:[#allocation4 + $0x198] sm:$0xff]
    %v6950 = vld [vmem:[#allocation4 + $0x1a0] sm:$0xff]
    %v6951 = vld [vmem:[#allocation4 + $0x1a8] sm:$0xff]
    %v6952 = vld [vmem:[#allocation4 + $0x1b0] sm:$0xff]
    %v6953 = vld [vmem:[#allocation4 + $0x1b8] sm:$0xff]
    %v6954 = vld [vmem:[#allocation4 + $0x1c0] sm:$0xff]
    %v6955 = vld [vmem:[#allocation4 + $0x1c8] sm:$0xff]
    %v6956 = vld [vmem:[#allocation4 + $0x1d0] sm:$0xff]
    %v6957 = vld [vmem:[#allocation4 + $0x1d8] sm:$0xff]
    %v6958 = vld [vmem:[#allocation4 + $0x1e0] sm:$0xff]
    %v6959 = vld [vmem:[#allocation4 + $0x1e8] sm:$0xff]
    %v6960 = vld [vmem:[#allocation4 + $0x1f0] sm:$0xff]
    %v6961 = vld [vmem:[#allocation4 + $0x1f8] sm:$0xff]
    %v6962 = vld [vmem:[#allocation4 + $0x200] sm:$0xff]
    %v6963 = vld [vmem:[#allocation4 + $0x208] sm:$0xff]
    %v6964 = vld [vmem:[#allocation4 + $0x210] sm:$0xff]
    %v6965 = vld [vmem:[#allocation4 + $0x218] sm:$0xff]
    %v6966 = vld [vmem:[#allocation4 + $0x220] sm:$0xff]
    %v6967 = vld [vmem:[#allocation4 + $0x228] sm:$0xff]
    %v6968 = vld [vmem:[#allocation4 + $0x230] sm:$0xff]
    %v6969 = vld [vmem:[#allocation4 + $0x238] sm:$0xff]
    %v6970 = vld [vmem:[#allocation4 + $0x240] sm:$0xff]
    %v6971 = vld [vmem:[#allocation4 + $0x248] sm:$0xff]
    %v6972 = vld [vmem:[#allocation4 + $0x250] sm:$0xff]
    %v6973 = vld [vmem:[#allocation4 + $0x258] sm:$0xff]
    %v6974 = vld [vmem:[#allocation4 + $0x260] sm:$0xff]
    %v6975 = vld [vmem:[#allocation4 + $0x268] sm:$0xff]
    %v6976 = vld [vmem:[#allocation4 + $0x270] sm:$0xff]
    %v6977 = vld [vmem:[#allocation4 + $0x278] sm:$0xff]
    %v6978 = vld [vmem:[#allocation4 + $0x280] sm:$0xff]
    %v6979 = vld [vmem:[#allocation4 + $0x288] sm:$0xff]
    %v6980 = vld [vmem:[#allocation4 + $0x290] sm:$0xff]
    %v6981 = vld [vmem:[#allocation4 + $0x298] sm:$0xff]
    %v6982 = vld [vmem:[#allocation4 + $0x2a0] sm:$0xff]
    %v6983 = vld [vmem:[#allocation4 + $0x2a8] sm:$0xff]
    %v6984 = vld [vmem:[#allocation4 + $0x2b0] sm:$0xff]
    %v6985 = vld [vmem:[#allocation4 + $0x2b8] sm:$0xff]
    %v6986 = vld [vmem:[#allocation4 + $0x2c0] sm:$0xff]
    %v6987 = vld [vmem:[#allocation4 + $0x2c8] sm:$0xff]
    %v6988 = vld [vmem:[#allocation4 + $0x2d0] sm:$0xff]
    %v6989 = vld [vmem:[#allocation4 + $0x2d8] sm:$0xff]
    %v6990 = vld [vmem:[#allocation4 + $0x2e0] sm:$0xff]
    %v6991 = vld [vmem:[#allocation4 + $0x2e8] sm:$0xff]
    %v6992 = vld [vmem:[#allocation4 + $0x2f0] sm:$0xff]
    %v6993 = vld [vmem:[#allocation4 + $0x2f8] sm:$0xff]
    %v6994 = vld [vmem:[#allocation4 + $0x300] sm:$0xff]
    %v6995 = vld [vmem:[#allocation4 + $0x308] sm:$0xff]
    %v6996 = vld [vmem:[#allocation4 + $0x310] sm:$0xff]
    %v6997 = vld [vmem:[#allocation4 + $0x318] sm:$0xff]
    %v6998 = vld [vmem:[#allocation4 + $0x320] sm:$0xff]
    %v6999 = vld [vmem:[#allocation4 + $0x328] sm:$0xff]
    %v7000 = vld [vmem:[#allocation4 + $0x330] sm:$0xff]
    %v7001 = vld [vmem:[#allocation4 + $0x338] sm:$0xff]
    %v7002 = vld [vmem:[#allocation4 + $0x340] sm:$0xff]
    %v7003 = vld [vmem:[#allocation4 + $0x348] sm:$0xff]
    %v7004 = vld [vmem:[#allocation4 + $0x350] sm:$0xff]
    %v7005 = vld [vmem:[#allocation4 + $0x358] sm:$0xff]
    %v7006 = vld [vmem:[#allocation4 + $0x360] sm:$0xff]
    %v7007 = vld [vmem:[#allocation4 + $0x368] sm:$0xff]
    %v7008 = vld [vmem:[#allocation4 + $0x370] sm:$0xff]
    %v7009 = vld [vmem:[#allocation4 + $0x378] sm:$0xff]
    %v7010 = vld [vmem:[#allocation4 + $0x380] sm:$0xff]
    %v7011 = vld [vmem:[#allocation4 + $0x388] sm:$0xff]
    %v7012 = vld [vmem:[#allocation4 + $0x390] sm:$0xff]
    %v7013 = vld [vmem:[#allocation4 + $0x398] sm:$0xff]
    %v7014 = vld [vmem:[#allocation4 + $0x3a0] sm:$0xff]
    %v7015 = vld [vmem:[#allocation4 + $0x3a8] sm:$0xff]
    %v7016 = vld [vmem:[#allocation4 + $0x3b0] sm:$0xff]
    %v7017 = vld [vmem:[#allocation4 + $0x3b8] sm:$0xff]
    %v7018 = vld [vmem:[#allocation4 + $0x3c0] sm:$0xff]
    %v7019 = vld [vmem:[#allocation4 + $0x3c8] sm:$0xff]
    %v7020 = vld [vmem:[#allocation4 + $0x3d0] sm:$0xff]
    %v7021 = vld [vmem:[#allocation4 + $0x3d8] sm:$0xff]
    %v7022 = vld [vmem:[#allocation4 + $0x3e0] sm:$0xff]
    %v7023 = vld [vmem:[#allocation4 + $0x3e8] sm:$0xff]
    %v7024 = vld [vmem:[#allocation4 + $0x3f0] sm:$0xff]
    %v7025 = vld [vmem:[#allocation4 + $0x3f8] sm:$0xff]
    %v7154 = vunpack.c.l.b16 %v6898
    %v7155 = vunpack.c.h.b16 %v6898
    %v7156 = vunpack.c.l.b16 %v6899
    %v7157 = vunpack.c.h.b16 %v6899
    %v7158 = vunpack.c.l.b16 %v6900
    %v7159 = vunpack.c.h.b16 %v6900
    %v7160 = vunpack.c.l.b16 %v6901
    %v7161 = vunpack.c.h.b16 %v6901
    %v7162 = vunpack.c.l.b16 %v6902
    %v7163 = vunpack.c.h.b16 %v6902
    %v7164 = vunpack.c.l.b16 %v6903
    %v7165 = vunpack.c.h.b16 %v6903
    %v7166 = vunpack.c.l.b16 %v6904
    %v7167 = vunpack.c.h.b16 %v6904
    %v7168 = vunpack.c.l.b16 %v6905
    %v7169 = vunpack.c.h.b16 %v6905
    %v7170 = vunpack.c.l.b16 %v6906
    %v7171 = vunpack.c.h.b16 %v6906
    %v7172 = vunpack.c.l.b16 %v6907
    %v7173 = vunpack.c.h.b16 %v6907
    %v7174 = vunpack.c.l.b16 %v6908
    %v7175 = vunpack.c.h.b16 %v6908
    %v7176 = vunpack.c.l.b16 %v6909
    %v7177 = vunpack.c.h.b16 %v6909
    %v7178 = vunpack.c.l.b16 %v6910
    %v7179 = vunpack.c.h.b16 %v6910
    %v7180 = vunpack.c.l.b16 %v6911
    %v7181 = vunpack.c.h.b16 %v6911
    %v7182 = vunpack.c.l.b16 %v6912
    %v7183 = vunpack.c.h.b16 %v6912
    %v7184 = vunpack.c.l.b16 %v6913
    %v7185 = vunpack.c.h.b16 %v6913
    %v7186 = vunpack.c.l.b16 %v6914
    %v7187 = vunpack.c.h.b16 %v6914
    %v7188 = vunpack.c.l.b16 %v6915
    %v7189 = vunpack.c.h.b16 %v6915
    %v7190 = vunpack.c.l.b16 %v6916
    %v7191 = vunpack.c.h.b16 %v6916
    %v7192 = vunpack.c.l.b16 %v6917
    %v7193 = vunpack.c.h.b16 %v6917
    %v7194 = vunpack.c.l.b16 %v6918
    %v7195 = vunpack.c.h.b16 %v6918
    %v7196 = vunpack.c.l.b16 %v6919
    %v7197 = vunpack.c.h.b16 %v6919
    %v7198 = vunpack.c.l.b16 %v6920
    %v7199 = vunpack.c.h.b16 %v6920
    %v7200 = vunpack.c.l.b16 %v6921
    %v7201 = vunpack.c.h.b16 %v6921
    %v7202 = vunpack.c.l.b16 %v6922
    %v7203 = vunpack.c.h.b16 %v6922
    %v7204 = vunpack.c.l.b16 %v6923
    %v7205 = vunpack.c.h.b16 %v6923
    %v7206 = vunpack.c.l.b16 %v6924
    %v7207 = vunpack.c.h.b16 %v6924
    %v7208 = vunpack.c.l.b16 %v6925
    %v7209 = vunpack.c.h.b16 %v6925
    %v7210 = vunpack.c.l.b16 %v6926
    %v7211 = vunpack.c.h.b16 %v6926
    %v7212 = vunpack.c.l.b16 %v6927
    %v7213 = vunpack.c.h.b16 %v6927
    %v7214 = vunpack.c.l.b16 %v6928
    %v7215 = vunpack.c.h.b16 %v6928
    %v7216 = vunpack.c.l.b16 %v6929
    %v7217 = vunpack.c.h.b16 %v6929
    %v7218 = vunpack.c.l.b16 %v6930
    %v7219 = vunpack.c.h.b16 %v6930
    %v7220 = vunpack.c.l.b16 %v6931
    %v7221 = vunpack.c.h.b16 %v6931
    %v7222 = vunpack.c.l.b16 %v6932
    %v7223 = vunpack.c.h.b16 %v6932
    %v7224 = vunpack.c.l.b16 %v6933
    %v7225 = vunpack.c.h.b16 %v6933
    %v7226 = vunpack.c.l.b16 %v6934
    %v7227 = vunpack.c.h.b16 %v6934
    %v7228 = vunpack.c.l.b16 %v6935
    %v7229 = vunpack.c.h.b16 %v6935
    %v7230 = vunpack.c.l.b16 %v6936
    %v7231 = vunpack.c.h.b16 %v6936
    %v7232 = vunpack.c.l.b16 %v6937
    %v7233 = vunpack.c.h.b16 %v6937
    %v7234 = vunpack.c.l.b16 %v6938
    %v7235 = vunpack.c.h.b16 %v6938
    %v7236 = vunpack.c.l.b16 %v6939
    %v7237 = vunpack.c.h.b16 %v6939
    %v7238 = vunpack.c.l.b16 %v6940
    %v7239 = vunpack.c.h.b16 %v6940
    %v7240 = vunpack.c.l.b16 %v6941
    %v7241 = vunpack.c.h.b16 %v6941
    %v7242 = vunpack.c.l.b16 %v6942
    %v7243 = vunpack.c.h.b16 %v6942
    %v7244 = vunpack.c.l.b16 %v6943
    %v7245 = vunpack.c.h.b16 %v6943
    %v7246 = vunpack.c.l.b16 %v6944
    %v7247 = vunpack.c.h.b16 %v6944
    %v7248 = vunpack.c.l.b16 %v6945
    %v7249 = vunpack.c.h.b16 %v6945
    %v7250 = vunpack.c.l.b16 %v6946
    %v7251 = vunpack.c.h.b16 %v6946
    %v7252 = vunpack.c.l.b16 %v6947
    %v7253 = vunpack.c.h.b16 %v6947
    %v7254 = vunpack.c.l.b16 %v6948
    %v7255 = vunpack.c.h.b16 %v6948
    %v7256 = vunpack.c.l.b16 %v6949
    %v7257 = vunpack.c.h.b16 %v6949
    %v7258 = vunpack.c.l.b16 %v6950
    %v7259 = vunpack.c.h.b16 %v6950
    %v7260 = vunpack.c.l.b16 %v6951
    %v7261 = vunpack.c.h.b16 %v6951
    %v7262 = vunpack.c.l.b16 %v6952
    %v7263 = vunpack.c.h.b16 %v6952
    %v7264 = vunpack.c.l.b16 %v6953
    %v7265 = vunpack.c.h.b16 %v6953
    %v7266 = vunpack.c.l.b16 %v6954
    %v7267 = vunpack.c.h.b16 %v6954
    %v7268 = vunpack.c.l.b16 %v6955
    %v7269 = vunpack.c.h.b16 %v6955
    %v7270 = vunpack.c.l.b16 %v6956
    %v7271 = vunpack.c.h.b16 %v6956
    %v7272 = vunpack.c.l.b16 %v6957
    %v7273 = vunpack.c.h.b16 %v6957
    %v7274 = vunpack.c.l.b16 %v6958
    %v7275 = vunpack.c.h.b16 %v6958
    %v7276 = vunpack.c.l.b16 %v6959
    %v7277 = vunpack.c.h.b16 %v6959
    %v7278 = vunpack.c.l.b16 %v6960
    %v7279 = vunpack.c.h.b16 %v6960
    %v7280 = vunpack.c.l.b16 %v6961
    %v7281 = vunpack.c.h.b16 %v6961
    %v7282 = vunpack.c.l.b16 %v6962
    %v7283 = vunpack.c.h.b16 %v6962
    %v7284 = vunpack.c.l.b16 %v6963
    %v7285 = vunpack.c.h.b16 %v6963
    %v7286 = vunpack.c.l.b16 %v6964
    %v7287 = vunpack.c.h.b16 %v6964
    %v7288 = vunpack.c.l.b16 %v6965
    %v7289 = vunpack.c.h.b16 %v6965
    %v7290 = vunpack.c.l.b16 %v6966
    %v7291 = vunpack.c.h.b16 %v6966
    %v7292 = vunpack.c.l.b16 %v6967
    %v7293 = vunpack.c.h.b16 %v6967
    %v7294 = vunpack.c.l.b16 %v6968
    %v7295 = vunpack.c.h.b16 %v6968
    %v7296 = vunpack.c.l.b16 %v6969
    %v7297 = vunpack.c.h.b16 %v6969
    %v7298 = vunpack.c.l.b16 %v6970
    %v7299 = vunpack.c.h.b16 %v6970
    %v7300 = vunpack.c.l.b16 %v6971
    %v7301 = vunpack.c.h.b16 %v6971
    %v7302 = vunpack.c.l.b16 %v6972
    %v7303 = vunpack.c.h.b16 %v6972
    %v7304 = vunpack.c.l.b16 %v6973
    %v7305 = vunpack.c.h.b16 %v6973
    %v7306 = vunpack.c.l.b16 %v6974
    %v7307 = vunpack.c.h.b16 %v6974
    %v7308 = vunpack.c.l.b16 %v6975
    %v7309 = vunpack.c.h.b16 %v6975
    %v7310 = vunpack.c.l.b16 %v6976
    %v7311 = vunpack.c.h.b16 %v6976
    %v7312 = vunpack.c.l.b16 %v6977
    %v7313 = vunpack.c.h.b16 %v6977
    %v7314 = vunpack.c.l.b16 %v6978
    %v7315 = vunpack.c.h.b16 %v6978
    %v7316 = vunpack.c.l.b16 %v6979
    %v7317 = vunpack.c.h.b16 %v6979
    %v7318 = vunpack.c.l.b16 %v6980
    %v7319 = vunpack.c.h.b16 %v6980
    %v7320 = vunpack.c.l.b16 %v6981
    %v7321 = vunpack.c.h.b16 %v6981
    %v7322 = vunpack.c.l.b16 %v6982
    %v7323 = vunpack.c.h.b16 %v6982
    %v7324 = vunpack.c.l.b16 %v6983
    %v7325 = vunpack.c.h.b16 %v6983
    %v7326 = vunpack.c.l.b16 %v6984
    %v7327 = vunpack.c.h.b16 %v6984
    %v7328 = vunpack.c.l.b16 %v6985
    %v7329 = vunpack.c.h.b16 %v6985
    %v7330 = vunpack.c.l.b16 %v6986
    %v7331 = vunpack.c.h.b16 %v6986
    %v7332 = vunpack.c.l.b16 %v6987
    %v7333 = vunpack.c.h.b16 %v6987
    %v7334 = vunpack.c.l.b16 %v6988
    %v7335 = vunpack.c.h.b16 %v6988
    %v7336 = vunpack.c.l.b16 %v6989
    %v7337 = vunpack.c.h.b16 %v6989
    %v7338 = vunpack.c.l.b16 %v6990
    %v7339 = vunpack.c.h.b16 %v6990
    %v7340 = vunpack.c.l.b16 %v6991
    %v7341 = vunpack.c.h.b16 %v6991
    %v7342 = vunpack.c.l.b16 %v6992
    %v7343 = vunpack.c.h.b16 %v6992
    %v7344 = vunpack.c.l.b16 %v6993
    %v7345 = vunpack.c.h.b16 %v6993
    %v7346 = vunpack.c.l.b16 %v6994
    %v7347 = vunpack.c.h.b16 %v6994
    %v7348 = vunpack.c.l.b16 %v6995
    %v7349 = vunpack.c.h.b16 %v6995
    %v7350 = vunpack.c.l.b16 %v6996
    %v7351 = vunpack.c.h.b16 %v6996
    %v7352 = vunpack.c.l.b16 %v6997
    %v7353 = vunpack.c.h.b16 %v6997
    %v7354 = vunpack.c.l.b16 %v6998
    %v7355 = vunpack.c.h.b16 %v6998
    %v7356 = vunpack.c.l.b16 %v6999
    %v7357 = vunpack.c.h.b16 %v6999
    %v7358 = vunpack.c.l.b16 %v7000
    %v7359 = vunpack.c.h.b16 %v7000
    %v7360 = vunpack.c.l.b16 %v7001
    %v7361 = vunpack.c.h.b16 %v7001
    %v7362 = vunpack.c.l.b16 %v7002
    %v7363 = vunpack.c.h.b16 %v7002
    %v7364 = vunpack.c.l.b16 %v7003
    %v7365 = vunpack.c.h.b16 %v7003
    %v7366 = vunpack.c.l.b16 %v7004
    %v7367 = vunpack.c.h.b16 %v7004
    %v7368 = vunpack.c.l.b16 %v7005
    %v7369 = vunpack.c.h.b16 %v7005
    %v7370 = vunpack.c.l.b16 %v7006
    %v7371 = vunpack.c.h.b16 %v7006
    %v7372 = vunpack.c.l.b16 %v7007
    %v7373 = vunpack.c.h.b16 %v7007
    %v7374 = vunpack.c.l.b16 %v7008
    %v7375 = vunpack.c.h.b16 %v7008
    %v7376 = vunpack.c.l.b16 %v7009
    %v7377 = vunpack.c.h.b16 %v7009
    %v7378 = vunpack.c.l.b16 %v7010
    %v7379 = vunpack.c.h.b16 %v7010
    %v7380 = vunpack.c.l.b16 %v7011
    %v7381 = vunpack.c.h.b16 %v7011
    %v7382 = vunpack.c.l.b16 %v7012
    %v7383 = vunpack.c.h.b16 %v7012
    %v7384 = vunpack.c.l.b16 %v7013
    %v7385 = vunpack.c.h.b16 %v7013
    %v7386 = vunpack.c.l.b16 %v7014
    %v7387 = vunpack.c.h.b16 %v7014
    %v7388 = vunpack.c.l.b16 %v7015
    %v7389 = vunpack.c.h.b16 %v7015
    %v7390 = vunpack.c.l.b16 %v7016
    %v7391 = vunpack.c.h.b16 %v7016
    %v7392 = vunpack.c.l.b16 %v7017
    %v7393 = vunpack.c.h.b16 %v7017
    %v7394 = vunpack.c.l.b16 %v7018
    %v7395 = vunpack.c.h.b16 %v7018
    %v7396 = vunpack.c.l.b16 %v7019
    %v7397 = vunpack.c.h.b16 %v7019
    %v7398 = vunpack.c.l.b16 %v7020
    %v7399 = vunpack.c.h.b16 %v7020
    %v7400 = vunpack.c.l.b16 %v7021
    %v7401 = vunpack.c.h.b16 %v7021
    %v7402 = vunpack.c.l.b16 %v7022
    %v7403 = vunpack.c.h.b16 %v7022
    %v7404 = vunpack.c.l.b16 %v7023
    %v7405 = vunpack.c.h.b16 %v7023
    %v7406 = vunpack.c.l.b16 %v7024
    %v7407 = vunpack.c.h.b16 %v7024
    %v7408 = vunpack.c.l.b16 %v7025
    %v7409 = vunpack.c.h.b16 %v7025
    %v7410 = vpack.c.b16 %v7162, %v7154
    %v7411 = vpack.c.b16 %v7163, %v7155
    %v7412 = vpack.c.b16 %v7164, %v7156
    %v7413 = vpack.c.b16 %v7165, %v7157
    %v7414 = vpack.c.b16 %v7166, %v7158
    %v7415 = vpack.c.b16 %v7167, %v7159
    %v7416 = vpack.c.b16 %v7168, %v7160
    %v7417 = vpack.c.b16 %v7169, %v7161
    %v7418 = vpack.c.b16 %v7178, %v7170
    %v7419 = vpack.c.b16 %v7179, %v7171
    %v7420 = vpack.c.b16 %v7180, %v7172
    %v7421 = vpack.c.b16 %v7181, %v7173
    %v7422 = vpack.c.b16 %v7182, %v7174
    %v7423 = vpack.c.b16 %v7183, %v7175
    %v7424 = vpack.c.b16 %v7184, %v7176
    %v7425 = vpack.c.b16 %v7185, %v7177
    %v7426 = vpack.c.b16 %v7194, %v7186
    %v7427 = vpack.c.b16 %v7195, %v7187
    %v7428 = vpack.c.b16 %v7196, %v7188
    %v7429 = vpack.c.b16 %v7197, %v7189
    %v7430 = vpack.c.b16 %v7198, %v7190
    %v7431 = vpack.c.b16 %v7199, %v7191
    %v7432 = vpack.c.b16 %v7200, %v7192
    %v7433 = vpack.c.b16 %v7201, %v7193
    %v7434 = vpack.c.b16 %v7210, %v7202
    %v7435 = vpack.c.b16 %v7211, %v7203
    %v7436 = vpack.c.b16 %v7212, %v7204
    %v7437 = vpack.c.b16 %v7213, %v7205
    %v7438 = vpack.c.b16 %v7214, %v7206
    %v7439 = vpack.c.b16 %v7215, %v7207
    %v7440 = vpack.c.b16 %v7216, %v7208
    %v7441 = vpack.c.b16 %v7217, %v7209
    %v7442 = vpack.c.b16 %v7226, %v7218
    %v7443 = vpack.c.b16 %v7227, %v7219
    %v7444 = vpack.c.b16 %v7228, %v7220
    %v7445 = vpack.c.b16 %v7229, %v7221
    %v7446 = vpack.c.b16 %v7230, %v7222
    %v7447 = vpack.c.b16 %v7231, %v7223
    %v7448 = vpack.c.b16 %v7232, %v7224
    %v7449 = vpack.c.b16 %v7233, %v7225
    %v7450 = vpack.c.b16 %v7242, %v7234
    %v7451 = vpack.c.b16 %v7243, %v7235
    %v7452 = vpack.c.b16 %v7244, %v7236
    %v7453 = vpack.c.b16 %v7245, %v7237
    %v7454 = vpack.c.b16 %v7246, %v7238
    %v7455 = vpack.c.b16 %v7247, %v7239
    %v7456 = vpack.c.b16 %v7248, %v7240
    %v7457 = vpack.c.b16 %v7249, %v7241
    %v7458 = vpack.c.b16 %v7258, %v7250
    %v7459 = vpack.c.b16 %v7259, %v7251
    %v7460 = vpack.c.b16 %v7260, %v7252
    %v7461 = vpack.c.b16 %v7261, %v7253
    %v7462 = vpack.c.b16 %v7262, %v7254
    %v7463 = vpack.c.b16 %v7263, %v7255
    %v7464 = vpack.c.b16 %v7264, %v7256
    %v7465 = vpack.c.b16 %v7265, %v7257
    %v7466 = vpack.c.b16 %v7274, %v7266
    %v7467 = vpack.c.b16 %v7275, %v7267
    %v7468 = vpack.c.b16 %v7276, %v7268
    %v7469 = vpack.c.b16 %v7277, %v7269
    %v7470 = vpack.c.b16 %v7278, %v7270
    %v7471 = vpack.c.b16 %v7279, %v7271
    %v7472 = vpack.c.b16 %v7280, %v7272
    %v7473 = vpack.c.b16 %v7281, %v7273
    %v7474 = vpack.c.b16 %v7290, %v7282
    %v7475 = vpack.c.b16 %v7291, %v7283
    %v7476 = vpack.c.b16 %v7292, %v7284
    %v7477 = vpack.c.b16 %v7293, %v7285
    %v7478 = vpack.c.b16 %v7294, %v7286
    %v7479 = vpack.c.b16 %v7295, %v7287
    %v7480 = vpack.c.b16 %v7296, %v7288
    %v7481 = vpack.c.b16 %v7297, %v7289
    %v7482 = vpack.c.b16 %v7306, %v7298
    %v7483 = vpack.c.b16 %v7307, %v7299
    %v7484 = vpack.c.b16 %v7308, %v7300
    %v7485 = vpack.c.b16 %v7309, %v7301
    %v7486 = vpack.c.b16 %v7310, %v7302
    %v7487 = vpack.c.b16 %v7311, %v7303
    %v7488 = vpack.c.b16 %v7312, %v7304
    %v7489 = vpack.c.b16 %v7313, %v7305
    %v7490 = vpack.c.b16 %v7322, %v7314
    %v7491 = vpack.c.b16 %v7323, %v7315
    %v7492 = vpack.c.b16 %v7324, %v7316
    %v7493 = vpack.c.b16 %v7325, %v7317
    %v7494 = vpack.c.b16 %v7326, %v7318
    %v7495 = vpack.c.b16 %v7327, %v7319
    %v7496 = vpack.c.b16 %v7328, %v7320
    %v7497 = vpack.c.b16 %v7329, %v7321
    %v7498 = vpack.c.b16 %v7338, %v7330
    %v7499 = vpack.c.b16 %v7339, %v7331
    %v7500 = vpack.c.b16 %v7340, %v7332
    %v7501 = vpack.c.b16 %v7341, %v7333
    %v7502 = vpack.c.b16 %v7342, %v7334
    %v7503 = vpack.c.b16 %v7343, %v7335
    %v7504 = vpack.c.b16 %v7344, %v7336
    %v7505 = vpack.c.b16 %v7345, %v7337
    %v7506 = vpack.c.b16 %v7354, %v7346
    %v7507 = vpack.c.b16 %v7355, %v7347
    %v7508 = vpack.c.b16 %v7356, %v7348
    %v7509 = vpack.c.b16 %v7357, %v7349
    %v7510 = vpack.c.b16 %v7358, %v7350
    %v7511 = vpack.c.b16 %v7359, %v7351
    %v7512 = vpack.c.b16 %v7360, %v7352
    %v7513 = vpack.c.b16 %v7361, %v7353
    %v7514 = vpack.c.b16 %v7370, %v7362
    %v7515 = vpack.c.b16 %v7371, %v7363
    %v7516 = vpack.c.b16 %v7372, %v7364
    %v7517 = vpack.c.b16 %v7373, %v7365
    %v7518 = vpack.c.b16 %v7374, %v7366
    %v7519 = vpack.c.b16 %v7375, %v7367
    %v7520 = vpack.c.b16 %v7376, %v7368
    %v7521 = vpack.c.b16 %v7377, %v7369
    %v7522 = vpack.c.b16 %v7386, %v7378
    %v7523 = vpack.c.b16 %v7387, %v7379
    %v7524 = vpack.c.b16 %v7388, %v7380
    %v7525 = vpack.c.b16 %v7389, %v7381
    %v7526 = vpack.c.b16 %v7390, %v7382
    %v7527 = vpack.c.b16 %v7391, %v7383
    %v7528 = vpack.c.b16 %v7392, %v7384
    %v7529 = vpack.c.b16 %v7393, %v7385
    %v7530 = vpack.c.b16 %v7402, %v7394
    %v7531 = vpack.c.b16 %v7403, %v7395
    %v7532 = vpack.c.b16 %v7404, %v7396
    %v7533 = vpack.c.b16 %v7405, %v7397
    %v7534 = vpack.c.b16 %v7406, %v7398
    %v7535 = vpack.c.b16 %v7407, %v7399
    %v7536 = vpack.c.b16 %v7408, %v7400
    %v7537 = vpack.c.b16 %v7409, %v7401
    %7666 = vmatprep.subr.bf16.mxu0 %v7467
    %7667 = vmatpush1.bf16.msra.mxu0 %v7466
    %7668 = vmatprep.subr.bf16.mxu0 %v7459
    %7669 = vmatpush1.bf16.msra.mxu0 %v7458
    %7670 = vmatprep.subr.bf16.mxu0 %v7451
    %7671 = vmatpush1.bf16.msra.mxu0 %v7450
    %7672 = vmatprep.subr.bf16.mxu0 %v7443
    %7673 = vmatpush1.bf16.msra.mxu0 %v7442
    %7674 = vmatprep.subr.bf16.mxu0 %v7435
    %7675 = vmatpush1.bf16.msra.mxu0 %v7434
    %7676 = vmatprep.subr.bf16.mxu0 %v7427
    %7677 = vmatpush1.bf16.msra.mxu0 %v7426
    %7678 = vmatprep.subr.bf16.mxu0 %v7419
    %7679 = vmatpush1.bf16.msra.mxu0 %v7418
    %7680 = vmatprep.subr.bf16.mxu0 %v7411
    %7681 = vmatpush1.bf16.msra.mxu0 %v7410
    %7682 = vmatprep.subr.bf16.mxu0 %v7531
    %7683 = vmatpush2.bf16.msra.mxu0 %v7530
    %7684 = vmatprep.subr.bf16.mxu0 %v7523
    %7685 = vmatpush2.bf16.msra.mxu0 %v7522
    %7686 = vmatprep.subr.bf16.mxu0 %v7515
    %7687 = vmatpush2.bf16.msra.mxu0 %v7514
    %7688 = vmatprep.subr.bf16.mxu0 %v7507
    %7689 = vmatpush2.bf16.msra.mxu0 %v7506
    %7690 = vmatprep.subr.bf16.mxu0 %v7499
    %7691 = vmatpush2.bf16.msra.mxu0 %v7498
    %7692 = vmatprep.subr.bf16.mxu0 %v7491
    %7693 = vmatpush2.bf16.msra.mxu0 %v7490
    %7694 = vmatprep.subr.bf16.mxu0 %v7483
    %7695 = vmatpush2.bf16.msra.mxu0 %v7482
    %7696 = vmatprep.subr.bf16.mxu0 %v7475
    %7697 = vmatpush2.bf16.msra.mxu0 %v7474
    %7698 = vmatprep.mubr.bf16.mxu0 %v6885
    %7699 = vmatmul.mubr.bf16.gmra.mxu0 %v6884
    %v7700 = vpop.f32.mrf.mxu0
    %v7701 = vadd.f32 %v4759, %v7700
    %v7702 = vpop.f32.mrf.mxu0
    %v7703 = vadd.f32 %v4763, %v7702
    %v7704 = vpop.f32.mrf.mxu0
    %v7705 = vadd.f32 %v4759, %v7704
    %v7706 = vpop.f32.mrf.mxu0
    %v7707 = vadd.f32 %v4763, %v7706
    %7708 = vdwg.mxu0
    %7709 = vmatprep.subr.bf16.mxu0 %v7469
    %7710 = vmatpush1.bf16.msra.mxu0 %v7468
    %7711 = vmatprep.subr.bf16.mxu0 %v7461
    %7712 = vmatpush1.bf16.msra.mxu0 %v7460
    %7713 = vmatprep.subr.bf16.mxu0 %v7453
    %7714 = vmatpush1.bf16.msra.mxu0 %v7452
    %7715 = vmatprep.subr.bf16.mxu0 %v7445
    %7716 = vmatpush1.bf16.msra.mxu0 %v7444
    %7717 = vmatprep.subr.bf16.mxu0 %v7437
    %7718 = vmatpush1.bf16.msra.mxu0 %v7436
    %7719 = vmatprep.subr.bf16.mxu0 %v7429
    %7720 = vmatpush1.bf16.msra.mxu0 %v7428
    %7721 = vmatprep.subr.bf16.mxu0 %v7421
    %7722 = vmatpush1.bf16.msra.mxu0 %v7420
    %7723 = vmatprep.subr.bf16.mxu0 %v7413
    %7724 = vmatpush1.bf16.msra.mxu0 %v7412
    %7725 = vmatprep.subr.bf16.mxu0 %v7533
    %7726 = vmatpush2.bf16.msra.mxu0 %v7532
    %7727 = vmatprep.subr.bf16.mxu0 %v7525
    %7728 = vmatpush2.bf16.msra.mxu0 %v7524
    %7729 = vmatprep.subr.bf16.mxu0 %v7517
    %7730 = vmatpush2.bf16.msra.mxu0 %v7516
    %7731 = vmatprep.subr.bf16.mxu0 %v7509
    %7732 = vmatpush2.bf16.msra.mxu0 %v7508
    %7733 = vmatprep.subr.bf16.mxu0 %v7501
    %7734 = vmatpush2.bf16.msra.mxu0 %v7500
    %7735 = vmatprep.subr.bf16.mxu0 %v7493
    %7736 = vmatpush2.bf16.msra.mxu0 %v7492
    %7737 = vmatprep.subr.bf16.mxu0 %v7485
    %7738 = vmatpush2.bf16.msra.mxu0 %v7484
    %7739 = vmatprep.subr.bf16.mxu0 %v7477
    %7740 = vmatpush2.bf16.msra.mxu0 %v7476
    %7741 = vmatprep.mubr.bf16.mxu0 %v6885
    %7742 = vmatmul.mubr.bf16.gmra.mxu0 %v6884
    %v7743 = vpop.f32.mrf.mxu0
    %v7744 = vadd.f32 %v4767, %v7743
    %v7745 = vpop.f32.mrf.mxu0
    %v7746 = vadd.f32 %v4771, %v7745
    %v7747 = vpop.f32.mrf.mxu0
    %v7748 = vadd.f32 %v4767, %v7747
    %v7749 = vpop.f32.mrf.mxu0
    %v7750 = vadd.f32 %v4771, %v7749
    %7751 = vdwg.mxu0
    %7752 = vmatprep.subr.bf16.mxu0 %v7471
    %7753 = vmatpush1.bf16.msra.mxu0 %v7470
    %7754 = vmatprep.subr.bf16.mxu0 %v7463
    %7755 = vmatpush1.bf16.msra.mxu0 %v7462
    %7756 = vmatprep.subr.bf16.mxu0 %v7455
    %7757 = vmatpush1.bf16.msra.mxu0 %v7454
    %7758 = vmatprep.subr.bf16.mxu0 %v7447
    %7759 = vmatpush1.bf16.msra.mxu0 %v7446
    %7760 = vmatprep.subr.bf16.mxu0 %v7439
    %7761 = vmatpush1.bf16.msra.mxu0 %v7438
    %7762 = vmatprep.subr.bf16.mxu0 %v7431
    %7763 = vmatpush1.bf16.msra.mxu0 %v7430
    %7764 = vmatprep.subr.bf16.mxu0 %v7423
    %7765 = vmatpush1.bf16.msra.mxu0 %v7422
    %7766 = vmatprep.subr.bf16.mxu0 %v7415
    %7767 = vmatpush1.bf16.msra.mxu0 %v7414
    %7768 = vmatprep.subr.bf16.mxu0 %v7535
    %7769 = vmatpush2.bf16.msra.mxu0 %v7534
    %7770 = vmatprep.subr.bf16.mxu0 %v7527
    %7771 = vmatpush2.bf16.msra.mxu0 %v7526
    %7772 = vmatprep.subr.bf16.mxu0 %v7519
    %7773 = vmatpush2.bf16.msra.mxu0 %v7518
    %7774 = vmatprep.subr.bf16.mxu0 %v7511
    %7775 = vmatpush2.bf16.msra.mxu0 %v7510
    %7776 = vmatprep.subr.bf16.mxu0 %v7503
    %7777 = vmatpush2.bf16.msra.mxu0 %v7502
    %7778 = vmatprep.subr.bf16.mxu0 %v7495
    %7779 = vmatpush2.bf16.msra.mxu0 %v7494
    %7780 = vmatprep.subr.bf16.mxu0 %v7487
    %7781 = vmatpush2.bf16.msra.mxu0 %v7486
    %7782 = vmatprep.subr.bf16.mxu0 %v7479
    %7783 = vmatpush2.bf16.msra.mxu0 %v7478
    %7784 = vmatprep.mubr.bf16.mxu0 %v6885
    %7785 = vmatmul.mubr.bf16.gmra.mxu0 %v6884
    %v7786 = vpop.f32.mrf.mxu0
    %v7787 = vadd.f32 %v4775, %v7786
    %v7788 = vpop.f32.mrf.mxu0
    %v7789 = vadd.f32 %v4779, %v7788
    %v7790 = vpop.f32.mrf.mxu0
    %v7791 = vadd.f32 %v4775, %v7790
    %v7792 = vpop.f32.mrf.mxu0
    %v7793 = vadd.f32 %v4779, %v7792
    %7794 = vdwg.mxu0
    %7795 = vmatprep.subr.bf16.mxu0 %v7473
    %7796 = vmatpush1.bf16.msra.mxu0 %v7472
    %7797 = vmatprep.subr.bf16.mxu0 %v7465
    %7798 = vmatpush1.bf16.msra.mxu0 %v7464
    %7799 = vmatprep.subr.bf16.mxu0 %v7457
    %7800 = vmatpush1.bf16.msra.mxu0 %v7456
    %7801 = vmatprep.subr.bf16.mxu0 %v7449
    %7802 = vmatpush1.bf16.msra.mxu0 %v7448
    %7803 = vmatprep.subr.bf16.mxu0 %v7441
    %7804 = vmatpush1.bf16.msra.mxu0 %v7440
    %7805 = vmatprep.subr.bf16.mxu0 %v7433
    %7806 = vmatpush1.bf16.msra.mxu0 %v7432
    %7807 = vmatprep.subr.bf16.mxu0 %v7425
    %7808 = vmatpush1.bf16.msra.mxu0 %v7424
    %7809 = vmatprep.subr.bf16.mxu0 %v7417
    %7810 = vmatpush1.bf16.msra.mxu0 %v7416
    %7811 = vmatprep.subr.bf16.mxu0 %v7537
    %7812 = vmatpush2.bf16.msra.mxu0 %v7536
    %7813 = vmatprep.subr.bf16.mxu0 %v7529
    %7814 = vmatpush2.bf16.msra.mxu0 %v7528
    %7815 = vmatprep.subr.bf16.mxu0 %v7521
    %7816 = vmatpush2.bf16.msra.mxu0 %v7520
    %7817 = vmatprep.subr.bf16.mxu0 %v7513
    %7818 = vmatpush2.bf16.msra.mxu0 %v7512
    %7819 = vmatprep.subr.bf16.mxu0 %v7505
    %7820 = vmatpush2.bf16.msra.mxu0 %v7504
    %7821 = vmatprep.subr.bf16.mxu0 %v7497
    %7822 = vmatpush2.bf16.msra.mxu0 %v7496
    %7823 = vmatprep.subr.bf16.mxu0 %v7489
    %7824 = vmatpush2.bf16.msra.mxu0 %v7488
    %7825 = vmatprep.subr.bf16.mxu0 %v7481
    %7826 = vmatpush2.bf16.msra.mxu0 %v7480
    %7827 = vmatprep.mubr.bf16.mxu0 %v6885
    %7828 = vmatmul.mubr.bf16.gmra.mxu0 %v6884
    %v7829 = vpop.f32.mrf.mxu0
    %v7830 = vadd.f32 %v4783, %v7829
    %v7831 = vpop.f32.mrf.mxu0
    %v7832 = vadd.f32 %v4787, %v7831
    %v7833 = vpop.f32.mrf.mxu0
    %v7834 = vadd.f32 %v4783, %v7833
    %v7835 = vpop.f32.mrf.mxu0
    %v7836 = vadd.f32 %v4787, %v7835
    %7837 = vdwg.mxu0
    %v7838 = vxor.u32 %v7701, 2147483648
    %v7839 = vxor.u32 %v7703, 2147483648
    %v7840 = vxor.u32 %v7744, 2147483648
    %v7841 = vxor.u32 %v7746, 2147483648
    %v7842 = vxor.u32 %v7787, 2147483648
    %v7843 = vxor.u32 %v7789, 2147483648
    %v7844 = vxor.u32 %v7705, 2147483648
    %v7845 = vxor.u32 %v7707, 2147483648
    %v7846 = vxor.u32 %v7748, 2147483648
    %v7847 = vxor.u32 %v7750, 2147483648
    %v7848 = vxor.u32 %v7791, 2147483648
    %v7849 = vxor.u32 %v7793, 2147483648
    %v7850 = vmul.f32 %v7838, 1.442695
    %v7851 = vpow.pop %v7850
    %v7852 = vmul.f32 %v7839, 1.442695
    %v7853 = vpow.pop %v7852
    %v7854 = vmul.f32 %v7840, 1.442695
    %v7855 = vpow.pop %v7854
    %v7856 = vmul.f32 %v7841, 1.442695
    %v7857 = vpow.pop %v7856
    %v7858 = vmul.f32 %v7842, 1.442695
    %v7859 = vpow.pop %v7858
    %v7860 = vmul.f32 %v7843, 1.442695
    %v7861 = vpow.pop %v7860
    %v7862 = vmul.f32 %v7844, 1.442695
    %v7863 = vpow.pop %v7862
    %v7864 = vmul.f32 %v7845, 1.442695
    %v7865 = vpow.pop %v7864
    %v7866 = vmul.f32 %v7846, 1.442695
    %v7867 = vpow.pop %v7866
    %v7868 = vmul.f32 %v7847, 1.442695
    %v7869 = vpow.pop %v7868
    %v7870 = vmul.f32 %v7848, 1.442695
    %v7871 = vpow.pop %v7870
    %v7872 = vmul.f32 %v7849, 1.442695
    %v7873 = vpow.pop %v7872
    %v7874 = vadd.f32 %v7851, 1.0
    %v7875 = vadd.f32 %v7853, 1.0
    %v7876 = vadd.f32 %v7855, 1.0
    %v7877 = vadd.f32 %v7857, 1.0
    %v7878 = vadd.f32 %v7859, 1.0
    %v7879 = vadd.f32 %v7861, 1.0
    %v7880 = vadd.f32 %v7863, 1.0
    %v7881 = vadd.f32 %v7865, 1.0
    %v7882 = vadd.f32 %v7867, 1.0
    %v7883 = vadd.f32 %v7869, 1.0
    %v7884 = vadd.f32 %v7871, 1.0
    %v7885 = vadd.f32 %v7873, 1.0
    %v7886 = vrcp.pop %v7874
    %v7887 = vmul.f32 1.0, %v7886
    %v7888 = vrcp.pop %v7875
    %v7889 = vmul.f32 1.0, %v7888
    %v7890 = vrcp.pop %v7876
    %v7891 = vmul.f32 1.0, %v7890
    %v7892 = vrcp.pop %v7877
    %v7893 = vmul.f32 1.0, %v7892
    %v7894 = vrcp.pop %v7878
    %v7895 = vmul.f32 1.0, %v7894
    %v7896 = vrcp.pop %v7879
    %v7897 = vmul.f32 1.0, %v7896
    %v7898 = vrcp.pop %v7880
    %v7899 = vmul.f32 1.0, %v7898
    %v7900 = vrcp.pop %v7881
    %v7901 = vmul.f32 1.0, %v7900
    %v7902 = vrcp.pop %v7882
    %v7903 = vmul.f32 1.0, %v7902
    %v7904 = vrcp.pop %v7883
    %v7905 = vmul.f32 1.0, %v7904
    %v7906 = vrcp.pop %v7884
    %v7907 = vmul.f32 1.0, %v7906
    %v7908 = vrcp.pop %v7885
    %v7909 = vmul.f32 1.0, %v7908
    %v7910 = vtanh.pop %v7830
    %v7911 = vtanh.pop %v7832
    %v7912 = vtanh.pop %v7834
    %v7913 = vtanh.pop %v7836
    %v7914 = vmul.f32 %v7891, %v6872
    %v7915 = vmul.f32 %v7893, %v6873
    %v7916 = vmul.f32 %v7903, %v6874
    %v7917 = vmul.f32 %v7905, %v6875
    %v7918 = vmul.f32 %v7887, %v7910
    %v7919 = vmul.f32 %v7889, %v7911
    %v7920 = vmul.f32 %v7899, %v7912
    %v7921 = vmul.f32 %v7901, %v7913
    %v7922 = vadd.f32 %v7914, %v7918
    %v7923 = vadd.f32 %v7915, %v7919
    %v7924 = vadd.f32 %v7916, %v7920
    %v7925 = vadd.f32 %v7917, %v7921
    %v7926 = vtanh.pop %v7922
    %v7927 = vtanh.pop %v7923
    %v7928 = vtanh.pop %v7924
    %v7929 = vtanh.pop %v7925
    %v7930 = vmul.f32 %v7895, %v7926
    %v7931 = vmul.f32 %v7897, %v7927
    %v7932 = vmul.f32 %v7907, %v7928
    %v7933 = vmul.f32 %v7909, %v7929
    %v7934 = vpack.c.bf16 %v7932, %v7930
    %v7935 = vpack.c.bf16 %v7933, %v7931
    %v7938 = vunpack.c.l.b16 %v7934
    %v7939 = vunpack.c.l.b16 %v7935
    %v7940 = vunpack.c.h.b16 %v7934
    %v7941 = vunpack.c.h.b16 %v7935
    %v7942 = vpack.c.b16 %v7939, %v7938
    %v7943 = vpack.c.b16 %v7941, %v7940
    %7946 = vst [vmem:[#allocation3 + $0x10] sm:$0xff] %v7942
    %7947 = vst [vmem:[#allocation3 + $0x28] sm:$0xff] %v7943
    %s7948 = smul.u32 4, 96
    %s7949 = smul.u32 %s7948, 1
    %s7950 = sshll.u32 %s7949, 4
    %7951 = dma.done %s102, %s7950
    %v7952 = vld [vmem:[#allocation3] sm:$0xff]
    %v7953 = vld [vmem:[#allocation3 + $0x8] sm:$0xff]
    %v7954 = vld [vmem:[#allocation3 + $0x10] sm:$0xff]
    %v7955 = vld [vmem:[#allocation3 + $0x18] sm:$0xff]
    %v7956 = vld [vmem:[#allocation3 + $0x20] sm:$0xff]
    %v7957 = vld [vmem:[#allocation3 + $0x28] sm:$0xff]
    %v7958 = vld [vmem:[#allocation5] sm:$0xf]
    %v7959 = vld [vmem:[#allocation5 + $0x4] sm:$0xf]
    %v7960 = vld [vmem:[#allocation5 + $0x8] sm:$0xf]
    %v7961 = vld [vmem:[#allocation5 + $0xc] sm:$0xf]
    %v7962 = vld [vmem:[#allocation5 + $0x10] sm:$0xf]
    %v7963 = vld [vmem:[#allocation5 + $0x14] sm:$0xf]
    %v7964 = vld [vmem:[#allocation5 + $0x18] sm:$0xf]
    %v7965 = vld [vmem:[#allocation5 + $0x1c] sm:$0xf]
    %v7966 = vld [vmem:[#allocation5 + $0x20] sm:$0xf]
    %v7967 = vld [vmem:[#allocation5 + $0x24] sm:$0xf]
    %v7968 = vld [vmem:[#allocation5 + $0x28] sm:$0xf]
    %v7969 = vld [vmem:[#allocation5 + $0x2c] sm:$0xf]
    %v7970 = vld [vmem:[#allocation5 + $0x30] sm:$0xf]
    %v7971 = vld [vmem:[#allocation5 + $0x34] sm:$0xf]
    %v7972 = vld [vmem:[#allocation5 + $0x38] sm:$0xf]
    %v7973 = vld [vmem:[#allocation5 + $0x3c] sm:$0xf]
    %v7974 = vld [vmem:[#allocation5 + $0x40] sm:$0xf]
    %v7975 = vld [vmem:[#allocation5 + $0x44] sm:$0xf]
    %v7976 = vld [vmem:[#allocation5 + $0x48] sm:$0xf]
    %v7977 = vld [vmem:[#allocation5 + $0x4c] sm:$0xf]
    %v7978 = vld [vmem:[#allocation5 + $0x50] sm:$0xf]
    %v7979 = vld [vmem:[#allocation5 + $0x54] sm:$0xf]
    %v7980 = vld [vmem:[#allocation5 + $0x58] sm:$0xf]
    %v7981 = vld [vmem:[#allocation5 + $0x5c] sm:$0xf]
    %v7982 = vld [vmem:[#allocation5 + $0x60] sm:$0xf]
    %v7983 = vld [vmem:[#allocation5 + $0x64] sm:$0xf]
    %v7984 = vld [vmem:[#allocation5 + $0x68] sm:$0xf]
    %v7985 = vld [vmem:[#allocation5 + $0x6c] sm:$0xf]
    %v7986 = vld [vmem:[#allocation5 + $0x70] sm:$0xf]
    %v7987 = vld [vmem:[#allocation5 + $0x74] sm:$0xf]
    %v7988 = vld [vmem:[#allocation5 + $0x78] sm:$0xf]
    %v7989 = vld [vmem:[#allocation5 + $0x7c] sm:$0xf]
    %v7990 = vld [vmem:[#allocation5 + $0x80] sm:$0xf]
    %v7991 = vld [vmem:[#allocation5 + $0x84] sm:$0xf]
    %v7992 = vld [vmem:[#allocation5 + $0x88] sm:$0xf]
    %v7993 = vld [vmem:[#allocation5 + $0x8c] sm:$0xf]
    %v7994 = vld [vmem:[#allocation5 + $0x90] sm:$0xf]
    %v7995 = vld [vmem:[#allocation5 + $0x94] sm:$0xf]
    %v7996 = vld [vmem:[#allocation5 + $0x98] sm:$0xf]
    %v7997 = vld [vmem:[#allocation5 + $0x9c] sm:$0xf]
    %v7998 = vld [vmem:[#allocation5 + $0xa0] sm:$0xf]
    %v7999 = vld [vmem:[#allocation5 + $0xa4] sm:$0xf]
    %v8000 = vld [vmem:[#allocation5 + $0xa8] sm:$0xf]
    %v8001 = vld [vmem:[#allocation5 + $0xac] sm:$0xf]
    %v8002 = vld [vmem:[#allocation5 + $0xb0] sm:$0xf]
    %v8003 = vld [vmem:[#allocation5 + $0xb4] sm:$0xf]
    %v8004 = vld [vmem:[#allocation5 + $0xb8] sm:$0xf]
    %v8005 = vld [vmem:[#allocation5 + $0xbc] sm:$0xf]
    %v8006 = vld [vmem:[#allocation5 + $0xc0] sm:$0xf]
    %v8007 = vld [vmem:[#allocation5 + $0xc4] sm:$0xf]
    %v8008 = vld [vmem:[#allocation5 + $0xc8] sm:$0xf]
    %v8009 = vld [vmem:[#allocation5 + $0xcc] sm:$0xf]
    %v8010 = vld [vmem:[#allocation5 + $0xd0] sm:$0xf]
    %v8011 = vld [vmem:[#allocation5 + $0xd4] sm:$0xf]
    %v8012 = vld [vmem:[#allocation5 + $0xd8] sm:$0xf]
    %v8013 = vld [vmem:[#allocation5 + $0xdc] sm:$0xf]
    %v8014 = vld [vmem:[#allocation5 + $0xe0] sm:$0xf]
    %v8015 = vld [vmem:[#allocation5 + $0xe4] sm:$0xf]
    %v8016 = vld [vmem:[#allocation5 + $0xe8] sm:$0xf]
    %v8017 = vld [vmem:[#allocation5 + $0xec] sm:$0xf]
    %v8018 = vld [vmem:[#allocation5 + $0xf0] sm:$0xf]
    %v8019 = vld [vmem:[#allocation5 + $0xf4] sm:$0xf]
    %v8020 = vld [vmem:[#allocation5 + $0xf8] sm:$0xf]
    %v8021 = vld [vmem:[#allocation5 + $0xfc] sm:$0xf]
    %v8022 = vld [vmem:[#allocation5 + $0x100] sm:$0xf]
    %v8023 = vld [vmem:[#allocation5 + $0x104] sm:$0xf]
    %v8024 = vld [vmem:[#allocation5 + $0x108] sm:$0xf]
    %v8025 = vld [vmem:[#allocation5 + $0x10c] sm:$0xf]
    %v8026 = vld [vmem:[#allocation5 + $0x110] sm:$0xf]
    %v8027 = vld [vmem:[#allocation5 + $0x114] sm:$0xf]
    %v8028 = vld [vmem:[#allocation5 + $0x118] sm:$0xf]
    %v8029 = vld [vmem:[#allocation5 + $0x11c] sm:$0xf]
    %v8030 = vld [vmem:[#allocation5 + $0x120] sm:$0xf]
    %v8031 = vld [vmem:[#allocation5 + $0x124] sm:$0xf]
    %v8032 = vld [vmem:[#allocation5 + $0x128] sm:$0xf]
    %v8033 = vld [vmem:[#allocation5 + $0x12c] sm:$0xf]
    %v8034 = vld [vmem:[#allocation5 + $0x130] sm:$0xf]
    %v8035 = vld [vmem:[#allocation5 + $0x134] sm:$0xf]
    %v8036 = vld [vmem:[#allocation5 + $0x138] sm:$0xf]
    %v8037 = vld [vmem:[#allocation5 + $0x13c] sm:$0xf]
    %v8038 = vld [vmem:[#allocation5 + $0x140] sm:$0xf]
    %v8039 = vld [vmem:[#allocation5 + $0x144] sm:$0xf]
    %v8040 = vld [vmem:[#allocation5 + $0x148] sm:$0xf]
    %v8041 = vld [vmem:[#allocation5 + $0x14c] sm:$0xf]
    %v8042 = vld [vmem:[#allocation5 + $0x150] sm:$0xf]
    %v8043 = vld [vmem:[#allocation5 + $0x154] sm:$0xf]
    %v8044 = vld [vmem:[#allocation5 + $0x158] sm:$0xf]
    %v8045 = vld [vmem:[#allocation5 + $0x15c] sm:$0xf]
    %v8046 = vld [vmem:[#allocation5 + $0x160] sm:$0xf]
    %v8047 = vld [vmem:[#allocation5 + $0x164] sm:$0xf]
    %v8048 = vld [vmem:[#allocation5 + $0x168] sm:$0xf]
    %v8049 = vld [vmem:[#allocation5 + $0x16c] sm:$0xf]
    %v8050 = vld [vmem:[#allocation5 + $0x170] sm:$0xf]
    %v8051 = vld [vmem:[#allocation5 + $0x174] sm:$0xf]
    %v8052 = vld [vmem:[#allocation5 + $0x178] sm:$0xf]
    %v8053 = vld [vmem:[#allocation5 + $0x17c] sm:$0xf]
    %v8054 = vld [vmem:[%s5] sm:$0x1]
    %v8056 = vlaneseq
    %v8057 = vshrl.u32 %v8056, 7
    %v8058 = vsub.s32 0, %v8057
    %v8059 = vrot.slane %v8054, %v8058
    %v8067 = vunpack.c.l.b16 %v7952
    %v8068 = vunpack.c.h.b16 %v7952
    %v8069 = vunpack.c.l.b16 %v7953
    %v8070 = vunpack.c.h.b16 %v7953
    %v8071 = vunpack.c.l.b16 %v7954
    %v8072 = vunpack.c.h.b16 %v7954
    %v8073 = vunpack.c.l.b16 %v7955
    %v8074 = vunpack.c.h.b16 %v7955
    %v8075 = vunpack.c.l.b16 %v7956
    %v8076 = vunpack.c.h.b16 %v7956
    %v8077 = vunpack.c.l.b16 %v7957
    %v8078 = vunpack.c.h.b16 %v7957
    %v8079 = vpack.c.b16 %v8073, %v8067
    %v8080 = vpack.c.b16 %v8074, %v8068
    %v8081 = vpack.c.b16 %v8075, %v8069
    %v8082 = vpack.c.b16 %v8076, %v8070
    %v8083 = vpack.c.b16 %v8077, %v8071
    %v8084 = vpack.c.b16 %v8078, %v8072
    %v8187 = vunpack.c.l.b16 %v7958
    %v8188 = vunpack.c.l.b16 %v7959
    %v8189 = vunpack.c.l.b16 %v7960
    %v8190 = vunpack.c.l.b16 %v7961
    %v8191 = vunpack.c.l.b16 %v7962
    %v8192 = vunpack.c.l.b16 %v7963
    %v8193 = vunpack.c.l.b16 %v7964
    %v8194 = vunpack.c.l.b16 %v7965
    %v8195 = vunpack.c.l.b16 %v7966
    %v8196 = vunpack.c.l.b16 %v7967
    %v8197 = vunpack.c.l.b16 %v7968
    %v8198 = vunpack.c.l.b16 %v7969
    %v8199 = vunpack.c.l.b16 %v7970
    %v8200 = vunpack.c.l.b16 %v7971
    %v8201 = vunpack.c.l.b16 %v7972
    %v8202 = vunpack.c.l.b16 %v7973
    %v8203 = vunpack.c.l.b16 %v7974
    %v8204 = vunpack.c.l.b16 %v7975
    %v8205 = vunpack.c.l.b16 %v7976
    %v8206 = vunpack.c.l.b16 %v7977
    %v8207 = vunpack.c.l.b16 %v7978
    %v8208 = vunpack.c.l.b16 %v7979
    %v8209 = vunpack.c.l.b16 %v7980
    %v8210 = vunpack.c.l.b16 %v7981
    %v8211 = vunpack.c.l.b16 %v7982
    %v8212 = vunpack.c.l.b16 %v7983
    %v8213 = vunpack.c.l.b16 %v7984
    %v8214 = vunpack.c.l.b16 %v7985
    %v8215 = vunpack.c.l.b16 %v7986
    %v8216 = vunpack.c.l.b16 %v7987
    %v8217 = vunpack.c.l.b16 %v7988
    %v8218 = vunpack.c.l.b16 %v7989
    %v8219 = vunpack.c.l.b16 %v7990
    %v8220 = vunpack.c.l.b16 %v7991
    %v8221 = vunpack.c.l.b16 %v7992
    %v8222 = vunpack.c.l.b16 %v7993
    %v8223 = vunpack.c.l.b16 %v7994
    %v8224 = vunpack.c.l.b16 %v7995
    %v8225 = vunpack.c.l.b16 %v7996
    %v8226 = vunpack.c.l.b16 %v7997
    %v8227 = vunpack.c.l.b16 %v7998
    %v8228 = vunpack.c.l.b16 %v7999
    %v8229 = vunpack.c.l.b16 %v8000
    %v8230 = vunpack.c.l.b16 %v8001
    %v8231 = vunpack.c.l.b16 %v8002
    %v8232 = vunpack.c.l.b16 %v8003
    %v8233 = vunpack.c.l.b16 %v8004
    %v8234 = vunpack.c.l.b16 %v8005
    %v8235 = vunpack.c.l.b16 %v8006
    %v8236 = vunpack.c.l.b16 %v8007
    %v8237 = vunpack.c.l.b16 %v8008
    %v8238 = vunpack.c.l.b16 %v8009
    %v8239 = vunpack.c.l.b16 %v8010
    %v8240 = vunpack.c.l.b16 %v8011
    %v8241 = vunpack.c.l.b16 %v8012
    %v8242 = vunpack.c.l.b16 %v8013
    %v8243 = vunpack.c.l.b16 %v8014
    %v8244 = vunpack.c.l.b16 %v8015
    %v8245 = vunpack.c.l.b16 %v8016
    %v8246 = vunpack.c.l.b16 %v8017
    %v8247 = vunpack.c.l.b16 %v8018
    %v8248 = vunpack.c.l.b16 %v8019
    %v8249 = vunpack.c.l.b16 %v8020
    %v8250 = vunpack.c.l.b16 %v8021
    %v8251 = vunpack.c.l.b16 %v8022
    %v8252 = vunpack.c.l.b16 %v8023
    %v8253 = vunpack.c.l.b16 %v8024
    %v8254 = vunpack.c.l.b16 %v8025
    %v8255 = vunpack.c.l.b16 %v8026
    %v8256 = vunpack.c.l.b16 %v8027
    %v8257 = vunpack.c.l.b16 %v8028
    %v8258 = vunpack.c.l.b16 %v8029
    %v8259 = vunpack.c.l.b16 %v8030
    %v8260 = vunpack.c.l.b16 %v8031
    %v8261 = vunpack.c.l.b16 %v8032
    %v8262 = vunpack.c.l.b16 %v8033
    %v8263 = vunpack.c.l.b16 %v8034
    %v8264 = vunpack.c.l.b16 %v8035
    %v8265 = vunpack.c.l.b16 %v8036
    %v8266 = vunpack.c.l.b16 %v8037
    %v8267 = vunpack.c.l.b16 %v8038
    %v8268 = vunpack.c.l.b16 %v8039
    %v8269 = vunpack.c.l.b16 %v8040
    %v8270 = vunpack.c.l.b16 %v8041
    %v8271 = vunpack.c.l.b16 %v8042
    %v8272 = vunpack.c.l.b16 %v8043
    %v8273 = vunpack.c.l.b16 %v8044
    %v8274 = vunpack.c.l.b16 %v8045
    %v8275 = vunpack.c.l.b16 %v8046
    %v8276 = vunpack.c.l.b16 %v8047
    %v8277 = vunpack.c.l.b16 %v8048
    %v8278 = vunpack.c.l.b16 %v8049
    %v8279 = vunpack.c.l.b16 %v8050
    %v8280 = vunpack.c.l.b16 %v8051
    %v8281 = vunpack.c.l.b16 %v8052
    %v8282 = vunpack.c.l.b16 %v8053
    %v8283 = vpack.c.b16 %v8188, %v8187
    %v8284 = vpack.c.b16 %v8190, %v8189
    %v8285 = vpack.c.b16 %v8192, %v8191
    %v8286 = vpack.c.b16 %v8194, %v8193
    %v8287 = vpack.c.b16 %v8196, %v8195
    %v8288 = vpack.c.b16 %v8198, %v8197
    %v8289 = vpack.c.b16 %v8200, %v8199
    %v8290 = vpack.c.b16 %v8202, %v8201
    %v8291 = vpack.c.b16 %v8204, %v8203
    %v8292 = vpack.c.b16 %v8206, %v8205
    %v8293 = vpack.c.b16 %v8208, %v8207
    %v8294 = vpack.c.b16 %v8210, %v8209
    %v8295 = vpack.c.b16 %v8212, %v8211
    %v8296 = vpack.c.b16 %v8214, %v8213
    %v8297 = vpack.c.b16 %v8216, %v8215
    %v8298 = vpack.c.b16 %v8218, %v8217
    %v8299 = vpack.c.b16 %v8220, %v8219
    %v8300 = vpack.c.b16 %v8222, %v8221
    %v8301 = vpack.c.b16 %v8224, %v8223
    %v8302 = vpack.c.b16 %v8226, %v8225
    %v8303 = vpack.c.b16 %v8228, %v8227
    %v8304 = vpack.c.b16 %v8230, %v8229
    %v8305 = vpack.c.b16 %v8232, %v8231
    %v8306 = vpack.c.b16 %v8234, %v8233
    %v8307 = vpack.c.b16 %v8236, %v8235
    %v8308 = vpack.c.b16 %v8238, %v8237
    %v8309 = vpack.c.b16 %v8240, %v8239
    %v8310 = vpack.c.b16 %v8242, %v8241
    %v8311 = vpack.c.b16 %v8244, %v8243
    %v8312 = vpack.c.b16 %v8246, %v8245
    %v8313 = vpack.c.b16 %v8248, %v8247
    %v8314 = vpack.c.b16 %v8250, %v8249
    %v8315 = vpack.c.b16 %v8252, %v8251
    %v8316 = vpack.c.b16 %v8254, %v8253
    %v8317 = vpack.c.b16 %v8256, %v8255
    %v8318 = vpack.c.b16 %v8258, %v8257
    %v8319 = vpack.c.b16 %v8260, %v8259
    %v8320 = vpack.c.b16 %v8262, %v8261
    %v8321 = vpack.c.b16 %v8264, %v8263
    %v8322 = vpack.c.b16 %v8266, %v8265
    %v8323 = vpack.c.b16 %v8268, %v8267
    %v8324 = vpack.c.b16 %v8270, %v8269
    %v8325 = vpack.c.b16 %v8272, %v8271
    %v8326 = vpack.c.b16 %v8274, %v8273
    %v8327 = vpack.c.b16 %v8276, %v8275
    %v8328 = vpack.c.b16 %v8278, %v8277
    %v8329 = vpack.c.b16 %v8280, %v8279
    %v8330 = vpack.c.b16 %v8282, %v8281
    %8379 = vmatprep.subr.bf16.mxu0 0
    %8380 = vmatpush1.bf16.msra.mxu0 %v8290
    %8381 = vmatprep.subr.bf16.mxu0 0
    %8382 = vmatpush1.bf16.msra.mxu0 %v8289
    %8383 = vmatprep.subr.bf16.mxu0 0
    %8384 = vmatpush1.bf16.msra.mxu0 %v8288
    %8385 = vmatprep.subr.bf16.mxu0 0
    %8386 = vmatpush1.bf16.msra.mxu0 %v8287
    %8387 = vmatprep.subr.bf16.mxu0 0
    %8388 = vmatpush1.bf16.msra.mxu0 %v8286
    %8389 = vmatprep.subr.bf16.mxu0 0
    %8390 = vmatpush1.bf16.msra.mxu0 %v8285
    %8391 = vmatprep.subr.bf16.mxu0 0
    %8392 = vmatpush1.bf16.msra.mxu0 %v8284
    %8393 = vmatprep.subr.bf16.mxu0 0
    %8394 = vmatpush1.bf16.msra.mxu0 %v8283
    %8395 = vmatprep.subr.bf16.mxu0 0
    %8396 = vmatpush2.bf16.msra.mxu0 %v8298
    %8397 = vmatprep.subr.bf16.mxu0 0
    %8398 = vmatpush2.bf16.msra.mxu0 %v8297
    %8399 = vmatprep.subr.bf16.mxu0 0
    %8400 = vmatpush2.bf16.msra.mxu0 %v8296
    %8401 = vmatprep.subr.bf16.mxu0 0
    %8402 = vmatpush2.bf16.msra.mxu0 %v8295
    %8403 = vmatprep.subr.bf16.mxu0 0
    %8404 = vmatpush2.bf16.msra.mxu0 %v8294
    %8405 = vmatprep.subr.bf16.mxu0 0
    %8406 = vmatpush2.bf16.msra.mxu0 %v8293
    %8407 = vmatprep.subr.bf16.mxu0 0
    %8408 = vmatpush2.bf16.msra.mxu0 %v8292
    %8409 = vmatprep.subr.bf16.mxu0 0
    %8410 = vmatpush2.bf16.msra.mxu0 %v8291
    %8411 = vmatprep.mubr.bf16.mxu0 %v8080
    %8412 = vmatmul.mubr.bf16.gmra.mxu0 %v8079
    %v8413 = vpop.f32.mrf.mxu0
    %v8414 = vadd.f32 %v8059, %v8413
    %v8415 = vpop.f32.mrf.mxu0
    %v8416 = vpop.f32.mrf.mxu0
    %v8417 = vadd.f32 %v8059, %v8416
    %v8418 = vpop.f32.mrf.mxu0
    %8419 = vdwg.mxu0
    %8420 = vmatprep.subr.bf16.mxu0 0
    %8421 = vmatpush1.bf16.msra.mxu0 %v8306
    %8422 = vmatprep.subr.bf16.mxu0 0
    %8423 = vmatpush1.bf16.msra.mxu0 %v8305
    %8424 = vmatprep.subr.bf16.mxu0 0
    %8425 = vmatpush1.bf16.msra.mxu0 %v8304
    %8426 = vmatprep.subr.bf16.mxu0 0
    %8427 = vmatpush1.bf16.msra.mxu0 %v8303
    %8428 = vmatprep.subr.bf16.mxu0 0
    %8429 = vmatpush1.bf16.msra.mxu0 %v8302
    %8430 = vmatprep.subr.bf16.mxu0 0
    %8431 = vmatpush1.bf16.msra.mxu0 %v8301
    %8432 = vmatprep.subr.bf16.mxu0 0
    %8433 = vmatpush1.bf16.msra.mxu0 %v8300
    %8434 = vmatprep.subr.bf16.mxu0 0
    %8435 = vmatpush1.bf16.msra.mxu0 %v8299
    %8436 = vmatprep.subr.bf16.mxu0 0
    %8437 = vmatpush2.bf16.msra.mxu0 %v8314
    %8438 = vmatprep.subr.bf16.mxu0 0
    %8439 = vmatpush2.bf16.msra.mxu0 %v8313
    %8440 = vmatprep.subr.bf16.mxu0 0
    %8441 = vmatpush2.bf16.msra.mxu0 %v8312
    %8442 = vmatprep.subr.bf16.mxu0 0
    %8443 = vmatpush2.bf16.msra.mxu0 %v8311
    %8444 = vmatprep.subr.bf16.mxu0 0
    %8445 = vmatpush2.bf16.msra.mxu0 %v8310
    %8446 = vmatprep.subr.bf16.mxu0 0
    %8447 = vmatpush2.bf16.msra.mxu0 %v8309
    %8448 = vmatprep.subr.bf16.mxu0 0
    %8449 = vmatpush2.bf16.msra.mxu0 %v8308
    %8450 = vmatprep.subr.bf16.mxu0 0
    %8451 = vmatpush2.bf16.msra.mxu0 %v8307
    %8452 = vmatprep.mubr.bf16.mxu0 %v8082
    %8453 = vmatmul.mubr.bf16.gmra.mxu0 %v8081
    %v8454 = vpop.f32.mrf.mxu0
    %v8455 = vadd.f32 %v8414, %v8454
    %v8456 = vpop.f32.mrf.mxu0
    %v8457 = vpop.f32.mrf.mxu0
    %v8458 = vadd.f32 %v8417, %v8457
    %v8459 = vpop.f32.mrf.mxu0
    %8460 = vdwg.mxu0
    %8461 = vmatprep.subr.bf16.mxu0 0
    %8462 = vmatpush1.bf16.msra.mxu0 %v8322
    %8463 = vmatprep.subr.bf16.mxu0 0
    %8464 = vmatpush1.bf16.msra.mxu0 %v8321
    %8465 = vmatprep.subr.bf16.mxu0 0
    %8466 = vmatpush1.bf16.msra.mxu0 %v8320
    %8467 = vmatprep.subr.bf16.mxu0 0
    %8468 = vmatpush1.bf16.msra.mxu0 %v8319
    %8469 = vmatprep.subr.bf16.mxu0 0
    %8470 = vmatpush1.bf16.msra.mxu0 %v8318
    %8471 = vmatprep.subr.bf16.mxu0 0
    %8472 = vmatpush1.bf16.msra.mxu0 %v8317
    %8473 = vmatprep.subr.bf16.mxu0 0
    %8474 = vmatpush1.bf16.msra.mxu0 %v8316
    %8475 = vmatprep.subr.bf16.mxu0 0
    %8476 = vmatpush1.bf16.msra.mxu0 %v8315
    %8477 = vmatprep.subr.bf16.mxu0 0
    %8478 = vmatpush2.bf16.msra.mxu0 %v8330
    %8479 = vmatprep.subr.bf16.mxu0 0
    %8480 = vmatpush2.bf16.msra.mxu0 %v8329
    %8481 = vmatprep.subr.bf16.mxu0 0
    %8482 = vmatpush2.bf16.msra.mxu0 %v8328
    %8483 = vmatprep.subr.bf16.mxu0 0
    %8484 = vmatpush2.bf16.msra.mxu0 %v8327
    %8485 = vmatprep.subr.bf16.mxu0 0
    %8486 = vmatpush2.bf16.msra.mxu0 %v8326
    %8487 = vmatprep.subr.bf16.mxu0 0
    %8488 = vmatpush2.bf16.msra.mxu0 %v8325
    %8489 = vmatprep.subr.bf16.mxu0 0
    %8490 = vmatpush2.bf16.msra.mxu0 %v8324
    %8491 = vmatprep.subr.bf16.mxu0 0
    %8492 = vmatpush2.bf16.msra.mxu0 %v8323
    %8493 = vmatprep.mubr.bf16.mxu0 %v8084
    %8494 = vmatmul.mubr.bf16.gmra.mxu0 %v8083
    %v8495 = vpop.f32.mrf.mxu0
    %v8496 = vadd.f32 %v8455, %v8495
    %v8497 = vpop.f32.mrf.mxu0
    %v8498 = vpop.f32.mrf.mxu0
    %v8499 = vadd.f32 %v8458, %v8498
    %v8500 = vpop.f32.mrf.mxu0
    %8501 = vdwg.mxu0
    %8502 = vst [vmem:[#allocation16] sm:$0xff] %v8496
    %8503 = vst [vmem:[#allocation16 + $0x8] sm:$0xff] %v8499
    // Predicated region
    $region54: #{tpu_custom_call.1} parent=1 // pred_check
      _
    $region55: #{tpu_custom_call.1} parent=1 // pred_check_branch
      %8505 = sbr.rel (0) target = $region57
    $region56: #{tpu_custom_call.1} parent=1 // pred_region
      %s8507 = ssub.s32 256, 256
      %8508 = vsyncadd [#allocation9], %s8507
      %s8509 = sshll.u32 [#allocation16], 4
      %s8510 = int_to_ptr.vmem [resolvable:$true] %s8509
      %8515 = dma.vmem_to_hbm [thread:$0]  %s8510, 256, %s8, [#allocation9], 128, 128, 8
    $region57: #{tpu_custom_call.1} parent=1 // pred_fallthru
      _
    // Predicated region
    $region58: #{tpu_custom_call.1} parent=1 // pred_check
      _
    $region59: #{tpu_custom_call.1} parent=1 // pred_check_branch
      %8517 = sbr.rel (0) target = $region61
    $region60: #{tpu_custom_call.1} parent=1 // pred_region
      %8518 = dma.done [#allocation9], 256
    $region61: #{tpu_custom_call.1} parent=1 // pred_fallthru
      _
    %8519 = vsyncpa [#allocation8], 1
    %8520 = vsyncpa [#allocation11], 1
    %8521 = vsyncpa [#allocation14], 1
    %8522 = vsyncpa [#allocation9], 1
  %8523 = vsyncmov [#allocation6]
  %s8524 = vpop.sfrf %8523
  %p8525 = scmp.eq.s32.totalorder %s8524, 0
  %p8526 = pneg %p8525
  %8528 = shalt.err (%p8526)
  %s8529 = scalar_lea.sflag [#allocation6], 1
  %8530 = vsyncmov %s8529
  %s8531 = vpop.sfrf %8530
  %p8532 = scmp.eq.s32.totalorder %s8531, 0
  %p8533 = pneg %p8532
  %8535 = shalt.err (%p8533)

</llo_original>
